<compile_context>
chip_gen: v7x
topology: tpu7x:2x2x1
jax: 0.10.0
libtpu: 0.0.40
codegen_flags: <defaults>
</compile_context>

<pallas_src>
import functools

import jax
import jax.numpy as jnp
from jax.experimental import pallas as pl
from jax.experimental.pallas import tpu as pltpu

HIDDEN = 32          # hidden_dim argument of the module
RNN_H = 128          # self.rnn_hidden_dim
NUM_RNN_LAYERS = 4   # self.num_rnn_layers
LANE = 128
SUBLANE = 8


def _lstm_classifier_kernel(T, B_pad,
                            x_ref,       # (T*B_pad, HIDDEN)  embedding layer-0 output
                            w32_ref,     # (6, HIDDEN, HIDDEN): we1..we4, wf1, wf2
                            b32_ref,     # (7, HIDDEN):         be1..be4, bf0, bf1, bf2
                            wih0_ref,    # (HIDDEN, 4*RNN_H)
                            lstm_w_ref,  # (7, RNN_H, 4*RNN_H): whh0..whh3, wih1..wih3
                            lstm_b_ref,  # (4, 4*RNN_H)         combined b_ih + b_hh
                            wf0_ref,     # (RNN_H, HIDDEN)
                            wf3_ref,     # (HIDDEN, LANE)       zero-padded beyond col 2
                            bf3_ref,     # (1, LANE)            zero-padded beyond col 2
                            out_ref):    # (B_pad, LANE)
    relu = lambda v: jnp.maximum(v, 0.0)
    dot = lambda a, b: jnp.dot(a, b, preferred_element_type=jnp.float32)

    # ---- embedding MLP layers 1..4, applied to all T*B_pad tokens at once ----
    h = x_ref[...]                                            # (T*B_pad, HIDDEN)
    for i in range(4):
        h = relu(dot(h, w32_ref[i]) + b32_ref[i:i + 1, :])

    # ---- 4-layer LSTM (batch_first, zero init h/c), PyTorch gate order i,f,g,o ----
    xs_all = h                                                # (T*B_pad, in_dim)
    hs = None
    for l in range(NUM_RNN_LAYERS):
        whh = lstm_w_ref[l]                                   # (RNN_H, 4*RNN_H)
        wih = wih0_ref[...] if l == 0 else lstm_w_ref[3 + l]  # (in_dim, 4*RNN_H)
        bl = lstm_b_ref[l:l + 1, :]                           # (1, 4*RNN_H)

        # Hoisted input-to-hidden projection + bias: one big matmul per layer.
        gates_x = dot(xs_all, wih) + bl                       # (T*B_pad, 4*RNN_H)

        hs = jnp.zeros((B_pad, RNN_H), jnp.float32)
        cs = jnp.zeros((B_pad, RNN_H), jnp.float32)
        outs = []
        for t in range(T):
            # tile-aligned static slice (B_pad is a multiple of 8, lanes full 512)
            gates = gates_x[t * B_pad:(t + 1) * B_pad, :] + dot(hs, whh)
            i_g = jax.nn.sigmoid(gates[:, 0 * RNN_H:1 * RNN_H])
            f_g = jax.nn.sigmoid(gates[:, 1 * RNN_H:2 * RNN_H])
            g_g = jnp.tanh(gates[:, 2 * RNN_H:3 * RNN_H])
            o_g = jax.nn.sigmoid(gates[:, 3 * RNN_H:4 * RNN_H])
            cs = f_g * cs + i_g * g_g
            hs = o_g * jnp.tanh(cs)
            outs.append(hs)
        if l < NUM_RNN_LAYERS - 1:
            xs_all = jnp.concatenate(outs, axis=0)            # (T*B_pad, RNN_H)

    # ---- classifier head on the top-layer hidden state at the last timestep ----
    y = hs                                                    # (B_pad, RNN_H)
    y = relu(dot(y, wf0_ref[...]) + b32_ref[4:5, :])          # fc0 + bf0
    y = relu(dot(y, w32_ref[4]) + b32_ref[5:6, :])            # fc1 + bf1
    y = relu(dot(y, w32_ref[5]) + b32_ref[6:7, :])            # fc2 + bf2
    out_ref[...] = dot(y, wf3_ref[...]) + bf3_ref[...]        # (B_pad, LANE)


def pack_params(params):
    """Concatenate the 31 per-tensor parameters into 9 VMEM slabs (host-side)."""
    (we0, be0, we1, be1, we2, be2, we3, be3, we4, be4,
     wih0, whh0, b0, wih1, whh1, b1, wih2, whh2, b2, wih3, whh3, b3,
     wf0, bf0, wf1, bf1, wf2, bf2, wf3, bf3) = params
    w32 = jnp.stack([we1, we2, we3, we4, wf1, wf2])                        # (6,32,32)
    b32 = jnp.concatenate([be1, be2, be3, be4, bf0, bf1, bf2], axis=0)     # (7,32)
    lstm_w = jnp.stack([whh0, whh1, whh2, whh3, wih1, wih2, wih3])         # (7,128,512)
    lstm_b = jnp.concatenate([b0, b1, b2, b3], axis=0)                     # (4,512)
    wf3p = jnp.zeros((HIDDEN, LANE), jnp.float32).at[:, :2].set(wf3)       # (32,128)
    bf3p = jnp.zeros((1, LANE), jnp.float32).at[:, :2].set(bf3)            # (1,128)
    return dict(we0=we0, be0=be0, w32=w32, b32=b32, wih0=wih0,
                lstm_w=lstm_w, lstm_b=lstm_b, wf0=wf0, wf3p=wf3p, bf3p=bf3p)


@jax.jit
def jihyeon_lstm_classifier(x, packed):
    """x: (B, 2, T) float32, matching the PyTorch module's NCL input layout."""
    B, C, T = x.shape
    assert C == 2
    B_pad = max(SUBLANE, ((B + SUBLANE - 1) // SUBLANE) * SUBLANE)

    # time-major rows: row index = t*B_pad + b; pad batch to the sublane tile.
    x_tm = jnp.transpose(x, (2, 0, 1))                                     # (T, B, 2)
    x_tm = jnp.pad(x_tm, ((0, 0), (0, B_pad - B), (0, 0)))                 # (T, B_pad, 2)
    x_flat = x_tm.reshape(T * B_pad, 2)

    # First Linear(2->HIDDEN)+ReLU done in the XLA wrapper to avoid the K=2
    # degenerate MXU op and the 2-lane input DMA inside the kernel.
    h0 = jnp.maximum(x_flat @ packed["we0"] + packed["be0"], 0.0)          # (T*B_pad, 32)

    inputs = [h0, packed["w32"], packed["b32"], packed["wih0"],
              packed["lstm_w"], packed["lstm_b"], packed["wf0"],
              packed["wf3p"], packed["bf3p"]]
    kernel = functools.partial(_lstm_classifier_kernel, T, B_pad)
    out = pl.pallas_call(
        kernel,
        out_shape=jax.ShapeDtypeStruct((B_pad, LANE), jnp.float32),
        in_specs=[pl.BlockSpec(memory_space=pltpu.MemorySpace.VMEM)] * len(inputs),
        out_specs=pl.BlockSpec(memory_space=pltpu.MemorySpace.VMEM),
    )(*inputs)
    return out[:B, :2]                                                     # real logits


def init_params(key, hidden=HIDDEN, rnn_h=RNN_H):
    """Deterministic synthetic parameters matching the module's shapes."""
    keys = iter(jax.random.split(key, 64))
    gain = float(jnp.sqrt(2.0))

    def xavier(fan_in, fan_out):
        lim = gain * (6.0 / (fan_in + fan_out)) ** 0.5
        return jax.random.uniform(next(keys), (fan_in, fan_out), jnp.float32, -lim, lim)

    params = []
    # embedding: Linear(2,H) + 4x Linear(H,H); layer_init -> xavier weight, zero bias
    for fi, fo in [(2, hidden)] + [(hidden, hidden)] * 4:
        params += [xavier(fi, fo), jnp.zeros((1, fo), jnp.float32)]

    # LSTM: 4 layers; PyTorch default init uniform(-1/sqrt(H), 1/sqrt(H)); gate order i,f,g,o
    k = 1.0 / rnn_h ** 0.5
    for fi in [hidden, rnn_h, rnn_h, rnn_h]:
        wih = jax.random.uniform(next(keys), (fi, 4 * rnn_h), jnp.float32, -k, k)
        whh = jax.random.uniform(next(keys), (rnn_h, 4 * rnn_h), jnp.float32, -k, k)
        b_ih = jax.random.uniform(next(keys), (1, 4 * rnn_h), jnp.float32, -k, k)
        b_hh = jax.random.uniform(next(keys), (1, 4 * rnn_h), jnp.float32, -k, k)
        params += [wih, whh, b_ih + b_hh]

    # fc head: 3x layer_init Linear + final default-init Linear(H, 2)
    for fi, fo in [(rnn_h, hidden), (hidden, hidden), (hidden, hidden)]:
        params += [xavier(fi, fo), jnp.zeros((1, fo), jnp.float32)]
    kd = 1.0 / hidden ** 0.5
    params += [jax.random.uniform(next(keys), (hidden, 2), jnp.float32, -kd, kd),
               jax.random.uniform(next(keys), (1, 2), jnp.float32, -kd, kd)]
    return params


def reference_forward(x, params):
    """Pure-JAX reference reproducing the PyTorch forward semantics."""
    (we0, be0, we1, be1, we2, be2, we3, be3, we4, be4,
     wih0, whh0, bl0, wih1, whh1, bl1, wih2, whh2, bl2, wih3, whh3, bl3,
     wf0, bf0, wf1, bf1, wf2, bf2, wf3, bf3) = params
    B, _, T = x.shape
    relu = lambda v: jnp.maximum(v, 0.0)

    h = jnp.transpose(x, (0, 2, 1))                              # (B, T, 2)
    for w, b in ((we0, be0), (we1, be1), (we2, be2), (we3, be3), (we4, be4)):
        h = relu(h @ w + b)

    seq = h                                                      # (B, T, HIDDEN)
    hs = None
    for wih, whh, bl in ((wih0, whh0, bl0), (wih1, whh1, bl1),
                         (wih2, whh2, bl2), (wih3, whh3, bl3)):
        hs = jnp.zeros((B, RNN_H), jnp.float32)
        cs = jnp.zeros((B, RNN_H), jnp.float32)
        outs = []
        for t in range(T):
            gates = seq[:, t] @ wih + hs @ whh + bl
            i = jax.nn.sigmoid(gates[:, :RNN_H])
            f = jax.nn.sigmoid(gates[:, RNN_H:2 * RNN_H])
            g = jnp.tanh(gates[:, 2 * RNN_H:3 * RNN_H])
            o = jax.nn.sigmoid(gates[:, 3 * RNN_H:])
            cs = f * cs + i * g
            hs = o * jnp.tanh(cs)
            outs.append(hs)
        seq = jnp.stack(outs, axis=1)

    y = hs
    y = relu(y @ wf0 + bf0)
    y = relu(y @ wf1 + bf1)
    y = relu(y @ wf2 + bf2)
    return y @ wf3 + bf3


if __name__ == "__main__":
    key = jax.random.PRNGKey(0)
    pkey, xkey = jax.random.split(key)

    B, T = 2, 8
    params = init_params(pkey)
    packed = pack_params(params)
    x = jax.random.normal(xkey, (B, 2, T), jnp.float32)          # (N, C=2, L=T) like PyTorch

    out = jihyeon_lstm_classifier(x, packed)
    out = jax.block_until_ready(out)

    ref = reference_forward(x, params)
    assert out.shape == (B, 2)
    assert jnp.allclose(out, ref, atol=1e-3, rtol=1e-3), (out, ref)

    print("KERNEL_OK")
</pallas_src>

<mosaic_0001>
module attributes {stable_mosaic.version = 11 : i64} {
  func.func @_lstm_classifier_kernel(%arg0: memref<64x32xf32, #tpu.memory_space<vmem>>, %arg1: memref<6x32x32xf32, #tpu.memory_space<vmem>>, %arg2: memref<7x32xf32, #tpu.memory_space<vmem>>, %arg3: memref<32x512xf32, #tpu.memory_space<vmem>>, %arg4: memref<7x128x512xf32, #tpu.memory_space<vmem>>, %arg5: memref<4x512xf32, #tpu.memory_space<vmem>>, %arg6: memref<128x32xf32, #tpu.memory_space<vmem>>, %arg7: memref<32x128xf32, #tpu.memory_space<vmem>>, %arg8: memref<1x128xf32, #tpu.memory_space<vmem>>, %arg9: memref<8x128xf32, #tpu.memory_space<vmem>>) attributes {dimension_semantics = [], scalar_prefetch = 0 : i64, scratch_operands = 0 : i64, tpu.core_type = #tpu.core_type<tc>} {
    %c0 = arith.constant 0 : index
    %c0_0 = arith.constant 0 : index
    %0 = vector.load %arg0[%c0, %c0_0] : memref<64x32xf32, #tpu.memory_space<vmem>>, vector<64x32xf32>
    %c0_1 = arith.constant 0 : index
    %c0_2 = arith.constant 0 : index
    %c0_3 = arith.constant 0 : index
    %1 = vector.load %arg1[%c0_1, %c0_2, %c0_3] : memref<6x32x32xf32, #tpu.memory_space<vmem>>, vector<1x32x32xf32>
    %2 = vector.shape_cast %1 : vector<1x32x32xf32> to vector<32x32xf32>
    %cst = arith.constant dense<0.000000e+00> : vector<64x32xf32>
    %3 = tpu.matmul %0, %2, %cst {dimension_numbers = #tpu.dot_dimension_numbers<[1], [0], [0], [1], [0, 0, 1, 1], [], []>} : vector<64x32xf32>, vector<32x32xf32>, vector<64x32xf32> -> vector<64x32xf32>
    %c0_4 = arith.constant 0 : index
    %c0_5 = arith.constant 0 : index
    %4 = vector.load %arg2[%c0_4, %c0_5] : memref<7x32xf32, #tpu.memory_space<vmem>>, vector<1x32xf32>
    %5 = vector.broadcast %4 : vector<1x32xf32> to vector<64x32xf32>
    %6 = arith.addf %3, %5 : vector<64x32xf32>
    %cst_6 = arith.constant 0.000000e+00 : f32
    %7 = vector.broadcast %cst_6 : f32 to vector<64x32xf32>
    %8 = arith.maximumf %6, %7 : vector<64x32xf32>
    %c1 = arith.constant 1 : index
    %c0_7 = arith.constant 0 : index
    %c0_8 = arith.constant 0 : index
    %9 = vector.load %arg1[%c1, %c0_7, %c0_8] : memref<6x32x32xf32, #tpu.memory_space<vmem>>, vector<1x32x32xf32>
    %10 = vector.shape_cast %9 : vector<1x32x32xf32> to vector<32x32xf32>
    %cst_9 = arith.constant dense<0.000000e+00> : vector<64x32xf32>
    %11 = tpu.matmul %8, %10, %cst_9 {dimension_numbers = #tpu.dot_dimension_numbers<[1], [0], [0], [1], [0, 0, 1, 1], [], []>} : vector<64x32xf32>, vector<32x32xf32>, vector<64x32xf32> -> vector<64x32xf32>
    %c1_10 = arith.constant 1 : index
    %c0_11 = arith.constant 0 : index
    %12 = vector.load %arg2[%c1_10, %c0_11] : memref<7x32xf32, #tpu.memory_space<vmem>>, vector<1x32xf32>
    %13 = vector.broadcast %12 : vector<1x32xf32> to vector<64x32xf32>
    %14 = arith.addf %11, %13 : vector<64x32xf32>
    %cst_12 = arith.constant 0.000000e+00 : f32
    %15 = vector.broadcast %cst_12 : f32 to vector<64x32xf32>
    %16 = arith.maximumf %14, %15 : vector<64x32xf32>
    %c2 = arith.constant 2 : index
    %c0_13 = arith.constant 0 : index
    %c0_14 = arith.constant 0 : index
    %17 = vector.load %arg1[%c2, %c0_13, %c0_14] : memref<6x32x32xf32, #tpu.memory_space<vmem>>, vector<1x32x32xf32>
    %18 = vector.shape_cast %17 : vector<1x32x32xf32> to vector<32x32xf32>
    %cst_15 = arith.constant dense<0.000000e+00> : vector<64x32xf32>
    %19 = tpu.matmul %16, %18, %cst_15 {dimension_numbers = #tpu.dot_dimension_numbers<[1], [0], [0], [1], [0, 0, 1, 1], [], []>} : vector<64x32xf32>, vector<32x32xf32>, vector<64x32xf32> -> vector<64x32xf32>
    %c2_16 = arith.constant 2 : index
    %c0_17 = arith.constant 0 : index
    %20 = vector.load %arg2[%c2_16, %c0_17] : memref<7x32xf32, #tpu.memory_space<vmem>>, vector<1x32xf32>
    %21 = vector.broadcast %20 : vector<1x32xf32> to vector<64x32xf32>
    %22 = arith.addf %19, %21 : vector<64x32xf32>
    %cst_18 = arith.constant 0.000000e+00 : f32
    %23 = vector.broadcast %cst_18 : f32 to vector<64x32xf32>
    %24 = arith.maximumf %22, %23 : vector<64x32xf32>
    %c3 = arith.constant 3 : index
    %c0_19 = arith.constant 0 : index
    %c0_20 = arith.constant 0 : index
    %25 = vector.load %arg1[%c3, %c0_19, %c0_20] : memref<6x32x32xf32, #tpu.memory_space<vmem>>, vector<1x32x32xf32>
    %26 = vector.shape_cast %25 : vector<1x32x32xf32> to vector<32x32xf32>
    %cst_21 = arith.constant dense<0.000000e+00> : vector<64x32xf32>
    %27 = tpu.matmul %24, %26, %cst_21 {dimension_numbers = #tpu.dot_dimension_numbers<[1], [0], [0], [1], [0, 0, 1, 1], [], []>} : vector<64x32xf32>, vector<32x32xf32>, vector<64x32xf32> -> vector<64x32xf32>
    %c3_22 = arith.constant 3 : index
    %c0_23 = arith.constant 0 : index
    %28 = vector.load %arg2[%c3_22, %c0_23] : memref<7x32xf32, #tpu.memory_space<vmem>>, vector<1x32xf32>
    %29 = vector.broadcast %28 : vector<1x32xf32> to vector<64x32xf32>
    %30 = arith.addf %27, %29 : vector<64x32xf32>
    %cst_24 = arith.constant 0.000000e+00 : f32
    %31 = vector.broadcast %cst_24 : f32 to vector<64x32xf32>
    %32 = arith.maximumf %30, %31 : vector<64x32xf32>
    %c0_25 = arith.constant 0 : index
    %c0_26 = arith.constant 0 : index
    %c0_27 = arith.constant 0 : index
    %33 = vector.load %arg4[%c0_25, %c0_26, %c0_27] : memref<7x128x512xf32, #tpu.memory_space<vmem>>, vector<1x128x512xf32>
    %34 = vector.shape_cast %33 : vector<1x128x512xf32> to vector<128x512xf32>
    %c0_28 = arith.constant 0 : index
    %c0_29 = arith.constant 0 : index
    %35 = vector.load %arg3[%c0_28, %c0_29] : memref<32x512xf32, #tpu.memory_space<vmem>>, vector<32x512xf32>
    %c0_30 = arith.constant 0 : index
    %c0_31 = arith.constant 0 : index
    %36 = vector.load %arg5[%c0_30, %c0_31] : memref<4x512xf32, #tpu.memory_space<vmem>>, vector<1x512xf32>
    %cst_32 = arith.constant dense<0.000000e+00> : vector<64x512xf32>
    %37 = tpu.matmul %32, %35, %cst_32 {dimension_numbers = #tpu.dot_dimension_numbers<[1], [0], [0], [1], [0, 0, 1, 1], [], []>} : vector<64x32xf32>, vector<32x512xf32>, vector<64x512xf32> -> vector<64x512xf32>
    %38 = vector.broadcast %36 : vector<1x512xf32> to vector<64x512xf32>
    %39 = arith.addf %37, %38 : vector<64x512xf32>
    %cst_33 = arith.constant 0.000000e+00 : f32
    %40 = vector.broadcast %cst_33 : f32 to vector<8x128xf32>
    %cst_34 = arith.constant 0.000000e+00 : f32
    %41 = vector.broadcast %cst_34 : f32 to vector<8x128xf32>
    %42 = vector.extract_strided_slice %39 {offsets = [0, 0], sizes = [8, 512], strides = [1, 1]} : vector<64x512xf32> to vector<8x512xf32>
    %cst_35 = arith.constant dense<0.000000e+00> : vector<8x512xf32>
    %43 = tpu.matmul %40, %34, %cst_35 {dimension_numbers = #tpu.dot_dimension_numbers<[1], [0], [0], [1], [0, 0, 1, 1], [], []>} : vector<8x128xf32>, vector<128x512xf32>, vector<8x512xf32> -> vector<8x512xf32>
    %44 = arith.addf %42, %43 : vector<8x512xf32>
    %45 = vector.extract_strided_slice %44 {offsets = [0, 0], sizes = [8, 128], strides = [1, 1]} : vector<8x512xf32> to vector<8x128xf32>
    %46 = arith.negf %45 : vector<8x128xf32>
    %47 = math.exp %46 : vector<8x128xf32>
    %cst_36 = arith.constant 1.000000e+00 : f32
    %48 = vector.broadcast %cst_36 : f32 to vector<8x128xf32>
    %49 = arith.addf %48, %47 : vector<8x128xf32>
    %50 = arith.divf %48, %49 : vector<8x128xf32>
    %51 = vector.extract_strided_slice %44 {offsets = [0, 128], sizes = [8, 128], strides = [1, 1]} : vector<8x512xf32> to vector<8x128xf32>
    %52 = arith.negf %51 : vector<8x128xf32>
    %53 = math.exp %52 : vector<8x128xf32>
    %cst_37 = arith.constant 1.000000e+00 : f32
    %54 = vector.broadcast %cst_37 : f32 to vector<8x128xf32>
    %55 = arith.addf %54, %53 : vector<8x128xf32>
    %56 = arith.divf %54, %55 : vector<8x128xf32>
    %57 = vector.extract_strided_slice %44 {offsets = [0, 256], sizes = [8, 128], strides = [1, 1]} : vector<8x512xf32> to vector<8x128xf32>
    %58 = math.tanh %57 : vector<8x128xf32>
    %59 = vector.extract_strided_slice %44 {offsets = [0, 384], sizes = [8, 128], strides = [1, 1]} : vector<8x512xf32> to vector<8x128xf32>
    %60 = arith.negf %59 : vector<8x128xf32>
    %61 = math.exp %60 : vector<8x128xf32>
    %cst_38 = arith.constant 1.000000e+00 : f32
    %62 = vector.broadcast %cst_38 : f32 to vector<8x128xf32>
    %63 = arith.addf %62, %61 : vector<8x128xf32>
    %64 = arith.divf %62, %63 : vector<8x128xf32>
    %65 = arith.mulf %56, %41 : vector<8x128xf32>
    %66 = arith.mulf %50, %58 : vector<8x128xf32>
    %67 = arith.addf %65, %66 : vector<8x128xf32>
    %68 = math.tanh %67 : vector<8x128xf32>
    %69 = arith.mulf %64, %68 : vector<8x128xf32>
    %70 = vector.extract_strided_slice %39 {offsets = [8, 0], sizes = [8, 512], strides = [1, 1]} : vector<64x512xf32> to vector<8x512xf32>
    %cst_39 = arith.constant dense<0.000000e+00> : vector<8x512xf32>
    %71 = tpu.matmul %69, %34, %cst_39 {dimension_numbers = #tpu.dot_dimension_numbers<[1], [0], [0], [1], [0, 0, 1, 1], [], []>} : vector<8x128xf32>, vector<128x512xf32>, vector<8x512xf32> -> vector<8x512xf32>
    %72 = arith.addf %70, %71 : vector<8x512xf32>
    %73 = vector.extract_strided_slice %72 {offsets = [0, 0], sizes = [8, 128], strides = [1, 1]} : vector<8x512xf32> to vector<8x128xf32>
    %74 = arith.negf %73 : vector<8x128xf32>
    %75 = math.exp %74 : vector<8x128xf32>
    %cst_40 = arith.constant 1.000000e+00 : f32
    %76 = vector.broadcast %cst_40 : f32 to vector<8x128xf32>
    %77 = arith.addf %76, %75 : vector<8x128xf32>
    %78 = arith.divf %76, %77 : vector<8x128xf32>
    %79 = vector.extract_strided_slice %72 {offsets = [0, 128], sizes = [8, 128], strides = [1, 1]} : vector<8x512xf32> to vector<8x128xf32>
    %80 = arith.negf %79 : vector<8x128xf32>
    %81 = math.exp %80 : vector<8x128xf32>
    %cst_41 = arith.constant 1.000000e+00 : f32
    %82 = vector.broadcast %cst_41 : f32 to vector<8x128xf32>
    %83 = arith.addf %82, %81 : vector<8x128xf32>
    %84 = arith.divf %82, %83 : vector<8x128xf32>
    %85 = vector.extract_strided_slice %72 {offsets = [0, 256], sizes = [8, 128], strides = [1, 1]} : vector<8x512xf32> to vector<8x128xf32>
    %86 = math.tanh %85 : vector<8x128xf32>
    %87 = vector.extract_strided_slice %72 {offsets = [0, 384], sizes = [8, 128], strides = [1, 1]} : vector<8x512xf32> to vector<8x128xf32>
    %88 = arith.negf %87 : vector<8x128xf32>
    %89 = math.exp %88 : vector<8x128xf32>
    %cst_42 = arith.constant 1.000000e+00 : f32
    %90 = vector.broadcast %cst_42 : f32 to vector<8x128xf32>
    %91 = arith.addf %90, %89 : vector<8x128xf32>
    %92 = arith.divf %90, %91 : vector<8x128xf32>
    %93 = arith.mulf %84, %67 : vector<8x128xf32>
    %94 = arith.mulf %78, %86 : vector<8x128xf32>
    %95 = arith.addf %93, %94 : vector<8x128xf32>
    %96 = math.tanh %95 : vector<8x128xf32>
    %97 = arith.mulf %92, %96 : vector<8x128xf32>
    %98 = vector.extract_strided_slice %39 {offsets = [16, 0], sizes = [8, 512], strides = [1, 1]} : vector<64x512xf32> to vector<8x512xf32>
    %cst_43 = arith.constant dense<0.000000e+00> : vector<8x512xf32>
    %99 = tpu.matmul %97, %34, %cst_43 {dimension_numbers = #tpu.dot_dimension_numbers<[1], [0], [0], [1], [0, 0, 1, 1], [], []>} : vector<8x128xf32>, vector<128x512xf32>, vector<8x512xf32> -> vector<8x512xf32>
    %100 = arith.addf %98, %99 : vector<8x512xf32>
    %101 = vector.extract_strided_slice %100 {offsets = [0, 0], sizes = [8, 128], strides = [1, 1]} : vector<8x512xf32> to vector<8x128xf32>
    %102 = arith.negf %101 : vector<8x128xf32>
    %103 = math.exp %102 : vector<8x128xf32>
    %cst_44 = arith.constant 1.000000e+00 : f32
    %104 = vector.broadcast %cst_44 : f32 to vector<8x128xf32>
    %105 = arith.addf %104, %103 : vector<8x128xf32>
    %106 = arith.divf %104, %105 : vector<8x128xf32>
    %107 = vector.extract_strided_slice %100 {offsets = [0, 128], sizes = [8, 128], strides = [1, 1]} : vector<8x512xf32> to vector<8x128xf32>
    %108 = arith.negf %107 : vector<8x128xf32>
    %109 = math.exp %108 : vector<8x128xf32>
    %cst_45 = arith.constant 1.000000e+00 : f32
    %110 = vector.broadcast %cst_45 : f32 to vector<8x128xf32>
    %111 = arith.addf %110, %109 : vector<8x128xf32>
    %112 = arith.divf %110, %111 : vector<8x128xf32>
    %113 = vector.extract_strided_slice %100 {offsets = [0, 256], sizes = [8, 128], strides = [1, 1]} : vector<8x512xf32> to vector<8x128xf32>
    %114 = math.tanh %113 : vector<8x128xf32>
    %115 = vector.extract_strided_slice %100 {offsets = [0, 384], sizes = [8, 128], strides = [1, 1]} : vector<8x512xf32> to vector<8x128xf32>
    %116 = arith.negf %115 : vector<8x128xf32>
    %117 = math.exp %116 : vector<8x128xf32>
    %cst_46 = arith.constant 1.000000e+00 : f32
    %118 = vector.broadcast %cst_46 : f32 to vector<8x128xf32>
    %119 = arith.addf %118, %117 : vector<8x128xf32>
    %120 = arith.divf %118, %119 : vector<8x128xf32>
    %121 = arith.mulf %112, %95 : vector<8x128xf32>
    %122 = arith.mulf %106, %114 : vector<8x128xf32>
    %123 = arith.addf %121, %122 : vector<8x128xf32>
    %124 = math.tanh %123 : vector<8x128xf32>
    %125 = arith.mulf %120, %124 : vector<8x128xf32>
    %126 = vector.extract_strided_slice %39 {offsets = [24, 0], sizes = [8, 512], strides = [1, 1]} : vector<64x512xf32> to vector<8x512xf32>
    %cst_47 = arith.constant dense<0.000000e+00> : vector<8x512xf32>
    %127 = tpu.matmul %125, %34, %cst_47 {dimension_numbers = #tpu.dot_dimension_numbers<[1], [0], [0], [1], [0, 0, 1, 1], [], []>} : vector<8x128xf32>, vector<128x512xf32>, vector<8x512xf32> -> vector<8x512xf32>
    %128 = arith.addf %126, %127 : vector<8x512xf32>
    %129 = vector.extract_strided_slice %128 {offsets = [0, 0], sizes = [8, 128], strides = [1, 1]} : vector<8x512xf32> to vector<8x128xf32>
    %130 = arith.negf %129 : vector<8x128xf32>
    %131 = math.exp %130 : vector<8x128xf32>
    %cst_48 = arith.constant 1.000000e+00 : f32
    %132 = vector.broadcast %cst_48 : f32 to vector<8x128xf32>
    %133 = arith.addf %132, %131 : vector<8x128xf32>
    %134 = arith.divf %132, %133 : vector<8x128xf32>
    %135 = vector.extract_strided_slice %128 {offsets = [0, 128], sizes = [8, 128], strides = [1, 1]} : vector<8x512xf32> to vector<8x128xf32>
    %136 = arith.negf %135 : vector<8x128xf32>
    %137 = math.exp %136 : vector<8x128xf32>
    %cst_49 = arith.constant 1.000000e+00 : f32
    %138 = vector.broadcast %cst_49 : f32 to vector<8x128xf32>
    %139 = arith.addf %138, %137 : vector<8x128xf32>
    %140 = arith.divf %138, %139 : vector<8x128xf32>
    %141 = vector.extract_strided_slice %128 {offsets = [0, 256], sizes = [8, 128], strides = [1, 1]} : vector<8x512xf32> to vector<8x128xf32>
    %142 = math.tanh %141 : vector<8x128xf32>
    %143 = vector.extract_strided_slice %128 {offsets = [0, 384], sizes = [8, 128], strides = [1, 1]} : vector<8x512xf32> to vector<8x128xf32>
    %144 = arith.negf %143 : vector<8x128xf32>
    %145 = math.exp %144 : vector<8x128xf32>
    %cst_50 = arith.constant 1.000000e+00 : f32
    %146 = vector.broadcast %cst_50 : f32 to vector<8x128xf32>
    %147 = arith.addf %146, %145 : vector<8x128xf32>
    %148 = arith.divf %146, %147 : vector<8x128xf32>
    %149 = arith.mulf %140, %123 : vector<8x128xf32>
    %150 = arith.mulf %134, %142 : vector<8x128xf32>
    %151 = arith.addf %149, %150 : vector<8x128xf32>
    %152 = math.tanh %151 : vector<8x128xf32>
    %153 = arith.mulf %148, %152 : vector<8x128xf32>
    %154 = vector.extract_strided_slice %39 {offsets = [32, 0], sizes = [8, 512], strides = [1, 1]} : vector<64x512xf32> to vector<8x512xf32>
    %cst_51 = arith.constant dense<0.000000e+00> : vector<8x512xf32>
    %155 = tpu.matmul %153, %34, %cst_51 {dimension_numbers = #tpu.dot_dimension_numbers<[1], [0], [0], [1], [0, 0, 1, 1], [], []>} : vector<8x128xf32>, vector<128x512xf32>, vector<8x512xf32> -> vector<8x512xf32>
    %156 = arith.addf %154, %155 : vector<8x512xf32>
    %157 = vector.extract_strided_slice %156 {offsets = [0, 0], sizes = [8, 128], strides = [1, 1]} : vector<8x512xf32> to vector<8x128xf32>
    %158 = arith.negf %157 : vector<8x128xf32>
    %159 = math.exp %158 : vector<8x128xf32>
    %cst_52 = arith.constant 1.000000e+00 : f32
    %160 = vector.broadcast %cst_52 : f32 to vector<8x128xf32>
    %161 = arith.addf %160, %159 : vector<8x128xf32>
    %162 = arith.divf %160, %161 : vector<8x128xf32>
    %163 = vector.extract_strided_slice %156 {offsets = [0, 128], sizes = [8, 128], strides = [1, 1]} : vector<8x512xf32> to vector<8x128xf32>
    %164 = arith.negf %163 : vector<8x128xf32>
    %165 = math.exp %164 : vector<8x128xf32>
    %cst_53 = arith.constant 1.000000e+00 : f32
    %166 = vector.broadcast %cst_53 : f32 to vector<8x128xf32>
    %167 = arith.addf %166, %165 : vector<8x128xf32>
    %168 = arith.divf %166, %167 : vector<8x128xf32>
    %169 = vector.extract_strided_slice %156 {offsets = [0, 256], sizes = [8, 128], strides = [1, 1]} : vector<8x512xf32> to vector<8x128xf32>
    %170 = math.tanh %169 : vector<8x128xf32>
    %171 = vector.extract_strided_slice %156 {offsets = [0, 384], sizes = [8, 128], strides = [1, 1]} : vector<8x512xf32> to vector<8x128xf32>
    %172 = arith.negf %171 : vector<8x128xf32>
    %173 = math.exp %172 : vector<8x128xf32>
    %cst_54 = arith.constant 1.000000e+00 : f32
    %174 = vector.broadcast %cst_54 : f32 to vector<8x128xf32>
    %175 = arith.addf %174, %173 : vector<8x128xf32>
    %176 = arith.divf %174, %175 : vector<8x128xf32>
    %177 = arith.mulf %168, %151 : vector<8x128xf32>
    %178 = arith.mulf %162, %170 : vector<8x128xf32>
    %179 = arith.addf %177, %178 : vector<8x128xf32>
    %180 = math.tanh %179 : vector<8x128xf32>
    %181 = arith.mulf %176, %180 : vector<8x128xf32>
    %182 = vector.extract_strided_slice %39 {offsets = [40, 0], sizes = [8, 512], strides = [1, 1]} : vector<64x512xf32> to vector<8x512xf32>
    %cst_55 = arith.constant dense<0.000000e+00> : vector<8x512xf32>
    %183 = tpu.matmul %181, %34, %cst_55 {dimension_numbers = #tpu.dot_dimension_numbers<[1], [0], [0], [1], [0, 0, 1, 1], [], []>} : vector<8x128xf32>, vector<128x512xf32>, vector<8x512xf32> -> vector<8x512xf32>
    %184 = arith.addf %182, %183 : vector<8x512xf32>
    %185 = vector.extract_strided_slice %184 {offsets = [0, 0], sizes = [8, 128], strides = [1, 1]} : vector<8x512xf32> to vector<8x128xf32>
    %186 = arith.negf %185 : vector<8x128xf32>
    %187 = math.exp %186 : vector<8x128xf32>
    %cst_56 = arith.constant 1.000000e+00 : f32
    %188 = vector.broadcast %cst_56 : f32 to vector<8x128xf32>
    %189 = arith.addf %188, %187 : vector<8x128xf32>
    %190 = arith.divf %188, %189 : vector<8x128xf32>
    %191 = vector.extract_strided_slice %184 {offsets = [0, 128], sizes = [8, 128], strides = [1, 1]} : vector<8x512xf32> to vector<8x128xf32>
    %192 = arith.negf %191 : vector<8x128xf32>
    %193 = math.exp %192 : vector<8x128xf32>
    %cst_57 = arith.constant 1.000000e+00 : f32
    %194 = vector.broadcast %cst_57 : f32 to vector<8x128xf32>
    %195 = arith.addf %194, %193 : vector<8x128xf32>
    %196 = arith.divf %194, %195 : vector<8x128xf32>
    %197 = vector.extract_strided_slice %184 {offsets = [0, 256], sizes = [8, 128], strides = [1, 1]} : vector<8x512xf32> to vector<8x128xf32>
    %198 = math.tanh %197 : vector<8x128xf32>
    %199 = vector.extract_strided_slice %184 {offsets = [0, 384], sizes = [8, 128], strides = [1, 1]} : vector<8x512xf32> to vector<8x128xf32>
    %200 = arith.negf %199 : vector<8x128xf32>
    %201 = math.exp %200 : vector<8x128xf32>
    %cst_58 = arith.constant 1.000000e+00 : f32
    %202 = vector.broadcast %cst_58 : f32 to vector<8x128xf32>
    %203 = arith.addf %202, %201 : vector<8x128xf32>
    %204 = arith.divf %202, %203 : vector<8x128xf32>
    %205 = arith.mulf %196, %179 : vector<8x128xf32>
    %206 = arith.mulf %190, %198 : vector<8x128xf32>
    %207 = arith.addf %205, %206 : vector<8x128xf32>
    %208 = math.tanh %207 : vector<8x128xf32>
    %209 = arith.mulf %204, %208 : vector<8x128xf32>
    %210 = vector.extract_strided_slice %39 {offsets = [48, 0], sizes = [8, 512], strides = [1, 1]} : vector<64x512xf32> to vector<8x512xf32>
    %cst_59 = arith.constant dense<0.000000e+00> : vector<8x512xf32>
    %211 = tpu.matmul %209, %34, %cst_59 {dimension_numbers = #tpu.dot_dimension_numbers<[1], [0], [0], [1], [0, 0, 1, 1], [], []>} : vector<8x128xf32>, vector<128x512xf32>, vector<8x512xf32> -> vector<8x512xf32>
    %212 = arith.addf %210, %211 : vector<8x512xf32>
    %213 = vector.extract_strided_slice %212 {offsets = [0, 0], sizes = [8, 128], strides = [1, 1]} : vector<8x512xf32> to vector<8x128xf32>
    %214 = arith.negf %213 : vector<8x128xf32>
    %215 = math.exp %214 : vector<8x128xf32>
    %cst_60 = arith.constant 1.000000e+00 : f32
    %216 = vector.broadcast %cst_60 : f32 to vector<8x128xf32>
    %217 = arith.addf %216, %215 : vector<8x128xf32>
    %218 = arith.divf %216, %217 : vector<8x128xf32>
    %219 = vector.extract_strided_slice %212 {offsets = [0, 128], sizes = [8, 128], strides = [1, 1]} : vector<8x512xf32> to vector<8x128xf32>
    %220 = arith.negf %219 : vector<8x128xf32>
    %221 = math.exp %220 : vector<8x128xf32>
    %cst_61 = arith.constant 1.000000e+00 : f32
    %222 = vector.broadcast %cst_61 : f32 to vector<8x128xf32>
    %223 = arith.addf %222, %221 : vector<8x128xf32>
    %224 = arith.divf %222, %223 : vector<8x128xf32>
    %225 = vector.extract_strided_slice %212 {offsets = [0, 256], sizes = [8, 128], strides = [1, 1]} : vector<8x512xf32> to vector<8x128xf32>
    %226 = math.tanh %225 : vector<8x128xf32>
    %227 = vector.extract_strided_slice %212 {offsets = [0, 384], sizes = [8, 128], strides = [1, 1]} : vector<8x512xf32> to vector<8x128xf32>
    %228 = arith.negf %227 : vector<8x128xf32>
    %229 = math.exp %228 : vector<8x128xf32>
    %cst_62 = arith.constant 1.000000e+00 : f32
    %230 = vector.broadcast %cst_62 : f32 to vector<8x128xf32>
    %231 = arith.addf %230, %229 : vector<8x128xf32>
    %232 = arith.divf %230, %231 : vector<8x128xf32>
    %233 = arith.mulf %224, %207 : vector<8x128xf32>
    %234 = arith.mulf %218, %226 : vector<8x128xf32>
    %235 = arith.addf %233, %234 : vector<8x128xf32>
    %236 = math.tanh %235 : vector<8x128xf32>
    %237 = arith.mulf %232, %236 : vector<8x128xf32>
    %238 = vector.extract_strided_slice %39 {offsets = [56, 0], sizes = [8, 512], strides = [1, 1]} : vector<64x512xf32> to vector<8x512xf32>
    %cst_63 = arith.constant dense<0.000000e+00> : vector<8x512xf32>
    %239 = tpu.matmul %237, %34, %cst_63 {dimension_numbers = #tpu.dot_dimension_numbers<[1], [0], [0], [1], [0, 0, 1, 1], [], []>} : vector<8x128xf32>, vector<128x512xf32>, vector<8x512xf32> -> vector<8x512xf32>
    %240 = arith.addf %238, %239 : vector<8x512xf32>
    %241 = vector.extract_strided_slice %240 {offsets = [0, 0], sizes = [8, 128], strides = [1, 1]} : vector<8x512xf32> to vector<8x128xf32>
    %242 = arith.negf %241 : vector<8x128xf32>
    %243 = math.exp %242 : vector<8x128xf32>
    %cst_64 = arith.constant 1.000000e+00 : f32
    %244 = vector.broadcast %cst_64 : f32 to vector<8x128xf32>
    %245 = arith.addf %244, %243 : vector<8x128xf32>
    %246 = arith.divf %244, %245 : vector<8x128xf32>
    %247 = vector.extract_strided_slice %240 {offsets = [0, 128], sizes = [8, 128], strides = [1, 1]} : vector<8x512xf32> to vector<8x128xf32>
    %248 = arith.negf %247 : vector<8x128xf32>
    %249 = math.exp %248 : vector<8x128xf32>
    %cst_65 = arith.constant 1.000000e+00 : f32
    %250 = vector.broadcast %cst_65 : f32 to vector<8x128xf32>
    %251 = arith.addf %250, %249 : vector<8x128xf32>
    %252 = arith.divf %250, %251 : vector<8x128xf32>
    %253 = vector.extract_strided_slice %240 {offsets = [0, 256], sizes = [8, 128], strides = [1, 1]} : vector<8x512xf32> to vector<8x128xf32>
    %254 = math.tanh %253 : vector<8x128xf32>
    %255 = vector.extract_strided_slice %240 {offsets = [0, 384], sizes = [8, 128], strides = [1, 1]} : vector<8x512xf32> to vector<8x128xf32>
    %256 = arith.negf %255 : vector<8x128xf32>
    %257 = math.exp %256 : vector<8x128xf32>
    %cst_66 = arith.constant 1.000000e+00 : f32
    %258 = vector.broadcast %cst_66 : f32 to vector<8x128xf32>
    %259 = arith.addf %258, %257 : vector<8x128xf32>
    %260 = arith.divf %258, %259 : vector<8x128xf32>
    %261 = arith.mulf %252, %235 : vector<8x128xf32>
    %262 = arith.mulf %246, %254 : vector<8x128xf32>
    %263 = arith.addf %261, %262 : vector<8x128xf32>
    %264 = math.tanh %263 : vector<8x128xf32>
    %265 = arith.mulf %260, %264 : vector<8x128xf32>
    %266 = tpu.concatenate %69, %97, %125, %153, %181, %209, %237, %265 in 0 : vector<8x128xf32>, vector<8x128xf32>, vector<8x128xf32>, vector<8x128xf32>, vector<8x128xf32>, vector<8x128xf32>, vector<8x128xf32>, vector<8x128xf32> -> vector<64x128xf32>
    %c1_67 = arith.constant 1 : index
    %c0_68 = arith.constant 0 : index
    %c0_69 = arith.constant 0 : index
    %267 = vector.load %arg4[%c1_67, %c0_68, %c0_69] : memref<7x128x512xf32, #tpu.memory_space<vmem>>, vector<1x128x512xf32>
    %268 = vector.shape_cast %267 : vector<1x128x512xf32> to vector<128x512xf32>
    %c4 = arith.constant 4 : index
    %c0_70 = arith.constant 0 : index
    %c0_71 = arith.constant 0 : index
    %269 = vector.load %arg4[%c4, %c0_70, %c0_71] : memref<7x128x512xf32, #tpu.memory_space<vmem>>, vector<1x128x512xf32>
    %270 = vector.shape_cast %269 : vector<1x128x512xf32> to vector<128x512xf32>
    %c1_72 = arith.constant 1 : index
    %c0_73 = arith.constant 0 : index
    %271 = vector.load %arg5[%c1_72, %c0_73] : memref<4x512xf32, #tpu.memory_space<vmem>>, vector<1x512xf32>
    %cst_74 = arith.constant dense<0.000000e+00> : vector<64x512xf32>
    %272 = tpu.matmul %266, %270, %cst_74 {dimension_numbers = #tpu.dot_dimension_numbers<[1], [0], [0], [1], [0, 0, 1, 1], [], []>} : vector<64x128xf32>, vector<128x512xf32>, vector<64x512xf32> -> vector<64x512xf32>
    %273 = vector.broadcast %271 : vector<1x512xf32> to vector<64x512xf32>
    %274 = arith.addf %272, %273 : vector<64x512xf32>
    %cst_75 = arith.constant 0.000000e+00 : f32
    %275 = vector.broadcast %cst_75 : f32 to vector<8x128xf32>
    %cst_76 = arith.constant 0.000000e+00 : f32
    %276 = vector.broadcast %cst_76 : f32 to vector<8x128xf32>
    %277 = vector.extract_strided_slice %274 {offsets = [0, 0], sizes = [8, 512], strides = [1, 1]} : vector<64x512xf32> to vector<8x512xf32>
    %cst_77 = arith.constant dense<0.000000e+00> : vector<8x512xf32>
    %278 = tpu.matmul %275, %268, %cst_77 {dimension_numbers = #tpu.dot_dimension_numbers<[1], [0], [0], [1], [0, 0, 1, 1], [], []>} : vector<8x128xf32>, vector<128x512xf32>, vector<8x512xf32> -> vector<8x512xf32>
    %279 = arith.addf %277, %278 : vector<8x512xf32>
    %280 = vector.extract_strided_slice %279 {offsets = [0, 0], sizes = [8, 128], strides = [1, 1]} : vector<8x512xf32> to vector<8x128xf32>
    %281 = arith.negf %280 : vector<8x128xf32>
    %282 = math.exp %281 : vector<8x128xf32>
    %cst_78 = arith.constant 1.000000e+00 : f32
    %283 = vector.broadcast %cst_78 : f32 to vector<8x128xf32>
    %284 = arith.addf %283, %282 : vector<8x128xf32>
    %285 = arith.divf %283, %284 : vector<8x128xf32>
    %286 = vector.extract_strided_slice %279 {offsets = [0, 128], sizes = [8, 128], strides = [1, 1]} : vector<8x512xf32> to vector<8x128xf32>
    %287 = arith.negf %286 : vector<8x128xf32>
    %288 = math.exp %287 : vector<8x128xf32>
    %cst_79 = arith.constant 1.000000e+00 : f32
    %289 = vector.broadcast %cst_79 : f32 to vector<8x128xf32>
    %290 = arith.addf %289, %288 : vector<8x128xf32>
    %291 = arith.divf %289, %290 : vector<8x128xf32>
    %292 = vector.extract_strided_slice %279 {offsets = [0, 256], sizes = [8, 128], strides = [1, 1]} : vector<8x512xf32> to vector<8x128xf32>
    %293 = math.tanh %292 : vector<8x128xf32>
    %294 = vector.extract_strided_slice %279 {offsets = [0, 384], sizes = [8, 128], strides = [1, 1]} : vector<8x512xf32> to vector<8x128xf32>
    %295 = arith.negf %294 : vector<8x128xf32>
    %296 = math.exp %295 : vector<8x128xf32>
    %cst_80 = arith.constant 1.000000e+00 : f32
    %297 = vector.broadcast %cst_80 : f32 to vector<8x128xf32>
    %298 = arith.addf %297, %296 : vector<8x128xf32>
    %299 = arith.divf %297, %298 : vector<8x128xf32>
    %300 = arith.mulf %291, %276 : vector<8x128xf32>
    %301 = arith.mulf %285, %293 : vector<8x128xf32>
    %302 = arith.addf %300, %301 : vector<8x128xf32>
    %303 = math.tanh %302 : vector<8x128xf32>
    %304 = arith.mulf %299, %303 : vector<8x128xf32>
    %305 = vector.extract_strided_slice %274 {offsets = [8, 0], sizes = [8, 512], strides = [1, 1]} : vector<64x512xf32> to vector<8x512xf32>
    %cst_81 = arith.constant dense<0.000000e+00> : vector<8x512xf32>
    %306 = tpu.matmul %304, %268, %cst_81 {dimension_numbers = #tpu.dot_dimension_numbers<[1], [0], [0], [1], [0, 0, 1, 1], [], []>} : vector<8x128xf32>, vector<128x512xf32>, vector<8x512xf32> -> vector<8x512xf32>
    %307 = arith.addf %305, %306 : vector<8x512xf32>
    %308 = vector.extract_strided_slice %307 {offsets = [0, 0], sizes = [8, 128], strides = [1, 1]} : vector<8x512xf32> to vector<8x128xf32>
    %309 = arith.negf %308 : vector<8x128xf32>
    %310 = math.exp %309 : vector<8x128xf32>
    %cst_82 = arith.constant 1.000000e+00 : f32
    %311 = vector.broadcast %cst_82 : f32 to vector<8x128xf32>
    %312 = arith.addf %311, %310 : vector<8x128xf32>
    %313 = arith.divf %311, %312 : vector<8x128xf32>
    %314 = vector.extract_strided_slice %307 {offsets = [0, 128], sizes = [8, 128], strides = [1, 1]} : vector<8x512xf32> to vector<8x128xf32>
    %315 = arith.negf %314 : vector<8x128xf32>
    %316 = math.exp %315 : vector<8x128xf32>
    %cst_83 = arith.constant 1.000000e+00 : f32
    %317 = vector.broadcast %cst_83 : f32 to vector<8x128xf32>
    %318 = arith.addf %317, %316 : vector<8x128xf32>
    %319 = arith.divf %317, %318 : vector<8x128xf32>
    %320 = vector.extract_strided_slice %307 {offsets = [0, 256], sizes = [8, 128], strides = [1, 1]} : vector<8x512xf32> to vector<8x128xf32>
    %321 = math.tanh %320 : vector<8x128xf32>
    %322 = vector.extract_strided_slice %307 {offsets = [0, 384], sizes = [8, 128], strides = [1, 1]} : vector<8x512xf32> to vector<8x128xf32>
    %323 = arith.negf %322 : vector<8x128xf32>
    %324 = math.exp %323 : vector<8x128xf32>
    %cst_84 = arith.constant 1.000000e+00 : f32
    %325 = vector.broadcast %cst_84 : f32 to vector<8x128xf32>
    %326 = arith.addf %325, %324 : vector<8x128xf32>
    %327 = arith.divf %325, %326 : vector<8x128xf32>
    %328 = arith.mulf %319, %302 : vector<8x128xf32>
    %329 = arith.mulf %313, %321 : vector<8x128xf32>
    %330 = arith.addf %328, %329 : vector<8x128xf32>
    %331 = math.tanh %330 : vector<8x128xf32>
    %332 = arith.mulf %327, %331 : vector<8x128xf32>
    %333 = vector.extract_strided_slice %274 {offsets = [16, 0], sizes = [8, 512], strides = [1, 1]} : vector<64x512xf32> to vector<8x512xf32>
    %cst_85 = arith.constant dense<0.000000e+00> : vector<8x512xf32>
    %334 = tpu.matmul %332, %268, %cst_85 {dimension_numbers = #tpu.dot_dimension_numbers<[1], [0], [0], [1], [0, 0, 1, 1], [], []>} : vector<8x128xf32>, vector<128x512xf32>, vector<8x512xf32> -> vector<8x512xf32>
    %335 = arith.addf %333, %334 : vector<8x512xf32>
    %336 = vector.extract_strided_slice %335 {offsets = [0, 0], sizes = [8, 128], strides = [1, 1]} : vector<8x512xf32> to vector<8x128xf32>
    %337 = arith.negf %336 : vector<8x128xf32>
    %338 = math.exp %337 : vector<8x128xf32>
    %cst_86 = arith.constant 1.000000e+00 : f32
    %339 = vector.broadcast %cst_86 : f32 to vector<8x128xf32>
    %340 = arith.addf %339, %338 : vector<8x128xf32>
    %341 = arith.divf %339, %340 : vector<8x128xf32>
    %342 = vector.extract_strided_slice %335 {offsets = [0, 128], sizes = [8, 128], strides = [1, 1]} : vector<8x512xf32> to vector<8x128xf32>
    %343 = arith.negf %342 : vector<8x128xf32>
    %344 = math.exp %343 : vector<8x128xf32>
    %cst_87 = arith.constant 1.000000e+00 : f32
    %345 = vector.broadcast %cst_87 : f32 to vector<8x128xf32>
    %346 = arith.addf %345, %344 : vector<8x128xf32>
    %347 = arith.divf %345, %346 : vector<8x128xf32>
    %348 = vector.extract_strided_slice %335 {offsets = [0, 256], sizes = [8, 128], strides = [1, 1]} : vector<8x512xf32> to vector<8x128xf32>
    %349 = math.tanh %348 : vector<8x128xf32>
    %350 = vector.extract_strided_slice %335 {offsets = [0, 384], sizes = [8, 128], strides = [1, 1]} : vector<8x512xf32> to vector<8x128xf32>
    %351 = arith.negf %350 : vector<8x128xf32>
    %352 = math.exp %351 : vector<8x128xf32>
    %cst_88 = arith.constant 1.000000e+00 : f32
    %353 = vector.broadcast %cst_88 : f32 to vector<8x128xf32>
    %354 = arith.addf %353, %352 : vector<8x128xf32>
    %355 = arith.divf %353, %354 : vector<8x128xf32>
    %356 = arith.mulf %347, %330 : vector<8x128xf32>
    %357 = arith.mulf %341, %349 : vector<8x128xf32>
    %358 = arith.addf %356, %357 : vector<8x128xf32>
    %359 = math.tanh %358 : vector<8x128xf32>
    %360 = arith.mulf %355, %359 : vector<8x128xf32>
    %361 = vector.extract_strided_slice %274 {offsets = [24, 0], sizes = [8, 512], strides = [1, 1]} : vector<64x512xf32> to vector<8x512xf32>
    %cst_89 = arith.constant dense<0.000000e+00> : vector<8x512xf32>
    %362 = tpu.matmul %360, %268, %cst_89 {dimension_numbers = #tpu.dot_dimension_numbers<[1], [0], [0], [1], [0, 0, 1, 1], [], []>} : vector<8x128xf32>, vector<128x512xf32>, vector<8x512xf32> -> vector<8x512xf32>
    %363 = arith.addf %361, %362 : vector<8x512xf32>
    %364 = vector.extract_strided_slice %363 {offsets = [0, 0], sizes = [8, 128], strides = [1, 1]} : vector<8x512xf32> to vector<8x128xf32>
    %365 = arith.negf %364 : vector<8x128xf32>
    %366 = math.exp %365 : vector<8x128xf32>
    %cst_90 = arith.constant 1.000000e+00 : f32
    %367 = vector.broadcast %cst_90 : f32 to vector<8x128xf32>
    %368 = arith.addf %367, %366 : vector<8x128xf32>
    %369 = arith.divf %367, %368 : vector<8x128xf32>
    %370 = vector.extract_strided_slice %363 {offsets = [0, 128], sizes = [8, 128], strides = [1, 1]} : vector<8x512xf32> to vector<8x128xf32>
    %371 = arith.negf %370 : vector<8x128xf32>
    %372 = math.exp %371 : vector<8x128xf32>
    %cst_91 = arith.constant 1.000000e+00 : f32
    %373 = vector.broadcast %cst_91 : f32 to vector<8x128xf32>
    %374 = arith.addf %373, %372 : vector<8x128xf32>
    %375 = arith.divf %373, %374 : vector<8x128xf32>
    %376 = vector.extract_strided_slice %363 {offsets = [0, 256], sizes = [8, 128], strides = [1, 1]} : vector<8x512xf32> to vector<8x128xf32>
    %377 = math.tanh %376 : vector<8x128xf32>
    %378 = vector.extract_strided_slice %363 {offsets = [0, 384], sizes = [8, 128], strides = [1, 1]} : vector<8x512xf32> to vector<8x128xf32>
    %379 = arith.negf %378 : vector<8x128xf32>
    %380 = math.exp %379 : vector<8x128xf32>
    %cst_92 = arith.constant 1.000000e+00 : f32
    %381 = vector.broadcast %cst_92 : f32 to vector<8x128xf32>
    %382 = arith.addf %381, %380 : vector<8x128xf32>
    %383 = arith.divf %381, %382 : vector<8x128xf32>
    %384 = arith.mulf %375, %358 : vector<8x128xf32>
    %385 = arith.mulf %369, %377 : vector<8x128xf32>
    %386 = arith.addf %384, %385 : vector<8x128xf32>
    %387 = math.tanh %386 : vector<8x128xf32>
    %388 = arith.mulf %383, %387 : vector<8x128xf32>
    %389 = vector.extract_strided_slice %274 {offsets = [32, 0], sizes = [8, 512], strides = [1, 1]} : vector<64x512xf32> to vector<8x512xf32>
    %cst_93 = arith.constant dense<0.000000e+00> : vector<8x512xf32>
    %390 = tpu.matmul %388, %268, %cst_93 {dimension_numbers = #tpu.dot_dimension_numbers<[1], [0], [0], [1], [0, 0, 1, 1], [], []>} : vector<8x128xf32>, vector<128x512xf32>, vector<8x512xf32> -> vector<8x512xf32>
    %391 = arith.addf %389, %390 : vector<8x512xf32>
    %392 = vector.extract_strided_slice %391 {offsets = [0, 0], sizes = [8, 128], strides = [1, 1]} : vector<8x512xf32> to vector<8x128xf32>
    %393 = arith.negf %392 : vector<8x128xf32>
    %394 = math.exp %393 : vector<8x128xf32>
    %cst_94 = arith.constant 1.000000e+00 : f32
    %395 = vector.broadcast %cst_94 : f32 to vector<8x128xf32>
    %396 = arith.addf %395, %394 : vector<8x128xf32>
    %397 = arith.divf %395, %396 : vector<8x128xf32>
    %398 = vector.extract_strided_slice %391 {offsets = [0, 128], sizes = [8, 128], strides = [1, 1]} : vector<8x512xf32> to vector<8x128xf32>
    %399 = arith.negf %398 : vector<8x128xf32>
    %400 = math.exp %399 : vector<8x128xf32>
    %cst_95 = arith.constant 1.000000e+00 : f32
    %401 = vector.broadcast %cst_95 : f32 to vector<8x128xf32>
    %402 = arith.addf %401, %400 : vector<8x128xf32>
    %403 = arith.divf %401, %402 : vector<8x128xf32>
    %404 = vector.extract_strided_slice %391 {offsets = [0, 256], sizes = [8, 128], strides = [1, 1]} : vector<8x512xf32> to vector<8x128xf32>
    %405 = math.tanh %404 : vector<8x128xf32>
    %406 = vector.extract_strided_slice %391 {offsets = [0, 384], sizes = [8, 128], strides = [1, 1]} : vector<8x512xf32> to vector<8x128xf32>
    %407 = arith.negf %406 : vector<8x128xf32>
    %408 = math.exp %407 : vector<8x128xf32>
    %cst_96 = arith.constant 1.000000e+00 : f32
    %409 = vector.broadcast %cst_96 : f32 to vector<8x128xf32>
    %410 = arith.addf %409, %408 : vector<8x128xf32>
    %411 = arith.divf %409, %410 : vector<8x128xf32>
    %412 = arith.mulf %403, %386 : vector<8x128xf32>
    %413 = arith.mulf %397, %405 : vector<8x128xf32>
    %414 = arith.addf %412, %413 : vector<8x128xf32>
    %415 = math.tanh %414 : vector<8x128xf32>
    %416 = arith.mulf %411, %415 : vector<8x128xf32>
    %417 = vector.extract_strided_slice %274 {offsets = [40, 0], sizes = [8, 512], strides = [1, 1]} : vector<64x512xf32> to vector<8x512xf32>
    %cst_97 = arith.constant dense<0.000000e+00> : vector<8x512xf32>
    %418 = tpu.matmul %416, %268, %cst_97 {dimension_numbers = #tpu.dot_dimension_numbers<[1], [0], [0], [1], [0, 0, 1, 1], [], []>} : vector<8x128xf32>, vector<128x512xf32>, vector<8x512xf32> -> vector<8x512xf32>
    %419 = arith.addf %417, %418 : vector<8x512xf32>
    %420 = vector.extract_strided_slice %419 {offsets = [0, 0], sizes = [8, 128], strides = [1, 1]} : vector<8x512xf32> to vector<8x128xf32>
    %421 = arith.negf %420 : vector<8x128xf32>
    %422 = math.exp %421 : vector<8x128xf32>
    %cst_98 = arith.constant 1.000000e+00 : f32
    %423 = vector.broadcast %cst_98 : f32 to vector<8x128xf32>
    %424 = arith.addf %423, %422 : vector<8x128xf32>
    %425 = arith.divf %423, %424 : vector<8x128xf32>
    %426 = vector.extract_strided_slice %419 {offsets = [0, 128], sizes = [8, 128], strides = [1, 1]} : vector<8x512xf32> to vector<8x128xf32>
    %427 = arith.negf %426 : vector<8x128xf32>
    %428 = math.exp %427 : vector<8x128xf32>
    %cst_99 = arith.constant 1.000000e+00 : f32
    %429 = vector.broadcast %cst_99 : f32 to vector<8x128xf32>
    %430 = arith.addf %429, %428 : vector<8x128xf32>
    %431 = arith.divf %429, %430 : vector<8x128xf32>
    %432 = vector.extract_strided_slice %419 {offsets = [0, 256], sizes = [8, 128], strides = [1, 1]} : vector<8x512xf32> to vector<8x128xf32>
    %433 = math.tanh %432 : vector<8x128xf32>
    %434 = vector.extract_strided_slice %419 {offsets = [0, 384], sizes = [8, 128], strides = [1, 1]} : vector<8x512xf32> to vector<8x128xf32>
    %435 = arith.negf %434 : vector<8x128xf32>
    %436 = math.exp %435 : vector<8x128xf32>
    %cst_100 = arith.constant 1.000000e+00 : f32
    %437 = vector.broadcast %cst_100 : f32 to vector<8x128xf32>
    %438 = arith.addf %437, %436 : vector<8x128xf32>
    %439 = arith.divf %437, %438 : vector<8x128xf32>
    %440 = arith.mulf %431, %414 : vector<8x128xf32>
    %441 = arith.mulf %425, %433 : vector<8x128xf32>
    %442 = arith.addf %440, %441 : vector<8x128xf32>
    %443 = math.tanh %442 : vector<8x128xf32>
    %444 = arith.mulf %439, %443 : vector<8x128xf32>
    %445 = vector.extract_strided_slice %274 {offsets = [48, 0], sizes = [8, 512], strides = [1, 1]} : vector<64x512xf32> to vector<8x512xf32>
    %cst_101 = arith.constant dense<0.000000e+00> : vector<8x512xf32>
    %446 = tpu.matmul %444, %268, %cst_101 {dimension_numbers = #tpu.dot_dimension_numbers<[1], [0], [0], [1], [0, 0, 1, 1], [], []>} : vector<8x128xf32>, vector<128x512xf32>, vector<8x512xf32> -> vector<8x512xf32>
    %447 = arith.addf %445, %446 : vector<8x512xf32>
    %448 = vector.extract_strided_slice %447 {offsets = [0, 0], sizes = [8, 128], strides = [1, 1]} : vector<8x512xf32> to vector<8x128xf32>
    %449 = arith.negf %448 : vector<8x128xf32>
    %450 = math.exp %449 : vector<8x128xf32>
    %cst_102 = arith.constant 1.000000e+00 : f32
    %451 = vector.broadcast %cst_102 : f32 to vector<8x128xf32>
    %452 = arith.addf %451, %450 : vector<8x128xf32>
    %453 = arith.divf %451, %452 : vector<8x128xf32>
    %454 = vector.extract_strided_slice %447 {offsets = [0, 128], sizes = [8, 128], strides = [1, 1]} : vector<8x512xf32> to vector<8x128xf32>
    %455 = arith.negf %454 : vector<8x128xf32>
    %456 = math.exp %455 : vector<8x128xf32>
    %cst_103 = arith.constant 1.000000e+00 : f32
    %457 = vector.broadcast %cst_103 : f32 to vector<8x128xf32>
    %458 = arith.addf %457, %456 : vector<8x128xf32>
    %459 = arith.divf %457, %458 : vector<8x128xf32>
    %460 = vector.extract_strided_slice %447 {offsets = [0, 256], sizes = [8, 128], strides = [1, 1]} : vector<8x512xf32> to vector<8x128xf32>
    %461 = math.tanh %460 : vector<8x128xf32>
    %462 = vector.extract_strided_slice %447 {offsets = [0, 384], sizes = [8, 128], strides = [1, 1]} : vector<8x512xf32> to vector<8x128xf32>
    %463 = arith.negf %462 : vector<8x128xf32>
    %464 = math.exp %463 : vector<8x128xf32>
    %cst_104 = arith.constant 1.000000e+00 : f32
    %465 = vector.broadcast %cst_104 : f32 to vector<8x128xf32>
    %466 = arith.addf %465, %464 : vector<8x128xf32>
    %467 = arith.divf %465, %466 : vector<8x128xf32>
    %468 = arith.mulf %459, %442 : vector<8x128xf32>
    %469 = arith.mulf %453, %461 : vector<8x128xf32>
    %470 = arith.addf %468, %469 : vector<8x128xf32>
    %471 = math.tanh %470 : vector<8x128xf32>
    %472 = arith.mulf %467, %471 : vector<8x128xf32>
    %473 = vector.extract_strided_slice %274 {offsets = [56, 0], sizes = [8, 512], strides = [1, 1]} : vector<64x512xf32> to vector<8x512xf32>
    %cst_105 = arith.constant dense<0.000000e+00> : vector<8x512xf32>
    %474 = tpu.matmul %472, %268, %cst_105 {dimension_numbers = #tpu.dot_dimension_numbers<[1], [0], [0], [1], [0, 0, 1, 1], [], []>} : vector<8x128xf32>, vector<128x512xf32>, vector<8x512xf32> -> vector<8x512xf32>
    %475 = arith.addf %473, %474 : vector<8x512xf32>
    %476 = vector.extract_strided_slice %475 {offsets = [0, 0], sizes = [8, 128], strides = [1, 1]} : vector<8x512xf32> to vector<8x128xf32>
    %477 = arith.negf %476 : vector<8x128xf32>
    %478 = math.exp %477 : vector<8x128xf32>
    %cst_106 = arith.constant 1.000000e+00 : f32
    %479 = vector.broadcast %cst_106 : f32 to vector<8x128xf32>
    %480 = arith.addf %479, %478 : vector<8x128xf32>
    %481 = arith.divf %479, %480 : vector<8x128xf32>
    %482 = vector.extract_strided_slice %475 {offsets = [0, 128], sizes = [8, 128], strides = [1, 1]} : vector<8x512xf32> to vector<8x128xf32>
    %483 = arith.negf %482 : vector<8x128xf32>
    %484 = math.exp %483 : vector<8x128xf32>
    %cst_107 = arith.constant 1.000000e+00 : f32
    %485 = vector.broadcast %cst_107 : f32 to vector<8x128xf32>
    %486 = arith.addf %485, %484 : vector<8x128xf32>
    %487 = arith.divf %485, %486 : vector<8x128xf32>
    %488 = vector.extract_strided_slice %475 {offsets = [0, 256], sizes = [8, 128], strides = [1, 1]} : vector<8x512xf32> to vector<8x128xf32>
    %489 = math.tanh %488 : vector<8x128xf32>
    %490 = vector.extract_strided_slice %475 {offsets = [0, 384], sizes = [8, 128], strides = [1, 1]} : vector<8x512xf32> to vector<8x128xf32>
    %491 = arith.negf %490 : vector<8x128xf32>
    %492 = math.exp %491 : vector<8x128xf32>
    %cst_108 = arith.constant 1.000000e+00 : f32
    %493 = vector.broadcast %cst_108 : f32 to vector<8x128xf32>
    %494 = arith.addf %493, %492 : vector<8x128xf32>
    %495 = arith.divf %493, %494 : vector<8x128xf32>
    %496 = arith.mulf %487, %470 : vector<8x128xf32>
    %497 = arith.mulf %481, %489 : vector<8x128xf32>
    %498 = arith.addf %496, %497 : vector<8x128xf32>
    %499 = math.tanh %498 : vector<8x128xf32>
    %500 = arith.mulf %495, %499 : vector<8x128xf32>
    %501 = tpu.concatenate %304, %332, %360, %388, %416, %444, %472, %500 in 0 : vector<8x128xf32>, vector<8x128xf32>, vector<8x128xf32>, vector<8x128xf32>, vector<8x128xf32>, vector<8x128xf32>, vector<8x128xf32>, vector<8x128xf32> -> vector<64x128xf32>
    %c2_109 = arith.constant 2 : index
    %c0_110 = arith.constant 0 : index
    %c0_111 = arith.constant 0 : index
    %502 = vector.load %arg4[%c2_109, %c0_110, %c0_111] : memref<7x128x512xf32, #tpu.memory_space<vmem>>, vector<1x128x512xf32>
    %503 = vector.shape_cast %502 : vector<1x128x512xf32> to vector<128x512xf32>
    %c5 = arith.constant 5 : index
    %c0_112 = arith.constant 0 : index
    %c0_113 = arith.constant 0 : index
    %504 = vector.load %arg4[%c5, %c0_112, %c0_113] : memref<7x128x512xf32, #tpu.memory_space<vmem>>, vector<1x128x512xf32>
    %505 = vector.shape_cast %504 : vector<1x128x512xf32> to vector<128x512xf32>
    %c2_114 = arith.constant 2 : index
    %c0_115 = arith.constant 0 : index
    %506 = vector.load %arg5[%c2_114, %c0_115] : memref<4x512xf32, #tpu.memory_space<vmem>>, vector<1x512xf32>
    %cst_116 = arith.constant dense<0.000000e+00> : vector<64x512xf32>
    %507 = tpu.matmul %501, %505, %cst_116 {dimension_numbers = #tpu.dot_dimension_numbers<[1], [0], [0], [1], [0, 0, 1, 1], [], []>} : vector<64x128xf32>, vector<128x512xf32>, vector<64x512xf32> -> vector<64x512xf32>
    %508 = vector.broadcast %506 : vector<1x512xf32> to vector<64x512xf32>
    %509 = arith.addf %507, %508 : vector<64x512xf32>
    %cst_117 = arith.constant 0.000000e+00 : f32
    %510 = vector.broadcast %cst_117 : f32 to vector<8x128xf32>
    %cst_118 = arith.constant 0.000000e+00 : f32
    %511 = vector.broadcast %cst_118 : f32 to vector<8x128xf32>
    %512 = vector.extract_strided_slice %509 {offsets = [0, 0], sizes = [8, 512], strides = [1, 1]} : vector<64x512xf32> to vector<8x512xf32>
    %cst_119 = arith.constant dense<0.000000e+00> : vector<8x512xf32>
    %513 = tpu.matmul %510, %503, %cst_119 {dimension_numbers = #tpu.dot_dimension_numbers<[1], [0], [0], [1], [0, 0, 1, 1], [], []>} : vector<8x128xf32>, vector<128x512xf32>, vector<8x512xf32> -> vector<8x512xf32>
    %514 = arith.addf %512, %513 : vector<8x512xf32>
    %515 = vector.extract_strided_slice %514 {offsets = [0, 0], sizes = [8, 128], strides = [1, 1]} : vector<8x512xf32> to vector<8x128xf32>
    %516 = arith.negf %515 : vector<8x128xf32>
    %517 = math.exp %516 : vector<8x128xf32>
    %cst_120 = arith.constant 1.000000e+00 : f32
    %518 = vector.broadcast %cst_120 : f32 to vector<8x128xf32>
    %519 = arith.addf %518, %517 : vector<8x128xf32>
    %520 = arith.divf %518, %519 : vector<8x128xf32>
    %521 = vector.extract_strided_slice %514 {offsets = [0, 128], sizes = [8, 128], strides = [1, 1]} : vector<8x512xf32> to vector<8x128xf32>
    %522 = arith.negf %521 : vector<8x128xf32>
    %523 = math.exp %522 : vector<8x128xf32>
    %cst_121 = arith.constant 1.000000e+00 : f32
    %524 = vector.broadcast %cst_121 : f32 to vector<8x128xf32>
    %525 = arith.addf %524, %523 : vector<8x128xf32>
    %526 = arith.divf %524, %525 : vector<8x128xf32>
    %527 = vector.extract_strided_slice %514 {offsets = [0, 256], sizes = [8, 128], strides = [1, 1]} : vector<8x512xf32> to vector<8x128xf32>
    %528 = math.tanh %527 : vector<8x128xf32>
    %529 = vector.extract_strided_slice %514 {offsets = [0, 384], sizes = [8, 128], strides = [1, 1]} : vector<8x512xf32> to vector<8x128xf32>
    %530 = arith.negf %529 : vector<8x128xf32>
    %531 = math.exp %530 : vector<8x128xf32>
    %cst_122 = arith.constant 1.000000e+00 : f32
    %532 = vector.broadcast %cst_122 : f32 to vector<8x128xf32>
    %533 = arith.addf %532, %531 : vector<8x128xf32>
    %534 = arith.divf %532, %533 : vector<8x128xf32>
    %535 = arith.mulf %526, %511 : vector<8x128xf32>
    %536 = arith.mulf %520, %528 : vector<8x128xf32>
    %537 = arith.addf %535, %536 : vector<8x128xf32>
    %538 = math.tanh %537 : vector<8x128xf32>
    %539 = arith.mulf %534, %538 : vector<8x128xf32>
    %540 = vector.extract_strided_slice %509 {offsets = [8, 0], sizes = [8, 512], strides = [1, 1]} : vector<64x512xf32> to vector<8x512xf32>
    %cst_123 = arith.constant dense<0.000000e+00> : vector<8x512xf32>
    %541 = tpu.matmul %539, %503, %cst_123 {dimension_numbers = #tpu.dot_dimension_numbers<[1], [0], [0], [1], [0, 0, 1, 1], [], []>} : vector<8x128xf32>, vector<128x512xf32>, vector<8x512xf32> -> vector<8x512xf32>
    %542 = arith.addf %540, %541 : vector<8x512xf32>
    %543 = vector.extract_strided_slice %542 {offsets = [0, 0], sizes = [8, 128], strides = [1, 1]} : vector<8x512xf32> to vector<8x128xf32>
    %544 = arith.negf %543 : vector<8x128xf32>
    %545 = math.exp %544 : vector<8x128xf32>
    %cst_124 = arith.constant 1.000000e+00 : f32
    %546 = vector.broadcast %cst_124 : f32 to vector<8x128xf32>
    %547 = arith.addf %546, %545 : vector<8x128xf32>
    %548 = arith.divf %546, %547 : vector<8x128xf32>
    %549 = vector.extract_strided_slice %542 {offsets = [0, 128], sizes = [8, 128], strides = [1, 1]} : vector<8x512xf32> to vector<8x128xf32>
    %550 = arith.negf %549 : vector<8x128xf32>
    %551 = math.exp %550 : vector<8x128xf32>
    %cst_125 = arith.constant 1.000000e+00 : f32
    %552 = vector.broadcast %cst_125 : f32 to vector<8x128xf32>
    %553 = arith.addf %552, %551 : vector<8x128xf32>
    %554 = arith.divf %552, %553 : vector<8x128xf32>
    %555 = vector.extract_strided_slice %542 {offsets = [0, 256], sizes = [8, 128], strides = [1, 1]} : vector<8x512xf32> to vector<8x128xf32>
    %556 = math.tanh %555 : vector<8x128xf32>
    %557 = vector.extract_strided_slice %542 {offsets = [0, 384], sizes = [8, 128], strides = [1, 1]} : vector<8x512xf32> to vector<8x128xf32>
    %558 = arith.negf %557 : vector<8x128xf32>
    %559 = math.exp %558 : vector<8x128xf32>
    %cst_126 = arith.constant 1.000000e+00 : f32
    %560 = vector.broadcast %cst_126 : f32 to vector<8x128xf32>
    %561 = arith.addf %560, %559 : vector<8x128xf32>
    %562 = arith.divf %560, %561 : vector<8x128xf32>
    %563 = arith.mulf %554, %537 : vector<8x128xf32>
    %564 = arith.mulf %548, %556 : vector<8x128xf32>
    %565 = arith.addf %563, %564 : vector<8x128xf32>
    %566 = math.tanh %565 : vector<8x128xf32>
    %567 = arith.mulf %562, %566 : vector<8x128xf32>
    %568 = vector.extract_strided_slice %509 {offsets = [16, 0], sizes = [8, 512], strides = [1, 1]} : vector<64x512xf32> to vector<8x512xf32>
    %cst_127 = arith.constant dense<0.000000e+00> : vector<8x512xf32>
    %569 = tpu.matmul %567, %503, %cst_127 {dimension_numbers = #tpu.dot_dimension_numbers<[1], [0], [0], [1], [0, 0, 1, 1], [], []>} : vector<8x128xf32>, vector<128x512xf32>, vector<8x512xf32> -> vector<8x512xf32>
    %570 = arith.addf %568, %569 : vector<8x512xf32>
    %571 = vector.extract_strided_slice %570 {offsets = [0, 0], sizes = [8, 128], strides = [1, 1]} : vector<8x512xf32> to vector<8x128xf32>
    %572 = arith.negf %571 : vector<8x128xf32>
    %573 = math.exp %572 : vector<8x128xf32>
    %cst_128 = arith.constant 1.000000e+00 : f32
    %574 = vector.broadcast %cst_128 : f32 to vector<8x128xf32>
    %575 = arith.addf %574, %573 : vector<8x128xf32>
    %576 = arith.divf %574, %575 : vector<8x128xf32>
    %577 = vector.extract_strided_slice %570 {offsets = [0, 128], sizes = [8, 128], strides = [1, 1]} : vector<8x512xf32> to vector<8x128xf32>
    %578 = arith.negf %577 : vector<8x128xf32>
    %579 = math.exp %578 : vector<8x128xf32>
    %cst_129 = arith.constant 1.000000e+00 : f32
    %580 = vector.broadcast %cst_129 : f32 to vector<8x128xf32>
    %581 = arith.addf %580, %579 : vector<8x128xf32>
    %582 = arith.divf %580, %581 : vector<8x128xf32>
    %583 = vector.extract_strided_slice %570 {offsets = [0, 256], sizes = [8, 128], strides = [1, 1]} : vector<8x512xf32> to vector<8x128xf32>
    %584 = math.tanh %583 : vector<8x128xf32>
    %585 = vector.extract_strided_slice %570 {offsets = [0, 384], sizes = [8, 128], strides = [1, 1]} : vector<8x512xf32> to vector<8x128xf32>
    %586 = arith.negf %585 : vector<8x128xf32>
    %587 = math.exp %586 : vector<8x128xf32>
    %cst_130 = arith.constant 1.000000e+00 : f32
    %588 = vector.broadcast %cst_130 : f32 to vector<8x128xf32>
    %589 = arith.addf %588, %587 : vector<8x128xf32>
    %590 = arith.divf %588, %589 : vector<8x128xf32>
    %591 = arith.mulf %582, %565 : vector<8x128xf32>
    %592 = arith.mulf %576, %584 : vector<8x128xf32>
    %593 = arith.addf %591, %592 : vector<8x128xf32>
    %594 = math.tanh %593 : vector<8x128xf32>
    %595 = arith.mulf %590, %594 : vector<8x128xf32>
    %596 = vector.extract_strided_slice %509 {offsets = [24, 0], sizes = [8, 512], strides = [1, 1]} : vector<64x512xf32> to vector<8x512xf32>
    %cst_131 = arith.constant dense<0.000000e+00> : vector<8x512xf32>
    %597 = tpu.matmul %595, %503, %cst_131 {dimension_numbers = #tpu.dot_dimension_numbers<[1], [0], [0], [1], [0, 0, 1, 1], [], []>} : vector<8x128xf32>, vector<128x512xf32>, vector<8x512xf32> -> vector<8x512xf32>
    %598 = arith.addf %596, %597 : vector<8x512xf32>
    %599 = vector.extract_strided_slice %598 {offsets = [0, 0], sizes = [8, 128], strides = [1, 1]} : vector<8x512xf32> to vector<8x128xf32>
    %600 = arith.negf %599 : vector<8x128xf32>
    %601 = math.exp %600 : vector<8x128xf32>
    %cst_132 = arith.constant 1.000000e+00 : f32
    %602 = vector.broadcast %cst_132 : f32 to vector<8x128xf32>
    %603 = arith.addf %602, %601 : vector<8x128xf32>
    %604 = arith.divf %602, %603 : vector<8x128xf32>
    %605 = vector.extract_strided_slice %598 {offsets = [0, 128], sizes = [8, 128], strides = [1, 1]} : vector<8x512xf32> to vector<8x128xf32>
    %606 = arith.negf %605 : vector<8x128xf32>
    %607 = math.exp %606 : vector<8x128xf32>
    %cst_133 = arith.constant 1.000000e+00 : f32
    %608 = vector.broadcast %cst_133 : f32 to vector<8x128xf32>
    %609 = arith.addf %608, %607 : vector<8x128xf32>
    %610 = arith.divf %608, %609 : vector<8x128xf32>
    %611 = vector.extract_strided_slice %598 {offsets = [0, 256], sizes = [8, 128], strides = [1, 1]} : vector<8x512xf32> to vector<8x128xf32>
    %612 = math.tanh %611 : vector<8x128xf32>
    %613 = vector.extract_strided_slice %598 {offsets = [0, 384], sizes = [8, 128], strides = [1, 1]} : vector<8x512xf32> to vector<8x128xf32>
    %614 = arith.negf %613 : vector<8x128xf32>
    %615 = math.exp %614 : vector<8x128xf32>
    %cst_134 = arith.constant 1.000000e+00 : f32
    %616 = vector.broadcast %cst_134 : f32 to vector<8x128xf32>
    %617 = arith.addf %616, %615 : vector<8x128xf32>
    %618 = arith.divf %616, %617 : vector<8x128xf32>
    %619 = arith.mulf %610, %593 : vector<8x128xf32>
    %620 = arith.mulf %604, %612 : vector<8x128xf32>
    %621 = arith.addf %619, %620 : vector<8x128xf32>
    %622 = math.tanh %621 : vector<8x128xf32>
    %623 = arith.mulf %618, %622 : vector<8x128xf32>
    %624 = vector.extract_strided_slice %509 {offsets = [32, 0], sizes = [8, 512], strides = [1, 1]} : vector<64x512xf32> to vector<8x512xf32>
    %cst_135 = arith.constant dense<0.000000e+00> : vector<8x512xf32>
    %625 = tpu.matmul %623, %503, %cst_135 {dimension_numbers = #tpu.dot_dimension_numbers<[1], [0], [0], [1], [0, 0, 1, 1], [], []>} : vector<8x128xf32>, vector<128x512xf32>, vector<8x512xf32> -> vector<8x512xf32>
    %626 = arith.addf %624, %625 : vector<8x512xf32>
    %627 = vector.extract_strided_slice %626 {offsets = [0, 0], sizes = [8, 128], strides = [1, 1]} : vector<8x512xf32> to vector<8x128xf32>
    %628 = arith.negf %627 : vector<8x128xf32>
    %629 = math.exp %628 : vector<8x128xf32>
    %cst_136 = arith.constant 1.000000e+00 : f32
    %630 = vector.broadcast %cst_136 : f32 to vector<8x128xf32>
    %631 = arith.addf %630, %629 : vector<8x128xf32>
    %632 = arith.divf %630, %631 : vector<8x128xf32>
    %633 = vector.extract_strided_slice %626 {offsets = [0, 128], sizes = [8, 128], strides = [1, 1]} : vector<8x512xf32> to vector<8x128xf32>
    %634 = arith.negf %633 : vector<8x128xf32>
    %635 = math.exp %634 : vector<8x128xf32>
    %cst_137 = arith.constant 1.000000e+00 : f32
    %636 = vector.broadcast %cst_137 : f32 to vector<8x128xf32>
    %637 = arith.addf %636, %635 : vector<8x128xf32>
    %638 = arith.divf %636, %637 : vector<8x128xf32>
    %639 = vector.extract_strided_slice %626 {offsets = [0, 256], sizes = [8, 128], strides = [1, 1]} : vector<8x512xf32> to vector<8x128xf32>
    %640 = math.tanh %639 : vector<8x128xf32>
    %641 = vector.extract_strided_slice %626 {offsets = [0, 384], sizes = [8, 128], strides = [1, 1]} : vector<8x512xf32> to vector<8x128xf32>
    %642 = arith.negf %641 : vector<8x128xf32>
    %643 = math.exp %642 : vector<8x128xf32>
    %cst_138 = arith.constant 1.000000e+00 : f32
    %644 = vector.broadcast %cst_138 : f32 to vector<8x128xf32>
    %645 = arith.addf %644, %643 : vector<8x128xf32>
    %646 = arith.divf %644, %645 : vector<8x128xf32>
    %647 = arith.mulf %638, %621 : vector<8x128xf32>
    %648 = arith.mulf %632, %640 : vector<8x128xf32>
    %649 = arith.addf %647, %648 : vector<8x128xf32>
    %650 = math.tanh %649 : vector<8x128xf32>
    %651 = arith.mulf %646, %650 : vector<8x128xf32>
    %652 = vector.extract_strided_slice %509 {offsets = [40, 0], sizes = [8, 512], strides = [1, 1]} : vector<64x512xf32> to vector<8x512xf32>
    %cst_139 = arith.constant dense<0.000000e+00> : vector<8x512xf32>
    %653 = tpu.matmul %651, %503, %cst_139 {dimension_numbers = #tpu.dot_dimension_numbers<[1], [0], [0], [1], [0, 0, 1, 1], [], []>} : vector<8x128xf32>, vector<128x512xf32>, vector<8x512xf32> -> vector<8x512xf32>
    %654 = arith.addf %652, %653 : vector<8x512xf32>
    %655 = vector.extract_strided_slice %654 {offsets = [0, 0], sizes = [8, 128], strides = [1, 1]} : vector<8x512xf32> to vector<8x128xf32>
    %656 = arith.negf %655 : vector<8x128xf32>
    %657 = math.exp %656 : vector<8x128xf32>
    %cst_140 = arith.constant 1.000000e+00 : f32
    %658 = vector.broadcast %cst_140 : f32 to vector<8x128xf32>
    %659 = arith.addf %658, %657 : vector<8x128xf32>
    %660 = arith.divf %658, %659 : vector<8x128xf32>
    %661 = vector.extract_strided_slice %654 {offsets = [0, 128], sizes = [8, 128], strides = [1, 1]} : vector<8x512xf32> to vector<8x128xf32>
    %662 = arith.negf %661 : vector<8x128xf32>
    %663 = math.exp %662 : vector<8x128xf32>
    %cst_141 = arith.constant 1.000000e+00 : f32
    %664 = vector.broadcast %cst_141 : f32 to vector<8x128xf32>
    %665 = arith.addf %664, %663 : vector<8x128xf32>
    %666 = arith.divf %664, %665 : vector<8x128xf32>
    %667 = vector.extract_strided_slice %654 {offsets = [0, 256], sizes = [8, 128], strides = [1, 1]} : vector<8x512xf32> to vector<8x128xf32>
    %668 = math.tanh %667 : vector<8x128xf32>
    %669 = vector.extract_strided_slice %654 {offsets = [0, 384], sizes = [8, 128], strides = [1, 1]} : vector<8x512xf32> to vector<8x128xf32>
    %670 = arith.negf %669 : vector<8x128xf32>
    %671 = math.exp %670 : vector<8x128xf32>
    %cst_142 = arith.constant 1.000000e+00 : f32
    %672 = vector.broadcast %cst_142 : f32 to vector<8x128xf32>
    %673 = arith.addf %672, %671 : vector<8x128xf32>
    %674 = arith.divf %672, %673 : vector<8x128xf32>
    %675 = arith.mulf %666, %649 : vector<8x128xf32>
    %676 = arith.mulf %660, %668 : vector<8x128xf32>
    %677 = arith.addf %675, %676 : vector<8x128xf32>
    %678 = math.tanh %677 : vector<8x128xf32>
    %679 = arith.mulf %674, %678 : vector<8x128xf32>
    %680 = vector.extract_strided_slice %509 {offsets = [48, 0], sizes = [8, 512], strides = [1, 1]} : vector<64x512xf32> to vector<8x512xf32>
    %cst_143 = arith.constant dense<0.000000e+00> : vector<8x512xf32>
    %681 = tpu.matmul %679, %503, %cst_143 {dimension_numbers = #tpu.dot_dimension_numbers<[1], [0], [0], [1], [0, 0, 1, 1], [], []>} : vector<8x128xf32>, vector<128x512xf32>, vector<8x512xf32> -> vector<8x512xf32>
    %682 = arith.addf %680, %681 : vector<8x512xf32>
    %683 = vector.extract_strided_slice %682 {offsets = [0, 0], sizes = [8, 128], strides = [1, 1]} : vector<8x512xf32> to vector<8x128xf32>
    %684 = arith.negf %683 : vector<8x128xf32>
    %685 = math.exp %684 : vector<8x128xf32>
    %cst_144 = arith.constant 1.000000e+00 : f32
    %686 = vector.broadcast %cst_144 : f32 to vector<8x128xf32>
    %687 = arith.addf %686, %685 : vector<8x128xf32>
    %688 = arith.divf %686, %687 : vector<8x128xf32>
    %689 = vector.extract_strided_slice %682 {offsets = [0, 128], sizes = [8, 128], strides = [1, 1]} : vector<8x512xf32> to vector<8x128xf32>
    %690 = arith.negf %689 : vector<8x128xf32>
    %691 = math.exp %690 : vector<8x128xf32>
    %cst_145 = arith.constant 1.000000e+00 : f32
    %692 = vector.broadcast %cst_145 : f32 to vector<8x128xf32>
    %693 = arith.addf %692, %691 : vector<8x128xf32>
    %694 = arith.divf %692, %693 : vector<8x128xf32>
    %695 = vector.extract_strided_slice %682 {offsets = [0, 256], sizes = [8, 128], strides = [1, 1]} : vector<8x512xf32> to vector<8x128xf32>
    %696 = math.tanh %695 : vector<8x128xf32>
    %697 = vector.extract_strided_slice %682 {offsets = [0, 384], sizes = [8, 128], strides = [1, 1]} : vector<8x512xf32> to vector<8x128xf32>
    %698 = arith.negf %697 : vector<8x128xf32>
    %699 = math.exp %698 : vector<8x128xf32>
    %cst_146 = arith.constant 1.000000e+00 : f32
    %700 = vector.broadcast %cst_146 : f32 to vector<8x128xf32>
    %701 = arith.addf %700, %699 : vector<8x128xf32>
    %702 = arith.divf %700, %701 : vector<8x128xf32>
    %703 = arith.mulf %694, %677 : vector<8x128xf32>
    %704 = arith.mulf %688, %696 : vector<8x128xf32>
    %705 = arith.addf %703, %704 : vector<8x128xf32>
    %706 = math.tanh %705 : vector<8x128xf32>
    %707 = arith.mulf %702, %706 : vector<8x128xf32>
    %708 = vector.extract_strided_slice %509 {offsets = [56, 0], sizes = [8, 512], strides = [1, 1]} : vector<64x512xf32> to vector<8x512xf32>
    %cst_147 = arith.constant dense<0.000000e+00> : vector<8x512xf32>
    %709 = tpu.matmul %707, %503, %cst_147 {dimension_numbers = #tpu.dot_dimension_numbers<[1], [0], [0], [1], [0, 0, 1, 1], [], []>} : vector<8x128xf32>, vector<128x512xf32>, vector<8x512xf32> -> vector<8x512xf32>
    %710 = arith.addf %708, %709 : vector<8x512xf32>
    %711 = vector.extract_strided_slice %710 {offsets = [0, 0], sizes = [8, 128], strides = [1, 1]} : vector<8x512xf32> to vector<8x128xf32>
    %712 = arith.negf %711 : vector<8x128xf32>
    %713 = math.exp %712 : vector<8x128xf32>
    %cst_148 = arith.constant 1.000000e+00 : f32
    %714 = vector.broadcast %cst_148 : f32 to vector<8x128xf32>
    %715 = arith.addf %714, %713 : vector<8x128xf32>
    %716 = arith.divf %714, %715 : vector<8x128xf32>
    %717 = vector.extract_strided_slice %710 {offsets = [0, 128], sizes = [8, 128], strides = [1, 1]} : vector<8x512xf32> to vector<8x128xf32>
    %718 = arith.negf %717 : vector<8x128xf32>
    %719 = math.exp %718 : vector<8x128xf32>
    %cst_149 = arith.constant 1.000000e+00 : f32
    %720 = vector.broadcast %cst_149 : f32 to vector<8x128xf32>
    %721 = arith.addf %720, %719 : vector<8x128xf32>
    %722 = arith.divf %720, %721 : vector<8x128xf32>
    %723 = vector.extract_strided_slice %710 {offsets = [0, 256], sizes = [8, 128], strides = [1, 1]} : vector<8x512xf32> to vector<8x128xf32>
    %724 = math.tanh %723 : vector<8x128xf32>
    %725 = vector.extract_strided_slice %710 {offsets = [0, 384], sizes = [8, 128], strides = [1, 1]} : vector<8x512xf32> to vector<8x128xf32>
    %726 = arith.negf %725 : vector<8x128xf32>
    %727 = math.exp %726 : vector<8x128xf32>
    %cst_150 = arith.constant 1.000000e+00 : f32
    %728 = vector.broadcast %cst_150 : f32 to vector<8x128xf32>
    %729 = arith.addf %728, %727 : vector<8x128xf32>
    %730 = arith.divf %728, %729 : vector<8x128xf32>
    %731 = arith.mulf %722, %705 : vector<8x128xf32>
    %732 = arith.mulf %716, %724 : vector<8x128xf32>
    %733 = arith.addf %731, %732 : vector<8x128xf32>
    %734 = math.tanh %733 : vector<8x128xf32>
    %735 = arith.mulf %730, %734 : vector<8x128xf32>
    %736 = tpu.concatenate %539, %567, %595, %623, %651, %679, %707, %735 in 0 : vector<8x128xf32>, vector<8x128xf32>, vector<8x128xf32>, vector<8x128xf32>, vector<8x128xf32>, vector<8x128xf32>, vector<8x128xf32>, vector<8x128xf32> -> vector<64x128xf32>
    %c3_151 = arith.constant 3 : index
    %c0_152 = arith.constant 0 : index
    %c0_153 = arith.constant 0 : index
    %737 = vector.load %arg4[%c3_151, %c0_152, %c0_153] : memref<7x128x512xf32, #tpu.memory_space<vmem>>, vector<1x128x512xf32>
    %738 = vector.shape_cast %737 : vector<1x128x512xf32> to vector<128x512xf32>
    %c6 = arith.constant 6 : index
    %c0_154 = arith.constant 0 : index
    %c0_155 = arith.constant 0 : index
    %739 = vector.load %arg4[%c6, %c0_154, %c0_155] : memref<7x128x512xf32, #tpu.memory_space<vmem>>, vector<1x128x512xf32>
    %740 = vector.shape_cast %739 : vector<1x128x512xf32> to vector<128x512xf32>
    %c3_156 = arith.constant 3 : index
    %c0_157 = arith.constant 0 : index
    %741 = vector.load %arg5[%c3_156, %c0_157] : memref<4x512xf32, #tpu.memory_space<vmem>>, vector<1x512xf32>
    %cst_158 = arith.constant dense<0.000000e+00> : vector<64x512xf32>
    %742 = tpu.matmul %736, %740, %cst_158 {dimension_numbers = #tpu.dot_dimension_numbers<[1], [0], [0], [1], [0, 0, 1, 1], [], []>} : vector<64x128xf32>, vector<128x512xf32>, vector<64x512xf32> -> vector<64x512xf32>
    %743 = vector.broadcast %741 : vector<1x512xf32> to vector<64x512xf32>
    %744 = arith.addf %742, %743 : vector<64x512xf32>
    %cst_159 = arith.constant 0.000000e+00 : f32
    %745 = vector.broadcast %cst_159 : f32 to vector<8x128xf32>
    %cst_160 = arith.constant 0.000000e+00 : f32
    %746 = vector.broadcast %cst_160 : f32 to vector<8x128xf32>
    %747 = vector.extract_strided_slice %744 {offsets = [0, 0], sizes = [8, 512], strides = [1, 1]} : vector<64x512xf32> to vector<8x512xf32>
    %cst_161 = arith.constant dense<0.000000e+00> : vector<8x512xf32>
    %748 = tpu.matmul %745, %738, %cst_161 {dimension_numbers = #tpu.dot_dimension_numbers<[1], [0], [0], [1], [0, 0, 1, 1], [], []>} : vector<8x128xf32>, vector<128x512xf32>, vector<8x512xf32> -> vector<8x512xf32>
    %749 = arith.addf %747, %748 : vector<8x512xf32>
    %750 = vector.extract_strided_slice %749 {offsets = [0, 0], sizes = [8, 128], strides = [1, 1]} : vector<8x512xf32> to vector<8x128xf32>
    %751 = arith.negf %750 : vector<8x128xf32>
    %752 = math.exp %751 : vector<8x128xf32>
    %cst_162 = arith.constant 1.000000e+00 : f32
    %753 = vector.broadcast %cst_162 : f32 to vector<8x128xf32>
    %754 = arith.addf %753, %752 : vector<8x128xf32>
    %755 = arith.divf %753, %754 : vector<8x128xf32>
    %756 = vector.extract_strided_slice %749 {offsets = [0, 128], sizes = [8, 128], strides = [1, 1]} : vector<8x512xf32> to vector<8x128xf32>
    %757 = arith.negf %756 : vector<8x128xf32>
    %758 = math.exp %757 : vector<8x128xf32>
    %cst_163 = arith.constant 1.000000e+00 : f32
    %759 = vector.broadcast %cst_163 : f32 to vector<8x128xf32>
    %760 = arith.addf %759, %758 : vector<8x128xf32>
    %761 = arith.divf %759, %760 : vector<8x128xf32>
    %762 = vector.extract_strided_slice %749 {offsets = [0, 256], sizes = [8, 128], strides = [1, 1]} : vector<8x512xf32> to vector<8x128xf32>
    %763 = math.tanh %762 : vector<8x128xf32>
    %764 = vector.extract_strided_slice %749 {offsets = [0, 384], sizes = [8, 128], strides = [1, 1]} : vector<8x512xf32> to vector<8x128xf32>
    %765 = arith.negf %764 : vector<8x128xf32>
    %766 = math.exp %765 : vector<8x128xf32>
    %cst_164 = arith.constant 1.000000e+00 : f32
    %767 = vector.broadcast %cst_164 : f32 to vector<8x128xf32>
    %768 = arith.addf %767, %766 : vector<8x128xf32>
    %769 = arith.divf %767, %768 : vector<8x128xf32>
    %770 = arith.mulf %761, %746 : vector<8x128xf32>
    %771 = arith.mulf %755, %763 : vector<8x128xf32>
    %772 = arith.addf %770, %771 : vector<8x128xf32>
    %773 = math.tanh %772 : vector<8x128xf32>
    %774 = arith.mulf %769, %773 : vector<8x128xf32>
    %775 = vector.extract_strided_slice %744 {offsets = [8, 0], sizes = [8, 512], strides = [1, 1]} : vector<64x512xf32> to vector<8x512xf32>
    %cst_165 = arith.constant dense<0.000000e+00> : vector<8x512xf32>
    %776 = tpu.matmul %774, %738, %cst_165 {dimension_numbers = #tpu.dot_dimension_numbers<[1], [0], [0], [1], [0, 0, 1, 1], [], []>} : vector<8x128xf32>, vector<128x512xf32>, vector<8x512xf32> -> vector<8x512xf32>
    %777 = arith.addf %775, %776 : vector<8x512xf32>
    %778 = vector.extract_strided_slice %777 {offsets = [0, 0], sizes = [8, 128], strides = [1, 1]} : vector<8x512xf32> to vector<8x128xf32>
    %779 = arith.negf %778 : vector<8x128xf32>
    %780 = math.exp %779 : vector<8x128xf32>
    %cst_166 = arith.constant 1.000000e+00 : f32
    %781 = vector.broadcast %cst_166 : f32 to vector<8x128xf32>
    %782 = arith.addf %781, %780 : vector<8x128xf32>
    %783 = arith.divf %781, %782 : vector<8x128xf32>
    %784 = vector.extract_strided_slice %777 {offsets = [0, 128], sizes = [8, 128], strides = [1, 1]} : vector<8x512xf32> to vector<8x128xf32>
    %785 = arith.negf %784 : vector<8x128xf32>
    %786 = math.exp %785 : vector<8x128xf32>
    %cst_167 = arith.constant 1.000000e+00 : f32
    %787 = vector.broadcast %cst_167 : f32 to vector<8x128xf32>
    %788 = arith.addf %787, %786 : vector<8x128xf32>
    %789 = arith.divf %787, %788 : vector<8x128xf32>
    %790 = vector.extract_strided_slice %777 {offsets = [0, 256], sizes = [8, 128], strides = [1, 1]} : vector<8x512xf32> to vector<8x128xf32>
    %791 = math.tanh %790 : vector<8x128xf32>
    %792 = vector.extract_strided_slice %777 {offsets = [0, 384], sizes = [8, 128], strides = [1, 1]} : vector<8x512xf32> to vector<8x128xf32>
    %793 = arith.negf %792 : vector<8x128xf32>
    %794 = math.exp %793 : vector<8x128xf32>
    %cst_168 = arith.constant 1.000000e+00 : f32
    %795 = vector.broadcast %cst_168 : f32 to vector<8x128xf32>
    %796 = arith.addf %795, %794 : vector<8x128xf32>
    %797 = arith.divf %795, %796 : vector<8x128xf32>
    %798 = arith.mulf %789, %772 : vector<8x128xf32>
    %799 = arith.mulf %783, %791 : vector<8x128xf32>
    %800 = arith.addf %798, %799 : vector<8x128xf32>
    %801 = math.tanh %800 : vector<8x128xf32>
    %802 = arith.mulf %797, %801 : vector<8x128xf32>
    %803 = vector.extract_strided_slice %744 {offsets = [16, 0], sizes = [8, 512], strides = [1, 1]} : vector<64x512xf32> to vector<8x512xf32>
    %cst_169 = arith.constant dense<0.000000e+00> : vector<8x512xf32>
    %804 = tpu.matmul %802, %738, %cst_169 {dimension_numbers = #tpu.dot_dimension_numbers<[1], [0], [0], [1], [0, 0, 1, 1], [], []>} : vector<8x128xf32>, vector<128x512xf32>, vector<8x512xf32> -> vector<8x512xf32>
    %805 = arith.addf %803, %804 : vector<8x512xf32>
    %806 = vector.extract_strided_slice %805 {offsets = [0, 0], sizes = [8, 128], strides = [1, 1]} : vector<8x512xf32> to vector<8x128xf32>
    %807 = arith.negf %806 : vector<8x128xf32>
    %808 = math.exp %807 : vector<8x128xf32>
    %cst_170 = arith.constant 1.000000e+00 : f32
    %809 = vector.broadcast %cst_170 : f32 to vector<8x128xf32>
    %810 = arith.addf %809, %808 : vector<8x128xf32>
    %811 = arith.divf %809, %810 : vector<8x128xf32>
    %812 = vector.extract_strided_slice %805 {offsets = [0, 128], sizes = [8, 128], strides = [1, 1]} : vector<8x512xf32> to vector<8x128xf32>
    %813 = arith.negf %812 : vector<8x128xf32>
    %814 = math.exp %813 : vector<8x128xf32>
    %cst_171 = arith.constant 1.000000e+00 : f32
    %815 = vector.broadcast %cst_171 : f32 to vector<8x128xf32>
    %816 = arith.addf %815, %814 : vector<8x128xf32>
    %817 = arith.divf %815, %816 : vector<8x128xf32>
    %818 = vector.extract_strided_slice %805 {offsets = [0, 256], sizes = [8, 128], strides = [1, 1]} : vector<8x512xf32> to vector<8x128xf32>
    %819 = math.tanh %818 : vector<8x128xf32>
    %820 = vector.extract_strided_slice %805 {offsets = [0, 384], sizes = [8, 128], strides = [1, 1]} : vector<8x512xf32> to vector<8x128xf32>
    %821 = arith.negf %820 : vector<8x128xf32>
    %822 = math.exp %821 : vector<8x128xf32>
    %cst_172 = arith.constant 1.000000e+00 : f32
    %823 = vector.broadcast %cst_172 : f32 to vector<8x128xf32>
    %824 = arith.addf %823, %822 : vector<8x128xf32>
    %825 = arith.divf %823, %824 : vector<8x128xf32>
    %826 = arith.mulf %817, %800 : vector<8x128xf32>
    %827 = arith.mulf %811, %819 : vector<8x128xf32>
    %828 = arith.addf %826, %827 : vector<8x128xf32>
    %829 = math.tanh %828 : vector<8x128xf32>
    %830 = arith.mulf %825, %829 : vector<8x128xf32>
    %831 = vector.extract_strided_slice %744 {offsets = [24, 0], sizes = [8, 512], strides = [1, 1]} : vector<64x512xf32> to vector<8x512xf32>
    %cst_173 = arith.constant dense<0.000000e+00> : vector<8x512xf32>
    %832 = tpu.matmul %830, %738, %cst_173 {dimension_numbers = #tpu.dot_dimension_numbers<[1], [0], [0], [1], [0, 0, 1, 1], [], []>} : vector<8x128xf32>, vector<128x512xf32>, vector<8x512xf32> -> vector<8x512xf32>
    %833 = arith.addf %831, %832 : vector<8x512xf32>
    %834 = vector.extract_strided_slice %833 {offsets = [0, 0], sizes = [8, 128], strides = [1, 1]} : vector<8x512xf32> to vector<8x128xf32>
    %835 = arith.negf %834 : vector<8x128xf32>
    %836 = math.exp %835 : vector<8x128xf32>
    %cst_174 = arith.constant 1.000000e+00 : f32
    %837 = vector.broadcast %cst_174 : f32 to vector<8x128xf32>
    %838 = arith.addf %837, %836 : vector<8x128xf32>
    %839 = arith.divf %837, %838 : vector<8x128xf32>
    %840 = vector.extract_strided_slice %833 {offsets = [0, 128], sizes = [8, 128], strides = [1, 1]} : vector<8x512xf32> to vector<8x128xf32>
    %841 = arith.negf %840 : vector<8x128xf32>
    %842 = math.exp %841 : vector<8x128xf32>
    %cst_175 = arith.constant 1.000000e+00 : f32
    %843 = vector.broadcast %cst_175 : f32 to vector<8x128xf32>
    %844 = arith.addf %843, %842 : vector<8x128xf32>
    %845 = arith.divf %843, %844 : vector<8x128xf32>
    %846 = vector.extract_strided_slice %833 {offsets = [0, 256], sizes = [8, 128], strides = [1, 1]} : vector<8x512xf32> to vector<8x128xf32>
    %847 = math.tanh %846 : vector<8x128xf32>
    %848 = vector.extract_strided_slice %833 {offsets = [0, 384], sizes = [8, 128], strides = [1, 1]} : vector<8x512xf32> to vector<8x128xf32>
    %849 = arith.negf %848 : vector<8x128xf32>
    %850 = math.exp %849 : vector<8x128xf32>
    %cst_176 = arith.constant 1.000000e+00 : f32
    %851 = vector.broadcast %cst_176 : f32 to vector<8x128xf32>
    %852 = arith.addf %851, %850 : vector<8x128xf32>
    %853 = arith.divf %851, %852 : vector<8x128xf32>
    %854 = arith.mulf %845, %828 : vector<8x128xf32>
    %855 = arith.mulf %839, %847 : vector<8x128xf32>
    %856 = arith.addf %854, %855 : vector<8x128xf32>
    %857 = math.tanh %856 : vector<8x128xf32>
    %858 = arith.mulf %853, %857 : vector<8x128xf32>
    %859 = vector.extract_strided_slice %744 {offsets = [32, 0], sizes = [8, 512], strides = [1, 1]} : vector<64x512xf32> to vector<8x512xf32>
    %cst_177 = arith.constant dense<0.000000e+00> : vector<8x512xf32>
    %860 = tpu.matmul %858, %738, %cst_177 {dimension_numbers = #tpu.dot_dimension_numbers<[1], [0], [0], [1], [0, 0, 1, 1], [], []>} : vector<8x128xf32>, vector<128x512xf32>, vector<8x512xf32> -> vector<8x512xf32>
    %861 = arith.addf %859, %860 : vector<8x512xf32>
    %862 = vector.extract_strided_slice %861 {offsets = [0, 0], sizes = [8, 128], strides = [1, 1]} : vector<8x512xf32> to vector<8x128xf32>
    %863 = arith.negf %862 : vector<8x128xf32>
    %864 = math.exp %863 : vector<8x128xf32>
    %cst_178 = arith.constant 1.000000e+00 : f32
    %865 = vector.broadcast %cst_178 : f32 to vector<8x128xf32>
    %866 = arith.addf %865, %864 : vector<8x128xf32>
    %867 = arith.divf %865, %866 : vector<8x128xf32>
    %868 = vector.extract_strided_slice %861 {offsets = [0, 128], sizes = [8, 128], strides = [1, 1]} : vector<8x512xf32> to vector<8x128xf32>
    %869 = arith.negf %868 : vector<8x128xf32>
    %870 = math.exp %869 : vector<8x128xf32>
    %cst_179 = arith.constant 1.000000e+00 : f32
    %871 = vector.broadcast %cst_179 : f32 to vector<8x128xf32>
    %872 = arith.addf %871, %870 : vector<8x128xf32>
    %873 = arith.divf %871, %872 : vector<8x128xf32>
    %874 = vector.extract_strided_slice %861 {offsets = [0, 256], sizes = [8, 128], strides = [1, 1]} : vector<8x512xf32> to vector<8x128xf32>
    %875 = math.tanh %874 : vector<8x128xf32>
    %876 = vector.extract_strided_slice %861 {offsets = [0, 384], sizes = [8, 128], strides = [1, 1]} : vector<8x512xf32> to vector<8x128xf32>
    %877 = arith.negf %876 : vector<8x128xf32>
    %878 = math.exp %877 : vector<8x128xf32>
    %cst_180 = arith.constant 1.000000e+00 : f32
    %879 = vector.broadcast %cst_180 : f32 to vector<8x128xf32>
    %880 = arith.addf %879, %878 : vector<8x128xf32>
    %881 = arith.divf %879, %880 : vector<8x128xf32>
    %882 = arith.mulf %873, %856 : vector<8x128xf32>
    %883 = arith.mulf %867, %875 : vector<8x128xf32>
    %884 = arith.addf %882, %883 : vector<8x128xf32>
    %885 = math.tanh %884 : vector<8x128xf32>
    %886 = arith.mulf %881, %885 : vector<8x128xf32>
    %887 = vector.extract_strided_slice %744 {offsets = [40, 0], sizes = [8, 512], strides = [1, 1]} : vector<64x512xf32> to vector<8x512xf32>
    %cst_181 = arith.constant dense<0.000000e+00> : vector<8x512xf32>
    %888 = tpu.matmul %886, %738, %cst_181 {dimension_numbers = #tpu.dot_dimension_numbers<[1], [0], [0], [1], [0, 0, 1, 1], [], []>} : vector<8x128xf32>, vector<128x512xf32>, vector<8x512xf32> -> vector<8x512xf32>
    %889 = arith.addf %887, %888 : vector<8x512xf32>
    %890 = vector.extract_strided_slice %889 {offsets = [0, 0], sizes = [8, 128], strides = [1, 1]} : vector<8x512xf32> to vector<8x128xf32>
    %891 = arith.negf %890 : vector<8x128xf32>
    %892 = math.exp %891 : vector<8x128xf32>
    %cst_182 = arith.constant 1.000000e+00 : f32
    %893 = vector.broadcast %cst_182 : f32 to vector<8x128xf32>
    %894 = arith.addf %893, %892 : vector<8x128xf32>
    %895 = arith.divf %893, %894 : vector<8x128xf32>
    %896 = vector.extract_strided_slice %889 {offsets = [0, 128], sizes = [8, 128], strides = [1, 1]} : vector<8x512xf32> to vector<8x128xf32>
    %897 = arith.negf %896 : vector<8x128xf32>
    %898 = math.exp %897 : vector<8x128xf32>
    %cst_183 = arith.constant 1.000000e+00 : f32
    %899 = vector.broadcast %cst_183 : f32 to vector<8x128xf32>
    %900 = arith.addf %899, %898 : vector<8x128xf32>
    %901 = arith.divf %899, %900 : vector<8x128xf32>
    %902 = vector.extract_strided_slice %889 {offsets = [0, 256], sizes = [8, 128], strides = [1, 1]} : vector<8x512xf32> to vector<8x128xf32>
    %903 = math.tanh %902 : vector<8x128xf32>
    %904 = vector.extract_strided_slice %889 {offsets = [0, 384], sizes = [8, 128], strides = [1, 1]} : vector<8x512xf32> to vector<8x128xf32>
    %905 = arith.negf %904 : vector<8x128xf32>
    %906 = math.exp %905 : vector<8x128xf32>
    %cst_184 = arith.constant 1.000000e+00 : f32
    %907 = vector.broadcast %cst_184 : f32 to vector<8x128xf32>
    %908 = arith.addf %907, %906 : vector<8x128xf32>
    %909 = arith.divf %907, %908 : vector<8x128xf32>
    %910 = arith.mulf %901, %884 : vector<8x128xf32>
    %911 = arith.mulf %895, %903 : vector<8x128xf32>
    %912 = arith.addf %910, %911 : vector<8x128xf32>
    %913 = math.tanh %912 : vector<8x128xf32>
    %914 = arith.mulf %909, %913 : vector<8x128xf32>
    %915 = vector.extract_strided_slice %744 {offsets = [48, 0], sizes = [8, 512], strides = [1, 1]} : vector<64x512xf32> to vector<8x512xf32>
    %cst_185 = arith.constant dense<0.000000e+00> : vector<8x512xf32>
    %916 = tpu.matmul %914, %738, %cst_185 {dimension_numbers = #tpu.dot_dimension_numbers<[1], [0], [0], [1], [0, 0, 1, 1], [], []>} : vector<8x128xf32>, vector<128x512xf32>, vector<8x512xf32> -> vector<8x512xf32>
    %917 = arith.addf %915, %916 : vector<8x512xf32>
    %918 = vector.extract_strided_slice %917 {offsets = [0, 0], sizes = [8, 128], strides = [1, 1]} : vector<8x512xf32> to vector<8x128xf32>
    %919 = arith.negf %918 : vector<8x128xf32>
    %920 = math.exp %919 : vector<8x128xf32>
    %cst_186 = arith.constant 1.000000e+00 : f32
    %921 = vector.broadcast %cst_186 : f32 to vector<8x128xf32>
    %922 = arith.addf %921, %920 : vector<8x128xf32>
    %923 = arith.divf %921, %922 : vector<8x128xf32>
    %924 = vector.extract_strided_slice %917 {offsets = [0, 128], sizes = [8, 128], strides = [1, 1]} : vector<8x512xf32> to vector<8x128xf32>
    %925 = arith.negf %924 : vector<8x128xf32>
    %926 = math.exp %925 : vector<8x128xf32>
    %cst_187 = arith.constant 1.000000e+00 : f32
    %927 = vector.broadcast %cst_187 : f32 to vector<8x128xf32>
    %928 = arith.addf %927, %926 : vector<8x128xf32>
    %929 = arith.divf %927, %928 : vector<8x128xf32>
    %930 = vector.extract_strided_slice %917 {offsets = [0, 256], sizes = [8, 128], strides = [1, 1]} : vector<8x512xf32> to vector<8x128xf32>
    %931 = math.tanh %930 : vector<8x128xf32>
    %932 = vector.extract_strided_slice %917 {offsets = [0, 384], sizes = [8, 128], strides = [1, 1]} : vector<8x512xf32> to vector<8x128xf32>
    %933 = arith.negf %932 : vector<8x128xf32>
    %934 = math.exp %933 : vector<8x128xf32>
    %cst_188 = arith.constant 1.000000e+00 : f32
    %935 = vector.broadcast %cst_188 : f32 to vector<8x128xf32>
    %936 = arith.addf %935, %934 : vector<8x128xf32>
    %937 = arith.divf %935, %936 : vector<8x128xf32>
    %938 = arith.mulf %929, %912 : vector<8x128xf32>
    %939 = arith.mulf %923, %931 : vector<8x128xf32>
    %940 = arith.addf %938, %939 : vector<8x128xf32>
    %941 = math.tanh %940 : vector<8x128xf32>
    %942 = arith.mulf %937, %941 : vector<8x128xf32>
    %943 = vector.extract_strided_slice %744 {offsets = [56, 0], sizes = [8, 512], strides = [1, 1]} : vector<64x512xf32> to vector<8x512xf32>
    %cst_189 = arith.constant dense<0.000000e+00> : vector<8x512xf32>
    %944 = tpu.matmul %942, %738, %cst_189 {dimension_numbers = #tpu.dot_dimension_numbers<[1], [0], [0], [1], [0, 0, 1, 1], [], []>} : vector<8x128xf32>, vector<128x512xf32>, vector<8x512xf32> -> vector<8x512xf32>
    %945 = arith.addf %943, %944 : vector<8x512xf32>
    %946 = vector.extract_strided_slice %945 {offsets = [0, 0], sizes = [8, 128], strides = [1, 1]} : vector<8x512xf32> to vector<8x128xf32>
    %947 = arith.negf %946 : vector<8x128xf32>
    %948 = math.exp %947 : vector<8x128xf32>
    %cst_190 = arith.constant 1.000000e+00 : f32
    %949 = vector.broadcast %cst_190 : f32 to vector<8x128xf32>
    %950 = arith.addf %949, %948 : vector<8x128xf32>
    %951 = arith.divf %949, %950 : vector<8x128xf32>
    %952 = vector.extract_strided_slice %945 {offsets = [0, 128], sizes = [8, 128], strides = [1, 1]} : vector<8x512xf32> to vector<8x128xf32>
    %953 = arith.negf %952 : vector<8x128xf32>
    %954 = math.exp %953 : vector<8x128xf32>
    %cst_191 = arith.constant 1.000000e+00 : f32
    %955 = vector.broadcast %cst_191 : f32 to vector<8x128xf32>
    %956 = arith.addf %955, %954 : vector<8x128xf32>
    %957 = arith.divf %955, %956 : vector<8x128xf32>
    %958 = vector.extract_strided_slice %945 {offsets = [0, 256], sizes = [8, 128], strides = [1, 1]} : vector<8x512xf32> to vector<8x128xf32>
    %959 = math.tanh %958 : vector<8x128xf32>
    %960 = vector.extract_strided_slice %945 {offsets = [0, 384], sizes = [8, 128], strides = [1, 1]} : vector<8x512xf32> to vector<8x128xf32>
    %961 = arith.negf %960 : vector<8x128xf32>
    %962 = math.exp %961 : vector<8x128xf32>
    %cst_192 = arith.constant 1.000000e+00 : f32
    %963 = vector.broadcast %cst_192 : f32 to vector<8x128xf32>
    %964 = arith.addf %963, %962 : vector<8x128xf32>
    %965 = arith.divf %963, %964 : vector<8x128xf32>
    %966 = arith.mulf %957, %940 : vector<8x128xf32>
    %967 = arith.mulf %951, %959 : vector<8x128xf32>
    %968 = arith.addf %966, %967 : vector<8x128xf32>
    %969 = math.tanh %968 : vector<8x128xf32>
    %970 = arith.mulf %965, %969 : vector<8x128xf32>
    %c0_193 = arith.constant 0 : index
    %c0_194 = arith.constant 0 : index
    %971 = vector.load %arg6[%c0_193, %c0_194] : memref<128x32xf32, #tpu.memory_space<vmem>>, vector<128x32xf32>
    %cst_195 = arith.constant dense<0.000000e+00> : vector<8x32xf32>
    %972 = tpu.matmul %970, %971, %cst_195 {dimension_numbers = #tpu.dot_dimension_numbers<[1], [0], [0], [1], [0, 0, 1, 1], [], []>} : vector<8x128xf32>, vector<128x32xf32>, vector<8x32xf32> -> vector<8x32xf32>
    %c4_196 = arith.constant 4 : index
    %c0_197 = arith.constant 0 : index
    %973 = vector.load %arg2[%c4_196, %c0_197] : memref<7x32xf32, #tpu.memory_space<vmem>>, vector<1x32xf32>
    %974 = vector.broadcast %973 : vector<1x32xf32> to vector<8x32xf32>
    %975 = arith.addf %972, %974 : vector<8x32xf32>
    %cst_198 = arith.constant 0.000000e+00 : f32
    %976 = vector.broadcast %cst_198 : f32 to vector<8x32xf32>
    %977 = arith.maximumf %975, %976 : vector<8x32xf32>
    %c4_199 = arith.constant 4 : index
    %c0_200 = arith.constant 0 : index
    %c0_201 = arith.constant 0 : index
    %978 = vector.load %arg1[%c4_199, %c0_200, %c0_201] : memref<6x32x32xf32, #tpu.memory_space<vmem>>, vector<1x32x32xf32>
    %979 = vector.shape_cast %978 : vector<1x32x32xf32> to vector<32x32xf32>
    %cst_202 = arith.constant dense<0.000000e+00> : vector<8x32xf32>
    %980 = tpu.matmul %977, %979, %cst_202 {dimension_numbers = #tpu.dot_dimension_numbers<[1], [0], [0], [1], [0, 0, 1, 1], [], []>} : vector<8x32xf32>, vector<32x32xf32>, vector<8x32xf32> -> vector<8x32xf32>
    %c5_203 = arith.constant 5 : index
    %c0_204 = arith.constant 0 : index
    %981 = vector.load %arg2[%c5_203, %c0_204] : memref<7x32xf32, #tpu.memory_space<vmem>>, vector<1x32xf32>
    %982 = vector.broadcast %981 : vector<1x32xf32> to vector<8x32xf32>
    %983 = arith.addf %980, %982 : vector<8x32xf32>
    %cst_205 = arith.constant 0.000000e+00 : f32
    %984 = vector.broadcast %cst_205 : f32 to vector<8x32xf32>
    %985 = arith.maximumf %983, %984 : vector<8x32xf32>
    %c5_206 = arith.constant 5 : index
    %c0_207 = arith.constant 0 : index
    %c0_208 = arith.constant 0 : index
    %986 = vector.load %arg1[%c5_206, %c0_207, %c0_208] : memref<6x32x32xf32, #tpu.memory_space<vmem>>, vector<1x32x32xf32>
    %987 = vector.shape_cast %986 : vector<1x32x32xf32> to vector<32x32xf32>
    %cst_209 = arith.constant dense<0.000000e+00> : vector<8x32xf32>
    %988 = tpu.matmul %985, %987, %cst_209 {dimension_numbers = #tpu.dot_dimension_numbers<[1], [0], [0], [1], [0, 0, 1, 1], [], []>} : vector<8x32xf32>, vector<32x32xf32>, vector<8x32xf32> -> vector<8x32xf32>
    %c6_210 = arith.constant 6 : index
    %c0_211 = arith.constant 0 : index
    %989 = vector.load %arg2[%c6_210, %c0_211] : memref<7x32xf32, #tpu.memory_space<vmem>>, vector<1x32xf32>
    %990 = vector.broadcast %989 : vector<1x32xf32> to vector<8x32xf32>
    %991 = arith.addf %988, %990 : vector<8x32xf32>
    %cst_212 = arith.constant 0.000000e+00 : f32
    %992 = vector.broadcast %cst_212 : f32 to vector<8x32xf32>
    %993 = arith.maximumf %991, %992 : vector<8x32xf32>
    %c0_213 = arith.constant 0 : index
    %c0_214 = arith.constant 0 : index
    %994 = vector.load %arg7[%c0_213, %c0_214] : memref<32x128xf32, #tpu.memory_space<vmem>>, vector<32x128xf32>
    %cst_215 = arith.constant dense<0.000000e+00> : vector<8x128xf32>
    %995 = tpu.matmul %993, %994, %cst_215 {dimension_numbers = #tpu.dot_dimension_numbers<[1], [0], [0], [1], [0, 0, 1, 1], [], []>} : vector<8x32xf32>, vector<32x128xf32>, vector<8x128xf32> -> vector<8x128xf32>
    %c0_216 = arith.constant 0 : index
    %c0_217 = arith.constant 0 : index
    %996 = vector.load %arg8[%c0_216, %c0_217] : memref<1x128xf32, #tpu.memory_space<vmem>>, vector<1x128xf32>
    %997 = vector.broadcast %996 : vector<1x128xf32> to vector<8x128xf32>
    %998 = arith.addf %995, %997 : vector<8x128xf32>
    %c0_218 = arith.constant 0 : index
    %c0_219 = arith.constant 0 : index
    %999 = vector.load %arg9[%c0_218, %c0_219] : memref<8x128xf32, #tpu.memory_space<vmem>>, vector<8x128xf32>
    tpu.vector_store %arg9[%c0_218, %c0_219], %998 {strides = array<i32>} : memref<8x128xf32, #tpu.memory_space<vmem>>, vector<8x128xf32>,
    return
  }
}

</mosaic_0001>

<llo_original>
// kernel: jihyeon_lstm_classifier.1
$region0: #{jihyeon_lstm_classifier.1}
  #allocation0 [shape = 'u32[]', space=smem, size = 0x4, offset = 0x4, fixed_abs, tag = 'smem constant byte address 0x4 - core index']
  #allocation1 [shape = 'u32[144,128]{1,0:T(1,128)}', space=vmem, size = 0x12000, scoped, tag = 'internal scratch']
  %s0 = inlined_call_operand.vmem [shape: f32[64,32], index: 0, kind: input, shape index: {}]
  %s1 = inlined_call_operand.hbm [shape: f32[6,32,32], index: 1, kind: input, shape index: {}]
  %s2 = inlined_call_operand.hbm [shape: f32[7,32], index: 2, kind: input, shape index: {}]
  %s3 = inlined_call_operand.hbm [shape: f32[32,512], index: 3, kind: input, shape index: {}]
  %s4 = inlined_call_operand.hbm [shape: f32[7,128,512], index: 4, kind: input, shape index: {}]
  %s5 = inlined_call_operand.hbm [shape: f32[4,512], index: 5, kind: input, shape index: {}]
  %s6 = inlined_call_operand.vmem [shape: f32[128,32], index: 6, kind: input, shape index: {}]
  %s7 = inlined_call_operand.hbm [shape: f32[32,128], index: 7, kind: input, shape index: {}]
  %s8 = inlined_call_operand.hbm [shape: f32[1,128], index: 8, kind: input, shape index: {}]
  %s9 = inlined_call_operand.vmem [shape: f32[8,128], index: 9, kind: output, shape index: {}]
  %s10 = sld [smem:[#allocation0]]
  $region74: #{jihyeon_lstm_classifier.1} parent=0
    _
  %s12 = ssub.s32 1, %s10
  %s13 = scalar_select 0, %s12, %s10
  $region1: #{jihyeon_lstm_classifier.1} parent=0
    #allocation2 [shape = 'u8[98304]{0}', space=vmem, size = 0x18000, scoped, tag = 'input window, operand 1, single buffered']
    #allocation3 [shape = 's32[1]{0}', space=sflag, size = 0x4, scoped, tag = 'scoped memory for jihyeon_lstm_classifier.1']
    #allocation4 [shape = 'u8[4096]{0}', space=vmem, size = 0x1000, scoped, tag = 'input window, operand 2, single buffered']
    #allocation5 [shape = 's32[1]{0}', space=sflag, size = 0x4, scoped, tag = 'scoped memory for jihyeon_lstm_classifier.1']
    #allocation6 [shape = 'u8[65536]{0}', space=vmem, size = 0x10000, scoped, tag = 'input window, operand 3, single buffered']
    #allocation7 [shape = 'u8[1835008]{0}', space=vmem, size = 0x1c0000, scoped, tag = 'input window, operand 4, single buffered']
    #allocation8 [shape = 's32[1]{0}', space=sflag, size = 0x4, scoped, tag = 'scoped memory for jihyeon_lstm_classifier.1']
    #allocation9 [shape = 'u8[8192]{0}', space=vmem, size = 0x2000, scoped, tag = 'input window, operand 5, single buffered']
    #allocation10 [shape = 'u8[16384]{0}', space=vmem, size = 0x4000, scoped, tag = 'input window, operand 7, single buffered']
    #allocation11 [shape = 's32[1]{0}', space=sflag, size = 0x4, scoped, tag = 'scoped memory for jihyeon_lstm_classifier.1']
    #allocation12 [shape = 'u8[512]{0}', space=vmem, size = 0x400, scoped, tag = 'input window, operand 8, single buffered']
    %14 = vsyncpa [#allocation3], 0
    %15 = vsyncpa [#allocation5], 0
    %16 = vsyncpa [#allocation8], 0
    %17 = vsyncpa [#allocation11], 0
    // Predicated region
    $region2: #{jihyeon_lstm_classifier.1} parent=1 // pred_check
      _
    $region3: #{jihyeon_lstm_classifier.1} parent=1 // pred_check_branch
      %19 = sbr.rel (0) target = $region5
    $region4: #{jihyeon_lstm_classifier.1} parent=1 // pred_region
      _
    $region5: #{jihyeon_lstm_classifier.1} parent=1 // pred_fallthru
      _
    // Predicated region
    $region6: #{jihyeon_lstm_classifier.1} parent=1 // pred_check
      _
    $region7: #{jihyeon_lstm_classifier.1} parent=1 // pred_check_branch
      %21 = sbr.rel (0) target = $region9
    $region8: #{jihyeon_lstm_classifier.1} parent=1 // pred_region
      %s23 = ssub.s32 3072, 3072
      %24 = vsyncadd [#allocation3], %s23
      %s25 = sshll.u32 [#allocation2], 4
      %s26 = int_to_ptr.vmem [resolvable:$true] %s25
      %31 = dma.hbm_to_vmem [thread:$0]  %s1, 3072, %s26, [#allocation3], 128, 128, 8
    $region9: #{jihyeon_lstm_classifier.1} parent=1 // pred_fallthru
      _
    // Predicated region
    $region10: #{jihyeon_lstm_classifier.1} parent=1 // pred_check
      _
    $region11: #{jihyeon_lstm_classifier.1} parent=1 // pred_check_branch
      %33 = sbr.rel (0) target = $region13
    $region12: #{jihyeon_lstm_classifier.1} parent=1 // pred_region
      %s35 = ssub.s32 128, 128
      %36 = vsyncadd [#allocation5], %s35
      %s38 = sshll.u32 [#allocation4], 4
      %s39 = int_to_ptr.vmem [resolvable:$true] %s38
      %41 = dma.hbm_to_vmem [thread:$0]  %s2, 128, %s39, [#allocation5]
    $region13: #{jihyeon_lstm_classifier.1} parent=1 // pred_fallthru
      _
    // Predicated region
    $region14: #{jihyeon_lstm_classifier.1} parent=1 // pred_check
      _
    $region15: #{jihyeon_lstm_classifier.1} parent=1 // pred_check_branch
      %43 = sbr.rel (0) target = $region17
    $region16: #{jihyeon_lstm_classifier.1} parent=1 // pred_region
      %s45 = ssub.s32 2048, 2048
      %46 = vsyncadd [#allocation5], %s45
      %s47 = sshll.u32 [#allocation6], 4
      %s48 = int_to_ptr.vmem [resolvable:$true] %s47
      %53 = dma.hbm_to_vmem [thread:$0]  %s3, 2048, %s48, [#allocation5], 512, 512, 32
    $region17: #{jihyeon_lstm_classifier.1} parent=1 // pred_fallthru
      _
    // Predicated region
    $region18: #{jihyeon_lstm_classifier.1} parent=1 // pred_check
      _
    $region19: #{jihyeon_lstm_classifier.1} parent=1 // pred_check_branch
      %55 = sbr.rel (0) target = $region21
    $region20: #{jihyeon_lstm_classifier.1} parent=1 // pred_region
      %s57 = ssub.s32 57344, 57344
      %58 = vsyncadd [#allocation8], %s57
      %s59 = sshll.u32 [#allocation7], 4
      %s60 = int_to_ptr.vmem [resolvable:$true] %s59
      %65 = dma.hbm_to_vmem [thread:$0]  %s4, 57344, %s60, [#allocation8], 512, 512, 32
    $region21: #{jihyeon_lstm_classifier.1} parent=1 // pred_fallthru
      _
    // Predicated region
    $region22: #{jihyeon_lstm_classifier.1} parent=1 // pred_check
      _
    $region23: #{jihyeon_lstm_classifier.1} parent=1 // pred_check_branch
      %67 = sbr.rel (0) target = $region25
    $region24: #{jihyeon_lstm_classifier.1} parent=1 // pred_region
      %s69 = ssub.s32 256, 256
      %70 = vsyncadd [#allocation8], %s69
      %s72 = sshll.u32 [#allocation9], 4
      %s73 = int_to_ptr.vmem [resolvable:$true] %s72
      %75 = dma.hbm_to_vmem [thread:$0]  %s5, 256, %s73, [#allocation8]
    $region25: #{jihyeon_lstm_classifier.1} parent=1 // pred_fallthru
      _
    // Predicated region
    $region26: #{jihyeon_lstm_classifier.1} parent=1 // pred_check
      _
    $region27: #{jihyeon_lstm_classifier.1} parent=1 // pred_check_branch
      %77 = sbr.rel (0) target = $region29
    $region28: #{jihyeon_lstm_classifier.1} parent=1 // pred_region
      _
    $region29: #{jihyeon_lstm_classifier.1} parent=1 // pred_fallthru
      _
    // Predicated region
    $region30: #{jihyeon_lstm_classifier.1} parent=1 // pred_check
      _
    $region31: #{jihyeon_lstm_classifier.1} parent=1 // pred_check_branch
      %79 = sbr.rel (0) target = $region33
    $region32: #{jihyeon_lstm_classifier.1} parent=1 // pred_region
      %s81 = ssub.s32 512, 512
      %82 = vsyncadd [#allocation11], %s81
      %s83 = sshll.u32 [#allocation10], 4
      %s84 = int_to_ptr.vmem [resolvable:$true] %s83
      %89 = dma.hbm_to_vmem [thread:$0]  %s7, 512, %s84, [#allocation11], 128, 128, 8
    $region33: #{jihyeon_lstm_classifier.1} parent=1 // pred_fallthru
      _
    // Predicated region
    $region34: #{jihyeon_lstm_classifier.1} parent=1 // pred_check
      _
    $region35: #{jihyeon_lstm_classifier.1} parent=1 // pred_check_branch
      %91 = sbr.rel (0) target = $region37
    $region36: #{jihyeon_lstm_classifier.1} parent=1 // pred_region
      %s93 = ssub.s32 16, 16
      %94 = vsyncadd [#allocation11], %s93
      %s96 = sshll.u32 [#allocation12], 4
      %s97 = int_to_ptr.vmem [resolvable:$true] %s96
      %99 = dma.hbm_to_vmem [thread:$0]  %s8, 16, %s97, [#allocation11]
    $region37: #{jihyeon_lstm_classifier.1} parent=1 // pred_fallthru
      _
    // Predicated region
    $region38: #{jihyeon_lstm_classifier.1} parent=1 // pred_check
      _
    $region39: #{jihyeon_lstm_classifier.1} parent=1 // pred_check_branch
      %101 = sbr.rel (0) target = $region41
    $region40: #{jihyeon_lstm_classifier.1} parent=1 // pred_region
      %102 = dma.done [#allocation3], 3072
    $region41: #{jihyeon_lstm_classifier.1} parent=1 // pred_fallthru
      _
    // Predicated region
    $region42: #{jihyeon_lstm_classifier.1} parent=1 // pred_check
      _
    $region43: #{jihyeon_lstm_classifier.1} parent=1 // pred_check_branch
      %104 = sbr.rel (0) target = $region45
    $region44: #{jihyeon_lstm_classifier.1} parent=1 // pred_region
      %105 = dma.done [#allocation5], 128
    $region45: #{jihyeon_lstm_classifier.1} parent=1 // pred_fallthru
      _
    // Predicated region
    $region46: #{jihyeon_lstm_classifier.1} parent=1 // pred_check
      _
    $region47: #{jihyeon_lstm_classifier.1} parent=1 // pred_check_branch
      %107 = sbr.rel (0) target = $region49
    $region48: #{jihyeon_lstm_classifier.1} parent=1 // pred_region
      %108 = dma.done [#allocation5], 2048
    $region49: #{jihyeon_lstm_classifier.1} parent=1 // pred_fallthru
      _
    // Predicated region
    $region50: #{jihyeon_lstm_classifier.1} parent=1 // pred_check
      _
    $region51: #{jihyeon_lstm_classifier.1} parent=1 // pred_check_branch
      %110 = sbr.rel (0) target = $region53
    $region52: #{jihyeon_lstm_classifier.1} parent=1 // pred_region
      %111 = dma.done [#allocation8], 57344
    $region53: #{jihyeon_lstm_classifier.1} parent=1 // pred_fallthru
      _
    // Predicated region
    $region54: #{jihyeon_lstm_classifier.1} parent=1 // pred_check
      _
    $region55: #{jihyeon_lstm_classifier.1} parent=1 // pred_check_branch
      %113 = sbr.rel (0) target = $region57
    $region56: #{jihyeon_lstm_classifier.1} parent=1 // pred_region
      %114 = dma.done [#allocation8], 256
    $region57: #{jihyeon_lstm_classifier.1} parent=1 // pred_fallthru
      _
    // Predicated region
    $region58: #{jihyeon_lstm_classifier.1} parent=1 // pred_check
      _
    $region59: #{jihyeon_lstm_classifier.1} parent=1 // pred_check_branch
      %116 = sbr.rel (0) target = $region61
    $region60: #{jihyeon_lstm_classifier.1} parent=1 // pred_region
      %117 = dma.done [#allocation11], 512
    $region61: #{jihyeon_lstm_classifier.1} parent=1 // pred_fallthru
      _
    // Predicated region
    $region62: #{jihyeon_lstm_classifier.1} parent=1 // pred_check
      _
    $region63: #{jihyeon_lstm_classifier.1} parent=1 // pred_check_branch
      %119 = sbr.rel (0) target = $region65
    $region64: #{jihyeon_lstm_classifier.1} parent=1 // pred_region
      %120 = dma.done [#allocation11], 16
    $region65: #{jihyeon_lstm_classifier.1} parent=1 // pred_fallthru
      _
    %v121 = vld [vmem:[%s0] sm:$0xff]
    %v122 = vld [vmem:[%s0 + $0x8] sm:$0xff]
    %v123 = vld [vmem:[%s0 + $0x10] sm:$0xff]
    %v124 = vld [vmem:[%s0 + $0x18] sm:$0xff]
    %v125 = vld [vmem:[%s0 + $0x20] sm:$0xff]
    %v126 = vld [vmem:[%s0 + $0x28] sm:$0xff]
    %v127 = vld [vmem:[%s0 + $0x30] sm:$0xff]
    %v128 = vld [vmem:[%s0 + $0x38] sm:$0xff]
    %v129 = vld [vmem:[#allocation2] sm:$0xff]
    %v130 = vld [vmem:[#allocation2 + $0x8] sm:$0xff]
    %v131 = vld [vmem:[#allocation2 + $0x10] sm:$0xff]
    %v132 = vld [vmem:[#allocation2 + $0x18] sm:$0xff]
    %v133 = vld [vmem:[#allocation4] sm:$0x1]
    %v134 = vlaneseq
    %v135 = vshrl.u32 %v134, 7
    %v136 = vsub.s32 0, %v135
    %v137 = vrot.slane %v133, %v136
    %vm138 = vcmask 261120
    %v140 = vsel %vm138, %v121, 0
    %v143 = vsel %vm138, %v122, 0
    %v146 = vsel %vm138, %v123, 0
    %v149 = vsel %vm138, %v124, 0
    %v152 = vsel %vm138, %v125, 0
    %v155 = vsel %vm138, %v126, 0
    %v158 = vsel %vm138, %v127, 0
    %v161 = vsel %vm138, %v128, 0
    %163 = vmatprep.subr.mxu0 0.0
    %164 = vmatpush1.msra.mxu0 %v129
    %165 = vmatprep.subr.mxu0 0.0
    %166 = vmatpush1.msra.mxu0 %v130
    %167 = vmatprep.subr.mxu0 0.0
    %168 = vmatpush1.msra.mxu0 %v131
    %169 = vmatprep.subr.mxu0 0.0
    %170 = vmatpush1.msra.mxu0 %v132
    %171 = vmatprep.subr.mxu0 0.0
    %172 = vmatpush1.msra.mxu0 0.0
    %173 = vmatprep.subr.mxu0 0.0
    %174 = vmatpush1.msra.mxu0 0.0
    %175 = vmatprep.subr.mxu0 0.0
    %176 = vmatpush1.msra.mxu0 0.0
    %177 = vmatprep.subr.mxu0 0.0
    %178 = vmatpush1.msra.mxu0 0.0
    %179 = vmatprep.subr.mxu0 0.0
    %180 = vmatpush1.msra.mxu0 0.0
    %181 = vmatprep.subr.mxu0 0.0
    %182 = vmatpush1.msra.mxu0 0.0
    %183 = vmatprep.subr.mxu0 0.0
    %184 = vmatpush1.msra.mxu0 0.0
    %185 = vmatprep.subr.mxu0 0.0
    %186 = vmatpush1.msra.mxu0 0.0
    %187 = vmatprep.subr.mxu0 0.0
    %188 = vmatpush1.msra.mxu0 0.0
    %189 = vmatprep.subr.mxu0 0.0
    %190 = vmatpush1.msra.mxu0 0.0
    %191 = vmatprep.subr.mxu0 0.0
    %192 = vmatpush1.msra.mxu0 0.0
    %193 = vmatprep.subr.mxu0 0.0
    %194 = vmatpush1.msra.mxu0 0.0
    %195 = vmatprep.subr.mxu0 0.0
    %196 = vmatpush1.msra.mxu0 0.0
    %197 = vmatprep.subr.mxu0 0.0
    %198 = vmatpush1.msra.mxu0 0.0
    %199 = vmatprep.subr.mxu0 0.0
    %200 = vmatpush1.msra.mxu0 0.0
    %201 = vmatprep.subr.mxu0 0.0
    %202 = vmatpush1.msra.mxu0 0.0
    %203 = vmatprep.subr.mxu0 0.0
    %204 = vmatpush1.msra.mxu0 0.0
    %205 = vmatprep.subr.mxu0 0.0
    %206 = vmatpush1.msra.mxu0 0.0
    %207 = vmatprep.subr.mxu0 0.0
    %208 = vmatpush1.msra.mxu0 0.0
    %209 = vmatprep.subr.mxu0 0.0
    %210 = vmatpush1.msra.mxu0 0.0
    %211 = vmatprep.subr.mxu0 0.0
    %212 = vmatpush1.msra.mxu0 0.0
    %213 = vmatprep.subr.mxu0 0.0
    %214 = vmatpush1.msra.mxu0 0.0
    %215 = vmatprep.subr.mxu0 0.0
    %216 = vmatpush1.msra.mxu0 0.0
    %217 = vmatprep.subr.mxu0 0.0
    %218 = vmatpush1.msra.mxu0 0.0
    %219 = vmatprep.subr.mxu0 0.0
    %220 = vmatpush1.msra.mxu0 0.0
    %221 = vmatprep.subr.mxu0 0.0
    %222 = vmatpush1.msra.mxu0 0.0
    %223 = vmatprep.subr.mxu0 0.0
    %224 = vmatpush1.msra.mxu0 0.0
    %225 = vmatprep.subr.mxu0 0.0
    %226 = vmatpush1.msra.mxu0 0.0
    %227 = vmatprep.mubr.f32.mxu0 0.0
    %228 = vmatmul.mubr.f32.gmra.mrb[0].mxu0 %v140
    %v229 = vpop.f32.mrb[0].mxu0
    %v230 = vadd.f32 %v137, %v229
    %v231 = vpop.f32.mrb[0].mxu0
    %232 = vmatprep.mubr.f32.mxu0 0.0
    %233 = vmatmul.mubr.f32.gmra.mrb[0].mxu0 %v143
    %v234 = vpop.f32.mrb[0].mxu0
    %v235 = vadd.f32 %v137, %v234
    %v236 = vpop.f32.mrb[0].mxu0
    %237 = vmatprep.mubr.f32.mxu0 0.0
    %238 = vmatmul.mubr.f32.gmra.mrb[0].mxu0 %v146
    %v239 = vpop.f32.mrb[0].mxu0
    %v240 = vadd.f32 %v137, %v239
    %v241 = vpop.f32.mrb[0].mxu0
    %242 = vmatprep.mubr.f32.mxu0 0.0
    %243 = vmatmul.mubr.f32.gmra.mrb[0].mxu0 %v149
    %v244 = vpop.f32.mrb[0].mxu0
    %v245 = vadd.f32 %v137, %v244
    %v246 = vpop.f32.mrb[0].mxu0
    %247 = vmatprep.mubr.f32.mxu0 0.0
    %248 = vmatmul.mubr.f32.gmra.mrb[0].mxu0 %v152
    %v249 = vpop.f32.mrb[0].mxu0
    %v250 = vadd.f32 %v137, %v249
    %v251 = vpop.f32.mrb[0].mxu0
    %252 = vmatprep.mubr.f32.mxu0 0.0
    %253 = vmatmul.mubr.f32.gmra.mrb[0].mxu0 %v155
    %v254 = vpop.f32.mrb[0].mxu0
    %v255 = vadd.f32 %v137, %v254
    %v256 = vpop.f32.mrb[0].mxu0
    %257 = vmatprep.mubr.f32.mxu0 0.0
    %258 = vmatmul.mubr.f32.gmra.mrb[0].mxu0 %v158
    %v259 = vpop.f32.mrb[0].mxu0
    %v260 = vadd.f32 %v137, %v259
    %v261 = vpop.f32.mrb[0].mxu0
    %262 = vmatprep.mubr.f32.mxu0 0.0
    %263 = vmatmul.mubr.f32.gmra.mrb[0].mxu0 %v161
    %v264 = vpop.f32.mrb[0].mxu0
    %v265 = vadd.f32 %v137, %v264
    %v266 = vpop.f32.mrb[0].mxu0
    %267 = vdwg.mxu0
    %v268 = vmax.f32 %v230, 0.0
    %v269 = vmax.f32 %v235, 0.0
    %v270 = vmax.f32 %v240, 0.0
    %v271 = vmax.f32 %v245, 0.0
    %v272 = vmax.f32 %v250, 0.0
    %v273 = vmax.f32 %v255, 0.0
    %v274 = vmax.f32 %v260, 0.0
    %v275 = vmax.f32 %v265, 0.0
    %s276 = scalar_lea.vmem [#allocation2], 32
    %v277 = vld [vmem:[%s276] sm:$0xff]
    %v278 = vld [vmem:[%s276 + $0x8] sm:$0xff]
    %v279 = vld [vmem:[%s276 + $0x10] sm:$0xff]
    %v280 = vld [vmem:[%s276 + $0x18] sm:$0xff]
    %v281 = vld [vmem:[#allocation4 + $0x1] sm:$0x1]
    %v282 = vlaneseq
    %v283 = vshrl.u32 %v282, 7
    %v284 = vsub.s32 0, %v283
    %v285 = vrot.slane %v281, %v284
    %v287 = vsel %vm138, %v268, 0
    %v290 = vsel %vm138, %v269, 0
    %v293 = vsel %vm138, %v270, 0
    %v296 = vsel %vm138, %v271, 0
    %v299 = vsel %vm138, %v272, 0
    %v302 = vsel %vm138, %v273, 0
    %v305 = vsel %vm138, %v274, 0
    %v308 = vsel %vm138, %v275, 0
    %310 = vmatprep.subr.mxu0 0.0
    %311 = vmatpush1.msra.mxu0 %v277
    %312 = vmatprep.subr.mxu0 0.0
    %313 = vmatpush1.msra.mxu0 %v278
    %314 = vmatprep.subr.mxu0 0.0
    %315 = vmatpush1.msra.mxu0 %v279
    %316 = vmatprep.subr.mxu0 0.0
    %317 = vmatpush1.msra.mxu0 %v280
    %318 = vmatprep.subr.mxu0 0.0
    %319 = vmatpush1.msra.mxu0 0.0
    %320 = vmatprep.subr.mxu0 0.0
    %321 = vmatpush1.msra.mxu0 0.0
    %322 = vmatprep.subr.mxu0 0.0
    %323 = vmatpush1.msra.mxu0 0.0
    %324 = vmatprep.subr.mxu0 0.0
    %325 = vmatpush1.msra.mxu0 0.0
    %326 = vmatprep.subr.mxu0 0.0
    %327 = vmatpush1.msra.mxu0 0.0
    %328 = vmatprep.subr.mxu0 0.0
    %329 = vmatpush1.msra.mxu0 0.0
    %330 = vmatprep.subr.mxu0 0.0
    %331 = vmatpush1.msra.mxu0 0.0
    %332 = vmatprep.subr.mxu0 0.0
    %333 = vmatpush1.msra.mxu0 0.0
    %334 = vmatprep.subr.mxu0 0.0
    %335 = vmatpush1.msra.mxu0 0.0
    %336 = vmatprep.subr.mxu0 0.0
    %337 = vmatpush1.msra.mxu0 0.0
    %338 = vmatprep.subr.mxu0 0.0
    %339 = vmatpush1.msra.mxu0 0.0
    %340 = vmatprep.subr.mxu0 0.0
    %341 = vmatpush1.msra.mxu0 0.0
    %342 = vmatprep.subr.mxu0 0.0
    %343 = vmatpush1.msra.mxu0 0.0
    %344 = vmatprep.subr.mxu0 0.0
    %345 = vmatpush1.msra.mxu0 0.0
    %346 = vmatprep.subr.mxu0 0.0
    %347 = vmatpush1.msra.mxu0 0.0
    %348 = vmatprep.subr.mxu0 0.0
    %349 = vmatpush1.msra.mxu0 0.0
    %350 = vmatprep.subr.mxu0 0.0
    %351 = vmatpush1.msra.mxu0 0.0
    %352 = vmatprep.subr.mxu0 0.0
    %353 = vmatpush1.msra.mxu0 0.0
    %354 = vmatprep.subr.mxu0 0.0
    %355 = vmatpush1.msra.mxu0 0.0
    %356 = vmatprep.subr.mxu0 0.0
    %357 = vmatpush1.msra.mxu0 0.0
    %358 = vmatprep.subr.mxu0 0.0
    %359 = vmatpush1.msra.mxu0 0.0
    %360 = vmatprep.subr.mxu0 0.0
    %361 = vmatpush1.msra.mxu0 0.0
    %362 = vmatprep.subr.mxu0 0.0
    %363 = vmatpush1.msra.mxu0 0.0
    %364 = vmatprep.subr.mxu0 0.0
    %365 = vmatpush1.msra.mxu0 0.0
    %366 = vmatprep.subr.mxu0 0.0
    %367 = vmatpush1.msra.mxu0 0.0
    %368 = vmatprep.subr.mxu0 0.0
    %369 = vmatpush1.msra.mxu0 0.0
    %370 = vmatprep.subr.mxu0 0.0
    %371 = vmatpush1.msra.mxu0 0.0
    %372 = vmatprep.subr.mxu0 0.0
    %373 = vmatpush1.msra.mxu0 0.0
    %374 = vmatprep.mubr.f32.mxu0 0.0
    %375 = vmatmul.mubr.f32.gmra.mrb[0].mxu0 %v287
    %v376 = vpop.f32.mrb[0].mxu0
    %v377 = vadd.f32 %v285, %v376
    %v378 = vpop.f32.mrb[0].mxu0
    %379 = vmatprep.mubr.f32.mxu0 0.0
    %380 = vmatmul.mubr.f32.gmra.mrb[0].mxu0 %v290
    %v381 = vpop.f32.mrb[0].mxu0
    %v382 = vadd.f32 %v285, %v381
    %v383 = vpop.f32.mrb[0].mxu0
    %384 = vmatprep.mubr.f32.mxu0 0.0
    %385 = vmatmul.mubr.f32.gmra.mrb[0].mxu0 %v293
    %v386 = vpop.f32.mrb[0].mxu0
    %v387 = vadd.f32 %v285, %v386
    %v388 = vpop.f32.mrb[0].mxu0
    %389 = vmatprep.mubr.f32.mxu0 0.0
    %390 = vmatmul.mubr.f32.gmra.mrb[0].mxu0 %v296
    %v391 = vpop.f32.mrb[0].mxu0
    %v392 = vadd.f32 %v285, %v391
    %v393 = vpop.f32.mrb[0].mxu0
    %394 = vmatprep.mubr.f32.mxu0 0.0
    %395 = vmatmul.mubr.f32.gmra.mrb[0].mxu0 %v299
    %v396 = vpop.f32.mrb[0].mxu0
    %v397 = vadd.f32 %v285, %v396
    %v398 = vpop.f32.mrb[0].mxu0
    %399 = vmatprep.mubr.f32.mxu0 0.0
    %400 = vmatmul.mubr.f32.gmra.mrb[0].mxu0 %v302
    %v401 = vpop.f32.mrb[0].mxu0
    %v402 = vadd.f32 %v285, %v401
    %v403 = vpop.f32.mrb[0].mxu0
    %404 = vmatprep.mubr.f32.mxu0 0.0
    %405 = vmatmul.mubr.f32.gmra.mrb[0].mxu0 %v305
    %v406 = vpop.f32.mrb[0].mxu0
    %v407 = vadd.f32 %v285, %v406
    %v408 = vpop.f32.mrb[0].mxu0
    %409 = vmatprep.mubr.f32.mxu0 0.0
    %410 = vmatmul.mubr.f32.gmra.mrb[0].mxu0 %v308
    %v411 = vpop.f32.mrb[0].mxu0
    %v412 = vadd.f32 %v285, %v411
    %v413 = vpop.f32.mrb[0].mxu0
    %414 = vdwg.mxu0
    %v415 = vmax.f32 %v377, 0.0
    %v416 = vmax.f32 %v382, 0.0
    %v417 = vmax.f32 %v387, 0.0
    %v418 = vmax.f32 %v392, 0.0
    %v419 = vmax.f32 %v397, 0.0
    %v420 = vmax.f32 %v402, 0.0
    %v421 = vmax.f32 %v407, 0.0
    %v422 = vmax.f32 %v412, 0.0
    %s423 = scalar_lea.vmem [#allocation2], 64
    %v424 = vld [vmem:[%s423] sm:$0xff]
    %v425 = vld [vmem:[%s423 + $0x8] sm:$0xff]
    %v426 = vld [vmem:[%s423 + $0x10] sm:$0xff]
    %v427 = vld [vmem:[%s423 + $0x18] sm:$0xff]
    %v428 = vld [vmem:[#allocation4 + $0x2] sm:$0x1]
    %v429 = vlaneseq
    %v430 = vshrl.u32 %v429, 7
    %v431 = vsub.s32 0, %v430
    %v432 = vrot.slane %v428, %v431
    %v434 = vsel %vm138, %v415, 0
    %v437 = vsel %vm138, %v416, 0
    %v440 = vsel %vm138, %v417, 0
    %v443 = vsel %vm138, %v418, 0
    %v446 = vsel %vm138, %v419, 0
    %v449 = vsel %vm138, %v420, 0
    %v452 = vsel %vm138, %v421, 0
    %v455 = vsel %vm138, %v422, 0
    %457 = vmatprep.subr.mxu0 0.0
    %458 = vmatpush1.msra.mxu0 %v424
    %459 = vmatprep.subr.mxu0 0.0
    %460 = vmatpush1.msra.mxu0 %v425
    %461 = vmatprep.subr.mxu0 0.0
    %462 = vmatpush1.msra.mxu0 %v426
    %463 = vmatprep.subr.mxu0 0.0
    %464 = vmatpush1.msra.mxu0 %v427
    %465 = vmatprep.subr.mxu0 0.0
    %466 = vmatpush1.msra.mxu0 0.0
    %467 = vmatprep.subr.mxu0 0.0
    %468 = vmatpush1.msra.mxu0 0.0
    %469 = vmatprep.subr.mxu0 0.0
    %470 = vmatpush1.msra.mxu0 0.0
    %471 = vmatprep.subr.mxu0 0.0
    %472 = vmatpush1.msra.mxu0 0.0
    %473 = vmatprep.subr.mxu0 0.0
    %474 = vmatpush1.msra.mxu0 0.0
    %475 = vmatprep.subr.mxu0 0.0
    %476 = vmatpush1.msra.mxu0 0.0
    %477 = vmatprep.subr.mxu0 0.0
    %478 = vmatpush1.msra.mxu0 0.0
    %479 = vmatprep.subr.mxu0 0.0
    %480 = vmatpush1.msra.mxu0 0.0
    %481 = vmatprep.subr.mxu0 0.0
    %482 = vmatpush1.msra.mxu0 0.0
    %483 = vmatprep.subr.mxu0 0.0
    %484 = vmatpush1.msra.mxu0 0.0
    %485 = vmatprep.subr.mxu0 0.0
    %486 = vmatpush1.msra.mxu0 0.0
    %487 = vmatprep.subr.mxu0 0.0
    %488 = vmatpush1.msra.mxu0 0.0
    %489 = vmatprep.subr.mxu0 0.0
    %490 = vmatpush1.msra.mxu0 0.0
    %491 = vmatprep.subr.mxu0 0.0
    %492 = vmatpush1.msra.mxu0 0.0
    %493 = vmatprep.subr.mxu0 0.0
    %494 = vmatpush1.msra.mxu0 0.0
    %495 = vmatprep.subr.mxu0 0.0
    %496 = vmatpush1.msra.mxu0 0.0
    %497 = vmatprep.subr.mxu0 0.0
    %498 = vmatpush1.msra.mxu0 0.0
    %499 = vmatprep.subr.mxu0 0.0
    %500 = vmatpush1.msra.mxu0 0.0
    %501 = vmatprep.subr.mxu0 0.0
    %502 = vmatpush1.msra.mxu0 0.0
    %503 = vmatprep.subr.mxu0 0.0
    %504 = vmatpush1.msra.mxu0 0.0
    %505 = vmatprep.subr.mxu0 0.0
    %506 = vmatpush1.msra.mxu0 0.0
    %507 = vmatprep.subr.mxu0 0.0
    %508 = vmatpush1.msra.mxu0 0.0
    %509 = vmatprep.subr.mxu0 0.0
    %510 = vmatpush1.msra.mxu0 0.0
    %511 = vmatprep.subr.mxu0 0.0
    %512 = vmatpush1.msra.mxu0 0.0
    %513 = vmatprep.subr.mxu0 0.0
    %514 = vmatpush1.msra.mxu0 0.0
    %515 = vmatprep.subr.mxu0 0.0
    %516 = vmatpush1.msra.mxu0 0.0
    %517 = vmatprep.subr.mxu0 0.0
    %518 = vmatpush1.msra.mxu0 0.0
    %519 = vmatprep.subr.mxu0 0.0
    %520 = vmatpush1.msra.mxu0 0.0
    %521 = vmatprep.mubr.f32.mxu0 0.0
    %522 = vmatmul.mubr.f32.gmra.mrb[0].mxu0 %v434
    %v523 = vpop.f32.mrb[0].mxu0
    %v524 = vadd.f32 %v432, %v523
    %v525 = vpop.f32.mrb[0].mxu0
    %526 = vmatprep.mubr.f32.mxu0 0.0
    %527 = vmatmul.mubr.f32.gmra.mrb[0].mxu0 %v437
    %v528 = vpop.f32.mrb[0].mxu0
    %v529 = vadd.f32 %v432, %v528
    %v530 = vpop.f32.mrb[0].mxu0
    %531 = vmatprep.mubr.f32.mxu0 0.0
    %532 = vmatmul.mubr.f32.gmra.mrb[0].mxu0 %v440
    %v533 = vpop.f32.mrb[0].mxu0
    %v534 = vadd.f32 %v432, %v533
    %v535 = vpop.f32.mrb[0].mxu0
    %536 = vmatprep.mubr.f32.mxu0 0.0
    %537 = vmatmul.mubr.f32.gmra.mrb[0].mxu0 %v443
    %v538 = vpop.f32.mrb[0].mxu0
    %v539 = vadd.f32 %v432, %v538
    %v540 = vpop.f32.mrb[0].mxu0
    %541 = vmatprep.mubr.f32.mxu0 0.0
    %542 = vmatmul.mubr.f32.gmra.mrb[0].mxu0 %v446
    %v543 = vpop.f32.mrb[0].mxu0
    %v544 = vadd.f32 %v432, %v543
    %v545 = vpop.f32.mrb[0].mxu0
    %546 = vmatprep.mubr.f32.mxu0 0.0
    %547 = vmatmul.mubr.f32.gmra.mrb[0].mxu0 %v449
    %v548 = vpop.f32.mrb[0].mxu0
    %v549 = vadd.f32 %v432, %v548
    %v550 = vpop.f32.mrb[0].mxu0
    %551 = vmatprep.mubr.f32.mxu0 0.0
    %552 = vmatmul.mubr.f32.gmra.mrb[0].mxu0 %v452
    %v553 = vpop.f32.mrb[0].mxu0
    %v554 = vadd.f32 %v432, %v553
    %v555 = vpop.f32.mrb[0].mxu0
    %556 = vmatprep.mubr.f32.mxu0 0.0
    %557 = vmatmul.mubr.f32.gmra.mrb[0].mxu0 %v455
    %v558 = vpop.f32.mrb[0].mxu0
    %v559 = vadd.f32 %v432, %v558
    %v560 = vpop.f32.mrb[0].mxu0
    %561 = vdwg.mxu0
    %v562 = vmax.f32 %v524, 0.0
    %v563 = vmax.f32 %v529, 0.0
    %v564 = vmax.f32 %v534, 0.0
    %v565 = vmax.f32 %v539, 0.0
    %v566 = vmax.f32 %v544, 0.0
    %v567 = vmax.f32 %v549, 0.0
    %v568 = vmax.f32 %v554, 0.0
    %v569 = vmax.f32 %v559, 0.0
    %s570 = scalar_lea.vmem [#allocation2], 96
    %v571 = vld [vmem:[%s570] sm:$0xff]
    %v572 = vld [vmem:[%s570 + $0x8] sm:$0xff]
    %v573 = vld [vmem:[%s570 + $0x10] sm:$0xff]
    %v574 = vld [vmem:[%s570 + $0x18] sm:$0xff]
    %v575 = vld [vmem:[#allocation4 + $0x3] sm:$0x1]
    %v576 = vlaneseq
    %v577 = vshrl.u32 %v576, 7
    %v578 = vsub.s32 0, %v577
    %v579 = vrot.slane %v575, %v578
    %v581 = vsel %vm138, %v562, 0
    %v584 = vsel %vm138, %v563, 0
    %v587 = vsel %vm138, %v564, 0
    %v590 = vsel %vm138, %v565, 0
    %v593 = vsel %vm138, %v566, 0
    %v596 = vsel %vm138, %v567, 0
    %v599 = vsel %vm138, %v568, 0
    %v602 = vsel %vm138, %v569, 0
    %604 = vmatprep.subr.mxu0 0.0
    %605 = vmatpush1.msra.mxu0 %v571
    %606 = vmatprep.subr.mxu0 0.0
    %607 = vmatpush1.msra.mxu0 %v572
    %608 = vmatprep.subr.mxu0 0.0
    %609 = vmatpush1.msra.mxu0 %v573
    %610 = vmatprep.subr.mxu0 0.0
    %611 = vmatpush1.msra.mxu0 %v574
    %612 = vmatprep.subr.mxu0 0.0
    %613 = vmatpush1.msra.mxu0 0.0
    %614 = vmatprep.subr.mxu0 0.0
    %615 = vmatpush1.msra.mxu0 0.0
    %616 = vmatprep.subr.mxu0 0.0
    %617 = vmatpush1.msra.mxu0 0.0
    %618 = vmatprep.subr.mxu0 0.0
    %619 = vmatpush1.msra.mxu0 0.0
    %620 = vmatprep.subr.mxu0 0.0
    %621 = vmatpush1.msra.mxu0 0.0
    %622 = vmatprep.subr.mxu0 0.0
    %623 = vmatpush1.msra.mxu0 0.0
    %624 = vmatprep.subr.mxu0 0.0
    %625 = vmatpush1.msra.mxu0 0.0
    %626 = vmatprep.subr.mxu0 0.0
    %627 = vmatpush1.msra.mxu0 0.0
    %628 = vmatprep.subr.mxu0 0.0
    %629 = vmatpush1.msra.mxu0 0.0
    %630 = vmatprep.subr.mxu0 0.0
    %631 = vmatpush1.msra.mxu0 0.0
    %632 = vmatprep.subr.mxu0 0.0
    %633 = vmatpush1.msra.mxu0 0.0
    %634 = vmatprep.subr.mxu0 0.0
    %635 = vmatpush1.msra.mxu0 0.0
    %636 = vmatprep.subr.mxu0 0.0
    %637 = vmatpush1.msra.mxu0 0.0
    %638 = vmatprep.subr.mxu0 0.0
    %639 = vmatpush1.msra.mxu0 0.0
    %640 = vmatprep.subr.mxu0 0.0
    %641 = vmatpush1.msra.mxu0 0.0
    %642 = vmatprep.subr.mxu0 0.0
    %643 = vmatpush1.msra.mxu0 0.0
    %644 = vmatprep.subr.mxu0 0.0
    %645 = vmatpush1.msra.mxu0 0.0
    %646 = vmatprep.subr.mxu0 0.0
    %647 = vmatpush1.msra.mxu0 0.0
    %648 = vmatprep.subr.mxu0 0.0
    %649 = vmatpush1.msra.mxu0 0.0
    %650 = vmatprep.subr.mxu0 0.0
    %651 = vmatpush1.msra.mxu0 0.0
    %652 = vmatprep.subr.mxu0 0.0
    %653 = vmatpush1.msra.mxu0 0.0
    %654 = vmatprep.subr.mxu0 0.0
    %655 = vmatpush1.msra.mxu0 0.0
    %656 = vmatprep.subr.mxu0 0.0
    %657 = vmatpush1.msra.mxu0 0.0
    %658 = vmatprep.subr.mxu0 0.0
    %659 = vmatpush1.msra.mxu0 0.0
    %660 = vmatprep.subr.mxu0 0.0
    %661 = vmatpush1.msra.mxu0 0.0
    %662 = vmatprep.subr.mxu0 0.0
    %663 = vmatpush1.msra.mxu0 0.0
    %664 = vmatprep.subr.mxu0 0.0
    %665 = vmatpush1.msra.mxu0 0.0
    %666 = vmatprep.subr.mxu0 0.0
    %667 = vmatpush1.msra.mxu0 0.0
    %668 = vmatprep.mubr.f32.mxu0 0.0
    %669 = vmatmul.mubr.f32.gmra.mrb[0].mxu0 %v581
    %v670 = vpop.f32.mrb[0].mxu0
    %v671 = vadd.f32 %v579, %v670
    %v672 = vpop.f32.mrb[0].mxu0
    %673 = vmatprep.mubr.f32.mxu0 0.0
    %674 = vmatmul.mubr.f32.gmra.mrb[0].mxu0 %v584
    %v675 = vpop.f32.mrb[0].mxu0
    %v676 = vadd.f32 %v579, %v675
    %v677 = vpop.f32.mrb[0].mxu0
    %678 = vmatprep.mubr.f32.mxu0 0.0
    %679 = vmatmul.mubr.f32.gmra.mrb[0].mxu0 %v587
    %v680 = vpop.f32.mrb[0].mxu0
    %v681 = vadd.f32 %v579, %v680
    %v682 = vpop.f32.mrb[0].mxu0
    %683 = vmatprep.mubr.f32.mxu0 0.0
    %684 = vmatmul.mubr.f32.gmra.mrb[0].mxu0 %v590
    %v685 = vpop.f32.mrb[0].mxu0
    %v686 = vadd.f32 %v579, %v685
    %v687 = vpop.f32.mrb[0].mxu0
    %688 = vmatprep.mubr.f32.mxu0 0.0
    %689 = vmatmul.mubr.f32.gmra.mrb[0].mxu0 %v593
    %v690 = vpop.f32.mrb[0].mxu0
    %v691 = vadd.f32 %v579, %v690
    %v692 = vpop.f32.mrb[0].mxu0
    %693 = vmatprep.mubr.f32.mxu0 0.0
    %694 = vmatmul.mubr.f32.gmra.mrb[0].mxu0 %v596
    %v695 = vpop.f32.mrb[0].mxu0
    %v696 = vadd.f32 %v579, %v695
    %v697 = vpop.f32.mrb[0].mxu0
    %698 = vmatprep.mubr.f32.mxu0 0.0
    %699 = vmatmul.mubr.f32.gmra.mrb[0].mxu0 %v599
    %v700 = vpop.f32.mrb[0].mxu0
    %v701 = vadd.f32 %v579, %v700
    %v702 = vpop.f32.mrb[0].mxu0
    %703 = vmatprep.mubr.f32.mxu0 0.0
    %704 = vmatmul.mubr.f32.gmra.mrb[0].mxu0 %v602
    %v705 = vpop.f32.mrb[0].mxu0
    %v706 = vadd.f32 %v579, %v705
    %v707 = vpop.f32.mrb[0].mxu0
    %708 = vdwg.mxu0
    %v709 = vmax.f32 %v671, 0.0
    %v710 = vmax.f32 %v676, 0.0
    %v711 = vmax.f32 %v681, 0.0
    %v712 = vmax.f32 %v686, 0.0
    %v713 = vmax.f32 %v691, 0.0
    %v714 = vmax.f32 %v696, 0.0
    %v715 = vmax.f32 %v701, 0.0
    %v716 = vmax.f32 %v706, 0.0
    %v717 = vld [vmem:[#allocation7] sm:$0xff]
    %v718 = vld [vmem:[#allocation7 + $0x8] sm:$0xff]
    %v719 = vld [vmem:[#allocation7 + $0x10] sm:$0xff]
    %v720 = vld [vmem:[#allocation7 + $0x18] sm:$0xff]
    %v721 = vld [vmem:[#allocation7 + $0x20] sm:$0xff]
    %v722 = vld [vmem:[#allocation7 + $0x28] sm:$0xff]
    %v723 = vld [vmem:[#allocation7 + $0x30] sm:$0xff]
    %v724 = vld [vmem:[#allocation7 + $0x38] sm:$0xff]
    %v725 = vld [vmem:[#allocation7 + $0x40] sm:$0xff]
    %v726 = vld [vmem:[#allocation7 + $0x48] sm:$0xff]
    %v727 = vld [vmem:[#allocation7 + $0x50] sm:$0xff]
    %v728 = vld [vmem:[#allocation7 + $0x58] sm:$0xff]
    %v729 = vld [vmem:[#allocation7 + $0x60] sm:$0xff]
    %v730 = vld [vmem:[#allocation7 + $0x68] sm:$0xff]
    %v731 = vld [vmem:[#allocation7 + $0x70] sm:$0xff]
    %v732 = vld [vmem:[#allocation7 + $0x78] sm:$0xff]
    %v733 = vld [vmem:[#allocation7 + $0x80] sm:$0xff]
    %v734 = vld [vmem:[#allocation7 + $0x88] sm:$0xff]
    %v735 = vld [vmem:[#allocation7 + $0x90] sm:$0xff]
    %v736 = vld [vmem:[#allocation7 + $0x98] sm:$0xff]
    %v737 = vld [vmem:[#allocation7 + $0xa0] sm:$0xff]
    %v738 = vld [vmem:[#allocation7 + $0xa8] sm:$0xff]
    %v739 = vld [vmem:[#allocation7 + $0xb0] sm:$0xff]
    %v740 = vld [vmem:[#allocation7 + $0xb8] sm:$0xff]
    %v741 = vld [vmem:[#allocation7 + $0xc0] sm:$0xff]
    %v742 = vld [vmem:[#allocation7 + $0xc8] sm:$0xff]
    %v743 = vld [vmem:[#allocation7 + $0xd0] sm:$0xff]
    %v744 = vld [vmem:[#allocation7 + $0xd8] sm:$0xff]
    %v745 = vld [vmem:[#allocation7 + $0xe0] sm:$0xff]
    %v746 = vld [vmem:[#allocation7 + $0xe8] sm:$0xff]
    %v747 = vld [vmem:[#allocation7 + $0xf0] sm:$0xff]
    %v748 = vld [vmem:[#allocation7 + $0xf8] sm:$0xff]
    %v749 = vld [vmem:[#allocation7 + $0x100] sm:$0xff]
    %v750 = vld [vmem:[#allocation7 + $0x108] sm:$0xff]
    %v751 = vld [vmem:[#allocation7 + $0x110] sm:$0xff]
    %v752 = vld [vmem:[#allocation7 + $0x118] sm:$0xff]
    %v753 = vld [vmem:[#allocation7 + $0x120] sm:$0xff]
    %v754 = vld [vmem:[#allocation7 + $0x128] sm:$0xff]
    %v755 = vld [vmem:[#allocation7 + $0x130] sm:$0xff]
    %v756 = vld [vmem:[#allocation7 + $0x138] sm:$0xff]
    %v757 = vld [vmem:[#allocation7 + $0x140] sm:$0xff]
    %v758 = vld [vmem:[#allocation7 + $0x148] sm:$0xff]
    %v759 = vld [vmem:[#allocation7 + $0x150] sm:$0xff]
    %v760 = vld [vmem:[#allocation7 + $0x158] sm:$0xff]
    %v761 = vld [vmem:[#allocation7 + $0x160] sm:$0xff]
    %v762 = vld [vmem:[#allocation7 + $0x168] sm:$0xff]
    %v763 = vld [vmem:[#allocation7 + $0x170] sm:$0xff]
    %v764 = vld [vmem:[#allocation7 + $0x178] sm:$0xff]
    %v765 = vld [vmem:[#allocation7 + $0x180] sm:$0xff]
    %v766 = vld [vmem:[#allocation7 + $0x188] sm:$0xff]
    %v767 = vld [vmem:[#allocation7 + $0x190] sm:$0xff]
    %v768 = vld [vmem:[#allocation7 + $0x198] sm:$0xff]
    %v769 = vld [vmem:[#allocation7 + $0x1a0] sm:$0xff]
    %v770 = vld [vmem:[#allocation7 + $0x1a8] sm:$0xff]
    %v771 = vld [vmem:[#allocation7 + $0x1b0] sm:$0xff]
    %v772 = vld [vmem:[#allocation7 + $0x1b8] sm:$0xff]
    %v773 = vld [vmem:[#allocation7 + $0x1c0] sm:$0xff]
    %v774 = vld [vmem:[#allocation7 + $0x1c8] sm:$0xff]
    %v775 = vld [vmem:[#allocation7 + $0x1d0] sm:$0xff]
    %v776 = vld [vmem:[#allocation7 + $0x1d8] sm:$0xff]
    %v777 = vld [vmem:[#allocation7 + $0x1e0] sm:$0xff]
    %v778 = vld [vmem:[#allocation7 + $0x1e8] sm:$0xff]
    %v779 = vld [vmem:[#allocation7 + $0x1f0] sm:$0xff]
    %v780 = vld [vmem:[#allocation7 + $0x1f8] sm:$0xff]
    %v781 = vld [vmem:[#allocation6] sm:$0xff]
    %v782 = vld [vmem:[#allocation6 + $0x8] sm:$0xff]
    %v783 = vld [vmem:[#allocation6 + $0x10] sm:$0xff]
    %v784 = vld [vmem:[#allocation6 + $0x18] sm:$0xff]
    %v785 = vld [vmem:[#allocation6 + $0x20] sm:$0xff]
    %v786 = vld [vmem:[#allocation6 + $0x28] sm:$0xff]
    %v787 = vld [vmem:[#allocation6 + $0x30] sm:$0xff]
    %v788 = vld [vmem:[#allocation6 + $0x38] sm:$0xff]
    %v789 = vld [vmem:[#allocation6 + $0x40] sm:$0xff]
    %v790 = vld [vmem:[#allocation6 + $0x48] sm:$0xff]
    %v791 = vld [vmem:[#allocation6 + $0x50] sm:$0xff]
    %v792 = vld [vmem:[#allocation6 + $0x58] sm:$0xff]
    %v793 = vld [vmem:[#allocation6 + $0x60] sm:$0xff]
    %v794 = vld [vmem:[#allocation6 + $0x68] sm:$0xff]
    %v795 = vld [vmem:[#allocation6 + $0x70] sm:$0xff]
    %v796 = vld [vmem:[#allocation6 + $0x78] sm:$0xff]
    %v797 = vld [vmem:[#allocation9] ss:$4 sm:$0xf]
    %v799 = vlaneseq
    %v800 = vshrl.u32 %v799, 7
    %v801 = vsub.s32 0, %v800
    %v802 = vrot.slane %v797, %v801
    %v803 = vlaneseq
    %v804 = vshrl.u32 %v803, 7
    %v805 = vsub.s32 1, %v804
    %v806 = vrot.slane %v797, %v805
    %v807 = vlaneseq
    %v808 = vshrl.u32 %v807, 7
    %v809 = vsub.s32 2, %v808
    %v810 = vrot.slane %v797, %v809
    %v811 = vlaneseq
    %v812 = vshrl.u32 %v811, 7
    %v813 = vsub.s32 3, %v812
    %v814 = vrot.slane %v797, %v813
    %v820 = vsel %vm138, %v709, 0
    %v823 = vsel %vm138, %v710, 0
    %v826 = vsel %vm138, %v711, 0
    %v829 = vsel %vm138, %v712, 0
    %v832 = vsel %vm138, %v713, 0
    %v835 = vsel %vm138, %v714, 0
    %v838 = vsel %vm138, %v715, 0
    %v841 = vsel %vm138, %v716, 0
    %843 = vmatprep.subr.mxu0 %v782
    %844 = vmatpush1.msra.mxu0 %v781
    %845 = vmatprep.subr.mxu0 %v786
    %846 = vmatpush1.msra.mxu0 %v785
    %847 = vmatprep.subr.mxu0 %v790
    %848 = vmatpush1.msra.mxu0 %v789
    %849 = vmatprep.subr.mxu0 %v794
    %850 = vmatpush1.msra.mxu0 %v793
    %851 = vmatprep.subr.mxu0 0.0
    %852 = vmatpush1.msra.mxu0 0.0
    %853 = vmatprep.subr.mxu0 0.0
    %854 = vmatpush1.msra.mxu0 0.0
    %855 = vmatprep.subr.mxu0 0.0
    %856 = vmatpush1.msra.mxu0 0.0
    %857 = vmatprep.subr.mxu0 0.0
    %858 = vmatpush1.msra.mxu0 0.0
    %859 = vmatprep.subr.mxu0 0.0
    %860 = vmatpush1.msra.mxu0 0.0
    %861 = vmatprep.subr.mxu0 0.0
    %862 = vmatpush1.msra.mxu0 0.0
    %863 = vmatprep.subr.mxu0 0.0
    %864 = vmatpush1.msra.mxu0 0.0
    %865 = vmatprep.subr.mxu0 0.0
    %866 = vmatpush1.msra.mxu0 0.0
    %867 = vmatprep.subr.mxu0 0.0
    %868 = vmatpush1.msra.mxu0 0.0
    %869 = vmatprep.subr.mxu0 0.0
    %870 = vmatpush1.msra.mxu0 0.0
    %871 = vmatprep.subr.mxu0 0.0
    %872 = vmatpush1.msra.mxu0 0.0
    %873 = vmatprep.subr.mxu0 0.0
    %874 = vmatpush1.msra.mxu0 0.0
    %875 = vmatprep.subr.mxu0 0.0
    %876 = vmatpush1.msra.mxu0 0.0
    %877 = vmatprep.subr.mxu0 0.0
    %878 = vmatpush1.msra.mxu0 0.0
    %879 = vmatprep.subr.mxu0 0.0
    %880 = vmatpush1.msra.mxu0 0.0
    %881 = vmatprep.subr.mxu0 0.0
    %882 = vmatpush1.msra.mxu0 0.0
    %883 = vmatprep.subr.mxu0 0.0
    %884 = vmatpush1.msra.mxu0 0.0
    %885 = vmatprep.subr.mxu0 0.0
    %886 = vmatpush1.msra.mxu0 0.0
    %887 = vmatprep.subr.mxu0 0.0
    %888 = vmatpush1.msra.mxu0 0.0
    %889 = vmatprep.subr.mxu0 0.0
    %890 = vmatpush1.msra.mxu0 0.0
    %891 = vmatprep.subr.mxu0 0.0
    %892 = vmatpush1.msra.mxu0 0.0
    %893 = vmatprep.subr.mxu0 0.0
    %894 = vmatpush1.msra.mxu0 0.0
    %895 = vmatprep.subr.mxu0 0.0
    %896 = vmatpush1.msra.mxu0 0.0
    %897 = vmatprep.subr.mxu0 0.0
    %898 = vmatpush1.msra.mxu0 0.0
    %899 = vmatprep.subr.mxu0 0.0
    %900 = vmatpush1.msra.mxu0 0.0
    %901 = vmatprep.subr.mxu0 0.0
    %902 = vmatpush1.msra.mxu0 0.0
    %903 = vmatprep.subr.mxu0 0.0
    %904 = vmatpush1.msra.mxu0 0.0
    %905 = vmatprep.subr.mxu0 0.0
    %906 = vmatpush1.msra.mxu0 0.0
    %907 = vmatprep.mubr.f32.mxu0 0.0
    %908 = vmatmul.mubr.f32.gmra.mrb[0].mxu0 %v820
    %v909 = vpop.f32.mrb[0].mxu0
    %v910 = vadd.f32 %v802, %v909
    %v911 = vpop.f32.mrb[0].mxu0
    %v912 = vadd.f32 %v806, %v911
    %913 = vmatprep.mubr.f32.mxu0 0.0
    %914 = vmatmul.mubr.f32.gmra.mrb[0].mxu0 %v823
    %v915 = vpop.f32.mrb[0].mxu0
    %v916 = vadd.f32 %v802, %v915
    %v917 = vpop.f32.mrb[0].mxu0
    %v918 = vadd.f32 %v806, %v917
    %919 = vmatprep.mubr.f32.mxu0 0.0
    %920 = vmatmul.mubr.f32.gmra.mrb[0].mxu0 %v826
    %v921 = vpop.f32.mrb[0].mxu0
    %v922 = vadd.f32 %v802, %v921
    %v923 = vpop.f32.mrb[0].mxu0
    %v924 = vadd.f32 %v806, %v923
    %925 = vmatprep.mubr.f32.mxu0 0.0
    %926 = vmatmul.mubr.f32.gmra.mrb[0].mxu0 %v829
    %v927 = vpop.f32.mrb[0].mxu0
    %v928 = vadd.f32 %v802, %v927
    %v929 = vpop.f32.mrb[0].mxu0
    %v930 = vadd.f32 %v806, %v929
    %931 = vmatprep.mubr.f32.mxu0 0.0
    %932 = vmatmul.mubr.f32.gmra.mrb[0].mxu0 %v832
    %v933 = vpop.f32.mrb[0].mxu0
    %v934 = vadd.f32 %v802, %v933
    %v935 = vpop.f32.mrb[0].mxu0
    %v936 = vadd.f32 %v806, %v935
    %937 = vmatprep.mubr.f32.mxu0 0.0
    %938 = vmatmul.mubr.f32.gmra.mrb[0].mxu0 %v835
    %v939 = vpop.f32.mrb[0].mxu0
    %v940 = vadd.f32 %v802, %v939
    %v941 = vpop.f32.mrb[0].mxu0
    %v942 = vadd.f32 %v806, %v941
    %943 = vmatprep.mubr.f32.mxu0 0.0
    %944 = vmatmul.mubr.f32.gmra.mrb[0].mxu0 %v838
    %v945 = vpop.f32.mrb[0].mxu0
    %v946 = vadd.f32 %v802, %v945
    %v947 = vpop.f32.mrb[0].mxu0
    %v948 = vadd.f32 %v806, %v947
    %949 = vmatprep.mubr.f32.mxu0 0.0
    %950 = vmatmul.mubr.f32.gmra.mrb[0].mxu0 %v841
    %v951 = vpop.f32.mrb[0].mxu0
    %v952 = vadd.f32 %v802, %v951
    %v953 = vpop.f32.mrb[0].mxu0
    %v954 = vadd.f32 %v806, %v953
    %955 = vdwg.mxu0
    %956 = vmatprep.subr.mxu0 %v784
    %957 = vmatpush1.msra.mxu0 %v783
    %958 = vmatprep.subr.mxu0 %v788
    %959 = vmatpush1.msra.mxu0 %v787
    %960 = vmatprep.subr.mxu0 %v792
    %961 = vmatpush1.msra.mxu0 %v791
    %962 = vmatprep.subr.mxu0 %v796
    %963 = vmatpush1.msra.mxu0 %v795
    %964 = vmatprep.subr.mxu0 0.0
    %965 = vmatpush1.msra.mxu0 0.0
    %966 = vmatprep.subr.mxu0 0.0
    %967 = vmatpush1.msra.mxu0 0.0
    %968 = vmatprep.subr.mxu0 0.0
    %969 = vmatpush1.msra.mxu0 0.0
    %970 = vmatprep.subr.mxu0 0.0
    %971 = vmatpush1.msra.mxu0 0.0
    %972 = vmatprep.subr.mxu0 0.0
    %973 = vmatpush1.msra.mxu0 0.0
    %974 = vmatprep.subr.mxu0 0.0
    %975 = vmatpush1.msra.mxu0 0.0
    %976 = vmatprep.subr.mxu0 0.0
    %977 = vmatpush1.msra.mxu0 0.0
    %978 = vmatprep.subr.mxu0 0.0
    %979 = vmatpush1.msra.mxu0 0.0
    %980 = vmatprep.subr.mxu0 0.0
    %981 = vmatpush1.msra.mxu0 0.0
    %982 = vmatprep.subr.mxu0 0.0
    %983 = vmatpush1.msra.mxu0 0.0
    %984 = vmatprep.subr.mxu0 0.0
    %985 = vmatpush1.msra.mxu0 0.0
    %986 = vmatprep.subr.mxu0 0.0
    %987 = vmatpush1.msra.mxu0 0.0
    %988 = vmatprep.subr.mxu0 0.0
    %989 = vmatpush1.msra.mxu0 0.0
    %990 = vmatprep.subr.mxu0 0.0
    %991 = vmatpush1.msra.mxu0 0.0
    %992 = vmatprep.subr.mxu0 0.0
    %993 = vmatpush1.msra.mxu0 0.0
    %994 = vmatprep.subr.mxu0 0.0
    %995 = vmatpush1.msra.mxu0 0.0
    %996 = vmatprep.subr.mxu0 0.0
    %997 = vmatpush1.msra.mxu0 0.0
    %998 = vmatprep.subr.mxu0 0.0
    %999 = vmatpush1.msra.mxu0 0.0
    %1000 = vmatprep.subr.mxu0 0.0
    %1001 = vmatpush1.msra.mxu0 0.0
    %1002 = vmatprep.subr.mxu0 0.0
    %1003 = vmatpush1.msra.mxu0 0.0
    %1004 = vmatprep.subr.mxu0 0.0
    %1005 = vmatpush1.msra.mxu0 0.0
    %1006 = vmatprep.subr.mxu0 0.0
    %1007 = vmatpush1.msra.mxu0 0.0
    %1008 = vmatprep.subr.mxu0 0.0
    %1009 = vmatpush1.msra.mxu0 0.0
    %1010 = vmatprep.subr.mxu0 0.0
    %1011 = vmatpush1.msra.mxu0 0.0
    %1012 = vmatprep.subr.mxu0 0.0
    %1013 = vmatpush1.msra.mxu0 0.0
    %1014 = vmatprep.subr.mxu0 0.0
    %1015 = vmatpush1.msra.mxu0 0.0
    %1016 = vmatprep.subr.mxu0 0.0
    %1017 = vmatpush1.msra.mxu0 0.0
    %1018 = vmatprep.subr.mxu0 0.0
    %1019 = vmatpush1.msra.mxu0 0.0
    %1020 = vmatprep.mubr.f32.mxu0 0.0
    %1021 = vmatmul.mubr.f32.gmra.mrb[0].mxu0 %v820
    %v1022 = vpop.f32.mrb[0].mxu0
    %v1023 = vadd.f32 %v810, %v1022
    %v1024 = vpop.f32.mrb[0].mxu0
    %v1025 = vadd.f32 %v814, %v1024
    %1026 = vmatprep.mubr.f32.mxu0 0.0
    %1027 = vmatmul.mubr.f32.gmra.mrb[0].mxu0 %v823
    %v1028 = vpop.f32.mrb[0].mxu0
    %v1029 = vadd.f32 %v810, %v1028
    %v1030 = vpop.f32.mrb[0].mxu0
    %v1031 = vadd.f32 %v814, %v1030
    %1032 = vmatprep.mubr.f32.mxu0 0.0
    %1033 = vmatmul.mubr.f32.gmra.mrb[0].mxu0 %v826
    %v1034 = vpop.f32.mrb[0].mxu0
    %v1035 = vadd.f32 %v810, %v1034
    %v1036 = vpop.f32.mrb[0].mxu0
    %v1037 = vadd.f32 %v814, %v1036
    %1038 = vmatprep.mubr.f32.mxu0 0.0
    %1039 = vmatmul.mubr.f32.gmra.mrb[0].mxu0 %v829
    %v1040 = vpop.f32.mrb[0].mxu0
    %v1041 = vadd.f32 %v810, %v1040
    %v1042 = vpop.f32.mrb[0].mxu0
    %v1043 = vadd.f32 %v814, %v1042
    %1044 = vmatprep.mubr.f32.mxu0 0.0
    %1045 = vmatmul.mubr.f32.gmra.mrb[0].mxu0 %v832
    %v1046 = vpop.f32.mrb[0].mxu0
    %v1047 = vadd.f32 %v810, %v1046
    %v1048 = vpop.f32.mrb[0].mxu0
    %v1049 = vadd.f32 %v814, %v1048
    %1050 = vmatprep.mubr.f32.mxu0 0.0
    %1051 = vmatmul.mubr.f32.gmra.mrb[0].mxu0 %v835
    %v1052 = vpop.f32.mrb[0].mxu0
    %v1053 = vadd.f32 %v810, %v1052
    %v1054 = vpop.f32.mrb[0].mxu0
    %v1055 = vadd.f32 %v814, %v1054
    %1056 = vmatprep.mubr.f32.mxu0 0.0
    %1057 = vmatmul.mubr.f32.gmra.mrb[0].mxu0 %v838
    %v1058 = vpop.f32.mrb[0].mxu0
    %v1059 = vadd.f32 %v810, %v1058
    %v1060 = vpop.f32.mrb[0].mxu0
    %v1061 = vadd.f32 %v814, %v1060
    %1062 = vmatprep.mubr.f32.mxu0 0.0
    %1063 = vmatmul.mubr.f32.gmra.mrb[0].mxu0 %v841
    %v1064 = vpop.f32.mrb[0].mxu0
    %v1065 = vadd.f32 %v810, %v1064
    %v1066 = vpop.f32.mrb[0].mxu0
    %v1067 = vadd.f32 %v814, %v1066
    %1068 = vdwg.mxu0
    %1069 = vmatprep.subr.mxu0 %v718
    %1070 = vmatpush1.msra.mxu0 %v717
    %1071 = vmatprep.subr.mxu0 %v722
    %1072 = vmatpush1.msra.mxu0 %v721
    %1073 = vmatprep.subr.mxu0 %v726
    %1074 = vmatpush1.msra.mxu0 %v725
    %1075 = vmatprep.subr.mxu0 %v730
    %1076 = vmatpush1.msra.mxu0 %v729
    %1077 = vmatprep.subr.mxu0 %v734
    %1078 = vmatpush1.msra.mxu0 %v733
    %1079 = vmatprep.subr.mxu0 %v738
    %1080 = vmatpush1.msra.mxu0 %v737
    %1081 = vmatprep.subr.mxu0 %v742
    %1082 = vmatpush1.msra.mxu0 %v741
    %1083 = vmatprep.subr.mxu0 %v746
    %1084 = vmatpush1.msra.mxu0 %v745
    %1085 = vmatprep.subr.mxu0 %v750
    %1086 = vmatpush1.msra.mxu0 %v749
    %1087 = vmatprep.subr.mxu0 %v754
    %1088 = vmatpush1.msra.mxu0 %v753
    %1089 = vmatprep.subr.mxu0 %v758
    %1090 = vmatpush1.msra.mxu0 %v757
    %1091 = vmatprep.subr.mxu0 %v762
    %1092 = vmatpush1.msra.mxu0 %v761
    %1093 = vmatprep.subr.mxu0 %v766
    %1094 = vmatpush1.msra.mxu0 %v765
    %1095 = vmatprep.subr.mxu0 %v770
    %1096 = vmatpush1.msra.mxu0 %v769
    %1097 = vmatprep.subr.mxu0 %v774
    %1098 = vmatpush1.msra.mxu0 %v773
    %1099 = vmatprep.subr.mxu0 %v778
    %1100 = vmatpush1.msra.mxu0 %v777
    %1101 = vmatprep.subr.mxu0 0.0
    %1102 = vmatpush1.msra.mxu0 0.0
    %1103 = vmatprep.subr.mxu0 0.0
    %1104 = vmatpush1.msra.mxu0 0.0
    %1105 = vmatprep.subr.mxu0 0.0
    %1106 = vmatpush1.msra.mxu0 0.0
    %1107 = vmatprep.subr.mxu0 0.0
    %1108 = vmatpush1.msra.mxu0 0.0
    %1109 = vmatprep.subr.mxu0 0.0
    %1110 = vmatpush1.msra.mxu0 0.0
    %1111 = vmatprep.subr.mxu0 0.0
    %1112 = vmatpush1.msra.mxu0 0.0
    %1113 = vmatprep.subr.mxu0 0.0
    %1114 = vmatpush1.msra.mxu0 0.0
    %1115 = vmatprep.subr.mxu0 0.0
    %1116 = vmatpush1.msra.mxu0 0.0
    %1117 = vmatprep.subr.mxu0 0.0
    %1118 = vmatpush1.msra.mxu0 0.0
    %1119 = vmatprep.subr.mxu0 0.0
    %1120 = vmatpush1.msra.mxu0 0.0
    %1121 = vmatprep.subr.mxu0 0.0
    %1122 = vmatpush1.msra.mxu0 0.0
    %1123 = vmatprep.subr.mxu0 0.0
    %1124 = vmatpush1.msra.mxu0 0.0
    %1125 = vmatprep.subr.mxu0 0.0
    %1126 = vmatpush1.msra.mxu0 0.0
    %1127 = vmatprep.subr.mxu0 0.0
    %1128 = vmatpush1.msra.mxu0 0.0
    %1129 = vmatprep.subr.mxu0 0.0
    %1130 = vmatpush1.msra.mxu0 0.0
    %1131 = vmatprep.subr.mxu0 0.0
    %1132 = vmatpush1.msra.mxu0 0.0
    %1133 = vmatprep.mubr.f32.mxu0 0.0
    %1134 = vmatmul.mubr.f32.gmra.mrb[0].mxu0 0.0
    %v1135 = vpop.f32.mrb[0].mxu0
    %v1136 = vadd.f32 0.0, %v1135
    %v1137 = vpop.f32.mrb[0].mxu0
    %v1138 = vadd.f32 0.0, %v1137
    %1139 = vdwg.mxu0
    %1140 = vmatprep.subr.mxu0 %v720
    %1141 = vmatpush1.msra.mxu0 %v719
    %1142 = vmatprep.subr.mxu0 %v724
    %1143 = vmatpush1.msra.mxu0 %v723
    %1144 = vmatprep.subr.mxu0 %v728
    %1145 = vmatpush1.msra.mxu0 %v727
    %1146 = vmatprep.subr.mxu0 %v732
    %1147 = vmatpush1.msra.mxu0 %v731
    %1148 = vmatprep.subr.mxu0 %v736
    %1149 = vmatpush1.msra.mxu0 %v735
    %1150 = vmatprep.subr.mxu0 %v740
    %1151 = vmatpush1.msra.mxu0 %v739
    %1152 = vmatprep.subr.mxu0 %v744
    %1153 = vmatpush1.msra.mxu0 %v743
    %1154 = vmatprep.subr.mxu0 %v748
    %1155 = vmatpush1.msra.mxu0 %v747
    %1156 = vmatprep.subr.mxu0 %v752
    %1157 = vmatpush1.msra.mxu0 %v751
    %1158 = vmatprep.subr.mxu0 %v756
    %1159 = vmatpush1.msra.mxu0 %v755
    %1160 = vmatprep.subr.mxu0 %v760
    %1161 = vmatpush1.msra.mxu0 %v759
    %1162 = vmatprep.subr.mxu0 %v764
    %1163 = vmatpush1.msra.mxu0 %v763
    %1164 = vmatprep.subr.mxu0 %v768
    %1165 = vmatpush1.msra.mxu0 %v767
    %1166 = vmatprep.subr.mxu0 %v772
    %1167 = vmatpush1.msra.mxu0 %v771
    %1168 = vmatprep.subr.mxu0 %v776
    %1169 = vmatpush1.msra.mxu0 %v775
    %1170 = vmatprep.subr.mxu0 %v780
    %1171 = vmatpush1.msra.mxu0 %v779
    %1172 = vmatprep.subr.mxu0 0.0
    %1173 = vmatpush1.msra.mxu0 0.0
    %1174 = vmatprep.subr.mxu0 0.0
    %1175 = vmatpush1.msra.mxu0 0.0
    %1176 = vmatprep.subr.mxu0 0.0
    %1177 = vmatpush1.msra.mxu0 0.0
    %1178 = vmatprep.subr.mxu0 0.0
    %1179 = vmatpush1.msra.mxu0 0.0
    %1180 = vmatprep.subr.mxu0 0.0
    %1181 = vmatpush1.msra.mxu0 0.0
    %1182 = vmatprep.subr.mxu0 0.0
    %1183 = vmatpush1.msra.mxu0 0.0
    %1184 = vmatprep.subr.mxu0 0.0
    %1185 = vmatpush1.msra.mxu0 0.0
    %1186 = vmatprep.subr.mxu0 0.0
    %1187 = vmatpush1.msra.mxu0 0.0
    %1188 = vmatprep.subr.mxu0 0.0
    %1189 = vmatpush1.msra.mxu0 0.0
    %1190 = vmatprep.subr.mxu0 0.0
    %1191 = vmatpush1.msra.mxu0 0.0
    %1192 = vmatprep.subr.mxu0 0.0
    %1193 = vmatpush1.msra.mxu0 0.0
    %1194 = vmatprep.subr.mxu0 0.0
    %1195 = vmatpush1.msra.mxu0 0.0
    %1196 = vmatprep.subr.mxu0 0.0
    %1197 = vmatpush1.msra.mxu0 0.0
    %1198 = vmatprep.subr.mxu0 0.0
    %1199 = vmatpush1.msra.mxu0 0.0
    %1200 = vmatprep.subr.mxu0 0.0
    %1201 = vmatpush1.msra.mxu0 0.0
    %1202 = vmatprep.subr.mxu0 0.0
    %1203 = vmatpush1.msra.mxu0 0.0
    %1204 = vmatprep.mubr.f32.mxu0 0.0
    %1205 = vmatmul.mubr.f32.gmra.mrb[0].mxu0 0.0
    %v1206 = vpop.f32.mrb[0].mxu0
    %v1207 = vadd.f32 0.0, %v1206
    %v1208 = vpop.f32.mrb[0].mxu0
    %v1209 = vadd.f32 0.0, %v1208
    %1210 = vdwg.mxu0
    %v1211 = vadd.f32 %v910, %v1136
    %v1212 = vadd.f32 %v912, %v1138
    %v1213 = vadd.f32 %v1023, %v1207
    %v1214 = vadd.f32 %v1025, %v1209
    %v1215 = vxor.u32 %v1211, 2147483648
    %v1216 = vmul.f32 %v1215, 1.442695
    %v1217 = vpow.pop %v1216
    %v1218 = vadd.f32 %v1217, 1.0
    %v1219 = vrcp.pop %v1218
    %v1220 = vmul.f32 1.0, %v1219
    %v1221 = vxor.u32 %v1212, 2147483648
    %v1222 = vmul.f32 %v1221, 1.442695
    %v1223 = vpow.pop %v1222
    %v1224 = vadd.f32 %v1223, 1.0
    %v1225 = vrcp.pop %v1224
    %v1226 = vmul.f32 1.0, %v1225
    %v1227 = vtanh.pop %v1213
    %v1228 = vxor.u32 %v1214, 2147483648
    %v1229 = vmul.f32 %v1228, 1.442695
    %v1230 = vpow.pop %v1229
    %v1231 = vadd.f32 %v1230, 1.0
    %v1232 = vrcp.pop %v1231
    %v1233 = vmul.f32 1.0, %v1232
    %v1234 = vmul.f32 %v1226, 0.0
    %v1235 = vmul.f32 %v1220, %v1227
    %v1236 = vadd.f32 %v1234, %v1235
    %v1237 = vtanh.pop %v1236
    %v1238 = vmul.f32 %v1233, %v1237
    %1239 = vmatprep.subr.mxu0 %v718
    %1240 = vmatpush1.msra.mxu0 %v717
    %1241 = vmatprep.subr.mxu0 %v722
    %1242 = vmatpush1.msra.mxu0 %v721
    %1243 = vmatprep.subr.mxu0 %v726
    %1244 = vmatpush1.msra.mxu0 %v725
    %1245 = vmatprep.subr.mxu0 %v730
    %1246 = vmatpush1.msra.mxu0 %v729
    %1247 = vmatprep.subr.mxu0 %v734
    %1248 = vmatpush1.msra.mxu0 %v733
    %1249 = vmatprep.subr.mxu0 %v738
    %1250 = vmatpush1.msra.mxu0 %v737
    %1251 = vmatprep.subr.mxu0 %v742
    %1252 = vmatpush1.msra.mxu0 %v741
    %1253 = vmatprep.subr.mxu0 %v746
    %1254 = vmatpush1.msra.mxu0 %v745
    %1255 = vmatprep.subr.mxu0 %v750
    %1256 = vmatpush1.msra.mxu0 %v749
    %1257 = vmatprep.subr.mxu0 %v754
    %1258 = vmatpush1.msra.mxu0 %v753
    %1259 = vmatprep.subr.mxu0 %v758
    %1260 = vmatpush1.msra.mxu0 %v757
    %1261 = vmatprep.subr.mxu0 %v762
    %1262 = vmatpush1.msra.mxu0 %v761
    %1263 = vmatprep.subr.mxu0 %v766
    %1264 = vmatpush1.msra.mxu0 %v765
    %1265 = vmatprep.subr.mxu0 %v770
    %1266 = vmatpush1.msra.mxu0 %v769
    %1267 = vmatprep.subr.mxu0 %v774
    %1268 = vmatpush1.msra.mxu0 %v773
    %1269 = vmatprep.subr.mxu0 %v778
    %1270 = vmatpush1.msra.mxu0 %v777
    %1271 = vmatprep.subr.mxu0 0.0
    %1272 = vmatpush1.msra.mxu0 0.0
    %1273 = vmatprep.subr.mxu0 0.0
    %1274 = vmatpush1.msra.mxu0 0.0
    %1275 = vmatprep.subr.mxu0 0.0
    %1276 = vmatpush1.msra.mxu0 0.0
    %1277 = vmatprep.subr.mxu0 0.0
    %1278 = vmatpush1.msra.mxu0 0.0
    %1279 = vmatprep.subr.mxu0 0.0
    %1280 = vmatpush1.msra.mxu0 0.0
    %1281 = vmatprep.subr.mxu0 0.0
    %1282 = vmatpush1.msra.mxu0 0.0
    %1283 = vmatprep.subr.mxu0 0.0
    %1284 = vmatpush1.msra.mxu0 0.0
    %1285 = vmatprep.subr.mxu0 0.0
    %1286 = vmatpush1.msra.mxu0 0.0
    %1287 = vmatprep.subr.mxu0 0.0
    %1288 = vmatpush1.msra.mxu0 0.0
    %1289 = vmatprep.subr.mxu0 0.0
    %1290 = vmatpush1.msra.mxu0 0.0
    %1291 = vmatprep.subr.mxu0 0.0
    %1292 = vmatpush1.msra.mxu0 0.0
    %1293 = vmatprep.subr.mxu0 0.0
    %1294 = vmatpush1.msra.mxu0 0.0
    %1295 = vmatprep.subr.mxu0 0.0
    %1296 = vmatpush1.msra.mxu0 0.0
    %1297 = vmatprep.subr.mxu0 0.0
    %1298 = vmatpush1.msra.mxu0 0.0
    %1299 = vmatprep.subr.mxu0 0.0
    %1300 = vmatpush1.msra.mxu0 0.0
    %1301 = vmatprep.subr.mxu0 0.0
    %1302 = vmatpush1.msra.mxu0 0.0
    %1303 = vmatprep.mubr.f32.mxu0 0.0
    %1304 = vmatmul.mubr.f32.gmra.mrb[0].mxu0 %v1238
    %v1305 = vpop.f32.mrb[0].mxu0
    %v1306 = vadd.f32 0.0, %v1305
    %v1307 = vpop.f32.mrb[0].mxu0
    %v1308 = vadd.f32 0.0, %v1307
    %1309 = vdwg.mxu0
    %1310 = vmatprep.subr.mxu0 %v720
    %1311 = vmatpush1.msra.mxu0 %v719
    %1312 = vmatprep.subr.mxu0 %v724
    %1313 = vmatpush1.msra.mxu0 %v723
    %1314 = vmatprep.subr.mxu0 %v728
    %1315 = vmatpush1.msra.mxu0 %v727
    %1316 = vmatprep.subr.mxu0 %v732
    %1317 = vmatpush1.msra.mxu0 %v731
    %1318 = vmatprep.subr.mxu0 %v736
    %1319 = vmatpush1.msra.mxu0 %v735
    %1320 = vmatprep.subr.mxu0 %v740
    %1321 = vmatpush1.msra.mxu0 %v739
    %1322 = vmatprep.subr.mxu0 %v744
    %1323 = vmatpush1.msra.mxu0 %v743
    %1324 = vmatprep.subr.mxu0 %v748
    %1325 = vmatpush1.msra.mxu0 %v747
    %1326 = vmatprep.subr.mxu0 %v752
    %1327 = vmatpush1.msra.mxu0 %v751
    %1328 = vmatprep.subr.mxu0 %v756
    %1329 = vmatpush1.msra.mxu0 %v755
    %1330 = vmatprep.subr.mxu0 %v760
    %1331 = vmatpush1.msra.mxu0 %v759
    %1332 = vmatprep.subr.mxu0 %v764
    %1333 = vmatpush1.msra.mxu0 %v763
    %1334 = vmatprep.subr.mxu0 %v768
    %1335 = vmatpush1.msra.mxu0 %v767
    %1336 = vmatprep.subr.mxu0 %v772
    %1337 = vmatpush1.msra.mxu0 %v771
    %1338 = vmatprep.subr.mxu0 %v776
    %1339 = vmatpush1.msra.mxu0 %v775
    %1340 = vmatprep.subr.mxu0 %v780
    %1341 = vmatpush1.msra.mxu0 %v779
    %1342 = vmatprep.subr.mxu0 0.0
    %1343 = vmatpush1.msra.mxu0 0.0
    %1344 = vmatprep.subr.mxu0 0.0
    %1345 = vmatpush1.msra.mxu0 0.0
    %1346 = vmatprep.subr.mxu0 0.0
    %1347 = vmatpush1.msra.mxu0 0.0
    %1348 = vmatprep.subr.mxu0 0.0
    %1349 = vmatpush1.msra.mxu0 0.0
    %1350 = vmatprep.subr.mxu0 0.0
    %1351 = vmatpush1.msra.mxu0 0.0
    %1352 = vmatprep.subr.mxu0 0.0
    %1353 = vmatpush1.msra.mxu0 0.0
    %1354 = vmatprep.subr.mxu0 0.0
    %1355 = vmatpush1.msra.mxu0 0.0
    %1356 = vmatprep.subr.mxu0 0.0
    %1357 = vmatpush1.msra.mxu0 0.0
    %1358 = vmatprep.subr.mxu0 0.0
    %1359 = vmatpush1.msra.mxu0 0.0
    %1360 = vmatprep.subr.mxu0 0.0
    %1361 = vmatpush1.msra.mxu0 0.0
    %1362 = vmatprep.subr.mxu0 0.0
    %1363 = vmatpush1.msra.mxu0 0.0
    %1364 = vmatprep.subr.mxu0 0.0
    %1365 = vmatpush1.msra.mxu0 0.0
    %1366 = vmatprep.subr.mxu0 0.0
    %1367 = vmatpush1.msra.mxu0 0.0
    %1368 = vmatprep.subr.mxu0 0.0
    %1369 = vmatpush1.msra.mxu0 0.0
    %1370 = vmatprep.subr.mxu0 0.0
    %1371 = vmatpush1.msra.mxu0 0.0
    %1372 = vmatprep.subr.mxu0 0.0
    %1373 = vmatpush1.msra.mxu0 0.0
    %1374 = vmatprep.mubr.f32.mxu0 0.0
    %1375 = vmatmul.mubr.f32.gmra.mrb[0].mxu0 %v1238
    %v1376 = vpop.f32.mrb[0].mxu0
    %v1377 = vadd.f32 0.0, %v1376
    %v1378 = vpop.f32.mrb[0].mxu0
    %v1379 = vadd.f32 0.0, %v1378
    %1380 = vdwg.mxu0
    %v1381 = vadd.f32 %v916, %v1306
    %v1382 = vadd.f32 %v918, %v1308
    %v1383 = vadd.f32 %v1029, %v1377
    %v1384 = vadd.f32 %v1031, %v1379
    %v1385 = vxor.u32 %v1381, 2147483648
    %v1386 = vmul.f32 %v1385, 1.442695
    %v1387 = vpow.pop %v1386
    %v1388 = vadd.f32 %v1387, 1.0
    %v1389 = vrcp.pop %v1388
    %v1390 = vmul.f32 1.0, %v1389
    %v1391 = vxor.u32 %v1382, 2147483648
    %v1392 = vmul.f32 %v1391, 1.442695
    %v1393 = vpow.pop %v1392
    %v1394 = vadd.f32 %v1393, 1.0
    %v1395 = vrcp.pop %v1394
    %v1396 = vmul.f32 1.0, %v1395
    %v1397 = vtanh.pop %v1383
    %v1398 = vxor.u32 %v1384, 2147483648
    %v1399 = vmul.f32 %v1398, 1.442695
    %v1400 = vpow.pop %v1399
    %v1401 = vadd.f32 %v1400, 1.0
    %v1402 = vrcp.pop %v1401
    %v1403 = vmul.f32 1.0, %v1402
    %v1404 = vmul.f32 %v1396, %v1236
    %v1405 = vmul.f32 %v1390, %v1397
    %v1406 = vadd.f32 %v1404, %v1405
    %v1407 = vtanh.pop %v1406
    %v1408 = vmul.f32 %v1403, %v1407
    %1409 = vmatprep.subr.mxu0 %v718
    %1410 = vmatpush1.msra.mxu0 %v717
    %1411 = vmatprep.subr.mxu0 %v722
    %1412 = vmatpush1.msra.mxu0 %v721
    %1413 = vmatprep.subr.mxu0 %v726
    %1414 = vmatpush1.msra.mxu0 %v725
    %1415 = vmatprep.subr.mxu0 %v730
    %1416 = vmatpush1.msra.mxu0 %v729
    %1417 = vmatprep.subr.mxu0 %v734
    %1418 = vmatpush1.msra.mxu0 %v733
    %1419 = vmatprep.subr.mxu0 %v738
    %1420 = vmatpush1.msra.mxu0 %v737
    %1421 = vmatprep.subr.mxu0 %v742
    %1422 = vmatpush1.msra.mxu0 %v741
    %1423 = vmatprep.subr.mxu0 %v746
    %1424 = vmatpush1.msra.mxu0 %v745
    %1425 = vmatprep.subr.mxu0 %v750
    %1426 = vmatpush1.msra.mxu0 %v749
    %1427 = vmatprep.subr.mxu0 %v754
    %1428 = vmatpush1.msra.mxu0 %v753
    %1429 = vmatprep.subr.mxu0 %v758
    %1430 = vmatpush1.msra.mxu0 %v757
    %1431 = vmatprep.subr.mxu0 %v762
    %1432 = vmatpush1.msra.mxu0 %v761
    %1433 = vmatprep.subr.mxu0 %v766
    %1434 = vmatpush1.msra.mxu0 %v765
    %1435 = vmatprep.subr.mxu0 %v770
    %1436 = vmatpush1.msra.mxu0 %v769
    %1437 = vmatprep.subr.mxu0 %v774
    %1438 = vmatpush1.msra.mxu0 %v773
    %1439 = vmatprep.subr.mxu0 %v778
    %1440 = vmatpush1.msra.mxu0 %v777
    %1441 = vmatprep.subr.mxu0 0.0
    %1442 = vmatpush1.msra.mxu0 0.0
    %1443 = vmatprep.subr.mxu0 0.0
    %1444 = vmatpush1.msra.mxu0 0.0
    %1445 = vmatprep.subr.mxu0 0.0
    %1446 = vmatpush1.msra.mxu0 0.0
    %1447 = vmatprep.subr.mxu0 0.0
    %1448 = vmatpush1.msra.mxu0 0.0
    %1449 = vmatprep.subr.mxu0 0.0
    %1450 = vmatpush1.msra.mxu0 0.0
    %1451 = vmatprep.subr.mxu0 0.0
    %1452 = vmatpush1.msra.mxu0 0.0
    %1453 = vmatprep.subr.mxu0 0.0
    %1454 = vmatpush1.msra.mxu0 0.0
    %1455 = vmatprep.subr.mxu0 0.0
    %1456 = vmatpush1.msra.mxu0 0.0
    %1457 = vmatprep.subr.mxu0 0.0
    %1458 = vmatpush1.msra.mxu0 0.0
    %1459 = vmatprep.subr.mxu0 0.0
    %1460 = vmatpush1.msra.mxu0 0.0
    %1461 = vmatprep.subr.mxu0 0.0
    %1462 = vmatpush1.msra.mxu0 0.0
    %1463 = vmatprep.subr.mxu0 0.0
    %1464 = vmatpush1.msra.mxu0 0.0
    %1465 = vmatprep.subr.mxu0 0.0
    %1466 = vmatpush1.msra.mxu0 0.0
    %1467 = vmatprep.subr.mxu0 0.0
    %1468 = vmatpush1.msra.mxu0 0.0
    %1469 = vmatprep.subr.mxu0 0.0
    %1470 = vmatpush1.msra.mxu0 0.0
    %1471 = vmatprep.subr.mxu0 0.0
    %1472 = vmatpush1.msra.mxu0 0.0
    %1473 = vmatprep.mubr.f32.mxu0 0.0
    %1474 = vmatmul.mubr.f32.gmra.mrb[0].mxu0 %v1408
    %v1475 = vpop.f32.mrb[0].mxu0
    %v1476 = vadd.f32 0.0, %v1475
    %v1477 = vpop.f32.mrb[0].mxu0
    %v1478 = vadd.f32 0.0, %v1477
    %1479 = vdwg.mxu0
    %1480 = vmatprep.subr.mxu0 %v720
    %1481 = vmatpush1.msra.mxu0 %v719
    %1482 = vmatprep.subr.mxu0 %v724
    %1483 = vmatpush1.msra.mxu0 %v723
    %1484 = vmatprep.subr.mxu0 %v728
    %1485 = vmatpush1.msra.mxu0 %v727
    %1486 = vmatprep.subr.mxu0 %v732
    %1487 = vmatpush1.msra.mxu0 %v731
    %1488 = vmatprep.subr.mxu0 %v736
    %1489 = vmatpush1.msra.mxu0 %v735
    %1490 = vmatprep.subr.mxu0 %v740
    %1491 = vmatpush1.msra.mxu0 %v739
    %1492 = vmatprep.subr.mxu0 %v744
    %1493 = vmatpush1.msra.mxu0 %v743
    %1494 = vmatprep.subr.mxu0 %v748
    %1495 = vmatpush1.msra.mxu0 %v747
    %1496 = vmatprep.subr.mxu0 %v752
    %1497 = vmatpush1.msra.mxu0 %v751
    %1498 = vmatprep.subr.mxu0 %v756
    %1499 = vmatpush1.msra.mxu0 %v755
    %1500 = vmatprep.subr.mxu0 %v760
    %1501 = vmatpush1.msra.mxu0 %v759
    %1502 = vmatprep.subr.mxu0 %v764
    %1503 = vmatpush1.msra.mxu0 %v763
    %1504 = vmatprep.subr.mxu0 %v768
    %1505 = vmatpush1.msra.mxu0 %v767
    %1506 = vmatprep.subr.mxu0 %v772
    %1507 = vmatpush1.msra.mxu0 %v771
    %1508 = vmatprep.subr.mxu0 %v776
    %1509 = vmatpush1.msra.mxu0 %v775
    %1510 = vmatprep.subr.mxu0 %v780
    %1511 = vmatpush1.msra.mxu0 %v779
    %1512 = vmatprep.subr.mxu0 0.0
    %1513 = vmatpush1.msra.mxu0 0.0
    %1514 = vmatprep.subr.mxu0 0.0
    %1515 = vmatpush1.msra.mxu0 0.0
    %1516 = vmatprep.subr.mxu0 0.0
    %1517 = vmatpush1.msra.mxu0 0.0
    %1518 = vmatprep.subr.mxu0 0.0
    %1519 = vmatpush1.msra.mxu0 0.0
    %1520 = vmatprep.subr.mxu0 0.0
    %1521 = vmatpush1.msra.mxu0 0.0
    %1522 = vmatprep.subr.mxu0 0.0
    %1523 = vmatpush1.msra.mxu0 0.0
    %1524 = vmatprep.subr.mxu0 0.0
    %1525 = vmatpush1.msra.mxu0 0.0
    %1526 = vmatprep.subr.mxu0 0.0
    %1527 = vmatpush1.msra.mxu0 0.0
    %1528 = vmatprep.subr.mxu0 0.0
    %1529 = vmatpush1.msra.mxu0 0.0
    %1530 = vmatprep.subr.mxu0 0.0
    %1531 = vmatpush1.msra.mxu0 0.0
    %1532 = vmatprep.subr.mxu0 0.0
    %1533 = vmatpush1.msra.mxu0 0.0
    %1534 = vmatprep.subr.mxu0 0.0
    %1535 = vmatpush1.msra.mxu0 0.0
    %1536 = vmatprep.subr.mxu0 0.0
    %1537 = vmatpush1.msra.mxu0 0.0
    %1538 = vmatprep.subr.mxu0 0.0
    %1539 = vmatpush1.msra.mxu0 0.0
    %1540 = vmatprep.subr.mxu0 0.0
    %1541 = vmatpush1.msra.mxu0 0.0
    %1542 = vmatprep.subr.mxu0 0.0
    %1543 = vmatpush1.msra.mxu0 0.0
    %1544 = vmatprep.mubr.f32.mxu0 0.0
    %1545 = vmatmul.mubr.f32.gmra.mrb[0].mxu0 %v1408
    %v1546 = vpop.f32.mrb[0].mxu0
    %v1547 = vadd.f32 0.0, %v1546
    %v1548 = vpop.f32.mrb[0].mxu0
    %v1549 = vadd.f32 0.0, %v1548
    %1550 = vdwg.mxu0
    %v1551 = vadd.f32 %v922, %v1476
    %v1552 = vadd.f32 %v924, %v1478
    %v1553 = vadd.f32 %v1035, %v1547
    %v1554 = vadd.f32 %v1037, %v1549
    %v1555 = vxor.u32 %v1551, 2147483648
    %v1556 = vmul.f32 %v1555, 1.442695
    %v1557 = vpow.pop %v1556
    %v1558 = vadd.f32 %v1557, 1.0
    %v1559 = vrcp.pop %v1558
    %v1560 = vmul.f32 1.0, %v1559
    %v1561 = vxor.u32 %v1552, 2147483648
    %v1562 = vmul.f32 %v1561, 1.442695
    %v1563 = vpow.pop %v1562
    %v1564 = vadd.f32 %v1563, 1.0
    %v1565 = vrcp.pop %v1564
    %v1566 = vmul.f32 1.0, %v1565
    %v1567 = vtanh.pop %v1553
    %v1568 = vxor.u32 %v1554, 2147483648
    %v1569 = vmul.f32 %v1568, 1.442695
    %v1570 = vpow.pop %v1569
    %v1571 = vadd.f32 %v1570, 1.0
    %v1572 = vrcp.pop %v1571
    %v1573 = vmul.f32 1.0, %v1572
    %v1574 = vmul.f32 %v1566, %v1406
    %v1575 = vmul.f32 %v1560, %v1567
    %v1576 = vadd.f32 %v1574, %v1575
    %v1577 = vtanh.pop %v1576
    %v1578 = vmul.f32 %v1573, %v1577
    %1579 = vmatprep.subr.mxu0 %v718
    %1580 = vmatpush1.msra.mxu0 %v717
    %1581 = vmatprep.subr.mxu0 %v722
    %1582 = vmatpush1.msra.mxu0 %v721
    %1583 = vmatprep.subr.mxu0 %v726
    %1584 = vmatpush1.msra.mxu0 %v725
    %1585 = vmatprep.subr.mxu0 %v730
    %1586 = vmatpush1.msra.mxu0 %v729
    %1587 = vmatprep.subr.mxu0 %v734
    %1588 = vmatpush1.msra.mxu0 %v733
    %1589 = vmatprep.subr.mxu0 %v738
    %1590 = vmatpush1.msra.mxu0 %v737
    %1591 = vmatprep.subr.mxu0 %v742
    %1592 = vmatpush1.msra.mxu0 %v741
    %1593 = vmatprep.subr.mxu0 %v746
    %1594 = vmatpush1.msra.mxu0 %v745
    %1595 = vmatprep.subr.mxu0 %v750
    %1596 = vmatpush1.msra.mxu0 %v749
    %1597 = vmatprep.subr.mxu0 %v754
    %1598 = vmatpush1.msra.mxu0 %v753
    %1599 = vmatprep.subr.mxu0 %v758
    %1600 = vmatpush1.msra.mxu0 %v757
    %1601 = vmatprep.subr.mxu0 %v762
    %1602 = vmatpush1.msra.mxu0 %v761
    %1603 = vmatprep.subr.mxu0 %v766
    %1604 = vmatpush1.msra.mxu0 %v765
    %1605 = vmatprep.subr.mxu0 %v770
    %1606 = vmatpush1.msra.mxu0 %v769
    %1607 = vmatprep.subr.mxu0 %v774
    %1608 = vmatpush1.msra.mxu0 %v773
    %1609 = vmatprep.subr.mxu0 %v778
    %1610 = vmatpush1.msra.mxu0 %v777
    %1611 = vmatprep.subr.mxu0 0.0
    %1612 = vmatpush1.msra.mxu0 0.0
    %1613 = vmatprep.subr.mxu0 0.0
    %1614 = vmatpush1.msra.mxu0 0.0
    %1615 = vmatprep.subr.mxu0 0.0
    %1616 = vmatpush1.msra.mxu0 0.0
    %1617 = vmatprep.subr.mxu0 0.0
    %1618 = vmatpush1.msra.mxu0 0.0
    %1619 = vmatprep.subr.mxu0 0.0
    %1620 = vmatpush1.msra.mxu0 0.0
    %1621 = vmatprep.subr.mxu0 0.0
    %1622 = vmatpush1.msra.mxu0 0.0
    %1623 = vmatprep.subr.mxu0 0.0
    %1624 = vmatpush1.msra.mxu0 0.0
    %1625 = vmatprep.subr.mxu0 0.0
    %1626 = vmatpush1.msra.mxu0 0.0
    %1627 = vmatprep.subr.mxu0 0.0
    %1628 = vmatpush1.msra.mxu0 0.0
    %1629 = vmatprep.subr.mxu0 0.0
    %1630 = vmatpush1.msra.mxu0 0.0
    %1631 = vmatprep.subr.mxu0 0.0
    %1632 = vmatpush1.msra.mxu0 0.0
    %1633 = vmatprep.subr.mxu0 0.0
    %1634 = vmatpush1.msra.mxu0 0.0
    %1635 = vmatprep.subr.mxu0 0.0
    %1636 = vmatpush1.msra.mxu0 0.0
    %1637 = vmatprep.subr.mxu0 0.0
    %1638 = vmatpush1.msra.mxu0 0.0
    %1639 = vmatprep.subr.mxu0 0.0
    %1640 = vmatpush1.msra.mxu0 0.0
    %1641 = vmatprep.subr.mxu0 0.0
    %1642 = vmatpush1.msra.mxu0 0.0
    %1643 = vmatprep.mubr.f32.mxu0 0.0
    %1644 = vmatmul.mubr.f32.gmra.mrb[0].mxu0 %v1578
    %v1645 = vpop.f32.mrb[0].mxu0
    %v1646 = vadd.f32 0.0, %v1645
    %v1647 = vpop.f32.mrb[0].mxu0
    %v1648 = vadd.f32 0.0, %v1647
    %1649 = vdwg.mxu0
    %1650 = vmatprep.subr.mxu0 %v720
    %1651 = vmatpush1.msra.mxu0 %v719
    %1652 = vmatprep.subr.mxu0 %v724
    %1653 = vmatpush1.msra.mxu0 %v723
    %1654 = vmatprep.subr.mxu0 %v728
    %1655 = vmatpush1.msra.mxu0 %v727
    %1656 = vmatprep.subr.mxu0 %v732
    %1657 = vmatpush1.msra.mxu0 %v731
    %1658 = vmatprep.subr.mxu0 %v736
    %1659 = vmatpush1.msra.mxu0 %v735
    %1660 = vmatprep.subr.mxu0 %v740
    %1661 = vmatpush1.msra.mxu0 %v739
    %1662 = vmatprep.subr.mxu0 %v744
    %1663 = vmatpush1.msra.mxu0 %v743
    %1664 = vmatprep.subr.mxu0 %v748
    %1665 = vmatpush1.msra.mxu0 %v747
    %1666 = vmatprep.subr.mxu0 %v752
    %1667 = vmatpush1.msra.mxu0 %v751
    %1668 = vmatprep.subr.mxu0 %v756
    %1669 = vmatpush1.msra.mxu0 %v755
    %1670 = vmatprep.subr.mxu0 %v760
    %1671 = vmatpush1.msra.mxu0 %v759
    %1672 = vmatprep.subr.mxu0 %v764
    %1673 = vmatpush1.msra.mxu0 %v763
    %1674 = vmatprep.subr.mxu0 %v768
    %1675 = vmatpush1.msra.mxu0 %v767
    %1676 = vmatprep.subr.mxu0 %v772
    %1677 = vmatpush1.msra.mxu0 %v771
    %1678 = vmatprep.subr.mxu0 %v776
    %1679 = vmatpush1.msra.mxu0 %v775
    %1680 = vmatprep.subr.mxu0 %v780
    %1681 = vmatpush1.msra.mxu0 %v779
    %1682 = vmatprep.subr.mxu0 0.0
    %1683 = vmatpush1.msra.mxu0 0.0
    %1684 = vmatprep.subr.mxu0 0.0
    %1685 = vmatpush1.msra.mxu0 0.0
    %1686 = vmatprep.subr.mxu0 0.0
    %1687 = vmatpush1.msra.mxu0 0.0
    %1688 = vmatprep.subr.mxu0 0.0
    %1689 = vmatpush1.msra.mxu0 0.0
    %1690 = vmatprep.subr.mxu0 0.0
    %1691 = vmatpush1.msra.mxu0 0.0
    %1692 = vmatprep.subr.mxu0 0.0
    %1693 = vmatpush1.msra.mxu0 0.0
    %1694 = vmatprep.subr.mxu0 0.0
    %1695 = vmatpush1.msra.mxu0 0.0
    %1696 = vmatprep.subr.mxu0 0.0
    %1697 = vmatpush1.msra.mxu0 0.0
    %1698 = vmatprep.subr.mxu0 0.0
    %1699 = vmatpush1.msra.mxu0 0.0
    %1700 = vmatprep.subr.mxu0 0.0
    %1701 = vmatpush1.msra.mxu0 0.0
    %1702 = vmatprep.subr.mxu0 0.0
    %1703 = vmatpush1.msra.mxu0 0.0
    %1704 = vmatprep.subr.mxu0 0.0
    %1705 = vmatpush1.msra.mxu0 0.0
    %1706 = vmatprep.subr.mxu0 0.0
    %1707 = vmatpush1.msra.mxu0 0.0
    %1708 = vmatprep.subr.mxu0 0.0
    %1709 = vmatpush1.msra.mxu0 0.0
    %1710 = vmatprep.subr.mxu0 0.0
    %1711 = vmatpush1.msra.mxu0 0.0
    %1712 = vmatprep.subr.mxu0 0.0
    %1713 = vmatpush1.msra.mxu0 0.0
    %1714 = vmatprep.mubr.f32.mxu0 0.0
    %1715 = vmatmul.mubr.f32.gmra.mrb[0].mxu0 %v1578
    %v1716 = vpop.f32.mrb[0].mxu0
    %v1717 = vadd.f32 0.0, %v1716
    %v1718 = vpop.f32.mrb[0].mxu0
    %v1719 = vadd.f32 0.0, %v1718
    %1720 = vdwg.mxu0
    %v1721 = vadd.f32 %v928, %v1646
    %v1722 = vadd.f32 %v930, %v1648
    %v1723 = vadd.f32 %v1041, %v1717
    %v1724 = vadd.f32 %v1043, %v1719
    %v1725 = vxor.u32 %v1721, 2147483648
    %v1726 = vmul.f32 %v1725, 1.442695
    %v1727 = vpow.pop %v1726
    %v1728 = vadd.f32 %v1727, 1.0
    %v1729 = vrcp.pop %v1728
    %v1730 = vmul.f32 1.0, %v1729
    %v1731 = vxor.u32 %v1722, 2147483648
    %v1732 = vmul.f32 %v1731, 1.442695
    %v1733 = vpow.pop %v1732
    %v1734 = vadd.f32 %v1733, 1.0
    %v1735 = vrcp.pop %v1734
    %v1736 = vmul.f32 1.0, %v1735
    %v1737 = vtanh.pop %v1723
    %v1738 = vxor.u32 %v1724, 2147483648
    %v1739 = vmul.f32 %v1738, 1.442695
    %v1740 = vpow.pop %v1739
    %v1741 = vadd.f32 %v1740, 1.0
    %v1742 = vrcp.pop %v1741
    %v1743 = vmul.f32 1.0, %v1742
    %v1744 = vmul.f32 %v1736, %v1576
    %v1745 = vmul.f32 %v1730, %v1737
    %v1746 = vadd.f32 %v1744, %v1745
    %v1747 = vtanh.pop %v1746
    %v1748 = vmul.f32 %v1743, %v1747
    %1749 = vmatprep.subr.mxu0 %v718
    %1750 = vmatpush1.msra.mxu0 %v717
    %1751 = vmatprep.subr.mxu0 %v722
    %1752 = vmatpush1.msra.mxu0 %v721
    %1753 = vmatprep.subr.mxu0 %v726
    %1754 = vmatpush1.msra.mxu0 %v725
    %1755 = vmatprep.subr.mxu0 %v730
    %1756 = vmatpush1.msra.mxu0 %v729
    %1757 = vmatprep.subr.mxu0 %v734
    %1758 = vmatpush1.msra.mxu0 %v733
    %1759 = vmatprep.subr.mxu0 %v738
    %1760 = vmatpush1.msra.mxu0 %v737
    %1761 = vmatprep.subr.mxu0 %v742
    %1762 = vmatpush1.msra.mxu0 %v741
    %1763 = vmatprep.subr.mxu0 %v746
    %1764 = vmatpush1.msra.mxu0 %v745
    %1765 = vmatprep.subr.mxu0 %v750
    %1766 = vmatpush1.msra.mxu0 %v749
    %1767 = vmatprep.subr.mxu0 %v754
    %1768 = vmatpush1.msra.mxu0 %v753
    %1769 = vmatprep.subr.mxu0 %v758
    %1770 = vmatpush1.msra.mxu0 %v757
    %1771 = vmatprep.subr.mxu0 %v762
    %1772 = vmatpush1.msra.mxu0 %v761
    %1773 = vmatprep.subr.mxu0 %v766
    %1774 = vmatpush1.msra.mxu0 %v765
    %1775 = vmatprep.subr.mxu0 %v770
    %1776 = vmatpush1.msra.mxu0 %v769
    %1777 = vmatprep.subr.mxu0 %v774
    %1778 = vmatpush1.msra.mxu0 %v773
    %1779 = vmatprep.subr.mxu0 %v778
    %1780 = vmatpush1.msra.mxu0 %v777
    %1781 = vmatprep.subr.mxu0 0.0
    %1782 = vmatpush1.msra.mxu0 0.0
    %1783 = vmatprep.subr.mxu0 0.0
    %1784 = vmatpush1.msra.mxu0 0.0
    %1785 = vmatprep.subr.mxu0 0.0
    %1786 = vmatpush1.msra.mxu0 0.0
    %1787 = vmatprep.subr.mxu0 0.0
    %1788 = vmatpush1.msra.mxu0 0.0
    %1789 = vmatprep.subr.mxu0 0.0
    %1790 = vmatpush1.msra.mxu0 0.0
    %1791 = vmatprep.subr.mxu0 0.0
    %1792 = vmatpush1.msra.mxu0 0.0
    %1793 = vmatprep.subr.mxu0 0.0
    %1794 = vmatpush1.msra.mxu0 0.0
    %1795 = vmatprep.subr.mxu0 0.0
    %1796 = vmatpush1.msra.mxu0 0.0
    %1797 = vmatprep.subr.mxu0 0.0
    %1798 = vmatpush1.msra.mxu0 0.0
    %1799 = vmatprep.subr.mxu0 0.0
    %1800 = vmatpush1.msra.mxu0 0.0
    %1801 = vmatprep.subr.mxu0 0.0
    %1802 = vmatpush1.msra.mxu0 0.0
    %1803 = vmatprep.subr.mxu0 0.0
    %1804 = vmatpush1.msra.mxu0 0.0
    %1805 = vmatprep.subr.mxu0 0.0
    %1806 = vmatpush1.msra.mxu0 0.0
    %1807 = vmatprep.subr.mxu0 0.0
    %1808 = vmatpush1.msra.mxu0 0.0
    %1809 = vmatprep.subr.mxu0 0.0
    %1810 = vmatpush1.msra.mxu0 0.0
    %1811 = vmatprep.subr.mxu0 0.0
    %1812 = vmatpush1.msra.mxu0 0.0
    %1813 = vmatprep.mubr.f32.mxu0 0.0
    %1814 = vmatmul.mubr.f32.gmra.mrb[0].mxu0 %v1748
    %v1815 = vpop.f32.mrb[0].mxu0
    %v1816 = vadd.f32 0.0, %v1815
    %v1817 = vpop.f32.mrb[0].mxu0
    %v1818 = vadd.f32 0.0, %v1817
    %1819 = vdwg.mxu0
    %1820 = vmatprep.subr.mxu0 %v720
    %1821 = vmatpush1.msra.mxu0 %v719
    %1822 = vmatprep.subr.mxu0 %v724
    %1823 = vmatpush1.msra.mxu0 %v723
    %1824 = vmatprep.subr.mxu0 %v728
    %1825 = vmatpush1.msra.mxu0 %v727
    %1826 = vmatprep.subr.mxu0 %v732
    %1827 = vmatpush1.msra.mxu0 %v731
    %1828 = vmatprep.subr.mxu0 %v736
    %1829 = vmatpush1.msra.mxu0 %v735
    %1830 = vmatprep.subr.mxu0 %v740
    %1831 = vmatpush1.msra.mxu0 %v739
    %1832 = vmatprep.subr.mxu0 %v744
    %1833 = vmatpush1.msra.mxu0 %v743
    %1834 = vmatprep.subr.mxu0 %v748
    %1835 = vmatpush1.msra.mxu0 %v747
    %1836 = vmatprep.subr.mxu0 %v752
    %1837 = vmatpush1.msra.mxu0 %v751
    %1838 = vmatprep.subr.mxu0 %v756
    %1839 = vmatpush1.msra.mxu0 %v755
    %1840 = vmatprep.subr.mxu0 %v760
    %1841 = vmatpush1.msra.mxu0 %v759
    %1842 = vmatprep.subr.mxu0 %v764
    %1843 = vmatpush1.msra.mxu0 %v763
    %1844 = vmatprep.subr.mxu0 %v768
    %1845 = vmatpush1.msra.mxu0 %v767
    %1846 = vmatprep.subr.mxu0 %v772
    %1847 = vmatpush1.msra.mxu0 %v771
    %1848 = vmatprep.subr.mxu0 %v776
    %1849 = vmatpush1.msra.mxu0 %v775
    %1850 = vmatprep.subr.mxu0 %v780
    %1851 = vmatpush1.msra.mxu0 %v779
    %1852 = vmatprep.subr.mxu0 0.0
    %1853 = vmatpush1.msra.mxu0 0.0
    %1854 = vmatprep.subr.mxu0 0.0
    %1855 = vmatpush1.msra.mxu0 0.0
    %1856 = vmatprep.subr.mxu0 0.0
    %1857 = vmatpush1.msra.mxu0 0.0
    %1858 = vmatprep.subr.mxu0 0.0
    %1859 = vmatpush1.msra.mxu0 0.0
    %1860 = vmatprep.subr.mxu0 0.0
    %1861 = vmatpush1.msra.mxu0 0.0
    %1862 = vmatprep.subr.mxu0 0.0
    %1863 = vmatpush1.msra.mxu0 0.0
    %1864 = vmatprep.subr.mxu0 0.0
    %1865 = vmatpush1.msra.mxu0 0.0
    %1866 = vmatprep.subr.mxu0 0.0
    %1867 = vmatpush1.msra.mxu0 0.0
    %1868 = vmatprep.subr.mxu0 0.0
    %1869 = vmatpush1.msra.mxu0 0.0
    %1870 = vmatprep.subr.mxu0 0.0
    %1871 = vmatpush1.msra.mxu0 0.0
    %1872 = vmatprep.subr.mxu0 0.0
    %1873 = vmatpush1.msra.mxu0 0.0
    %1874 = vmatprep.subr.mxu0 0.0
    %1875 = vmatpush1.msra.mxu0 0.0
    %1876 = vmatprep.subr.mxu0 0.0
    %1877 = vmatpush1.msra.mxu0 0.0
    %1878 = vmatprep.subr.mxu0 0.0
    %1879 = vmatpush1.msra.mxu0 0.0
    %1880 = vmatprep.subr.mxu0 0.0
    %1881 = vmatpush1.msra.mxu0 0.0
    %1882 = vmatprep.subr.mxu0 0.0
    %1883 = vmatpush1.msra.mxu0 0.0
    %1884 = vmatprep.mubr.f32.mxu0 0.0
    %1885 = vmatmul.mubr.f32.gmra.mrb[0].mxu0 %v1748
    %v1886 = vpop.f32.mrb[0].mxu0
    %v1887 = vadd.f32 0.0, %v1886
    %v1888 = vpop.f32.mrb[0].mxu0
    %v1889 = vadd.f32 0.0, %v1888
    %1890 = vdwg.mxu0
    %v1891 = vadd.f32 %v934, %v1816
    %v1892 = vadd.f32 %v936, %v1818
    %v1893 = vadd.f32 %v1047, %v1887
    %v1894 = vadd.f32 %v1049, %v1889
    %v1895 = vxor.u32 %v1891, 2147483648
    %v1896 = vmul.f32 %v1895, 1.442695
    %v1897 = vpow.pop %v1896
    %v1898 = vadd.f32 %v1897, 1.0
    %v1899 = vrcp.pop %v1898
    %v1900 = vmul.f32 1.0, %v1899
    %v1901 = vxor.u32 %v1892, 2147483648
    %v1902 = vmul.f32 %v1901, 1.442695
    %v1903 = vpow.pop %v1902
    %v1904 = vadd.f32 %v1903, 1.0
    %v1905 = vrcp.pop %v1904
    %v1906 = vmul.f32 1.0, %v1905
    %v1907 = vtanh.pop %v1893
    %v1908 = vxor.u32 %v1894, 2147483648
    %v1909 = vmul.f32 %v1908, 1.442695
    %v1910 = vpow.pop %v1909
    %v1911 = vadd.f32 %v1910, 1.0
    %v1912 = vrcp.pop %v1911
    %v1913 = vmul.f32 1.0, %v1912
    %v1914 = vmul.f32 %v1906, %v1746
    %v1915 = vmul.f32 %v1900, %v1907
    %v1916 = vadd.f32 %v1914, %v1915
    %v1917 = vtanh.pop %v1916
    %v1918 = vmul.f32 %v1913, %v1917
    %1919 = vmatprep.subr.mxu0 %v718
    %1920 = vmatpush1.msra.mxu0 %v717
    %1921 = vmatprep.subr.mxu0 %v722
    %1922 = vmatpush1.msra.mxu0 %v721
    %1923 = vmatprep.subr.mxu0 %v726
    %1924 = vmatpush1.msra.mxu0 %v725
    %1925 = vmatprep.subr.mxu0 %v730
    %1926 = vmatpush1.msra.mxu0 %v729
    %1927 = vmatprep.subr.mxu0 %v734
    %1928 = vmatpush1.msra.mxu0 %v733
    %1929 = vmatprep.subr.mxu0 %v738
    %1930 = vmatpush1.msra.mxu0 %v737
    %1931 = vmatprep.subr.mxu0 %v742
    %1932 = vmatpush1.msra.mxu0 %v741
    %1933 = vmatprep.subr.mxu0 %v746
    %1934 = vmatpush1.msra.mxu0 %v745
    %1935 = vmatprep.subr.mxu0 %v750
    %1936 = vmatpush1.msra.mxu0 %v749
    %1937 = vmatprep.subr.mxu0 %v754
    %1938 = vmatpush1.msra.mxu0 %v753
    %1939 = vmatprep.subr.mxu0 %v758
    %1940 = vmatpush1.msra.mxu0 %v757
    %1941 = vmatprep.subr.mxu0 %v762
    %1942 = vmatpush1.msra.mxu0 %v761
    %1943 = vmatprep.subr.mxu0 %v766
    %1944 = vmatpush1.msra.mxu0 %v765
    %1945 = vmatprep.subr.mxu0 %v770
    %1946 = vmatpush1.msra.mxu0 %v769
    %1947 = vmatprep.subr.mxu0 %v774
    %1948 = vmatpush1.msra.mxu0 %v773
    %1949 = vmatprep.subr.mxu0 %v778
    %1950 = vmatpush1.msra.mxu0 %v777
    %1951 = vmatprep.subr.mxu0 0.0
    %1952 = vmatpush1.msra.mxu0 0.0
    %1953 = vmatprep.subr.mxu0 0.0
    %1954 = vmatpush1.msra.mxu0 0.0
    %1955 = vmatprep.subr.mxu0 0.0
    %1956 = vmatpush1.msra.mxu0 0.0
    %1957 = vmatprep.subr.mxu0 0.0
    %1958 = vmatpush1.msra.mxu0 0.0
    %1959 = vmatprep.subr.mxu0 0.0
    %1960 = vmatpush1.msra.mxu0 0.0
    %1961 = vmatprep.subr.mxu0 0.0
    %1962 = vmatpush1.msra.mxu0 0.0
    %1963 = vmatprep.subr.mxu0 0.0
    %1964 = vmatpush1.msra.mxu0 0.0
    %1965 = vmatprep.subr.mxu0 0.0
    %1966 = vmatpush1.msra.mxu0 0.0
    %1967 = vmatprep.subr.mxu0 0.0
    %1968 = vmatpush1.msra.mxu0 0.0
    %1969 = vmatprep.subr.mxu0 0.0
    %1970 = vmatpush1.msra.mxu0 0.0
    %1971 = vmatprep.subr.mxu0 0.0
    %1972 = vmatpush1.msra.mxu0 0.0
    %1973 = vmatprep.subr.mxu0 0.0
    %1974 = vmatpush1.msra.mxu0 0.0
    %1975 = vmatprep.subr.mxu0 0.0
    %1976 = vmatpush1.msra.mxu0 0.0
    %1977 = vmatprep.subr.mxu0 0.0
    %1978 = vmatpush1.msra.mxu0 0.0
    %1979 = vmatprep.subr.mxu0 0.0
    %1980 = vmatpush1.msra.mxu0 0.0
    %1981 = vmatprep.subr.mxu0 0.0
    %1982 = vmatpush1.msra.mxu0 0.0
    %1983 = vmatprep.mubr.f32.mxu0 0.0
    %1984 = vmatmul.mubr.f32.gmra.mrb[0].mxu0 %v1918
    %v1985 = vpop.f32.mrb[0].mxu0
    %v1986 = vadd.f32 0.0, %v1985
    %v1987 = vpop.f32.mrb[0].mxu0
    %v1988 = vadd.f32 0.0, %v1987
    %1989 = vdwg.mxu0
    %1990 = vmatprep.subr.mxu0 %v720
    %1991 = vmatpush1.msra.mxu0 %v719
    %1992 = vmatprep.subr.mxu0 %v724
    %1993 = vmatpush1.msra.mxu0 %v723
    %1994 = vmatprep.subr.mxu0 %v728
    %1995 = vmatpush1.msra.mxu0 %v727
    %1996 = vmatprep.subr.mxu0 %v732
    %1997 = vmatpush1.msra.mxu0 %v731
    %1998 = vmatprep.subr.mxu0 %v736
    %1999 = vmatpush1.msra.mxu0 %v735
    %2000 = vmatprep.subr.mxu0 %v740
    %2001 = vmatpush1.msra.mxu0 %v739
    %2002 = vmatprep.subr.mxu0 %v744
    %2003 = vmatpush1.msra.mxu0 %v743
    %2004 = vmatprep.subr.mxu0 %v748
    %2005 = vmatpush1.msra.mxu0 %v747
    %2006 = vmatprep.subr.mxu0 %v752
    %2007 = vmatpush1.msra.mxu0 %v751
    %2008 = vmatprep.subr.mxu0 %v756
    %2009 = vmatpush1.msra.mxu0 %v755
    %2010 = vmatprep.subr.mxu0 %v760
    %2011 = vmatpush1.msra.mxu0 %v759
    %2012 = vmatprep.subr.mxu0 %v764
    %2013 = vmatpush1.msra.mxu0 %v763
    %2014 = vmatprep.subr.mxu0 %v768
    %2015 = vmatpush1.msra.mxu0 %v767
    %2016 = vmatprep.subr.mxu0 %v772
    %2017 = vmatpush1.msra.mxu0 %v771
    %2018 = vmatprep.subr.mxu0 %v776
    %2019 = vmatpush1.msra.mxu0 %v775
    %2020 = vmatprep.subr.mxu0 %v780
    %2021 = vmatpush1.msra.mxu0 %v779
    %2022 = vmatprep.subr.mxu0 0.0
    %2023 = vmatpush1.msra.mxu0 0.0
    %2024 = vmatprep.subr.mxu0 0.0
    %2025 = vmatpush1.msra.mxu0 0.0
    %2026 = vmatprep.subr.mxu0 0.0
    %2027 = vmatpush1.msra.mxu0 0.0
    %2028 = vmatprep.subr.mxu0 0.0
    %2029 = vmatpush1.msra.mxu0 0.0
    %2030 = vmatprep.subr.mxu0 0.0
    %2031 = vmatpush1.msra.mxu0 0.0
    %2032 = vmatprep.subr.mxu0 0.0
    %2033 = vmatpush1.msra.mxu0 0.0
    %2034 = vmatprep.subr.mxu0 0.0
    %2035 = vmatpush1.msra.mxu0 0.0
    %2036 = vmatprep.subr.mxu0 0.0
    %2037 = vmatpush1.msra.mxu0 0.0
    %2038 = vmatprep.subr.mxu0 0.0
    %2039 = vmatpush1.msra.mxu0 0.0
    %2040 = vmatprep.subr.mxu0 0.0
    %2041 = vmatpush1.msra.mxu0 0.0
    %2042 = vmatprep.subr.mxu0 0.0
    %2043 = vmatpush1.msra.mxu0 0.0
    %2044 = vmatprep.subr.mxu0 0.0
    %2045 = vmatpush1.msra.mxu0 0.0
    %2046 = vmatprep.subr.mxu0 0.0
    %2047 = vmatpush1.msra.mxu0 0.0
    %2048 = vmatprep.subr.mxu0 0.0
    %2049 = vmatpush1.msra.mxu0 0.0
    %2050 = vmatprep.subr.mxu0 0.0
    %2051 = vmatpush1.msra.mxu0 0.0
    %2052 = vmatprep.subr.mxu0 0.0
    %2053 = vmatpush1.msra.mxu0 0.0
    %2054 = vmatprep.mubr.f32.mxu0 0.0
    %2055 = vmatmul.mubr.f32.gmra.mrb[0].mxu0 %v1918
    %v2056 = vpop.f32.mrb[0].mxu0
    %v2057 = vadd.f32 0.0, %v2056
    %v2058 = vpop.f32.mrb[0].mxu0
    %v2059 = vadd.f32 0.0, %v2058
    %2060 = vdwg.mxu0
    %v2061 = vadd.f32 %v940, %v1986
    %v2062 = vadd.f32 %v942, %v1988
    %v2063 = vadd.f32 %v1053, %v2057
    %v2064 = vadd.f32 %v1055, %v2059
    %v2065 = vxor.u32 %v2061, 2147483648
    %v2066 = vmul.f32 %v2065, 1.442695
    %v2067 = vpow.pop %v2066
    %v2068 = vadd.f32 %v2067, 1.0
    %v2069 = vrcp.pop %v2068
    %v2070 = vmul.f32 1.0, %v2069
    %v2071 = vxor.u32 %v2062, 2147483648
    %v2072 = vmul.f32 %v2071, 1.442695
    %v2073 = vpow.pop %v2072
    %v2074 = vadd.f32 %v2073, 1.0
    %v2075 = vrcp.pop %v2074
    %v2076 = vmul.f32 1.0, %v2075
    %v2077 = vtanh.pop %v2063
    %v2078 = vxor.u32 %v2064, 2147483648
    %v2079 = vmul.f32 %v2078, 1.442695
    %v2080 = vpow.pop %v2079
    %v2081 = vadd.f32 %v2080, 1.0
    %v2082 = vrcp.pop %v2081
    %v2083 = vmul.f32 1.0, %v2082
    %v2084 = vmul.f32 %v2076, %v1916
    %v2085 = vmul.f32 %v2070, %v2077
    %v2086 = vadd.f32 %v2084, %v2085
    %v2087 = vtanh.pop %v2086
    %v2088 = vmul.f32 %v2083, %v2087
    %2089 = vmatprep.subr.mxu0 %v718
    %2090 = vmatpush1.msra.mxu0 %v717
    %2091 = vmatprep.subr.mxu0 %v722
    %2092 = vmatpush1.msra.mxu0 %v721
    %2093 = vmatprep.subr.mxu0 %v726
    %2094 = vmatpush1.msra.mxu0 %v725
    %2095 = vmatprep.subr.mxu0 %v730
    %2096 = vmatpush1.msra.mxu0 %v729
    %2097 = vmatprep.subr.mxu0 %v734
    %2098 = vmatpush1.msra.mxu0 %v733
    %2099 = vmatprep.subr.mxu0 %v738
    %2100 = vmatpush1.msra.mxu0 %v737
    %2101 = vmatprep.subr.mxu0 %v742
    %2102 = vmatpush1.msra.mxu0 %v741
    %2103 = vmatprep.subr.mxu0 %v746
    %2104 = vmatpush1.msra.mxu0 %v745
    %2105 = vmatprep.subr.mxu0 %v750
    %2106 = vmatpush1.msra.mxu0 %v749
    %2107 = vmatprep.subr.mxu0 %v754
    %2108 = vmatpush1.msra.mxu0 %v753
    %2109 = vmatprep.subr.mxu0 %v758
    %2110 = vmatpush1.msra.mxu0 %v757
    %2111 = vmatprep.subr.mxu0 %v762
    %2112 = vmatpush1.msra.mxu0 %v761
    %2113 = vmatprep.subr.mxu0 %v766
    %2114 = vmatpush1.msra.mxu0 %v765
    %2115 = vmatprep.subr.mxu0 %v770
    %2116 = vmatpush1.msra.mxu0 %v769
    %2117 = vmatprep.subr.mxu0 %v774
    %2118 = vmatpush1.msra.mxu0 %v773
    %2119 = vmatprep.subr.mxu0 %v778
    %2120 = vmatpush1.msra.mxu0 %v777
    %2121 = vmatprep.subr.mxu0 0.0
    %2122 = vmatpush1.msra.mxu0 0.0
    %2123 = vmatprep.subr.mxu0 0.0
    %2124 = vmatpush1.msra.mxu0 0.0
    %2125 = vmatprep.subr.mxu0 0.0
    %2126 = vmatpush1.msra.mxu0 0.0
    %2127 = vmatprep.subr.mxu0 0.0
    %2128 = vmatpush1.msra.mxu0 0.0
    %2129 = vmatprep.subr.mxu0 0.0
    %2130 = vmatpush1.msra.mxu0 0.0
    %2131 = vmatprep.subr.mxu0 0.0
    %2132 = vmatpush1.msra.mxu0 0.0
    %2133 = vmatprep.subr.mxu0 0.0
    %2134 = vmatpush1.msra.mxu0 0.0
    %2135 = vmatprep.subr.mxu0 0.0
    %2136 = vmatpush1.msra.mxu0 0.0
    %2137 = vmatprep.subr.mxu0 0.0
    %2138 = vmatpush1.msra.mxu0 0.0
    %2139 = vmatprep.subr.mxu0 0.0
    %2140 = vmatpush1.msra.mxu0 0.0
    %2141 = vmatprep.subr.mxu0 0.0
    %2142 = vmatpush1.msra.mxu0 0.0
    %2143 = vmatprep.subr.mxu0 0.0
    %2144 = vmatpush1.msra.mxu0 0.0
    %2145 = vmatprep.subr.mxu0 0.0
    %2146 = vmatpush1.msra.mxu0 0.0
    %2147 = vmatprep.subr.mxu0 0.0
    %2148 = vmatpush1.msra.mxu0 0.0
    %2149 = vmatprep.subr.mxu0 0.0
    %2150 = vmatpush1.msra.mxu0 0.0
    %2151 = vmatprep.subr.mxu0 0.0
    %2152 = vmatpush1.msra.mxu0 0.0
    %2153 = vmatprep.mubr.f32.mxu0 0.0
    %2154 = vmatmul.mubr.f32.gmra.mrb[0].mxu0 %v2088
    %v2155 = vpop.f32.mrb[0].mxu0
    %v2156 = vadd.f32 0.0, %v2155
    %v2157 = vpop.f32.mrb[0].mxu0
    %v2158 = vadd.f32 0.0, %v2157
    %2159 = vdwg.mxu0
    %2160 = vmatprep.subr.mxu0 %v720
    %2161 = vmatpush1.msra.mxu0 %v719
    %2162 = vmatprep.subr.mxu0 %v724
    %2163 = vmatpush1.msra.mxu0 %v723
    %2164 = vmatprep.subr.mxu0 %v728
    %2165 = vmatpush1.msra.mxu0 %v727
    %2166 = vmatprep.subr.mxu0 %v732
    %2167 = vmatpush1.msra.mxu0 %v731
    %2168 = vmatprep.subr.mxu0 %v736
    %2169 = vmatpush1.msra.mxu0 %v735
    %2170 = vmatprep.subr.mxu0 %v740
    %2171 = vmatpush1.msra.mxu0 %v739
    %2172 = vmatprep.subr.mxu0 %v744
    %2173 = vmatpush1.msra.mxu0 %v743
    %2174 = vmatprep.subr.mxu0 %v748
    %2175 = vmatpush1.msra.mxu0 %v747
    %2176 = vmatprep.subr.mxu0 %v752
    %2177 = vmatpush1.msra.mxu0 %v751
    %2178 = vmatprep.subr.mxu0 %v756
    %2179 = vmatpush1.msra.mxu0 %v755
    %2180 = vmatprep.subr.mxu0 %v760
    %2181 = vmatpush1.msra.mxu0 %v759
    %2182 = vmatprep.subr.mxu0 %v764
    %2183 = vmatpush1.msra.mxu0 %v763
    %2184 = vmatprep.subr.mxu0 %v768
    %2185 = vmatpush1.msra.mxu0 %v767
    %2186 = vmatprep.subr.mxu0 %v772
    %2187 = vmatpush1.msra.mxu0 %v771
    %2188 = vmatprep.subr.mxu0 %v776
    %2189 = vmatpush1.msra.mxu0 %v775
    %2190 = vmatprep.subr.mxu0 %v780
    %2191 = vmatpush1.msra.mxu0 %v779
    %2192 = vmatprep.subr.mxu0 0.0
    %2193 = vmatpush1.msra.mxu0 0.0
    %2194 = vmatprep.subr.mxu0 0.0
    %2195 = vmatpush1.msra.mxu0 0.0
    %2196 = vmatprep.subr.mxu0 0.0
    %2197 = vmatpush1.msra.mxu0 0.0
    %2198 = vmatprep.subr.mxu0 0.0
    %2199 = vmatpush1.msra.mxu0 0.0
    %2200 = vmatprep.subr.mxu0 0.0
    %2201 = vmatpush1.msra.mxu0 0.0
    %2202 = vmatprep.subr.mxu0 0.0
    %2203 = vmatpush1.msra.mxu0 0.0
    %2204 = vmatprep.subr.mxu0 0.0
    %2205 = vmatpush1.msra.mxu0 0.0
    %2206 = vmatprep.subr.mxu0 0.0
    %2207 = vmatpush1.msra.mxu0 0.0
    %2208 = vmatprep.subr.mxu0 0.0
    %2209 = vmatpush1.msra.mxu0 0.0
    %2210 = vmatprep.subr.mxu0 0.0
    %2211 = vmatpush1.msra.mxu0 0.0
    %2212 = vmatprep.subr.mxu0 0.0
    %2213 = vmatpush1.msra.mxu0 0.0
    %2214 = vmatprep.subr.mxu0 0.0
    %2215 = vmatpush1.msra.mxu0 0.0
    %2216 = vmatprep.subr.mxu0 0.0
    %2217 = vmatpush1.msra.mxu0 0.0
    %2218 = vmatprep.subr.mxu0 0.0
    %2219 = vmatpush1.msra.mxu0 0.0
    %2220 = vmatprep.subr.mxu0 0.0
    %2221 = vmatpush1.msra.mxu0 0.0
    %2222 = vmatprep.subr.mxu0 0.0
    %2223 = vmatpush1.msra.mxu0 0.0
    %2224 = vmatprep.mubr.f32.mxu0 0.0
    %2225 = vmatmul.mubr.f32.gmra.mrb[0].mxu0 %v2088
    %v2226 = vpop.f32.mrb[0].mxu0
    %v2227 = vadd.f32 0.0, %v2226
    %v2228 = vpop.f32.mrb[0].mxu0
    %v2229 = vadd.f32 0.0, %v2228
    %2230 = vdwg.mxu0
    %v2231 = vadd.f32 %v946, %v2156
    %v2232 = vadd.f32 %v948, %v2158
    %v2233 = vadd.f32 %v1059, %v2227
    %v2234 = vadd.f32 %v1061, %v2229
    %v2235 = vxor.u32 %v2231, 2147483648
    %v2236 = vmul.f32 %v2235, 1.442695
    %v2237 = vpow.pop %v2236
    %v2238 = vadd.f32 %v2237, 1.0
    %v2239 = vrcp.pop %v2238
    %v2240 = vmul.f32 1.0, %v2239
    %v2241 = vxor.u32 %v2232, 2147483648
    %v2242 = vmul.f32 %v2241, 1.442695
    %v2243 = vpow.pop %v2242
    %v2244 = vadd.f32 %v2243, 1.0
    %v2245 = vrcp.pop %v2244
    %v2246 = vmul.f32 1.0, %v2245
    %v2247 = vtanh.pop %v2233
    %v2248 = vxor.u32 %v2234, 2147483648
    %v2249 = vmul.f32 %v2248, 1.442695
    %v2250 = vpow.pop %v2249
    %v2251 = vadd.f32 %v2250, 1.0
    %v2252 = vrcp.pop %v2251
    %v2253 = vmul.f32 1.0, %v2252
    %v2254 = vmul.f32 %v2246, %v2086
    %v2255 = vmul.f32 %v2240, %v2247
    %v2256 = vadd.f32 %v2254, %v2255
    %v2257 = vtanh.pop %v2256
    %v2258 = vmul.f32 %v2253, %v2257
    %2259 = vmatprep.subr.mxu0 %v718
    %2260 = vmatpush1.msra.mxu0 %v717
    %2261 = vmatprep.subr.mxu0 %v722
    %2262 = vmatpush1.msra.mxu0 %v721
    %2263 = vmatprep.subr.mxu0 %v726
    %2264 = vmatpush1.msra.mxu0 %v725
    %2265 = vmatprep.subr.mxu0 %v730
    %2266 = vmatpush1.msra.mxu0 %v729
    %2267 = vmatprep.subr.mxu0 %v734
    %2268 = vmatpush1.msra.mxu0 %v733
    %2269 = vmatprep.subr.mxu0 %v738
    %2270 = vmatpush1.msra.mxu0 %v737
    %2271 = vmatprep.subr.mxu0 %v742
    %2272 = vmatpush1.msra.mxu0 %v741
    %2273 = vmatprep.subr.mxu0 %v746
    %2274 = vmatpush1.msra.mxu0 %v745
    %2275 = vmatprep.subr.mxu0 %v750
    %2276 = vmatpush1.msra.mxu0 %v749
    %2277 = vmatprep.subr.mxu0 %v754
    %2278 = vmatpush1.msra.mxu0 %v753
    %2279 = vmatprep.subr.mxu0 %v758
    %2280 = vmatpush1.msra.mxu0 %v757
    %2281 = vmatprep.subr.mxu0 %v762
    %2282 = vmatpush1.msra.mxu0 %v761
    %2283 = vmatprep.subr.mxu0 %v766
    %2284 = vmatpush1.msra.mxu0 %v765
    %2285 = vmatprep.subr.mxu0 %v770
    %2286 = vmatpush1.msra.mxu0 %v769
    %2287 = vmatprep.subr.mxu0 %v774
    %2288 = vmatpush1.msra.mxu0 %v773
    %2289 = vmatprep.subr.mxu0 %v778
    %2290 = vmatpush1.msra.mxu0 %v777
    %2291 = vmatprep.subr.mxu0 0.0
    %2292 = vmatpush1.msra.mxu0 0.0
    %2293 = vmatprep.subr.mxu0 0.0
    %2294 = vmatpush1.msra.mxu0 0.0
    %2295 = vmatprep.subr.mxu0 0.0
    %2296 = vmatpush1.msra.mxu0 0.0
    %2297 = vmatprep.subr.mxu0 0.0
    %2298 = vmatpush1.msra.mxu0 0.0
    %2299 = vmatprep.subr.mxu0 0.0
    %2300 = vmatpush1.msra.mxu0 0.0
    %2301 = vmatprep.subr.mxu0 0.0
    %2302 = vmatpush1.msra.mxu0 0.0
    %2303 = vmatprep.subr.mxu0 0.0
    %2304 = vmatpush1.msra.mxu0 0.0
    %2305 = vmatprep.subr.mxu0 0.0
    %2306 = vmatpush1.msra.mxu0 0.0
    %2307 = vmatprep.subr.mxu0 0.0
    %2308 = vmatpush1.msra.mxu0 0.0
    %2309 = vmatprep.subr.mxu0 0.0
    %2310 = vmatpush1.msra.mxu0 0.0
    %2311 = vmatprep.subr.mxu0 0.0
    %2312 = vmatpush1.msra.mxu0 0.0
    %2313 = vmatprep.subr.mxu0 0.0
    %2314 = vmatpush1.msra.mxu0 0.0
    %2315 = vmatprep.subr.mxu0 0.0
    %2316 = vmatpush1.msra.mxu0 0.0
    %2317 = vmatprep.subr.mxu0 0.0
    %2318 = vmatpush1.msra.mxu0 0.0
    %2319 = vmatprep.subr.mxu0 0.0
    %2320 = vmatpush1.msra.mxu0 0.0
    %2321 = vmatprep.subr.mxu0 0.0
    %2322 = vmatpush1.msra.mxu0 0.0
    %2323 = vmatprep.mubr.f32.mxu0 0.0
    %2324 = vmatmul.mubr.f32.gmra.mrb[0].mxu0 %v2258
    %v2325 = vpop.f32.mrb[0].mxu0
    %v2326 = vadd.f32 0.0, %v2325
    %v2327 = vpop.f32.mrb[0].mxu0
    %v2328 = vadd.f32 0.0, %v2327
    %2329 = vdwg.mxu0
    %2330 = vmatprep.subr.mxu0 %v720
    %2331 = vmatpush1.msra.mxu0 %v719
    %2332 = vmatprep.subr.mxu0 %v724
    %2333 = vmatpush1.msra.mxu0 %v723
    %2334 = vmatprep.subr.mxu0 %v728
    %2335 = vmatpush1.msra.mxu0 %v727
    %2336 = vmatprep.subr.mxu0 %v732
    %2337 = vmatpush1.msra.mxu0 %v731
    %2338 = vmatprep.subr.mxu0 %v736
    %2339 = vmatpush1.msra.mxu0 %v735
    %2340 = vmatprep.subr.mxu0 %v740
    %2341 = vmatpush1.msra.mxu0 %v739
    %2342 = vmatprep.subr.mxu0 %v744
    %2343 = vmatpush1.msra.mxu0 %v743
    %2344 = vmatprep.subr.mxu0 %v748
    %2345 = vmatpush1.msra.mxu0 %v747
    %2346 = vmatprep.subr.mxu0 %v752
    %2347 = vmatpush1.msra.mxu0 %v751
    %2348 = vmatprep.subr.mxu0 %v756
    %2349 = vmatpush1.msra.mxu0 %v755
    %2350 = vmatprep.subr.mxu0 %v760
    %2351 = vmatpush1.msra.mxu0 %v759
    %2352 = vmatprep.subr.mxu0 %v764
    %2353 = vmatpush1.msra.mxu0 %v763
    %2354 = vmatprep.subr.mxu0 %v768
    %2355 = vmatpush1.msra.mxu0 %v767
    %2356 = vmatprep.subr.mxu0 %v772
    %2357 = vmatpush1.msra.mxu0 %v771
    %2358 = vmatprep.subr.mxu0 %v776
    %2359 = vmatpush1.msra.mxu0 %v775
    %2360 = vmatprep.subr.mxu0 %v780
    %2361 = vmatpush1.msra.mxu0 %v779
    %2362 = vmatprep.subr.mxu0 0.0
    %2363 = vmatpush1.msra.mxu0 0.0
    %2364 = vmatprep.subr.mxu0 0.0
    %2365 = vmatpush1.msra.mxu0 0.0
    %2366 = vmatprep.subr.mxu0 0.0
    %2367 = vmatpush1.msra.mxu0 0.0
    %2368 = vmatprep.subr.mxu0 0.0
    %2369 = vmatpush1.msra.mxu0 0.0
    %2370 = vmatprep.subr.mxu0 0.0
    %2371 = vmatpush1.msra.mxu0 0.0
    %2372 = vmatprep.subr.mxu0 0.0
    %2373 = vmatpush1.msra.mxu0 0.0
    %2374 = vmatprep.subr.mxu0 0.0
    %2375 = vmatpush1.msra.mxu0 0.0
    %2376 = vmatprep.subr.mxu0 0.0
    %2377 = vmatpush1.msra.mxu0 0.0
    %2378 = vmatprep.subr.mxu0 0.0
    %2379 = vmatpush1.msra.mxu0 0.0
    %2380 = vmatprep.subr.mxu0 0.0
    %2381 = vmatpush1.msra.mxu0 0.0
    %2382 = vmatprep.subr.mxu0 0.0
    %2383 = vmatpush1.msra.mxu0 0.0
    %2384 = vmatprep.subr.mxu0 0.0
    %2385 = vmatpush1.msra.mxu0 0.0
    %2386 = vmatprep.subr.mxu0 0.0
    %2387 = vmatpush1.msra.mxu0 0.0
    %2388 = vmatprep.subr.mxu0 0.0
    %2389 = vmatpush1.msra.mxu0 0.0
    %2390 = vmatprep.subr.mxu0 0.0
    %2391 = vmatpush1.msra.mxu0 0.0
    %2392 = vmatprep.subr.mxu0 0.0
    %2393 = vmatpush1.msra.mxu0 0.0
    %2394 = vmatprep.mubr.f32.mxu0 0.0
    %2395 = vmatmul.mubr.f32.gmra.mrb[0].mxu0 %v2258
    %v2396 = vpop.f32.mrb[0].mxu0
    %v2397 = vadd.f32 0.0, %v2396
    %v2398 = vpop.f32.mrb[0].mxu0
    %v2399 = vadd.f32 0.0, %v2398
    %2400 = vdwg.mxu0
    %v2401 = vadd.f32 %v952, %v2326
    %v2402 = vadd.f32 %v954, %v2328
    %v2403 = vadd.f32 %v1065, %v2397
    %v2404 = vadd.f32 %v1067, %v2399
    %v2405 = vxor.u32 %v2401, 2147483648
    %v2406 = vmul.f32 %v2405, 1.442695
    %v2407 = vpow.pop %v2406
    %v2408 = vadd.f32 %v2407, 1.0
    %v2409 = vrcp.pop %v2408
    %v2410 = vmul.f32 1.0, %v2409
    %v2411 = vxor.u32 %v2402, 2147483648
    %v2412 = vmul.f32 %v2411, 1.442695
    %v2413 = vpow.pop %v2412
    %v2414 = vadd.f32 %v2413, 1.0
    %v2415 = vrcp.pop %v2414
    %v2416 = vmul.f32 1.0, %v2415
    %v2417 = vtanh.pop %v2403
    %v2418 = vxor.u32 %v2404, 2147483648
    %v2419 = vmul.f32 %v2418, 1.442695
    %v2420 = vpow.pop %v2419
    %v2421 = vadd.f32 %v2420, 1.0
    %v2422 = vrcp.pop %v2421
    %v2423 = vmul.f32 1.0, %v2422
    %v2424 = vmul.f32 %v2416, %v2256
    %v2425 = vmul.f32 %v2410, %v2417
    %v2426 = vadd.f32 %v2424, %v2425
    %v2427 = vtanh.pop %v2426
    %v2428 = vmul.f32 %v2423, %v2427
    %s2429 = scalar_lea.vmem [#allocation7], 512
    %v2430 = vld [vmem:[%s2429] sm:$0xff]
    %v2431 = vld [vmem:[%s2429 + $0x8] sm:$0xff]
    %v2432 = vld [vmem:[%s2429 + $0x10] sm:$0xff]
    %v2433 = vld [vmem:[%s2429 + $0x18] sm:$0xff]
    %v2434 = vld [vmem:[%s2429 + $0x20] sm:$0xff]
    %v2435 = vld [vmem:[%s2429 + $0x28] sm:$0xff]
    %v2436 = vld [vmem:[%s2429 + $0x30] sm:$0xff]
    %v2437 = vld [vmem:[%s2429 + $0x38] sm:$0xff]
    %v2438 = vld [vmem:[%s2429 + $0x40] sm:$0xff]
    %v2439 = vld [vmem:[%s2429 + $0x48] sm:$0xff]
    %v2440 = vld [vmem:[%s2429 + $0x50] sm:$0xff]
    %v2441 = vld [vmem:[%s2429 + $0x58] sm:$0xff]
    %v2442 = vld [vmem:[%s2429 + $0x60] sm:$0xff]
    %v2443 = vld [vmem:[%s2429 + $0x68] sm:$0xff]
    %v2444 = vld [vmem:[%s2429 + $0x70] sm:$0xff]
    %v2445 = vld [vmem:[%s2429 + $0x78] sm:$0xff]
    %v2446 = vld [vmem:[%s2429 + $0x80] sm:$0xff]
    %v2447 = vld [vmem:[%s2429 + $0x88] sm:$0xff]
    %v2448 = vld [vmem:[%s2429 + $0x90] sm:$0xff]
    %v2449 = vld [vmem:[%s2429 + $0x98] sm:$0xff]
    %v2450 = vld [vmem:[%s2429 + $0xa0] sm:$0xff]
    %v2451 = vld [vmem:[%s2429 + $0xa8] sm:$0xff]
    %v2452 = vld [vmem:[%s2429 + $0xb0] sm:$0xff]
    %v2453 = vld [vmem:[%s2429 + $0xb8] sm:$0xff]
    %v2454 = vld [vmem:[%s2429 + $0xc0] sm:$0xff]
    %v2455 = vld [vmem:[%s2429 + $0xc8] sm:$0xff]
    %v2456 = vld [vmem:[%s2429 + $0xd0] sm:$0xff]
    %v2457 = vld [vmem:[%s2429 + $0xd8] sm:$0xff]
    %v2458 = vld [vmem:[%s2429 + $0xe0] sm:$0xff]
    %v2459 = vld [vmem:[%s2429 + $0xe8] sm:$0xff]
    %v2460 = vld [vmem:[%s2429 + $0xf0] sm:$0xff]
    %v2461 = vld [vmem:[%s2429 + $0xf8] sm:$0xff]
    %v2462 = vld [vmem:[%s2429 + $0x100] sm:$0xff]
    %v2463 = vld [vmem:[%s2429 + $0x108] sm:$0xff]
    %v2464 = vld [vmem:[%s2429 + $0x110] sm:$0xff]
    %v2465 = vld [vmem:[%s2429 + $0x118] sm:$0xff]
    %v2466 = vld [vmem:[%s2429 + $0x120] sm:$0xff]
    %v2467 = vld [vmem:[%s2429 + $0x128] sm:$0xff]
    %v2468 = vld [vmem:[%s2429 + $0x130] sm:$0xff]
    %v2469 = vld [vmem:[%s2429 + $0x138] sm:$0xff]
    %v2470 = vld [vmem:[%s2429 + $0x140] sm:$0xff]
    %v2471 = vld [vmem:[%s2429 + $0x148] sm:$0xff]
    %v2472 = vld [vmem:[%s2429 + $0x150] sm:$0xff]
    %v2473 = vld [vmem:[%s2429 + $0x158] sm:$0xff]
    %v2474 = vld [vmem:[%s2429 + $0x160] sm:$0xff]
    %v2475 = vld [vmem:[%s2429 + $0x168] sm:$0xff]
    %v2476 = vld [vmem:[%s2429 + $0x170] sm:$0xff]
    %v2477 = vld [vmem:[%s2429 + $0x178] sm:$0xff]
    %v2478 = vld [vmem:[%s2429 + $0x180] sm:$0xff]
    %v2479 = vld [vmem:[%s2429 + $0x188] sm:$0xff]
    %v2480 = vld [vmem:[%s2429 + $0x190] sm:$0xff]
    %v2481 = vld [vmem:[%s2429 + $0x198] sm:$0xff]
    %v2482 = vld [vmem:[%s2429 + $0x1a0] sm:$0xff]
    %v2483 = vld [vmem:[%s2429 + $0x1a8] sm:$0xff]
    %v2484 = vld [vmem:[%s2429 + $0x1b0] sm:$0xff]
    %v2485 = vld [vmem:[%s2429 + $0x1b8] sm:$0xff]
    %v2486 = vld [vmem:[%s2429 + $0x1c0] sm:$0xff]
    %v2487 = vld [vmem:[%s2429 + $0x1c8] sm:$0xff]
    %v2488 = vld [vmem:[%s2429 + $0x1d0] sm:$0xff]
    %v2489 = vld [vmem:[%s2429 + $0x1d8] sm:$0xff]
    %v2490 = vld [vmem:[%s2429 + $0x1e0] sm:$0xff]
    %v2491 = vld [vmem:[%s2429 + $0x1e8] sm:$0xff]
    %v2492 = vld [vmem:[%s2429 + $0x1f0] sm:$0xff]
    %v2493 = vld [vmem:[%s2429 + $0x1f8] sm:$0xff]
    %s2494 = scalar_lea.vmem [#allocation7], 2048
    %v2495 = vld [vmem:[%s2494] sm:$0xff]
    %v2496 = vld [vmem:[%s2494 + $0x8] sm:$0xff]
    %v2497 = vld [vmem:[%s2494 + $0x10] sm:$0xff]
    %v2498 = vld [vmem:[%s2494 + $0x18] sm:$0xff]
    %v2499 = vld [vmem:[%s2494 + $0x20] sm:$0xff]
    %v2500 = vld [vmem:[%s2494 + $0x28] sm:$0xff]
    %v2501 = vld [vmem:[%s2494 + $0x30] sm:$0xff]
    %v2502 = vld [vmem:[%s2494 + $0x38] sm:$0xff]
    %v2503 = vld [vmem:[%s2494 + $0x40] sm:$0xff]
    %v2504 = vld [vmem:[%s2494 + $0x48] sm:$0xff]
    %v2505 = vld [vmem:[%s2494 + $0x50] sm:$0xff]
    %v2506 = vld [vmem:[%s2494 + $0x58] sm:$0xff]
    %v2507 = vld [vmem:[%s2494 + $0x60] sm:$0xff]
    %v2508 = vld [vmem:[%s2494 + $0x68] sm:$0xff]
    %v2509 = vld [vmem:[%s2494 + $0x70] sm:$0xff]
    %v2510 = vld [vmem:[%s2494 + $0x78] sm:$0xff]
    %v2511 = vld [vmem:[%s2494 + $0x80] sm:$0xff]
    %v2512 = vld [vmem:[%s2494 + $0x88] sm:$0xff]
    %v2513 = vld [vmem:[%s2494 + $0x90] sm:$0xff]
    %v2514 = vld [vmem:[%s2494 + $0x98] sm:$0xff]
    %v2515 = vld [vmem:[%s2494 + $0xa0] sm:$0xff]
    %v2516 = vld [vmem:[%s2494 + $0xa8] sm:$0xff]
    %v2517 = vld [vmem:[%s2494 + $0xb0] sm:$0xff]
    %v2518 = vld [vmem:[%s2494 + $0xb8] sm:$0xff]
    %v2519 = vld [vmem:[%s2494 + $0xc0] sm:$0xff]
    %v2520 = vld [vmem:[%s2494 + $0xc8] sm:$0xff]
    %v2521 = vld [vmem:[%s2494 + $0xd0] sm:$0xff]
    %v2522 = vld [vmem:[%s2494 + $0xd8] sm:$0xff]
    %v2523 = vld [vmem:[%s2494 + $0xe0] sm:$0xff]
    %v2524 = vld [vmem:[%s2494 + $0xe8] sm:$0xff]
    %v2525 = vld [vmem:[%s2494 + $0xf0] sm:$0xff]
    %v2526 = vld [vmem:[%s2494 + $0xf8] sm:$0xff]
    %v2527 = vld [vmem:[%s2494 + $0x100] sm:$0xff]
    %v2528 = vld [vmem:[%s2494 + $0x108] sm:$0xff]
    %v2529 = vld [vmem:[%s2494 + $0x110] sm:$0xff]
    %v2530 = vld [vmem:[%s2494 + $0x118] sm:$0xff]
    %v2531 = vld [vmem:[%s2494 + $0x120] sm:$0xff]
    %v2532 = vld [vmem:[%s2494 + $0x128] sm:$0xff]
    %v2533 = vld [vmem:[%s2494 + $0x130] sm:$0xff]
    %v2534 = vld [vmem:[%s2494 + $0x138] sm:$0xff]
    %v2535 = vld [vmem:[%s2494 + $0x140] sm:$0xff]
    %v2536 = vld [vmem:[%s2494 + $0x148] sm:$0xff]
    %v2537 = vld [vmem:[%s2494 + $0x150] sm:$0xff]
    %v2538 = vld [vmem:[%s2494 + $0x158] sm:$0xff]
    %v2539 = vld [vmem:[%s2494 + $0x160] sm:$0xff]
    %v2540 = vld [vmem:[%s2494 + $0x168] sm:$0xff]
    %v2541 = vld [vmem:[%s2494 + $0x170] sm:$0xff]
    %v2542 = vld [vmem:[%s2494 + $0x178] sm:$0xff]
    %v2543 = vld [vmem:[%s2494 + $0x180] sm:$0xff]
    %v2544 = vld [vmem:[%s2494 + $0x188] sm:$0xff]
    %v2545 = vld [vmem:[%s2494 + $0x190] sm:$0xff]
    %v2546 = vld [vmem:[%s2494 + $0x198] sm:$0xff]
    %v2547 = vld [vmem:[%s2494 + $0x1a0] sm:$0xff]
    %v2548 = vld [vmem:[%s2494 + $0x1a8] sm:$0xff]
    %v2549 = vld [vmem:[%s2494 + $0x1b0] sm:$0xff]
    %v2550 = vld [vmem:[%s2494 + $0x1b8] sm:$0xff]
    %v2551 = vld [vmem:[%s2494 + $0x1c0] sm:$0xff]
    %v2552 = vld [vmem:[%s2494 + $0x1c8] sm:$0xff]
    %v2553 = vld [vmem:[%s2494 + $0x1d0] sm:$0xff]
    %v2554 = vld [vmem:[%s2494 + $0x1d8] sm:$0xff]
    %v2555 = vld [vmem:[%s2494 + $0x1e0] sm:$0xff]
    %v2556 = vld [vmem:[%s2494 + $0x1e8] sm:$0xff]
    %v2557 = vld [vmem:[%s2494 + $0x1f0] sm:$0xff]
    %v2558 = vld [vmem:[%s2494 + $0x1f8] sm:$0xff]
    %s2559 = scalar_lea.vmem [#allocation9], 1
    %v2560 = vld [vmem:[%s2559] ss:$4 sm:$0xf]
    %v2562 = vlaneseq
    %v2563 = vshrl.u32 %v2562, 7
    %v2564 = vsub.s32 0, %v2563
    %v2565 = vrot.slane %v2560, %v2564
    %v2566 = vlaneseq
    %v2567 = vshrl.u32 %v2566, 7
    %v2568 = vsub.s32 1, %v2567
    %v2569 = vrot.slane %v2560, %v2568
    %v2570 = vlaneseq
    %v2571 = vshrl.u32 %v2570, 7
    %v2572 = vsub.s32 2, %v2571
    %v2573 = vrot.slane %v2560, %v2572
    %v2574 = vlaneseq
    %v2575 = vshrl.u32 %v2574, 7
    %v2576 = vsub.s32 3, %v2575
    %v2577 = vrot.slane %v2560, %v2576
    %2582 = vmatprep.subr.mxu0 %v2496
    %2583 = vmatpush1.msra.mxu0 %v2495
    %2584 = vmatprep.subr.mxu0 %v2500
    %2585 = vmatpush1.msra.mxu0 %v2499
    %2586 = vmatprep.subr.mxu0 %v2504
    %2587 = vmatpush1.msra.mxu0 %v2503
    %2588 = vmatprep.subr.mxu0 %v2508
    %2589 = vmatpush1.msra.mxu0 %v2507
    %2590 = vmatprep.subr.mxu0 %v2512
    %2591 = vmatpush1.msra.mxu0 %v2511
    %2592 = vmatprep.subr.mxu0 %v2516
    %2593 = vmatpush1.msra.mxu0 %v2515
    %2594 = vmatprep.subr.mxu0 %v2520
    %2595 = vmatpush1.msra.mxu0 %v2519
    %2596 = vmatprep.subr.mxu0 %v2524
    %2597 = vmatpush1.msra.mxu0 %v2523
    %2598 = vmatprep.subr.mxu0 %v2528
    %2599 = vmatpush1.msra.mxu0 %v2527
    %2600 = vmatprep.subr.mxu0 %v2532
    %2601 = vmatpush1.msra.mxu0 %v2531
    %2602 = vmatprep.subr.mxu0 %v2536
    %2603 = vmatpush1.msra.mxu0 %v2535
    %2604 = vmatprep.subr.mxu0 %v2540
    %2605 = vmatpush1.msra.mxu0 %v2539
    %2606 = vmatprep.subr.mxu0 %v2544
    %2607 = vmatpush1.msra.mxu0 %v2543
    %2608 = vmatprep.subr.mxu0 %v2548
    %2609 = vmatpush1.msra.mxu0 %v2547
    %2610 = vmatprep.subr.mxu0 %v2552
    %2611 = vmatpush1.msra.mxu0 %v2551
    %2612 = vmatprep.subr.mxu0 %v2556
    %2613 = vmatpush1.msra.mxu0 %v2555
    %2614 = vmatprep.subr.mxu0 0.0
    %2615 = vmatpush1.msra.mxu0 0.0
    %2616 = vmatprep.subr.mxu0 0.0
    %2617 = vmatpush1.msra.mxu0 0.0
    %2618 = vmatprep.subr.mxu0 0.0
    %2619 = vmatpush1.msra.mxu0 0.0
    %2620 = vmatprep.subr.mxu0 0.0
    %2621 = vmatpush1.msra.mxu0 0.0
    %2622 = vmatprep.subr.mxu0 0.0
    %2623 = vmatpush1.msra.mxu0 0.0
    %2624 = vmatprep.subr.mxu0 0.0
    %2625 = vmatpush1.msra.mxu0 0.0
    %2626 = vmatprep.subr.mxu0 0.0
    %2627 = vmatpush1.msra.mxu0 0.0
    %2628 = vmatprep.subr.mxu0 0.0
    %2629 = vmatpush1.msra.mxu0 0.0
    %2630 = vmatprep.subr.mxu0 0.0
    %2631 = vmatpush1.msra.mxu0 0.0
    %2632 = vmatprep.subr.mxu0 0.0
    %2633 = vmatpush1.msra.mxu0 0.0
    %2634 = vmatprep.subr.mxu0 0.0
    %2635 = vmatpush1.msra.mxu0 0.0
    %2636 = vmatprep.subr.mxu0 0.0
    %2637 = vmatpush1.msra.mxu0 0.0
    %2638 = vmatprep.subr.mxu0 0.0
    %2639 = vmatpush1.msra.mxu0 0.0
    %2640 = vmatprep.subr.mxu0 0.0
    %2641 = vmatpush1.msra.mxu0 0.0
    %2642 = vmatprep.subr.mxu0 0.0
    %2643 = vmatpush1.msra.mxu0 0.0
    %2644 = vmatprep.subr.mxu0 0.0
    %2645 = vmatpush1.msra.mxu0 0.0
    %2646 = vmatprep.mubr.f32.mxu0 0.0
    %2647 = vmatmul.mubr.f32.gmra.mrb[0].mxu0 %v1238
    %v2648 = vpop.f32.mrb[0].mxu0
    %v2649 = vadd.f32 %v2565, %v2648
    %v2650 = vpop.f32.mrb[0].mxu0
    %v2651 = vadd.f32 %v2569, %v2650
    %2652 = vmatprep.mubr.f32.mxu0 0.0
    %2653 = vmatmul.mubr.f32.gmra.mrb[0].mxu0 %v1408
    %v2654 = vpop.f32.mrb[0].mxu0
    %v2655 = vadd.f32 %v2565, %v2654
    %v2656 = vpop.f32.mrb[0].mxu0
    %v2657 = vadd.f32 %v2569, %v2656
    %2658 = vmatprep.mubr.f32.mxu0 0.0
    %2659 = vmatmul.mubr.f32.gmra.mrb[0].mxu0 %v1578
    %v2660 = vpop.f32.mrb[0].mxu0
    %v2661 = vadd.f32 %v2565, %v2660
    %v2662 = vpop.f32.mrb[0].mxu0
    %v2663 = vadd.f32 %v2569, %v2662
    %2664 = vmatprep.mubr.f32.mxu0 0.0
    %2665 = vmatmul.mubr.f32.gmra.mrb[0].mxu0 %v1748
    %v2666 = vpop.f32.mrb[0].mxu0
    %v2667 = vadd.f32 %v2565, %v2666
    %v2668 = vpop.f32.mrb[0].mxu0
    %v2669 = vadd.f32 %v2569, %v2668
    %2670 = vmatprep.mubr.f32.mxu0 0.0
    %2671 = vmatmul.mubr.f32.gmra.mrb[0].mxu0 %v1918
    %v2672 = vpop.f32.mrb[0].mxu0
    %v2673 = vadd.f32 %v2565, %v2672
    %v2674 = vpop.f32.mrb[0].mxu0
    %v2675 = vadd.f32 %v2569, %v2674
    %2676 = vmatprep.mubr.f32.mxu0 0.0
    %2677 = vmatmul.mubr.f32.gmra.mrb[0].mxu0 %v2088
    %v2678 = vpop.f32.mrb[0].mxu0
    %v2679 = vadd.f32 %v2565, %v2678
    %v2680 = vpop.f32.mrb[0].mxu0
    %v2681 = vadd.f32 %v2569, %v2680
    %2682 = vmatprep.mubr.f32.mxu0 0.0
    %2683 = vmatmul.mubr.f32.gmra.mrb[0].mxu0 %v2258
    %v2684 = vpop.f32.mrb[0].mxu0
    %v2685 = vadd.f32 %v2565, %v2684
    %v2686 = vpop.f32.mrb[0].mxu0
    %v2687 = vadd.f32 %v2569, %v2686
    %2688 = vmatprep.mubr.f32.mxu0 0.0
    %2689 = vmatmul.mubr.f32.gmra.mrb[0].mxu0 %v2428
    %v2690 = vpop.f32.mrb[0].mxu0
    %v2691 = vadd.f32 %v2565, %v2690
    %v2692 = vpop.f32.mrb[0].mxu0
    %v2693 = vadd.f32 %v2569, %v2692
    %2694 = vdwg.mxu0
    %2695 = vmatprep.subr.mxu0 %v2498
    %2696 = vmatpush1.msra.mxu0 %v2497
    %2697 = vmatprep.subr.mxu0 %v2502
    %2698 = vmatpush1.msra.mxu0 %v2501
    %2699 = vmatprep.subr.mxu0 %v2506
    %2700 = vmatpush1.msra.mxu0 %v2505
    %2701 = vmatprep.subr.mxu0 %v2510
    %2702 = vmatpush1.msra.mxu0 %v2509
    %2703 = vmatprep.subr.mxu0 %v2514
    %2704 = vmatpush1.msra.mxu0 %v2513
    %2705 = vmatprep.subr.mxu0 %v2518
    %2706 = vmatpush1.msra.mxu0 %v2517
    %2707 = vmatprep.subr.mxu0 %v2522
    %2708 = vmatpush1.msra.mxu0 %v2521
    %2709 = vmatprep.subr.mxu0 %v2526
    %2710 = vmatpush1.msra.mxu0 %v2525
    %2711 = vmatprep.subr.mxu0 %v2530
    %2712 = vmatpush1.msra.mxu0 %v2529
    %2713 = vmatprep.subr.mxu0 %v2534
    %2714 = vmatpush1.msra.mxu0 %v2533
    %2715 = vmatprep.subr.mxu0 %v2538
    %2716 = vmatpush1.msra.mxu0 %v2537
    %2717 = vmatprep.subr.mxu0 %v2542
    %2718 = vmatpush1.msra.mxu0 %v2541
    %2719 = vmatprep.subr.mxu0 %v2546
    %2720 = vmatpush1.msra.mxu0 %v2545
    %2721 = vmatprep.subr.mxu0 %v2550
    %2722 = vmatpush1.msra.mxu0 %v2549
    %2723 = vmatprep.subr.mxu0 %v2554
    %2724 = vmatpush1.msra.mxu0 %v2553
    %2725 = vmatprep.subr.mxu0 %v2558
    %2726 = vmatpush1.msra.mxu0 %v2557
    %2727 = vmatprep.subr.mxu0 0.0
    %2728 = vmatpush1.msra.mxu0 0.0
    %2729 = vmatprep.subr.mxu0 0.0
    %2730 = vmatpush1.msra.mxu0 0.0
    %2731 = vmatprep.subr.mxu0 0.0
    %2732 = vmatpush1.msra.mxu0 0.0
    %2733 = vmatprep.subr.mxu0 0.0
    %2734 = vmatpush1.msra.mxu0 0.0
    %2735 = vmatprep.subr.mxu0 0.0
    %2736 = vmatpush1.msra.mxu0 0.0
    %2737 = vmatprep.subr.mxu0 0.0
    %2738 = vmatpush1.msra.mxu0 0.0
    %2739 = vmatprep.subr.mxu0 0.0
    %2740 = vmatpush1.msra.mxu0 0.0
    %2741 = vmatprep.subr.mxu0 0.0
    %2742 = vmatpush1.msra.mxu0 0.0
    %2743 = vmatprep.subr.mxu0 0.0
    %2744 = vmatpush1.msra.mxu0 0.0
    %2745 = vmatprep.subr.mxu0 0.0
    %2746 = vmatpush1.msra.mxu0 0.0
    %2747 = vmatprep.subr.mxu0 0.0
    %2748 = vmatpush1.msra.mxu0 0.0
    %2749 = vmatprep.subr.mxu0 0.0
    %2750 = vmatpush1.msra.mxu0 0.0
    %2751 = vmatprep.subr.mxu0 0.0
    %2752 = vmatpush1.msra.mxu0 0.0
    %2753 = vmatprep.subr.mxu0 0.0
    %2754 = vmatpush1.msra.mxu0 0.0
    %2755 = vmatprep.subr.mxu0 0.0
    %2756 = vmatpush1.msra.mxu0 0.0
    %2757 = vmatprep.subr.mxu0 0.0
    %2758 = vmatpush1.msra.mxu0 0.0
    %2759 = vmatprep.mubr.f32.mxu0 0.0
    %2760 = vmatmul.mubr.f32.gmra.mrb[0].mxu0 %v1238
    %v2761 = vpop.f32.mrb[0].mxu0
    %v2762 = vadd.f32 %v2573, %v2761
    %v2763 = vpop.f32.mrb[0].mxu0
    %v2764 = vadd.f32 %v2577, %v2763
    %2765 = vmatprep.mubr.f32.mxu0 0.0
    %2766 = vmatmul.mubr.f32.gmra.mrb[0].mxu0 %v1408
    %v2767 = vpop.f32.mrb[0].mxu0
    %v2768 = vadd.f32 %v2573, %v2767
    %v2769 = vpop.f32.mrb[0].mxu0
    %v2770 = vadd.f32 %v2577, %v2769
    %2771 = vmatprep.mubr.f32.mxu0 0.0
    %2772 = vmatmul.mubr.f32.gmra.mrb[0].mxu0 %v1578
    %v2773 = vpop.f32.mrb[0].mxu0
    %v2774 = vadd.f32 %v2573, %v2773
    %v2775 = vpop.f32.mrb[0].mxu0
    %v2776 = vadd.f32 %v2577, %v2775
    %2777 = vmatprep.mubr.f32.mxu0 0.0
    %2778 = vmatmul.mubr.f32.gmra.mrb[0].mxu0 %v1748
    %v2779 = vpop.f32.mrb[0].mxu0
    %v2780 = vadd.f32 %v2573, %v2779
    %v2781 = vpop.f32.mrb[0].mxu0
    %v2782 = vadd.f32 %v2577, %v2781
    %2783 = vmatprep.mubr.f32.mxu0 0.0
    %2784 = vmatmul.mubr.f32.gmra.mrb[0].mxu0 %v1918
    %v2785 = vpop.f32.mrb[0].mxu0
    %v2786 = vadd.f32 %v2573, %v2785
    %v2787 = vpop.f32.mrb[0].mxu0
    %v2788 = vadd.f32 %v2577, %v2787
    %2789 = vmatprep.mubr.f32.mxu0 0.0
    %2790 = vmatmul.mubr.f32.gmra.mrb[0].mxu0 %v2088
    %v2791 = vpop.f32.mrb[0].mxu0
    %v2792 = vadd.f32 %v2573, %v2791
    %v2793 = vpop.f32.mrb[0].mxu0
    %v2794 = vadd.f32 %v2577, %v2793
    %2795 = vmatprep.mubr.f32.mxu0 0.0
    %2796 = vmatmul.mubr.f32.gmra.mrb[0].mxu0 %v2258
    %v2797 = vpop.f32.mrb[0].mxu0
    %v2798 = vadd.f32 %v2573, %v2797
    %v2799 = vpop.f32.mrb[0].mxu0
    %v2800 = vadd.f32 %v2577, %v2799
    %2801 = vmatprep.mubr.f32.mxu0 0.0
    %2802 = vmatmul.mubr.f32.gmra.mrb[0].mxu0 %v2428
    %v2803 = vpop.f32.mrb[0].mxu0
    %v2804 = vadd.f32 %v2573, %v2803
    %v2805 = vpop.f32.mrb[0].mxu0
    %v2806 = vadd.f32 %v2577, %v2805
    %2807 = vdwg.mxu0
    %2808 = vmatprep.subr.mxu0 %v2431
    %2809 = vmatpush1.msra.mxu0 %v2430
    %2810 = vmatprep.subr.mxu0 %v2435
    %2811 = vmatpush1.msra.mxu0 %v2434
    %2812 = vmatprep.subr.mxu0 %v2439
    %2813 = vmatpush1.msra.mxu0 %v2438
    %2814 = vmatprep.subr.mxu0 %v2443
    %2815 = vmatpush1.msra.mxu0 %v2442
    %2816 = vmatprep.subr.mxu0 %v2447
    %2817 = vmatpush1.msra.mxu0 %v2446
    %2818 = vmatprep.subr.mxu0 %v2451
    %2819 = vmatpush1.msra.mxu0 %v2450
    %2820 = vmatprep.subr.mxu0 %v2455
    %2821 = vmatpush1.msra.mxu0 %v2454
    %2822 = vmatprep.subr.mxu0 %v2459
    %2823 = vmatpush1.msra.mxu0 %v2458
    %2824 = vmatprep.subr.mxu0 %v2463
    %2825 = vmatpush1.msra.mxu0 %v2462
    %2826 = vmatprep.subr.mxu0 %v2467
    %2827 = vmatpush1.msra.mxu0 %v2466
    %2828 = vmatprep.subr.mxu0 %v2471
    %2829 = vmatpush1.msra.mxu0 %v2470
    %2830 = vmatprep.subr.mxu0 %v2475
    %2831 = vmatpush1.msra.mxu0 %v2474
    %2832 = vmatprep.subr.mxu0 %v2479
    %2833 = vmatpush1.msra.mxu0 %v2478
    %2834 = vmatprep.subr.mxu0 %v2483
    %2835 = vmatpush1.msra.mxu0 %v2482
    %2836 = vmatprep.subr.mxu0 %v2487
    %2837 = vmatpush1.msra.mxu0 %v2486
    %2838 = vmatprep.subr.mxu0 %v2491
    %2839 = vmatpush1.msra.mxu0 %v2490
    %2840 = vmatprep.subr.mxu0 0.0
    %2841 = vmatpush1.msra.mxu0 0.0
    %2842 = vmatprep.subr.mxu0 0.0
    %2843 = vmatpush1.msra.mxu0 0.0
    %2844 = vmatprep.subr.mxu0 0.0
    %2845 = vmatpush1.msra.mxu0 0.0
    %2846 = vmatprep.subr.mxu0 0.0
    %2847 = vmatpush1.msra.mxu0 0.0
    %2848 = vmatprep.subr.mxu0 0.0
    %2849 = vmatpush1.msra.mxu0 0.0
    %2850 = vmatprep.subr.mxu0 0.0
    %2851 = vmatpush1.msra.mxu0 0.0
    %2852 = vmatprep.subr.mxu0 0.0
    %2853 = vmatpush1.msra.mxu0 0.0
    %2854 = vmatprep.subr.mxu0 0.0
    %2855 = vmatpush1.msra.mxu0 0.0
    %2856 = vmatprep.subr.mxu0 0.0
    %2857 = vmatpush1.msra.mxu0 0.0
    %2858 = vmatprep.subr.mxu0 0.0
    %2859 = vmatpush1.msra.mxu0 0.0
    %2860 = vmatprep.subr.mxu0 0.0
    %2861 = vmatpush1.msra.mxu0 0.0
    %2862 = vmatprep.subr.mxu0 0.0
    %2863 = vmatpush1.msra.mxu0 0.0
    %2864 = vmatprep.subr.mxu0 0.0
    %2865 = vmatpush1.msra.mxu0 0.0
    %2866 = vmatprep.subr.mxu0 0.0
    %2867 = vmatpush1.msra.mxu0 0.0
    %2868 = vmatprep.subr.mxu0 0.0
    %2869 = vmatpush1.msra.mxu0 0.0
    %2870 = vmatprep.subr.mxu0 0.0
    %2871 = vmatpush1.msra.mxu0 0.0
    %2872 = vmatprep.mubr.f32.mxu0 0.0
    %2873 = vmatmul.mubr.f32.gmra.mrb[0].mxu0 0.0
    %v2874 = vpop.f32.mrb[0].mxu0
    %v2875 = vadd.f32 0.0, %v2874
    %v2876 = vpop.f32.mrb[0].mxu0
    %v2877 = vadd.f32 0.0, %v2876
    %2878 = vdwg.mxu0
    %2879 = vmatprep.subr.mxu0 %v2433
    %2880 = vmatpush1.msra.mxu0 %v2432
    %2881 = vmatprep.subr.mxu0 %v2437
    %2882 = vmatpush1.msra.mxu0 %v2436
    %2883 = vmatprep.subr.mxu0 %v2441
    %2884 = vmatpush1.msra.mxu0 %v2440
    %2885 = vmatprep.subr.mxu0 %v2445
    %2886 = vmatpush1.msra.mxu0 %v2444
    %2887 = vmatprep.subr.mxu0 %v2449
    %2888 = vmatpush1.msra.mxu0 %v2448
    %2889 = vmatprep.subr.mxu0 %v2453
    %2890 = vmatpush1.msra.mxu0 %v2452
    %2891 = vmatprep.subr.mxu0 %v2457
    %2892 = vmatpush1.msra.mxu0 %v2456
    %2893 = vmatprep.subr.mxu0 %v2461
    %2894 = vmatpush1.msra.mxu0 %v2460
    %2895 = vmatprep.subr.mxu0 %v2465
    %2896 = vmatpush1.msra.mxu0 %v2464
    %2897 = vmatprep.subr.mxu0 %v2469
    %2898 = vmatpush1.msra.mxu0 %v2468
    %2899 = vmatprep.subr.mxu0 %v2473
    %2900 = vmatpush1.msra.mxu0 %v2472
    %2901 = vmatprep.subr.mxu0 %v2477
    %2902 = vmatpush1.msra.mxu0 %v2476
    %2903 = vmatprep.subr.mxu0 %v2481
    %2904 = vmatpush1.msra.mxu0 %v2480
    %2905 = vmatprep.subr.mxu0 %v2485
    %2906 = vmatpush1.msra.mxu0 %v2484
    %2907 = vmatprep.subr.mxu0 %v2489
    %2908 = vmatpush1.msra.mxu0 %v2488
    %2909 = vmatprep.subr.mxu0 %v2493
    %2910 = vmatpush1.msra.mxu0 %v2492
    %2911 = vmatprep.subr.mxu0 0.0
    %2912 = vmatpush1.msra.mxu0 0.0
    %2913 = vmatprep.subr.mxu0 0.0
    %2914 = vmatpush1.msra.mxu0 0.0
    %2915 = vmatprep.subr.mxu0 0.0
    %2916 = vmatpush1.msra.mxu0 0.0
    %2917 = vmatprep.subr.mxu0 0.0
    %2918 = vmatpush1.msra.mxu0 0.0
    %2919 = vmatprep.subr.mxu0 0.0
    %2920 = vmatpush1.msra.mxu0 0.0
    %2921 = vmatprep.subr.mxu0 0.0
    %2922 = vmatpush1.msra.mxu0 0.0
    %2923 = vmatprep.subr.mxu0 0.0
    %2924 = vmatpush1.msra.mxu0 0.0
    %2925 = vmatprep.subr.mxu0 0.0
    %2926 = vmatpush1.msra.mxu0 0.0
    %2927 = vmatprep.subr.mxu0 0.0
    %2928 = vmatpush1.msra.mxu0 0.0
    %2929 = vmatprep.subr.mxu0 0.0
    %2930 = vmatpush1.msra.mxu0 0.0
    %2931 = vmatprep.subr.mxu0 0.0
    %2932 = vmatpush1.msra.mxu0 0.0
    %2933 = vmatprep.subr.mxu0 0.0
    %2934 = vmatpush1.msra.mxu0 0.0
    %2935 = vmatprep.subr.mxu0 0.0
    %2936 = vmatpush1.msra.mxu0 0.0
    %2937 = vmatprep.subr.mxu0 0.0
    %2938 = vmatpush1.msra.mxu0 0.0
    %2939 = vmatprep.subr.mxu0 0.0
    %2940 = vmatpush1.msra.mxu0 0.0
    %2941 = vmatprep.subr.mxu0 0.0
    %2942 = vmatpush1.msra.mxu0 0.0
    %2943 = vmatprep.mubr.f32.mxu0 0.0
    %2944 = vmatmul.mubr.f32.gmra.mrb[0].mxu0 0.0
    %v2945 = vpop.f32.mrb[0].mxu0
    %v2946 = vadd.f32 0.0, %v2945
    %v2947 = vpop.f32.mrb[0].mxu0
    %v2948 = vadd.f32 0.0, %v2947
    %2949 = vdwg.mxu0
    %v2950 = vadd.f32 %v2649, %v2875
    %v2951 = vadd.f32 %v2651, %v2877
    %v2952 = vadd.f32 %v2762, %v2946
    %v2953 = vadd.f32 %v2764, %v2948
    %v2954 = vxor.u32 %v2950, 2147483648
    %v2955 = vmul.f32 %v2954, 1.442695
    %v2956 = vpow.pop %v2955
    %v2957 = vadd.f32 %v2956, 1.0
    %v2958 = vrcp.pop %v2957
    %v2959 = vmul.f32 1.0, %v2958
    %v2960 = vxor.u32 %v2951, 2147483648
    %v2961 = vmul.f32 %v2960, 1.442695
    %v2962 = vpow.pop %v2961
    %v2963 = vadd.f32 %v2962, 1.0
    %v2964 = vrcp.pop %v2963
    %v2965 = vmul.f32 1.0, %v2964
    %v2966 = vtanh.pop %v2952
    %v2967 = vxor.u32 %v2953, 2147483648
    %v2968 = vmul.f32 %v2967, 1.442695
    %v2969 = vpow.pop %v2968
    %v2970 = vadd.f32 %v2969, 1.0
    %v2971 = vrcp.pop %v2970
    %v2972 = vmul.f32 1.0, %v2971
    %v2973 = vmul.f32 %v2965, 0.0
    %v2974 = vmul.f32 %v2959, %v2966
    %v2975 = vadd.f32 %v2973, %v2974
    %v2976 = vtanh.pop %v2975
    %v2977 = vmul.f32 %v2972, %v2976
    %2978 = vmatprep.subr.mxu0 %v2431
    %2979 = vmatpush1.msra.mxu0 %v2430
    %2980 = vmatprep.subr.mxu0 %v2435
    %2981 = vmatpush1.msra.mxu0 %v2434
    %2982 = vmatprep.subr.mxu0 %v2439
    %2983 = vmatpush1.msra.mxu0 %v2438
    %2984 = vmatprep.subr.mxu0 %v2443
    %2985 = vmatpush1.msra.mxu0 %v2442
    %2986 = vmatprep.subr.mxu0 %v2447
    %2987 = vmatpush1.msra.mxu0 %v2446
    %2988 = vmatprep.subr.mxu0 %v2451
    %2989 = vmatpush1.msra.mxu0 %v2450
    %2990 = vmatprep.subr.mxu0 %v2455
    %2991 = vmatpush1.msra.mxu0 %v2454
    %2992 = vmatprep.subr.mxu0 %v2459
    %2993 = vmatpush1.msra.mxu0 %v2458
    %2994 = vmatprep.subr.mxu0 %v2463
    %2995 = vmatpush1.msra.mxu0 %v2462
    %2996 = vmatprep.subr.mxu0 %v2467
    %2997 = vmatpush1.msra.mxu0 %v2466
    %2998 = vmatprep.subr.mxu0 %v2471
    %2999 = vmatpush1.msra.mxu0 %v2470
    %3000 = vmatprep.subr.mxu0 %v2475
    %3001 = vmatpush1.msra.mxu0 %v2474
    %3002 = vmatprep.subr.mxu0 %v2479
    %3003 = vmatpush1.msra.mxu0 %v2478
    %3004 = vmatprep.subr.mxu0 %v2483
    %3005 = vmatpush1.msra.mxu0 %v2482
    %3006 = vmatprep.subr.mxu0 %v2487
    %3007 = vmatpush1.msra.mxu0 %v2486
    %3008 = vmatprep.subr.mxu0 %v2491
    %3009 = vmatpush1.msra.mxu0 %v2490
    %3010 = vmatprep.subr.mxu0 0.0
    %3011 = vmatpush1.msra.mxu0 0.0
    %3012 = vmatprep.subr.mxu0 0.0
    %3013 = vmatpush1.msra.mxu0 0.0
    %3014 = vmatprep.subr.mxu0 0.0
    %3015 = vmatpush1.msra.mxu0 0.0
    %3016 = vmatprep.subr.mxu0 0.0
    %3017 = vmatpush1.msra.mxu0 0.0
    %3018 = vmatprep.subr.mxu0 0.0
    %3019 = vmatpush1.msra.mxu0 0.0
    %3020 = vmatprep.subr.mxu0 0.0
    %3021 = vmatpush1.msra.mxu0 0.0
    %3022 = vmatprep.subr.mxu0 0.0
    %3023 = vmatpush1.msra.mxu0 0.0
    %3024 = vmatprep.subr.mxu0 0.0
    %3025 = vmatpush1.msra.mxu0 0.0
    %3026 = vmatprep.subr.mxu0 0.0
    %3027 = vmatpush1.msra.mxu0 0.0
    %3028 = vmatprep.subr.mxu0 0.0
    %3029 = vmatpush1.msra.mxu0 0.0
    %3030 = vmatprep.subr.mxu0 0.0
    %3031 = vmatpush1.msra.mxu0 0.0
    %3032 = vmatprep.subr.mxu0 0.0
    %3033 = vmatpush1.msra.mxu0 0.0
    %3034 = vmatprep.subr.mxu0 0.0
    %3035 = vmatpush1.msra.mxu0 0.0
    %3036 = vmatprep.subr.mxu0 0.0
    %3037 = vmatpush1.msra.mxu0 0.0
    %3038 = vmatprep.subr.mxu0 0.0
    %3039 = vmatpush1.msra.mxu0 0.0
    %3040 = vmatprep.subr.mxu0 0.0
    %3041 = vmatpush1.msra.mxu0 0.0
    %3042 = vmatprep.mubr.f32.mxu0 0.0
    %3043 = vmatmul.mubr.f32.gmra.mrb[0].mxu0 %v2977
    %v3044 = vpop.f32.mrb[0].mxu0
    %v3045 = vadd.f32 0.0, %v3044
    %v3046 = vpop.f32.mrb[0].mxu0
    %v3047 = vadd.f32 0.0, %v3046
    %3048 = vdwg.mxu0
    %3049 = vmatprep.subr.mxu0 %v2433
    %3050 = vmatpush1.msra.mxu0 %v2432
    %3051 = vmatprep.subr.mxu0 %v2437
    %3052 = vmatpush1.msra.mxu0 %v2436
    %3053 = vmatprep.subr.mxu0 %v2441
    %3054 = vmatpush1.msra.mxu0 %v2440
    %3055 = vmatprep.subr.mxu0 %v2445
    %3056 = vmatpush1.msra.mxu0 %v2444
    %3057 = vmatprep.subr.mxu0 %v2449
    %3058 = vmatpush1.msra.mxu0 %v2448
    %3059 = vmatprep.subr.mxu0 %v2453
    %3060 = vmatpush1.msra.mxu0 %v2452
    %3061 = vmatprep.subr.mxu0 %v2457
    %3062 = vmatpush1.msra.mxu0 %v2456
    %3063 = vmatprep.subr.mxu0 %v2461
    %3064 = vmatpush1.msra.mxu0 %v2460
    %3065 = vmatprep.subr.mxu0 %v2465
    %3066 = vmatpush1.msra.mxu0 %v2464
    %3067 = vmatprep.subr.mxu0 %v2469
    %3068 = vmatpush1.msra.mxu0 %v2468
    %3069 = vmatprep.subr.mxu0 %v2473
    %3070 = vmatpush1.msra.mxu0 %v2472
    %3071 = vmatprep.subr.mxu0 %v2477
    %3072 = vmatpush1.msra.mxu0 %v2476
    %3073 = vmatprep.subr.mxu0 %v2481
    %3074 = vmatpush1.msra.mxu0 %v2480
    %3075 = vmatprep.subr.mxu0 %v2485
    %3076 = vmatpush1.msra.mxu0 %v2484
    %3077 = vmatprep.subr.mxu0 %v2489
    %3078 = vmatpush1.msra.mxu0 %v2488
    %3079 = vmatprep.subr.mxu0 %v2493
    %3080 = vmatpush1.msra.mxu0 %v2492
    %3081 = vmatprep.subr.mxu0 0.0
    %3082 = vmatpush1.msra.mxu0 0.0
    %3083 = vmatprep.subr.mxu0 0.0
    %3084 = vmatpush1.msra.mxu0 0.0
    %3085 = vmatprep.subr.mxu0 0.0
    %3086 = vmatpush1.msra.mxu0 0.0
    %3087 = vmatprep.subr.mxu0 0.0
    %3088 = vmatpush1.msra.mxu0 0.0
    %3089 = vmatprep.subr.mxu0 0.0
    %3090 = vmatpush1.msra.mxu0 0.0
    %3091 = vmatprep.subr.mxu0 0.0
    %3092 = vmatpush1.msra.mxu0 0.0
    %3093 = vmatprep.subr.mxu0 0.0
    %3094 = vmatpush1.msra.mxu0 0.0
    %3095 = vmatprep.subr.mxu0 0.0
    %3096 = vmatpush1.msra.mxu0 0.0
    %3097 = vmatprep.subr.mxu0 0.0
    %3098 = vmatpush1.msra.mxu0 0.0
    %3099 = vmatprep.subr.mxu0 0.0
    %3100 = vmatpush1.msra.mxu0 0.0
    %3101 = vmatprep.subr.mxu0 0.0
    %3102 = vmatpush1.msra.mxu0 0.0
    %3103 = vmatprep.subr.mxu0 0.0
    %3104 = vmatpush1.msra.mxu0 0.0
    %3105 = vmatprep.subr.mxu0 0.0
    %3106 = vmatpush1.msra.mxu0 0.0
    %3107 = vmatprep.subr.mxu0 0.0
    %3108 = vmatpush1.msra.mxu0 0.0
    %3109 = vmatprep.subr.mxu0 0.0
    %3110 = vmatpush1.msra.mxu0 0.0
    %3111 = vmatprep.subr.mxu0 0.0
    %3112 = vmatpush1.msra.mxu0 0.0
    %3113 = vmatprep.mubr.f32.mxu0 0.0
    %3114 = vmatmul.mubr.f32.gmra.mrb[0].mxu0 %v2977
    %v3115 = vpop.f32.mrb[0].mxu0
    %v3116 = vadd.f32 0.0, %v3115
    %v3117 = vpop.f32.mrb[0].mxu0
    %v3118 = vadd.f32 0.0, %v3117
    %3119 = vdwg.mxu0
    %v3120 = vadd.f32 %v2655, %v3045
    %v3121 = vadd.f32 %v2657, %v3047
    %v3122 = vadd.f32 %v2768, %v3116
    %v3123 = vadd.f32 %v2770, %v3118
    %v3124 = vxor.u32 %v3120, 2147483648
    %v3125 = vmul.f32 %v3124, 1.442695
    %v3126 = vpow.pop %v3125
    %v3127 = vadd.f32 %v3126, 1.0
    %v3128 = vrcp.pop %v3127
    %v3129 = vmul.f32 1.0, %v3128
    %v3130 = vxor.u32 %v3121, 2147483648
    %v3131 = vmul.f32 %v3130, 1.442695
    %v3132 = vpow.pop %v3131
    %v3133 = vadd.f32 %v3132, 1.0
    %v3134 = vrcp.pop %v3133
    %v3135 = vmul.f32 1.0, %v3134
    %v3136 = vtanh.pop %v3122
    %v3137 = vxor.u32 %v3123, 2147483648
    %v3138 = vmul.f32 %v3137, 1.442695
    %v3139 = vpow.pop %v3138
    %v3140 = vadd.f32 %v3139, 1.0
    %v3141 = vrcp.pop %v3140
    %v3142 = vmul.f32 1.0, %v3141
    %v3143 = vmul.f32 %v3135, %v2975
    %v3144 = vmul.f32 %v3129, %v3136
    %v3145 = vadd.f32 %v3143, %v3144
    %v3146 = vtanh.pop %v3145
    %v3147 = vmul.f32 %v3142, %v3146
    %3148 = vmatprep.subr.mxu0 %v2431
    %3149 = vmatpush1.msra.mxu0 %v2430
    %3150 = vmatprep.subr.mxu0 %v2435
    %3151 = vmatpush1.msra.mxu0 %v2434
    %3152 = vmatprep.subr.mxu0 %v2439
    %3153 = vmatpush1.msra.mxu0 %v2438
    %3154 = vmatprep.subr.mxu0 %v2443
    %3155 = vmatpush1.msra.mxu0 %v2442
    %3156 = vmatprep.subr.mxu0 %v2447
    %3157 = vmatpush1.msra.mxu0 %v2446
    %3158 = vmatprep.subr.mxu0 %v2451
    %3159 = vmatpush1.msra.mxu0 %v2450
    %3160 = vmatprep.subr.mxu0 %v2455
    %3161 = vmatpush1.msra.mxu0 %v2454
    %3162 = vmatprep.subr.mxu0 %v2459
    %3163 = vmatpush1.msra.mxu0 %v2458
    %3164 = vmatprep.subr.mxu0 %v2463
    %3165 = vmatpush1.msra.mxu0 %v2462
    %3166 = vmatprep.subr.mxu0 %v2467
    %3167 = vmatpush1.msra.mxu0 %v2466
    %3168 = vmatprep.subr.mxu0 %v2471
    %3169 = vmatpush1.msra.mxu0 %v2470
    %3170 = vmatprep.subr.mxu0 %v2475
    %3171 = vmatpush1.msra.mxu0 %v2474
    %3172 = vmatprep.subr.mxu0 %v2479
    %3173 = vmatpush1.msra.mxu0 %v2478
    %3174 = vmatprep.subr.mxu0 %v2483
    %3175 = vmatpush1.msra.mxu0 %v2482
    %3176 = vmatprep.subr.mxu0 %v2487
    %3177 = vmatpush1.msra.mxu0 %v2486
    %3178 = vmatprep.subr.mxu0 %v2491
    %3179 = vmatpush1.msra.mxu0 %v2490
    %3180 = vmatprep.subr.mxu0 0.0
    %3181 = vmatpush1.msra.mxu0 0.0
    %3182 = vmatprep.subr.mxu0 0.0
    %3183 = vmatpush1.msra.mxu0 0.0
    %3184 = vmatprep.subr.mxu0 0.0
    %3185 = vmatpush1.msra.mxu0 0.0
    %3186 = vmatprep.subr.mxu0 0.0
    %3187 = vmatpush1.msra.mxu0 0.0
    %3188 = vmatprep.subr.mxu0 0.0
    %3189 = vmatpush1.msra.mxu0 0.0
    %3190 = vmatprep.subr.mxu0 0.0
    %3191 = vmatpush1.msra.mxu0 0.0
    %3192 = vmatprep.subr.mxu0 0.0
    %3193 = vmatpush1.msra.mxu0 0.0
    %3194 = vmatprep.subr.mxu0 0.0
    %3195 = vmatpush1.msra.mxu0 0.0
    %3196 = vmatprep.subr.mxu0 0.0
    %3197 = vmatpush1.msra.mxu0 0.0
    %3198 = vmatprep.subr.mxu0 0.0
    %3199 = vmatpush1.msra.mxu0 0.0
    %3200 = vmatprep.subr.mxu0 0.0
    %3201 = vmatpush1.msra.mxu0 0.0
    %3202 = vmatprep.subr.mxu0 0.0
    %3203 = vmatpush1.msra.mxu0 0.0
    %3204 = vmatprep.subr.mxu0 0.0
    %3205 = vmatpush1.msra.mxu0 0.0
    %3206 = vmatprep.subr.mxu0 0.0
    %3207 = vmatpush1.msra.mxu0 0.0
    %3208 = vmatprep.subr.mxu0 0.0
    %3209 = vmatpush1.msra.mxu0 0.0
    %3210 = vmatprep.subr.mxu0 0.0
    %3211 = vmatpush1.msra.mxu0 0.0
    %3212 = vmatprep.mubr.f32.mxu0 0.0
    %3213 = vmatmul.mubr.f32.gmra.mrb[0].mxu0 %v3147
    %v3214 = vpop.f32.mrb[0].mxu0
    %v3215 = vadd.f32 0.0, %v3214
    %v3216 = vpop.f32.mrb[0].mxu0
    %v3217 = vadd.f32 0.0, %v3216
    %3218 = vdwg.mxu0
    %3219 = vmatprep.subr.mxu0 %v2433
    %3220 = vmatpush1.msra.mxu0 %v2432
    %3221 = vmatprep.subr.mxu0 %v2437
    %3222 = vmatpush1.msra.mxu0 %v2436
    %3223 = vmatprep.subr.mxu0 %v2441
    %3224 = vmatpush1.msra.mxu0 %v2440
    %3225 = vmatprep.subr.mxu0 %v2445
    %3226 = vmatpush1.msra.mxu0 %v2444
    %3227 = vmatprep.subr.mxu0 %v2449
    %3228 = vmatpush1.msra.mxu0 %v2448
    %3229 = vmatprep.subr.mxu0 %v2453
    %3230 = vmatpush1.msra.mxu0 %v2452
    %3231 = vmatprep.subr.mxu0 %v2457
    %3232 = vmatpush1.msra.mxu0 %v2456
    %3233 = vmatprep.subr.mxu0 %v2461
    %3234 = vmatpush1.msra.mxu0 %v2460
    %3235 = vmatprep.subr.mxu0 %v2465
    %3236 = vmatpush1.msra.mxu0 %v2464
    %3237 = vmatprep.subr.mxu0 %v2469
    %3238 = vmatpush1.msra.mxu0 %v2468
    %3239 = vmatprep.subr.mxu0 %v2473
    %3240 = vmatpush1.msra.mxu0 %v2472
    %3241 = vmatprep.subr.mxu0 %v2477
    %3242 = vmatpush1.msra.mxu0 %v2476
    %3243 = vmatprep.subr.mxu0 %v2481
    %3244 = vmatpush1.msra.mxu0 %v2480
    %3245 = vmatprep.subr.mxu0 %v2485
    %3246 = vmatpush1.msra.mxu0 %v2484
    %3247 = vmatprep.subr.mxu0 %v2489
    %3248 = vmatpush1.msra.mxu0 %v2488
    %3249 = vmatprep.subr.mxu0 %v2493
    %3250 = vmatpush1.msra.mxu0 %v2492
    %3251 = vmatprep.subr.mxu0 0.0
    %3252 = vmatpush1.msra.mxu0 0.0
    %3253 = vmatprep.subr.mxu0 0.0
    %3254 = vmatpush1.msra.mxu0 0.0
    %3255 = vmatprep.subr.mxu0 0.0
    %3256 = vmatpush1.msra.mxu0 0.0
    %3257 = vmatprep.subr.mxu0 0.0
    %3258 = vmatpush1.msra.mxu0 0.0
    %3259 = vmatprep.subr.mxu0 0.0
    %3260 = vmatpush1.msra.mxu0 0.0
    %3261 = vmatprep.subr.mxu0 0.0
    %3262 = vmatpush1.msra.mxu0 0.0
    %3263 = vmatprep.subr.mxu0 0.0
    %3264 = vmatpush1.msra.mxu0 0.0
    %3265 = vmatprep.subr.mxu0 0.0
    %3266 = vmatpush1.msra.mxu0 0.0
    %3267 = vmatprep.subr.mxu0 0.0
    %3268 = vmatpush1.msra.mxu0 0.0
    %3269 = vmatprep.subr.mxu0 0.0
    %3270 = vmatpush1.msra.mxu0 0.0
    %3271 = vmatprep.subr.mxu0 0.0
    %3272 = vmatpush1.msra.mxu0 0.0
    %3273 = vmatprep.subr.mxu0 0.0
    %3274 = vmatpush1.msra.mxu0 0.0
    %3275 = vmatprep.subr.mxu0 0.0
    %3276 = vmatpush1.msra.mxu0 0.0
    %3277 = vmatprep.subr.mxu0 0.0
    %3278 = vmatpush1.msra.mxu0 0.0
    %3279 = vmatprep.subr.mxu0 0.0
    %3280 = vmatpush1.msra.mxu0 0.0
    %3281 = vmatprep.subr.mxu0 0.0
    %3282 = vmatpush1.msra.mxu0 0.0
    %3283 = vmatprep.mubr.f32.mxu0 0.0
    %3284 = vmatmul.mubr.f32.gmra.mrb[0].mxu0 %v3147
    %v3285 = vpop.f32.mrb[0].mxu0
    %v3286 = vadd.f32 0.0, %v3285
    %v3287 = vpop.f32.mrb[0].mxu0
    %v3288 = vadd.f32 0.0, %v3287
    %3289 = vdwg.mxu0
    %v3290 = vadd.f32 %v2661, %v3215
    %v3291 = vadd.f32 %v2663, %v3217
    %v3292 = vadd.f32 %v2774, %v3286
    %v3293 = vadd.f32 %v2776, %v3288
    %v3294 = vxor.u32 %v3290, 2147483648
    %v3295 = vmul.f32 %v3294, 1.442695
    %v3296 = vpow.pop %v3295
    %v3297 = vadd.f32 %v3296, 1.0
    %v3298 = vrcp.pop %v3297
    %v3299 = vmul.f32 1.0, %v3298
    %v3300 = vxor.u32 %v3291, 2147483648
    %v3301 = vmul.f32 %v3300, 1.442695
    %v3302 = vpow.pop %v3301
    %v3303 = vadd.f32 %v3302, 1.0
    %v3304 = vrcp.pop %v3303
    %v3305 = vmul.f32 1.0, %v3304
    %v3306 = vtanh.pop %v3292
    %v3307 = vxor.u32 %v3293, 2147483648
    %v3308 = vmul.f32 %v3307, 1.442695
    %v3309 = vpow.pop %v3308
    %v3310 = vadd.f32 %v3309, 1.0
    %v3311 = vrcp.pop %v3310
    %v3312 = vmul.f32 1.0, %v3311
    %v3313 = vmul.f32 %v3305, %v3145
    %v3314 = vmul.f32 %v3299, %v3306
    %v3315 = vadd.f32 %v3313, %v3314
    %v3316 = vtanh.pop %v3315
    %v3317 = vmul.f32 %v3312, %v3316
    %3318 = vmatprep.subr.mxu0 %v2431
    %3319 = vmatpush1.msra.mxu0 %v2430
    %3320 = vmatprep.subr.mxu0 %v2435
    %3321 = vmatpush1.msra.mxu0 %v2434
    %3322 = vmatprep.subr.mxu0 %v2439
    %3323 = vmatpush1.msra.mxu0 %v2438
    %3324 = vmatprep.subr.mxu0 %v2443
    %3325 = vmatpush1.msra.mxu0 %v2442
    %3326 = vmatprep.subr.mxu0 %v2447
    %3327 = vmatpush1.msra.mxu0 %v2446
    %3328 = vmatprep.subr.mxu0 %v2451
    %3329 = vmatpush1.msra.mxu0 %v2450
    %3330 = vmatprep.subr.mxu0 %v2455
    %3331 = vmatpush1.msra.mxu0 %v2454
    %3332 = vmatprep.subr.mxu0 %v2459
    %3333 = vmatpush1.msra.mxu0 %v2458
    %3334 = vmatprep.subr.mxu0 %v2463
    %3335 = vmatpush1.msra.mxu0 %v2462
    %3336 = vmatprep.subr.mxu0 %v2467
    %3337 = vmatpush1.msra.mxu0 %v2466
    %3338 = vmatprep.subr.mxu0 %v2471
    %3339 = vmatpush1.msra.mxu0 %v2470
    %3340 = vmatprep.subr.mxu0 %v2475
    %3341 = vmatpush1.msra.mxu0 %v2474
    %3342 = vmatprep.subr.mxu0 %v2479
    %3343 = vmatpush1.msra.mxu0 %v2478
    %3344 = vmatprep.subr.mxu0 %v2483
    %3345 = vmatpush1.msra.mxu0 %v2482
    %3346 = vmatprep.subr.mxu0 %v2487
    %3347 = vmatpush1.msra.mxu0 %v2486
    %3348 = vmatprep.subr.mxu0 %v2491
    %3349 = vmatpush1.msra.mxu0 %v2490
    %3350 = vmatprep.subr.mxu0 0.0
    %3351 = vmatpush1.msra.mxu0 0.0
    %3352 = vmatprep.subr.mxu0 0.0
    %3353 = vmatpush1.msra.mxu0 0.0
    %3354 = vmatprep.subr.mxu0 0.0
    %3355 = vmatpush1.msra.mxu0 0.0
    %3356 = vmatprep.subr.mxu0 0.0
    %3357 = vmatpush1.msra.mxu0 0.0
    %3358 = vmatprep.subr.mxu0 0.0
    %3359 = vmatpush1.msra.mxu0 0.0
    %3360 = vmatprep.subr.mxu0 0.0
    %3361 = vmatpush1.msra.mxu0 0.0
    %3362 = vmatprep.subr.mxu0 0.0
    %3363 = vmatpush1.msra.mxu0 0.0
    %3364 = vmatprep.subr.mxu0 0.0
    %3365 = vmatpush1.msra.mxu0 0.0
    %3366 = vmatprep.subr.mxu0 0.0
    %3367 = vmatpush1.msra.mxu0 0.0
    %3368 = vmatprep.subr.mxu0 0.0
    %3369 = vmatpush1.msra.mxu0 0.0
    %3370 = vmatprep.subr.mxu0 0.0
    %3371 = vmatpush1.msra.mxu0 0.0
    %3372 = vmatprep.subr.mxu0 0.0
    %3373 = vmatpush1.msra.mxu0 0.0
    %3374 = vmatprep.subr.mxu0 0.0
    %3375 = vmatpush1.msra.mxu0 0.0
    %3376 = vmatprep.subr.mxu0 0.0
    %3377 = vmatpush1.msra.mxu0 0.0
    %3378 = vmatprep.subr.mxu0 0.0
    %3379 = vmatpush1.msra.mxu0 0.0
    %3380 = vmatprep.subr.mxu0 0.0
    %3381 = vmatpush1.msra.mxu0 0.0
    %3382 = vmatprep.mubr.f32.mxu0 0.0
    %3383 = vmatmul.mubr.f32.gmra.mrb[0].mxu0 %v3317
    %v3384 = vpop.f32.mrb[0].mxu0
    %v3385 = vadd.f32 0.0, %v3384
    %v3386 = vpop.f32.mrb[0].mxu0
    %v3387 = vadd.f32 0.0, %v3386
    %3388 = vdwg.mxu0
    %3389 = vmatprep.subr.mxu0 %v2433
    %3390 = vmatpush1.msra.mxu0 %v2432
    %3391 = vmatprep.subr.mxu0 %v2437
    %3392 = vmatpush1.msra.mxu0 %v2436
    %3393 = vmatprep.subr.mxu0 %v2441
    %3394 = vmatpush1.msra.mxu0 %v2440
    %3395 = vmatprep.subr.mxu0 %v2445
    %3396 = vmatpush1.msra.mxu0 %v2444
    %3397 = vmatprep.subr.mxu0 %v2449
    %3398 = vmatpush1.msra.mxu0 %v2448
    %3399 = vmatprep.subr.mxu0 %v2453
    %3400 = vmatpush1.msra.mxu0 %v2452
    %3401 = vmatprep.subr.mxu0 %v2457
    %3402 = vmatpush1.msra.mxu0 %v2456
    %3403 = vmatprep.subr.mxu0 %v2461
    %3404 = vmatpush1.msra.mxu0 %v2460
    %3405 = vmatprep.subr.mxu0 %v2465
    %3406 = vmatpush1.msra.mxu0 %v2464
    %3407 = vmatprep.subr.mxu0 %v2469
    %3408 = vmatpush1.msra.mxu0 %v2468
    %3409 = vmatprep.subr.mxu0 %v2473
    %3410 = vmatpush1.msra.mxu0 %v2472
    %3411 = vmatprep.subr.mxu0 %v2477
    %3412 = vmatpush1.msra.mxu0 %v2476
    %3413 = vmatprep.subr.mxu0 %v2481
    %3414 = vmatpush1.msra.mxu0 %v2480
    %3415 = vmatprep.subr.mxu0 %v2485
    %3416 = vmatpush1.msra.mxu0 %v2484
    %3417 = vmatprep.subr.mxu0 %v2489
    %3418 = vmatpush1.msra.mxu0 %v2488
    %3419 = vmatprep.subr.mxu0 %v2493
    %3420 = vmatpush1.msra.mxu0 %v2492
    %3421 = vmatprep.subr.mxu0 0.0
    %3422 = vmatpush1.msra.mxu0 0.0
    %3423 = vmatprep.subr.mxu0 0.0
    %3424 = vmatpush1.msra.mxu0 0.0
    %3425 = vmatprep.subr.mxu0 0.0
    %3426 = vmatpush1.msra.mxu0 0.0
    %3427 = vmatprep.subr.mxu0 0.0
    %3428 = vmatpush1.msra.mxu0 0.0
    %3429 = vmatprep.subr.mxu0 0.0
    %3430 = vmatpush1.msra.mxu0 0.0
    %3431 = vmatprep.subr.mxu0 0.0
    %3432 = vmatpush1.msra.mxu0 0.0
    %3433 = vmatprep.subr.mxu0 0.0
    %3434 = vmatpush1.msra.mxu0 0.0
    %3435 = vmatprep.subr.mxu0 0.0
    %3436 = vmatpush1.msra.mxu0 0.0
    %3437 = vmatprep.subr.mxu0 0.0
    %3438 = vmatpush1.msra.mxu0 0.0
    %3439 = vmatprep.subr.mxu0 0.0
    %3440 = vmatpush1.msra.mxu0 0.0
    %3441 = vmatprep.subr.mxu0 0.0
    %3442 = vmatpush1.msra.mxu0 0.0
    %3443 = vmatprep.subr.mxu0 0.0
    %3444 = vmatpush1.msra.mxu0 0.0
    %3445 = vmatprep.subr.mxu0 0.0
    %3446 = vmatpush1.msra.mxu0 0.0
    %3447 = vmatprep.subr.mxu0 0.0
    %3448 = vmatpush1.msra.mxu0 0.0
    %3449 = vmatprep.subr.mxu0 0.0
    %3450 = vmatpush1.msra.mxu0 0.0
    %3451 = vmatprep.subr.mxu0 0.0
    %3452 = vmatpush1.msra.mxu0 0.0
    %3453 = vmatprep.mubr.f32.mxu0 0.0
    %3454 = vmatmul.mubr.f32.gmra.mrb[0].mxu0 %v3317
    %v3455 = vpop.f32.mrb[0].mxu0
    %v3456 = vadd.f32 0.0, %v3455
    %v3457 = vpop.f32.mrb[0].mxu0
    %v3458 = vadd.f32 0.0, %v3457
    %3459 = vdwg.mxu0
    %v3460 = vadd.f32 %v2667, %v3385
    %v3461 = vadd.f32 %v2669, %v3387
    %v3462 = vadd.f32 %v2780, %v3456
    %v3463 = vadd.f32 %v2782, %v3458
    %v3464 = vxor.u32 %v3460, 2147483648
    %v3465 = vmul.f32 %v3464, 1.442695
    %v3466 = vpow.pop %v3465
    %v3467 = vadd.f32 %v3466, 1.0
    %v3468 = vrcp.pop %v3467
    %v3469 = vmul.f32 1.0, %v3468
    %v3470 = vxor.u32 %v3461, 2147483648
    %v3471 = vmul.f32 %v3470, 1.442695
    %v3472 = vpow.pop %v3471
    %v3473 = vadd.f32 %v3472, 1.0
    %v3474 = vrcp.pop %v3473
    %v3475 = vmul.f32 1.0, %v3474
    %v3476 = vtanh.pop %v3462
    %v3477 = vxor.u32 %v3463, 2147483648
    %v3478 = vmul.f32 %v3477, 1.442695
    %v3479 = vpow.pop %v3478
    %v3480 = vadd.f32 %v3479, 1.0
    %v3481 = vrcp.pop %v3480
    %v3482 = vmul.f32 1.0, %v3481
    %v3483 = vmul.f32 %v3475, %v3315
    %v3484 = vmul.f32 %v3469, %v3476
    %v3485 = vadd.f32 %v3483, %v3484
    %v3486 = vtanh.pop %v3485
    %v3487 = vmul.f32 %v3482, %v3486
    %3488 = vmatprep.subr.mxu0 %v2431
    %3489 = vmatpush1.msra.mxu0 %v2430
    %3490 = vmatprep.subr.mxu0 %v2435
    %3491 = vmatpush1.msra.mxu0 %v2434
    %3492 = vmatprep.subr.mxu0 %v2439
    %3493 = vmatpush1.msra.mxu0 %v2438
    %3494 = vmatprep.subr.mxu0 %v2443
    %3495 = vmatpush1.msra.mxu0 %v2442
    %3496 = vmatprep.subr.mxu0 %v2447
    %3497 = vmatpush1.msra.mxu0 %v2446
    %3498 = vmatprep.subr.mxu0 %v2451
    %3499 = vmatpush1.msra.mxu0 %v2450
    %3500 = vmatprep.subr.mxu0 %v2455
    %3501 = vmatpush1.msra.mxu0 %v2454
    %3502 = vmatprep.subr.mxu0 %v2459
    %3503 = vmatpush1.msra.mxu0 %v2458
    %3504 = vmatprep.subr.mxu0 %v2463
    %3505 = vmatpush1.msra.mxu0 %v2462
    %3506 = vmatprep.subr.mxu0 %v2467
    %3507 = vmatpush1.msra.mxu0 %v2466
    %3508 = vmatprep.subr.mxu0 %v2471
    %3509 = vmatpush1.msra.mxu0 %v2470
    %3510 = vmatprep.subr.mxu0 %v2475
    %3511 = vmatpush1.msra.mxu0 %v2474
    %3512 = vmatprep.subr.mxu0 %v2479
    %3513 = vmatpush1.msra.mxu0 %v2478
    %3514 = vmatprep.subr.mxu0 %v2483
    %3515 = vmatpush1.msra.mxu0 %v2482
    %3516 = vmatprep.subr.mxu0 %v2487
    %3517 = vmatpush1.msra.mxu0 %v2486
    %3518 = vmatprep.subr.mxu0 %v2491
    %3519 = vmatpush1.msra.mxu0 %v2490
    %3520 = vmatprep.subr.mxu0 0.0
    %3521 = vmatpush1.msra.mxu0 0.0
    %3522 = vmatprep.subr.mxu0 0.0
    %3523 = vmatpush1.msra.mxu0 0.0
    %3524 = vmatprep.subr.mxu0 0.0
    %3525 = vmatpush1.msra.mxu0 0.0
    %3526 = vmatprep.subr.mxu0 0.0
    %3527 = vmatpush1.msra.mxu0 0.0
    %3528 = vmatprep.subr.mxu0 0.0
    %3529 = vmatpush1.msra.mxu0 0.0
    %3530 = vmatprep.subr.mxu0 0.0
    %3531 = vmatpush1.msra.mxu0 0.0
    %3532 = vmatprep.subr.mxu0 0.0
    %3533 = vmatpush1.msra.mxu0 0.0
    %3534 = vmatprep.subr.mxu0 0.0
    %3535 = vmatpush1.msra.mxu0 0.0
    %3536 = vmatprep.subr.mxu0 0.0
    %3537 = vmatpush1.msra.mxu0 0.0
    %3538 = vmatprep.subr.mxu0 0.0
    %3539 = vmatpush1.msra.mxu0 0.0
    %3540 = vmatprep.subr.mxu0 0.0
    %3541 = vmatpush1.msra.mxu0 0.0
    %3542 = vmatprep.subr.mxu0 0.0
    %3543 = vmatpush1.msra.mxu0 0.0
    %3544 = vmatprep.subr.mxu0 0.0
    %3545 = vmatpush1.msra.mxu0 0.0
    %3546 = vmatprep.subr.mxu0 0.0
    %3547 = vmatpush1.msra.mxu0 0.0
    %3548 = vmatprep.subr.mxu0 0.0
    %3549 = vmatpush1.msra.mxu0 0.0
    %3550 = vmatprep.subr.mxu0 0.0
    %3551 = vmatpush1.msra.mxu0 0.0
    %3552 = vmatprep.mubr.f32.mxu0 0.0
    %3553 = vmatmul.mubr.f32.gmra.mrb[0].mxu0 %v3487
    %v3554 = vpop.f32.mrb[0].mxu0
    %v3555 = vadd.f32 0.0, %v3554
    %v3556 = vpop.f32.mrb[0].mxu0
    %v3557 = vadd.f32 0.0, %v3556
    %3558 = vdwg.mxu0
    %3559 = vmatprep.subr.mxu0 %v2433
    %3560 = vmatpush1.msra.mxu0 %v2432
    %3561 = vmatprep.subr.mxu0 %v2437
    %3562 = vmatpush1.msra.mxu0 %v2436
    %3563 = vmatprep.subr.mxu0 %v2441
    %3564 = vmatpush1.msra.mxu0 %v2440
    %3565 = vmatprep.subr.mxu0 %v2445
    %3566 = vmatpush1.msra.mxu0 %v2444
    %3567 = vmatprep.subr.mxu0 %v2449
    %3568 = vmatpush1.msra.mxu0 %v2448
    %3569 = vmatprep.subr.mxu0 %v2453
    %3570 = vmatpush1.msra.mxu0 %v2452
    %3571 = vmatprep.subr.mxu0 %v2457
    %3572 = vmatpush1.msra.mxu0 %v2456
    %3573 = vmatprep.subr.mxu0 %v2461
    %3574 = vmatpush1.msra.mxu0 %v2460
    %3575 = vmatprep.subr.mxu0 %v2465
    %3576 = vmatpush1.msra.mxu0 %v2464
    %3577 = vmatprep.subr.mxu0 %v2469
    %3578 = vmatpush1.msra.mxu0 %v2468
    %3579 = vmatprep.subr.mxu0 %v2473
    %3580 = vmatpush1.msra.mxu0 %v2472
    %3581 = vmatprep.subr.mxu0 %v2477
    %3582 = vmatpush1.msra.mxu0 %v2476
    %3583 = vmatprep.subr.mxu0 %v2481
    %3584 = vmatpush1.msra.mxu0 %v2480
    %3585 = vmatprep.subr.mxu0 %v2485
    %3586 = vmatpush1.msra.mxu0 %v2484
    %3587 = vmatprep.subr.mxu0 %v2489
    %3588 = vmatpush1.msra.mxu0 %v2488
    %3589 = vmatprep.subr.mxu0 %v2493
    %3590 = vmatpush1.msra.mxu0 %v2492
    %3591 = vmatprep.subr.mxu0 0.0
    %3592 = vmatpush1.msra.mxu0 0.0
    %3593 = vmatprep.subr.mxu0 0.0
    %3594 = vmatpush1.msra.mxu0 0.0
    %3595 = vmatprep.subr.mxu0 0.0
    %3596 = vmatpush1.msra.mxu0 0.0
    %3597 = vmatprep.subr.mxu0 0.0
    %3598 = vmatpush1.msra.mxu0 0.0
    %3599 = vmatprep.subr.mxu0 0.0
    %3600 = vmatpush1.msra.mxu0 0.0
    %3601 = vmatprep.subr.mxu0 0.0
    %3602 = vmatpush1.msra.mxu0 0.0
    %3603 = vmatprep.subr.mxu0 0.0
    %3604 = vmatpush1.msra.mxu0 0.0
    %3605 = vmatprep.subr.mxu0 0.0
    %3606 = vmatpush1.msra.mxu0 0.0
    %3607 = vmatprep.subr.mxu0 0.0
    %3608 = vmatpush1.msra.mxu0 0.0
    %3609 = vmatprep.subr.mxu0 0.0
    %3610 = vmatpush1.msra.mxu0 0.0
    %3611 = vmatprep.subr.mxu0 0.0
    %3612 = vmatpush1.msra.mxu0 0.0
    %3613 = vmatprep.subr.mxu0 0.0
    %3614 = vmatpush1.msra.mxu0 0.0
    %3615 = vmatprep.subr.mxu0 0.0
    %3616 = vmatpush1.msra.mxu0 0.0
    %3617 = vmatprep.subr.mxu0 0.0
    %3618 = vmatpush1.msra.mxu0 0.0
    %3619 = vmatprep.subr.mxu0 0.0
    %3620 = vmatpush1.msra.mxu0 0.0
    %3621 = vmatprep.subr.mxu0 0.0
    %3622 = vmatpush1.msra.mxu0 0.0
    %3623 = vmatprep.mubr.f32.mxu0 0.0
    %3624 = vmatmul.mubr.f32.gmra.mrb[0].mxu0 %v3487
    %v3625 = vpop.f32.mrb[0].mxu0
    %v3626 = vadd.f32 0.0, %v3625
    %v3627 = vpop.f32.mrb[0].mxu0
    %v3628 = vadd.f32 0.0, %v3627
    %3629 = vdwg.mxu0
    %v3630 = vadd.f32 %v2673, %v3555
    %v3631 = vadd.f32 %v2675, %v3557
    %v3632 = vadd.f32 %v2786, %v3626
    %v3633 = vadd.f32 %v2788, %v3628
    %v3634 = vxor.u32 %v3630, 2147483648
    %v3635 = vmul.f32 %v3634, 1.442695
    %v3636 = vpow.pop %v3635
    %v3637 = vadd.f32 %v3636, 1.0
    %v3638 = vrcp.pop %v3637
    %v3639 = vmul.f32 1.0, %v3638
    %v3640 = vxor.u32 %v3631, 2147483648
    %v3641 = vmul.f32 %v3640, 1.442695
    %v3642 = vpow.pop %v3641
    %v3643 = vadd.f32 %v3642, 1.0
    %v3644 = vrcp.pop %v3643
    %v3645 = vmul.f32 1.0, %v3644
    %v3646 = vtanh.pop %v3632
    %v3647 = vxor.u32 %v3633, 2147483648
    %v3648 = vmul.f32 %v3647, 1.442695
    %v3649 = vpow.pop %v3648
    %v3650 = vadd.f32 %v3649, 1.0
    %v3651 = vrcp.pop %v3650
    %v3652 = vmul.f32 1.0, %v3651
    %v3653 = vmul.f32 %v3645, %v3485
    %v3654 = vmul.f32 %v3639, %v3646
    %v3655 = vadd.f32 %v3653, %v3654
    %v3656 = vtanh.pop %v3655
    %v3657 = vmul.f32 %v3652, %v3656
    %3658 = vmatprep.subr.mxu0 %v2431
    %3659 = vmatpush1.msra.mxu0 %v2430
    %3660 = vmatprep.subr.mxu0 %v2435
    %3661 = vmatpush1.msra.mxu0 %v2434
    %3662 = vmatprep.subr.mxu0 %v2439
    %3663 = vmatpush1.msra.mxu0 %v2438
    %3664 = vmatprep.subr.mxu0 %v2443
    %3665 = vmatpush1.msra.mxu0 %v2442
    %3666 = vmatprep.subr.mxu0 %v2447
    %3667 = vmatpush1.msra.mxu0 %v2446
    %3668 = vmatprep.subr.mxu0 %v2451
    %3669 = vmatpush1.msra.mxu0 %v2450
    %3670 = vmatprep.subr.mxu0 %v2455
    %3671 = vmatpush1.msra.mxu0 %v2454
    %3672 = vmatprep.subr.mxu0 %v2459
    %3673 = vmatpush1.msra.mxu0 %v2458
    %3674 = vmatprep.subr.mxu0 %v2463
    %3675 = vmatpush1.msra.mxu0 %v2462
    %3676 = vmatprep.subr.mxu0 %v2467
    %3677 = vmatpush1.msra.mxu0 %v2466
    %3678 = vmatprep.subr.mxu0 %v2471
    %3679 = vmatpush1.msra.mxu0 %v2470
    %3680 = vmatprep.subr.mxu0 %v2475
    %3681 = vmatpush1.msra.mxu0 %v2474
    %3682 = vmatprep.subr.mxu0 %v2479
    %3683 = vmatpush1.msra.mxu0 %v2478
    %3684 = vmatprep.subr.mxu0 %v2483
    %3685 = vmatpush1.msra.mxu0 %v2482
    %3686 = vmatprep.subr.mxu0 %v2487
    %3687 = vmatpush1.msra.mxu0 %v2486
    %3688 = vmatprep.subr.mxu0 %v2491
    %3689 = vmatpush1.msra.mxu0 %v2490
    %3690 = vmatprep.subr.mxu0 0.0
    %3691 = vmatpush1.msra.mxu0 0.0
    %3692 = vmatprep.subr.mxu0 0.0
    %3693 = vmatpush1.msra.mxu0 0.0
    %3694 = vmatprep.subr.mxu0 0.0
    %3695 = vmatpush1.msra.mxu0 0.0
    %3696 = vmatprep.subr.mxu0 0.0
    %3697 = vmatpush1.msra.mxu0 0.0
    %3698 = vmatprep.subr.mxu0 0.0
    %3699 = vmatpush1.msra.mxu0 0.0
    %3700 = vmatprep.subr.mxu0 0.0
    %3701 = vmatpush1.msra.mxu0 0.0
    %3702 = vmatprep.subr.mxu0 0.0
    %3703 = vmatpush1.msra.mxu0 0.0
    %3704 = vmatprep.subr.mxu0 0.0
    %3705 = vmatpush1.msra.mxu0 0.0
    %3706 = vmatprep.subr.mxu0 0.0
    %3707 = vmatpush1.msra.mxu0 0.0
    %3708 = vmatprep.subr.mxu0 0.0
    %3709 = vmatpush1.msra.mxu0 0.0
    %3710 = vmatprep.subr.mxu0 0.0
    %3711 = vmatpush1.msra.mxu0 0.0
    %3712 = vmatprep.subr.mxu0 0.0
    %3713 = vmatpush1.msra.mxu0 0.0
    %3714 = vmatprep.subr.mxu0 0.0
    %3715 = vmatpush1.msra.mxu0 0.0
    %3716 = vmatprep.subr.mxu0 0.0
    %3717 = vmatpush1.msra.mxu0 0.0
    %3718 = vmatprep.subr.mxu0 0.0
    %3719 = vmatpush1.msra.mxu0 0.0
    %3720 = vmatprep.subr.mxu0 0.0
    %3721 = vmatpush1.msra.mxu0 0.0
    %3722 = vmatprep.mubr.f32.mxu0 0.0
    %3723 = vmatmul.mubr.f32.gmra.mrb[0].mxu0 %v3657
    %v3724 = vpop.f32.mrb[0].mxu0
    %v3725 = vadd.f32 0.0, %v3724
    %v3726 = vpop.f32.mrb[0].mxu0
    %v3727 = vadd.f32 0.0, %v3726
    %3728 = vdwg.mxu0
    %3729 = vmatprep.subr.mxu0 %v2433
    %3730 = vmatpush1.msra.mxu0 %v2432
    %3731 = vmatprep.subr.mxu0 %v2437
    %3732 = vmatpush1.msra.mxu0 %v2436
    %3733 = vmatprep.subr.mxu0 %v2441
    %3734 = vmatpush1.msra.mxu0 %v2440
    %3735 = vmatprep.subr.mxu0 %v2445
    %3736 = vmatpush1.msra.mxu0 %v2444
    %3737 = vmatprep.subr.mxu0 %v2449
    %3738 = vmatpush1.msra.mxu0 %v2448
    %3739 = vmatprep.subr.mxu0 %v2453
    %3740 = vmatpush1.msra.mxu0 %v2452
    %3741 = vmatprep.subr.mxu0 %v2457
    %3742 = vmatpush1.msra.mxu0 %v2456
    %3743 = vmatprep.subr.mxu0 %v2461
    %3744 = vmatpush1.msra.mxu0 %v2460
    %3745 = vmatprep.subr.mxu0 %v2465
    %3746 = vmatpush1.msra.mxu0 %v2464
    %3747 = vmatprep.subr.mxu0 %v2469
    %3748 = vmatpush1.msra.mxu0 %v2468
    %3749 = vmatprep.subr.mxu0 %v2473
    %3750 = vmatpush1.msra.mxu0 %v2472
    %3751 = vmatprep.subr.mxu0 %v2477
    %3752 = vmatpush1.msra.mxu0 %v2476
    %3753 = vmatprep.subr.mxu0 %v2481
    %3754 = vmatpush1.msra.mxu0 %v2480
    %3755 = vmatprep.subr.mxu0 %v2485
    %3756 = vmatpush1.msra.mxu0 %v2484
    %3757 = vmatprep.subr.mxu0 %v2489
    %3758 = vmatpush1.msra.mxu0 %v2488
    %3759 = vmatprep.subr.mxu0 %v2493
    %3760 = vmatpush1.msra.mxu0 %v2492
    %3761 = vmatprep.subr.mxu0 0.0
    %3762 = vmatpush1.msra.mxu0 0.0
    %3763 = vmatprep.subr.mxu0 0.0
    %3764 = vmatpush1.msra.mxu0 0.0
    %3765 = vmatprep.subr.mxu0 0.0
    %3766 = vmatpush1.msra.mxu0 0.0
    %3767 = vmatprep.subr.mxu0 0.0
    %3768 = vmatpush1.msra.mxu0 0.0
    %3769 = vmatprep.subr.mxu0 0.0
    %3770 = vmatpush1.msra.mxu0 0.0
    %3771 = vmatprep.subr.mxu0 0.0
    %3772 = vmatpush1.msra.mxu0 0.0
    %3773 = vmatprep.subr.mxu0 0.0
    %3774 = vmatpush1.msra.mxu0 0.0
    %3775 = vmatprep.subr.mxu0 0.0
    %3776 = vmatpush1.msra.mxu0 0.0
    %3777 = vmatprep.subr.mxu0 0.0
    %3778 = vmatpush1.msra.mxu0 0.0
    %3779 = vmatprep.subr.mxu0 0.0
    %3780 = vmatpush1.msra.mxu0 0.0
    %3781 = vmatprep.subr.mxu0 0.0
    %3782 = vmatpush1.msra.mxu0 0.0
    %3783 = vmatprep.subr.mxu0 0.0
    %3784 = vmatpush1.msra.mxu0 0.0
    %3785 = vmatprep.subr.mxu0 0.0
    %3786 = vmatpush1.msra.mxu0 0.0
    %3787 = vmatprep.subr.mxu0 0.0
    %3788 = vmatpush1.msra.mxu0 0.0
    %3789 = vmatprep.subr.mxu0 0.0
    %3790 = vmatpush1.msra.mxu0 0.0
    %3791 = vmatprep.subr.mxu0 0.0
    %3792 = vmatpush1.msra.mxu0 0.0
    %3793 = vmatprep.mubr.f32.mxu0 0.0
    %3794 = vmatmul.mubr.f32.gmra.mrb[0].mxu0 %v3657
    %v3795 = vpop.f32.mrb[0].mxu0
    %v3796 = vadd.f32 0.0, %v3795
    %v3797 = vpop.f32.mrb[0].mxu0
    %v3798 = vadd.f32 0.0, %v3797
    %3799 = vdwg.mxu0
    %v3800 = vadd.f32 %v2679, %v3725
    %v3801 = vadd.f32 %v2681, %v3727
    %v3802 = vadd.f32 %v2792, %v3796
    %v3803 = vadd.f32 %v2794, %v3798
    %v3804 = vxor.u32 %v3800, 2147483648
    %v3805 = vmul.f32 %v3804, 1.442695
    %v3806 = vpow.pop %v3805
    %v3807 = vadd.f32 %v3806, 1.0
    %v3808 = vrcp.pop %v3807
    %v3809 = vmul.f32 1.0, %v3808
    %v3810 = vxor.u32 %v3801, 2147483648
    %v3811 = vmul.f32 %v3810, 1.442695
    %v3812 = vpow.pop %v3811
    %v3813 = vadd.f32 %v3812, 1.0
    %v3814 = vrcp.pop %v3813
    %v3815 = vmul.f32 1.0, %v3814
    %v3816 = vtanh.pop %v3802
    %v3817 = vxor.u32 %v3803, 2147483648
    %v3818 = vmul.f32 %v3817, 1.442695
    %v3819 = vpow.pop %v3818
    %v3820 = vadd.f32 %v3819, 1.0
    %v3821 = vrcp.pop %v3820
    %v3822 = vmul.f32 1.0, %v3821
    %v3823 = vmul.f32 %v3815, %v3655
    %v3824 = vmul.f32 %v3809, %v3816
    %v3825 = vadd.f32 %v3823, %v3824
    %v3826 = vtanh.pop %v3825
    %v3827 = vmul.f32 %v3822, %v3826
    %3828 = vmatprep.subr.mxu0 %v2431
    %3829 = vmatpush1.msra.mxu0 %v2430
    %3830 = vmatprep.subr.mxu0 %v2435
    %3831 = vmatpush1.msra.mxu0 %v2434
    %3832 = vmatprep.subr.mxu0 %v2439
    %3833 = vmatpush1.msra.mxu0 %v2438
    %3834 = vmatprep.subr.mxu0 %v2443
    %3835 = vmatpush1.msra.mxu0 %v2442
    %3836 = vmatprep.subr.mxu0 %v2447
    %3837 = vmatpush1.msra.mxu0 %v2446
    %3838 = vmatprep.subr.mxu0 %v2451
    %3839 = vmatpush1.msra.mxu0 %v2450
    %3840 = vmatprep.subr.mxu0 %v2455
    %3841 = vmatpush1.msra.mxu0 %v2454
    %3842 = vmatprep.subr.mxu0 %v2459
    %3843 = vmatpush1.msra.mxu0 %v2458
    %3844 = vmatprep.subr.mxu0 %v2463
    %3845 = vmatpush1.msra.mxu0 %v2462
    %3846 = vmatprep.subr.mxu0 %v2467
    %3847 = vmatpush1.msra.mxu0 %v2466
    %3848 = vmatprep.subr.mxu0 %v2471
    %3849 = vmatpush1.msra.mxu0 %v2470
    %3850 = vmatprep.subr.mxu0 %v2475
    %3851 = vmatpush1.msra.mxu0 %v2474
    %3852 = vmatprep.subr.mxu0 %v2479
    %3853 = vmatpush1.msra.mxu0 %v2478
    %3854 = vmatprep.subr.mxu0 %v2483
    %3855 = vmatpush1.msra.mxu0 %v2482
    %3856 = vmatprep.subr.mxu0 %v2487
    %3857 = vmatpush1.msra.mxu0 %v2486
    %3858 = vmatprep.subr.mxu0 %v2491
    %3859 = vmatpush1.msra.mxu0 %v2490
    %3860 = vmatprep.subr.mxu0 0.0
    %3861 = vmatpush1.msra.mxu0 0.0
    %3862 = vmatprep.subr.mxu0 0.0
    %3863 = vmatpush1.msra.mxu0 0.0
    %3864 = vmatprep.subr.mxu0 0.0
    %3865 = vmatpush1.msra.mxu0 0.0
    %3866 = vmatprep.subr.mxu0 0.0
    %3867 = vmatpush1.msra.mxu0 0.0
    %3868 = vmatprep.subr.mxu0 0.0
    %3869 = vmatpush1.msra.mxu0 0.0
    %3870 = vmatprep.subr.mxu0 0.0
    %3871 = vmatpush1.msra.mxu0 0.0
    %3872 = vmatprep.subr.mxu0 0.0
    %3873 = vmatpush1.msra.mxu0 0.0
    %3874 = vmatprep.subr.mxu0 0.0
    %3875 = vmatpush1.msra.mxu0 0.0
    %3876 = vmatprep.subr.mxu0 0.0
    %3877 = vmatpush1.msra.mxu0 0.0
    %3878 = vmatprep.subr.mxu0 0.0
    %3879 = vmatpush1.msra.mxu0 0.0
    %3880 = vmatprep.subr.mxu0 0.0
    %3881 = vmatpush1.msra.mxu0 0.0
    %3882 = vmatprep.subr.mxu0 0.0
    %3883 = vmatpush1.msra.mxu0 0.0
    %3884 = vmatprep.subr.mxu0 0.0
    %3885 = vmatpush1.msra.mxu0 0.0
    %3886 = vmatprep.subr.mxu0 0.0
    %3887 = vmatpush1.msra.mxu0 0.0
    %3888 = vmatprep.subr.mxu0 0.0
    %3889 = vmatpush1.msra.mxu0 0.0
    %3890 = vmatprep.subr.mxu0 0.0
    %3891 = vmatpush1.msra.mxu0 0.0
    %3892 = vmatprep.mubr.f32.mxu0 0.0
    %3893 = vmatmul.mubr.f32.gmra.mrb[0].mxu0 %v3827
    %v3894 = vpop.f32.mrb[0].mxu0
    %v3895 = vadd.f32 0.0, %v3894
    %v3896 = vpop.f32.mrb[0].mxu0
    %v3897 = vadd.f32 0.0, %v3896
    %3898 = vdwg.mxu0
    %3899 = vmatprep.subr.mxu0 %v2433
    %3900 = vmatpush1.msra.mxu0 %v2432
    %3901 = vmatprep.subr.mxu0 %v2437
    %3902 = vmatpush1.msra.mxu0 %v2436
    %3903 = vmatprep.subr.mxu0 %v2441
    %3904 = vmatpush1.msra.mxu0 %v2440
    %3905 = vmatprep.subr.mxu0 %v2445
    %3906 = vmatpush1.msra.mxu0 %v2444
    %3907 = vmatprep.subr.mxu0 %v2449
    %3908 = vmatpush1.msra.mxu0 %v2448
    %3909 = vmatprep.subr.mxu0 %v2453
    %3910 = vmatpush1.msra.mxu0 %v2452
    %3911 = vmatprep.subr.mxu0 %v2457
    %3912 = vmatpush1.msra.mxu0 %v2456
    %3913 = vmatprep.subr.mxu0 %v2461
    %3914 = vmatpush1.msra.mxu0 %v2460
    %3915 = vmatprep.subr.mxu0 %v2465
    %3916 = vmatpush1.msra.mxu0 %v2464
    %3917 = vmatprep.subr.mxu0 %v2469
    %3918 = vmatpush1.msra.mxu0 %v2468
    %3919 = vmatprep.subr.mxu0 %v2473
    %3920 = vmatpush1.msra.mxu0 %v2472
    %3921 = vmatprep.subr.mxu0 %v2477
    %3922 = vmatpush1.msra.mxu0 %v2476
    %3923 = vmatprep.subr.mxu0 %v2481
    %3924 = vmatpush1.msra.mxu0 %v2480
    %3925 = vmatprep.subr.mxu0 %v2485
    %3926 = vmatpush1.msra.mxu0 %v2484
    %3927 = vmatprep.subr.mxu0 %v2489
    %3928 = vmatpush1.msra.mxu0 %v2488
    %3929 = vmatprep.subr.mxu0 %v2493
    %3930 = vmatpush1.msra.mxu0 %v2492
    %3931 = vmatprep.subr.mxu0 0.0
    %3932 = vmatpush1.msra.mxu0 0.0
    %3933 = vmatprep.subr.mxu0 0.0
    %3934 = vmatpush1.msra.mxu0 0.0
    %3935 = vmatprep.subr.mxu0 0.0
    %3936 = vmatpush1.msra.mxu0 0.0
    %3937 = vmatprep.subr.mxu0 0.0
    %3938 = vmatpush1.msra.mxu0 0.0
    %3939 = vmatprep.subr.mxu0 0.0
    %3940 = vmatpush1.msra.mxu0 0.0
    %3941 = vmatprep.subr.mxu0 0.0
    %3942 = vmatpush1.msra.mxu0 0.0
    %3943 = vmatprep.subr.mxu0 0.0
    %3944 = vmatpush1.msra.mxu0 0.0
    %3945 = vmatprep.subr.mxu0 0.0
    %3946 = vmatpush1.msra.mxu0 0.0
    %3947 = vmatprep.subr.mxu0 0.0
    %3948 = vmatpush1.msra.mxu0 0.0
    %3949 = vmatprep.subr.mxu0 0.0
    %3950 = vmatpush1.msra.mxu0 0.0
    %3951 = vmatprep.subr.mxu0 0.0
    %3952 = vmatpush1.msra.mxu0 0.0
    %3953 = vmatprep.subr.mxu0 0.0
    %3954 = vmatpush1.msra.mxu0 0.0
    %3955 = vmatprep.subr.mxu0 0.0
    %3956 = vmatpush1.msra.mxu0 0.0
    %3957 = vmatprep.subr.mxu0 0.0
    %3958 = vmatpush1.msra.mxu0 0.0
    %3959 = vmatprep.subr.mxu0 0.0
    %3960 = vmatpush1.msra.mxu0 0.0
    %3961 = vmatprep.subr.mxu0 0.0
    %3962 = vmatpush1.msra.mxu0 0.0
    %3963 = vmatprep.mubr.f32.mxu0 0.0
    %3964 = vmatmul.mubr.f32.gmra.mrb[0].mxu0 %v3827
    %v3965 = vpop.f32.mrb[0].mxu0
    %v3966 = vadd.f32 0.0, %v3965
    %v3967 = vpop.f32.mrb[0].mxu0
    %v3968 = vadd.f32 0.0, %v3967
    %3969 = vdwg.mxu0
    %v3970 = vadd.f32 %v2685, %v3895
    %v3971 = vadd.f32 %v2687, %v3897
    %v3972 = vadd.f32 %v2798, %v3966
    %v3973 = vadd.f32 %v2800, %v3968
    %v3974 = vxor.u32 %v3970, 2147483648
    %v3975 = vmul.f32 %v3974, 1.442695
    %v3976 = vpow.pop %v3975
    %v3977 = vadd.f32 %v3976, 1.0
    %v3978 = vrcp.pop %v3977
    %v3979 = vmul.f32 1.0, %v3978
    %v3980 = vxor.u32 %v3971, 2147483648
    %v3981 = vmul.f32 %v3980, 1.442695
    %v3982 = vpow.pop %v3981
    %v3983 = vadd.f32 %v3982, 1.0
    %v3984 = vrcp.pop %v3983
    %v3985 = vmul.f32 1.0, %v3984
    %v3986 = vtanh.pop %v3972
    %v3987 = vxor.u32 %v3973, 2147483648
    %v3988 = vmul.f32 %v3987, 1.442695
    %v3989 = vpow.pop %v3988
    %v3990 = vadd.f32 %v3989, 1.0
    %v3991 = vrcp.pop %v3990
    %v3992 = vmul.f32 1.0, %v3991
    %v3993 = vmul.f32 %v3985, %v3825
    %v3994 = vmul.f32 %v3979, %v3986
    %v3995 = vadd.f32 %v3993, %v3994
    %v3996 = vtanh.pop %v3995
    %v3997 = vmul.f32 %v3992, %v3996
    %3998 = vmatprep.subr.mxu0 %v2431
    %3999 = vmatpush1.msra.mxu0 %v2430
    %4000 = vmatprep.subr.mxu0 %v2435
    %4001 = vmatpush1.msra.mxu0 %v2434
    %4002 = vmatprep.subr.mxu0 %v2439
    %4003 = vmatpush1.msra.mxu0 %v2438
    %4004 = vmatprep.subr.mxu0 %v2443
    %4005 = vmatpush1.msra.mxu0 %v2442
    %4006 = vmatprep.subr.mxu0 %v2447
    %4007 = vmatpush1.msra.mxu0 %v2446
    %4008 = vmatprep.subr.mxu0 %v2451
    %4009 = vmatpush1.msra.mxu0 %v2450
    %4010 = vmatprep.subr.mxu0 %v2455
    %4011 = vmatpush1.msra.mxu0 %v2454
    %4012 = vmatprep.subr.mxu0 %v2459
    %4013 = vmatpush1.msra.mxu0 %v2458
    %4014 = vmatprep.subr.mxu0 %v2463
    %4015 = vmatpush1.msra.mxu0 %v2462
    %4016 = vmatprep.subr.mxu0 %v2467
    %4017 = vmatpush1.msra.mxu0 %v2466
    %4018 = vmatprep.subr.mxu0 %v2471
    %4019 = vmatpush1.msra.mxu0 %v2470
    %4020 = vmatprep.subr.mxu0 %v2475
    %4021 = vmatpush1.msra.mxu0 %v2474
    %4022 = vmatprep.subr.mxu0 %v2479
    %4023 = vmatpush1.msra.mxu0 %v2478
    %4024 = vmatprep.subr.mxu0 %v2483
    %4025 = vmatpush1.msra.mxu0 %v2482
    %4026 = vmatprep.subr.mxu0 %v2487
    %4027 = vmatpush1.msra.mxu0 %v2486
    %4028 = vmatprep.subr.mxu0 %v2491
    %4029 = vmatpush1.msra.mxu0 %v2490
    %4030 = vmatprep.subr.mxu0 0.0
    %4031 = vmatpush1.msra.mxu0 0.0
    %4032 = vmatprep.subr.mxu0 0.0
    %4033 = vmatpush1.msra.mxu0 0.0
    %4034 = vmatprep.subr.mxu0 0.0
    %4035 = vmatpush1.msra.mxu0 0.0
    %4036 = vmatprep.subr.mxu0 0.0
    %4037 = vmatpush1.msra.mxu0 0.0
    %4038 = vmatprep.subr.mxu0 0.0
    %4039 = vmatpush1.msra.mxu0 0.0
    %4040 = vmatprep.subr.mxu0 0.0
    %4041 = vmatpush1.msra.mxu0 0.0
    %4042 = vmatprep.subr.mxu0 0.0
    %4043 = vmatpush1.msra.mxu0 0.0
    %4044 = vmatprep.subr.mxu0 0.0
    %4045 = vmatpush1.msra.mxu0 0.0
    %4046 = vmatprep.subr.mxu0 0.0
    %4047 = vmatpush1.msra.mxu0 0.0
    %4048 = vmatprep.subr.mxu0 0.0
    %4049 = vmatpush1.msra.mxu0 0.0
    %4050 = vmatprep.subr.mxu0 0.0
    %4051 = vmatpush1.msra.mxu0 0.0
    %4052 = vmatprep.subr.mxu0 0.0
    %4053 = vmatpush1.msra.mxu0 0.0
    %4054 = vmatprep.subr.mxu0 0.0
    %4055 = vmatpush1.msra.mxu0 0.0
    %4056 = vmatprep.subr.mxu0 0.0
    %4057 = vmatpush1.msra.mxu0 0.0
    %4058 = vmatprep.subr.mxu0 0.0
    %4059 = vmatpush1.msra.mxu0 0.0
    %4060 = vmatprep.subr.mxu0 0.0
    %4061 = vmatpush1.msra.mxu0 0.0
    %4062 = vmatprep.mubr.f32.mxu0 0.0
    %4063 = vmatmul.mubr.f32.gmra.mrb[0].mxu0 %v3997
    %v4064 = vpop.f32.mrb[0].mxu0
    %v4065 = vadd.f32 0.0, %v4064
    %v4066 = vpop.f32.mrb[0].mxu0
    %v4067 = vadd.f32 0.0, %v4066
    %4068 = vdwg.mxu0
    %4069 = vmatprep.subr.mxu0 %v2433
    %4070 = vmatpush1.msra.mxu0 %v2432
    %4071 = vmatprep.subr.mxu0 %v2437
    %4072 = vmatpush1.msra.mxu0 %v2436
    %4073 = vmatprep.subr.mxu0 %v2441
    %4074 = vmatpush1.msra.mxu0 %v2440
    %4075 = vmatprep.subr.mxu0 %v2445
    %4076 = vmatpush1.msra.mxu0 %v2444
    %4077 = vmatprep.subr.mxu0 %v2449
    %4078 = vmatpush1.msra.mxu0 %v2448
    %4079 = vmatprep.subr.mxu0 %v2453
    %4080 = vmatpush1.msra.mxu0 %v2452
    %4081 = vmatprep.subr.mxu0 %v2457
    %4082 = vmatpush1.msra.mxu0 %v2456
    %4083 = vmatprep.subr.mxu0 %v2461
    %4084 = vmatpush1.msra.mxu0 %v2460
    %4085 = vmatprep.subr.mxu0 %v2465
    %4086 = vmatpush1.msra.mxu0 %v2464
    %4087 = vmatprep.subr.mxu0 %v2469
    %4088 = vmatpush1.msra.mxu0 %v2468
    %4089 = vmatprep.subr.mxu0 %v2473
    %4090 = vmatpush1.msra.mxu0 %v2472
    %4091 = vmatprep.subr.mxu0 %v2477
    %4092 = vmatpush1.msra.mxu0 %v2476
    %4093 = vmatprep.subr.mxu0 %v2481
    %4094 = vmatpush1.msra.mxu0 %v2480
    %4095 = vmatprep.subr.mxu0 %v2485
    %4096 = vmatpush1.msra.mxu0 %v2484
    %4097 = vmatprep.subr.mxu0 %v2489
    %4098 = vmatpush1.msra.mxu0 %v2488
    %4099 = vmatprep.subr.mxu0 %v2493
    %4100 = vmatpush1.msra.mxu0 %v2492
    %4101 = vmatprep.subr.mxu0 0.0
    %4102 = vmatpush1.msra.mxu0 0.0
    %4103 = vmatprep.subr.mxu0 0.0
    %4104 = vmatpush1.msra.mxu0 0.0
    %4105 = vmatprep.subr.mxu0 0.0
    %4106 = vmatpush1.msra.mxu0 0.0
    %4107 = vmatprep.subr.mxu0 0.0
    %4108 = vmatpush1.msra.mxu0 0.0
    %4109 = vmatprep.subr.mxu0 0.0
    %4110 = vmatpush1.msra.mxu0 0.0
    %4111 = vmatprep.subr.mxu0 0.0
    %4112 = vmatpush1.msra.mxu0 0.0
    %4113 = vmatprep.subr.mxu0 0.0
    %4114 = vmatpush1.msra.mxu0 0.0
    %4115 = vmatprep.subr.mxu0 0.0
    %4116 = vmatpush1.msra.mxu0 0.0
    %4117 = vmatprep.subr.mxu0 0.0
    %4118 = vmatpush1.msra.mxu0 0.0
    %4119 = vmatprep.subr.mxu0 0.0
    %4120 = vmatpush1.msra.mxu0 0.0
    %4121 = vmatprep.subr.mxu0 0.0
    %4122 = vmatpush1.msra.mxu0 0.0
    %4123 = vmatprep.subr.mxu0 0.0
    %4124 = vmatpush1.msra.mxu0 0.0
    %4125 = vmatprep.subr.mxu0 0.0
    %4126 = vmatpush1.msra.mxu0 0.0
    %4127 = vmatprep.subr.mxu0 0.0
    %4128 = vmatpush1.msra.mxu0 0.0
    %4129 = vmatprep.subr.mxu0 0.0
    %4130 = vmatpush1.msra.mxu0 0.0
    %4131 = vmatprep.subr.mxu0 0.0
    %4132 = vmatpush1.msra.mxu0 0.0
    %4133 = vmatprep.mubr.f32.mxu0 0.0
    %4134 = vmatmul.mubr.f32.gmra.mrb[0].mxu0 %v3997
    %v4135 = vpop.f32.mrb[0].mxu0
    %v4136 = vadd.f32 0.0, %v4135
    %v4137 = vpop.f32.mrb[0].mxu0
    %v4138 = vadd.f32 0.0, %v4137
    %4139 = vdwg.mxu0
    %v4140 = vadd.f32 %v2691, %v4065
    %v4141 = vadd.f32 %v2693, %v4067
    %v4142 = vadd.f32 %v2804, %v4136
    %v4143 = vadd.f32 %v2806, %v4138
    %v4144 = vxor.u32 %v4140, 2147483648
    %v4145 = vmul.f32 %v4144, 1.442695
    %v4146 = vpow.pop %v4145
    %v4147 = vadd.f32 %v4146, 1.0
    %v4148 = vrcp.pop %v4147
    %v4149 = vmul.f32 1.0, %v4148
    %v4150 = vxor.u32 %v4141, 2147483648
    %v4151 = vmul.f32 %v4150, 1.442695
    %v4152 = vpow.pop %v4151
    %v4153 = vadd.f32 %v4152, 1.0
    %v4154 = vrcp.pop %v4153
    %v4155 = vmul.f32 1.0, %v4154
    %v4156 = vtanh.pop %v4142
    %v4157 = vxor.u32 %v4143, 2147483648
    %v4158 = vmul.f32 %v4157, 1.442695
    %v4159 = vpow.pop %v4158
    %v4160 = vadd.f32 %v4159, 1.0
    %v4161 = vrcp.pop %v4160
    %v4162 = vmul.f32 1.0, %v4161
    %v4163 = vmul.f32 %v4155, %v3995
    %v4164 = vmul.f32 %v4149, %v4156
    %v4165 = vadd.f32 %v4163, %v4164
    %v4166 = vtanh.pop %v4165
    %v4167 = vmul.f32 %v4162, %v4166
    %s4168 = scalar_lea.vmem [#allocation7], 1024
    %v4169 = vld [vmem:[%s4168] sm:$0xff]
    %v4170 = vld [vmem:[%s4168 + $0x8] sm:$0xff]
    %v4171 = vld [vmem:[%s4168 + $0x10] sm:$0xff]
    %v4172 = vld [vmem:[%s4168 + $0x18] sm:$0xff]
    %v4173 = vld [vmem:[%s4168 + $0x20] sm:$0xff]
    %v4174 = vld [vmem:[%s4168 + $0x28] sm:$0xff]
    %v4175 = vld [vmem:[%s4168 + $0x30] sm:$0xff]
    %v4176 = vld [vmem:[%s4168 + $0x38] sm:$0xff]
    %v4177 = vld [vmem:[%s4168 + $0x40] sm:$0xff]
    %v4178 = vld [vmem:[%s4168 + $0x48] sm:$0xff]
    %v4179 = vld [vmem:[%s4168 + $0x50] sm:$0xff]
    %v4180 = vld [vmem:[%s4168 + $0x58] sm:$0xff]
    %v4181 = vld [vmem:[%s4168 + $0x60] sm:$0xff]
    %v4182 = vld [vmem:[%s4168 + $0x68] sm:$0xff]
    %v4183 = vld [vmem:[%s4168 + $0x70] sm:$0xff]
    %v4184 = vld [vmem:[%s4168 + $0x78] sm:$0xff]
    %v4185 = vld [vmem:[%s4168 + $0x80] sm:$0xff]
    %v4186 = vld [vmem:[%s4168 + $0x88] sm:$0xff]
    %v4187 = vld [vmem:[%s4168 + $0x90] sm:$0xff]
    %v4188 = vld [vmem:[%s4168 + $0x98] sm:$0xff]
    %v4189 = vld [vmem:[%s4168 + $0xa0] sm:$0xff]
    %v4190 = vld [vmem:[%s4168 + $0xa8] sm:$0xff]
    %v4191 = vld [vmem:[%s4168 + $0xb0] sm:$0xff]
    %v4192 = vld [vmem:[%s4168 + $0xb8] sm:$0xff]
    %v4193 = vld [vmem:[%s4168 + $0xc0] sm:$0xff]
    %v4194 = vld [vmem:[%s4168 + $0xc8] sm:$0xff]
    %v4195 = vld [vmem:[%s4168 + $0xd0] sm:$0xff]
    %v4196 = vld [vmem:[%s4168 + $0xd8] sm:$0xff]
    %v4197 = vld [vmem:[%s4168 + $0xe0] sm:$0xff]
    %v4198 = vld [vmem:[%s4168 + $0xe8] sm:$0xff]
    %v4199 = vld [vmem:[%s4168 + $0xf0] sm:$0xff]
    %v4200 = vld [vmem:[%s4168 + $0xf8] sm:$0xff]
    %v4201 = vld [vmem:[%s4168 + $0x100] sm:$0xff]
    %v4202 = vld [vmem:[%s4168 + $0x108] sm:$0xff]
    %v4203 = vld [vmem:[%s4168 + $0x110] sm:$0xff]
    %v4204 = vld [vmem:[%s4168 + $0x118] sm:$0xff]
    %v4205 = vld [vmem:[%s4168 + $0x120] sm:$0xff]
    %v4206 = vld [vmem:[%s4168 + $0x128] sm:$0xff]
    %v4207 = vld [vmem:[%s4168 + $0x130] sm:$0xff]
    %v4208 = vld [vmem:[%s4168 + $0x138] sm:$0xff]
    %v4209 = vld [vmem:[%s4168 + $0x140] sm:$0xff]
    %v4210 = vld [vmem:[%s4168 + $0x148] sm:$0xff]
    %v4211 = vld [vmem:[%s4168 + $0x150] sm:$0xff]
    %v4212 = vld [vmem:[%s4168 + $0x158] sm:$0xff]
    %v4213 = vld [vmem:[%s4168 + $0x160] sm:$0xff]
    %v4214 = vld [vmem:[%s4168 + $0x168] sm:$0xff]
    %v4215 = vld [vmem:[%s4168 + $0x170] sm:$0xff]
    %v4216 = vld [vmem:[%s4168 + $0x178] sm:$0xff]
    %v4217 = vld [vmem:[%s4168 + $0x180] sm:$0xff]
    %v4218 = vld [vmem:[%s4168 + $0x188] sm:$0xff]
    %v4219 = vld [vmem:[%s4168 + $0x190] sm:$0xff]
    %v4220 = vld [vmem:[%s4168 + $0x198] sm:$0xff]
    %v4221 = vld [vmem:[%s4168 + $0x1a0] sm:$0xff]
    %v4222 = vld [vmem:[%s4168 + $0x1a8] sm:$0xff]
    %v4223 = vld [vmem:[%s4168 + $0x1b0] sm:$0xff]
    %v4224 = vld [vmem:[%s4168 + $0x1b8] sm:$0xff]
    %v4225 = vld [vmem:[%s4168 + $0x1c0] sm:$0xff]
    %v4226 = vld [vmem:[%s4168 + $0x1c8] sm:$0xff]
    %v4227 = vld [vmem:[%s4168 + $0x1d0] sm:$0xff]
    %v4228 = vld [vmem:[%s4168 + $0x1d8] sm:$0xff]
    %v4229 = vld [vmem:[%s4168 + $0x1e0] sm:$0xff]
    %v4230 = vld [vmem:[%s4168 + $0x1e8] sm:$0xff]
    %v4231 = vld [vmem:[%s4168 + $0x1f0] sm:$0xff]
    %v4232 = vld [vmem:[%s4168 + $0x1f8] sm:$0xff]
    %s4233 = scalar_lea.vmem [#allocation7], 2560
    %v4234 = vld [vmem:[%s4233] sm:$0xff]
    %v4235 = vld [vmem:[%s4233 + $0x8] sm:$0xff]
    %v4236 = vld [vmem:[%s4233 + $0x10] sm:$0xff]
    %v4237 = vld [vmem:[%s4233 + $0x18] sm:$0xff]
    %v4238 = vld [vmem:[%s4233 + $0x20] sm:$0xff]
    %v4239 = vld [vmem:[%s4233 + $0x28] sm:$0xff]
    %v4240 = vld [vmem:[%s4233 + $0x30] sm:$0xff]
    %v4241 = vld [vmem:[%s4233 + $0x38] sm:$0xff]
    %v4242 = vld [vmem:[%s4233 + $0x40] sm:$0xff]
    %v4243 = vld [vmem:[%s4233 + $0x48] sm:$0xff]
    %v4244 = vld [vmem:[%s4233 + $0x50] sm:$0xff]
    %v4245 = vld [vmem:[%s4233 + $0x58] sm:$0xff]
    %v4246 = vld [vmem:[%s4233 + $0x60] sm:$0xff]
    %v4247 = vld [vmem:[%s4233 + $0x68] sm:$0xff]
    %v4248 = vld [vmem:[%s4233 + $0x70] sm:$0xff]
    %v4249 = vld [vmem:[%s4233 + $0x78] sm:$0xff]
    %v4250 = vld [vmem:[%s4233 + $0x80] sm:$0xff]
    %v4251 = vld [vmem:[%s4233 + $0x88] sm:$0xff]
    %v4252 = vld [vmem:[%s4233 + $0x90] sm:$0xff]
    %v4253 = vld [vmem:[%s4233 + $0x98] sm:$0xff]
    %v4254 = vld [vmem:[%s4233 + $0xa0] sm:$0xff]
    %v4255 = vld [vmem:[%s4233 + $0xa8] sm:$0xff]
    %v4256 = vld [vmem:[%s4233 + $0xb0] sm:$0xff]
    %v4257 = vld [vmem:[%s4233 + $0xb8] sm:$0xff]
    %v4258 = vld [vmem:[%s4233 + $0xc0] sm:$0xff]
    %v4259 = vld [vmem:[%s4233 + $0xc8] sm:$0xff]
    %v4260 = vld [vmem:[%s4233 + $0xd0] sm:$0xff]
    %v4261 = vld [vmem:[%s4233 + $0xd8] sm:$0xff]
    %v4262 = vld [vmem:[%s4233 + $0xe0] sm:$0xff]
    %v4263 = vld [vmem:[%s4233 + $0xe8] sm:$0xff]
    %v4264 = vld [vmem:[%s4233 + $0xf0] sm:$0xff]
    %v4265 = vld [vmem:[%s4233 + $0xf8] sm:$0xff]
    %v4266 = vld [vmem:[%s4233 + $0x100] sm:$0xff]
    %v4267 = vld [vmem:[%s4233 + $0x108] sm:$0xff]
    %v4268 = vld [vmem:[%s4233 + $0x110] sm:$0xff]
    %v4269 = vld [vmem:[%s4233 + $0x118] sm:$0xff]
    %v4270 = vld [vmem:[%s4233 + $0x120] sm:$0xff]
    %v4271 = vld [vmem:[%s4233 + $0x128] sm:$0xff]
    %v4272 = vld [vmem:[%s4233 + $0x130] sm:$0xff]
    %v4273 = vld [vmem:[%s4233 + $0x138] sm:$0xff]
    %v4274 = vld [vmem:[%s4233 + $0x140] sm:$0xff]
    %v4275 = vld [vmem:[%s4233 + $0x148] sm:$0xff]
    %v4276 = vld [vmem:[%s4233 + $0x150] sm:$0xff]
    %v4277 = vld [vmem:[%s4233 + $0x158] sm:$0xff]
    %v4278 = vld [vmem:[%s4233 + $0x160] sm:$0xff]
    %v4279 = vld [vmem:[%s4233 + $0x168] sm:$0xff]
    %v4280 = vld [vmem:[%s4233 + $0x170] sm:$0xff]
    %v4281 = vld [vmem:[%s4233 + $0x178] sm:$0xff]
    %v4282 = vld [vmem:[%s4233 + $0x180] sm:$0xff]
    %v4283 = vld [vmem:[%s4233 + $0x188] sm:$0xff]
    %v4284 = vld [vmem:[%s4233 + $0x190] sm:$0xff]
    %v4285 = vld [vmem:[%s4233 + $0x198] sm:$0xff]
    %v4286 = vld [vmem:[%s4233 + $0x1a0] sm:$0xff]
    %v4287 = vld [vmem:[%s4233 + $0x1a8] sm:$0xff]
    %v4288 = vld [vmem:[%s4233 + $0x1b0] sm:$0xff]
    %v4289 = vld [vmem:[%s4233 + $0x1b8] sm:$0xff]
    %v4290 = vld [vmem:[%s4233 + $0x1c0] sm:$0xff]
    %v4291 = vld [vmem:[%s4233 + $0x1c8] sm:$0xff]
    %v4292 = vld [vmem:[%s4233 + $0x1d0] sm:$0xff]
    %v4293 = vld [vmem:[%s4233 + $0x1d8] sm:$0xff]
    %v4294 = vld [vmem:[%s4233 + $0x1e0] sm:$0xff]
    %v4295 = vld [vmem:[%s4233 + $0x1e8] sm:$0xff]
    %v4296 = vld [vmem:[%s4233 + $0x1f0] sm:$0xff]
    %v4297 = vld [vmem:[%s4233 + $0x1f8] sm:$0xff]
    %s4298 = scalar_lea.vmem [#allocation9], 2
    %v4299 = vld [vmem:[%s4298] ss:$4 sm:$0xf]
    %v4301 = vlaneseq
    %v4302 = vshrl.u32 %v4301, 7
    %v4303 = vsub.s32 0, %v4302
    %v4304 = vrot.slane %v4299, %v4303
    %v4305 = vlaneseq
    %v4306 = vshrl.u32 %v4305, 7
    %v4307 = vsub.s32 1, %v4306
    %v4308 = vrot.slane %v4299, %v4307
    %v4309 = vlaneseq
    %v4310 = vshrl.u32 %v4309, 7
    %v4311 = vsub.s32 2, %v4310
    %v4312 = vrot.slane %v4299, %v4311
    %v4313 = vlaneseq
    %v4314 = vshrl.u32 %v4313, 7
    %v4315 = vsub.s32 3, %v4314
    %v4316 = vrot.slane %v4299, %v4315
    %4321 = vmatprep.subr.mxu0 %v4235
    %4322 = vmatpush1.msra.mxu0 %v4234
    %4323 = vmatprep.subr.mxu0 %v4239
    %4324 = vmatpush1.msra.mxu0 %v4238
    %4325 = vmatprep.subr.mxu0 %v4243
    %4326 = vmatpush1.msra.mxu0 %v4242
    %4327 = vmatprep.subr.mxu0 %v4247
    %4328 = vmatpush1.msra.mxu0 %v4246
    %4329 = vmatprep.subr.mxu0 %v4251
    %4330 = vmatpush1.msra.mxu0 %v4250
    %4331 = vmatprep.subr.mxu0 %v4255
    %4332 = vmatpush1.msra.mxu0 %v4254
    %4333 = vmatprep.subr.mxu0 %v4259
    %4334 = vmatpush1.msra.mxu0 %v4258
    %4335 = vmatprep.subr.mxu0 %v4263
    %4336 = vmatpush1.msra.mxu0 %v4262
    %4337 = vmatprep.subr.mxu0 %v4267
    %4338 = vmatpush1.msra.mxu0 %v4266
    %4339 = vmatprep.subr.mxu0 %v4271
    %4340 = vmatpush1.msra.mxu0 %v4270
    %4341 = vmatprep.subr.mxu0 %v4275
    %4342 = vmatpush1.msra.mxu0 %v4274
    %4343 = vmatprep.subr.mxu0 %v4279
    %4344 = vmatpush1.msra.mxu0 %v4278
    %4345 = vmatprep.subr.mxu0 %v4283
    %4346 = vmatpush1.msra.mxu0 %v4282
    %4347 = vmatprep.subr.mxu0 %v4287
    %4348 = vmatpush1.msra.mxu0 %v4286
    %4349 = vmatprep.subr.mxu0 %v4291
    %4350 = vmatpush1.msra.mxu0 %v4290
    %4351 = vmatprep.subr.mxu0 %v4295
    %4352 = vmatpush1.msra.mxu0 %v4294
    %4353 = vmatprep.subr.mxu0 0.0
    %4354 = vmatpush1.msra.mxu0 0.0
    %4355 = vmatprep.subr.mxu0 0.0
    %4356 = vmatpush1.msra.mxu0 0.0
    %4357 = vmatprep.subr.mxu0 0.0
    %4358 = vmatpush1.msra.mxu0 0.0
    %4359 = vmatprep.subr.mxu0 0.0
    %4360 = vmatpush1.msra.mxu0 0.0
    %4361 = vmatprep.subr.mxu0 0.0
    %4362 = vmatpush1.msra.mxu0 0.0
    %4363 = vmatprep.subr.mxu0 0.0
    %4364 = vmatpush1.msra.mxu0 0.0
    %4365 = vmatprep.subr.mxu0 0.0
    %4366 = vmatpush1.msra.mxu0 0.0
    %4367 = vmatprep.subr.mxu0 0.0
    %4368 = vmatpush1.msra.mxu0 0.0
    %4369 = vmatprep.subr.mxu0 0.0
    %4370 = vmatpush1.msra.mxu0 0.0
    %4371 = vmatprep.subr.mxu0 0.0
    %4372 = vmatpush1.msra.mxu0 0.0
    %4373 = vmatprep.subr.mxu0 0.0
    %4374 = vmatpush1.msra.mxu0 0.0
    %4375 = vmatprep.subr.mxu0 0.0
    %4376 = vmatpush1.msra.mxu0 0.0
    %4377 = vmatprep.subr.mxu0 0.0
    %4378 = vmatpush1.msra.mxu0 0.0
    %4379 = vmatprep.subr.mxu0 0.0
    %4380 = vmatpush1.msra.mxu0 0.0
    %4381 = vmatprep.subr.mxu0 0.0
    %4382 = vmatpush1.msra.mxu0 0.0
    %4383 = vmatprep.subr.mxu0 0.0
    %4384 = vmatpush1.msra.mxu0 0.0
    %4385 = vmatprep.mubr.f32.mxu0 0.0
    %4386 = vmatmul.mubr.f32.gmra.mrb[0].mxu0 %v2977
    %v4387 = vpop.f32.mrb[0].mxu0
    %v4388 = vadd.f32 %v4304, %v4387
    %v4389 = vpop.f32.mrb[0].mxu0
    %v4390 = vadd.f32 %v4308, %v4389
    %4391 = vmatprep.mubr.f32.mxu0 0.0
    %4392 = vmatmul.mubr.f32.gmra.mrb[0].mxu0 %v3147
    %v4393 = vpop.f32.mrb[0].mxu0
    %v4394 = vadd.f32 %v4304, %v4393
    %v4395 = vpop.f32.mrb[0].mxu0
    %v4396 = vadd.f32 %v4308, %v4395
    %4397 = vmatprep.mubr.f32.mxu0 0.0
    %4398 = vmatmul.mubr.f32.gmra.mrb[0].mxu0 %v3317
    %v4399 = vpop.f32.mrb[0].mxu0
    %v4400 = vadd.f32 %v4304, %v4399
    %v4401 = vpop.f32.mrb[0].mxu0
    %v4402 = vadd.f32 %v4308, %v4401
    %4403 = vmatprep.mubr.f32.mxu0 0.0
    %4404 = vmatmul.mubr.f32.gmra.mrb[0].mxu0 %v3487
    %v4405 = vpop.f32.mrb[0].mxu0
    %v4406 = vadd.f32 %v4304, %v4405
    %v4407 = vpop.f32.mrb[0].mxu0
    %v4408 = vadd.f32 %v4308, %v4407
    %4409 = vmatprep.mubr.f32.mxu0 0.0
    %4410 = vmatmul.mubr.f32.gmra.mrb[0].mxu0 %v3657
    %v4411 = vpop.f32.mrb[0].mxu0
    %v4412 = vadd.f32 %v4304, %v4411
    %v4413 = vpop.f32.mrb[0].mxu0
    %v4414 = vadd.f32 %v4308, %v4413
    %4415 = vmatprep.mubr.f32.mxu0 0.0
    %4416 = vmatmul.mubr.f32.gmra.mrb[0].mxu0 %v3827
    %v4417 = vpop.f32.mrb[0].mxu0
    %v4418 = vadd.f32 %v4304, %v4417
    %v4419 = vpop.f32.mrb[0].mxu0
    %v4420 = vadd.f32 %v4308, %v4419
    %4421 = vmatprep.mubr.f32.mxu0 0.0
    %4422 = vmatmul.mubr.f32.gmra.mrb[0].mxu0 %v3997
    %v4423 = vpop.f32.mrb[0].mxu0
    %v4424 = vadd.f32 %v4304, %v4423
    %v4425 = vpop.f32.mrb[0].mxu0
    %v4426 = vadd.f32 %v4308, %v4425
    %4427 = vmatprep.mubr.f32.mxu0 0.0
    %4428 = vmatmul.mubr.f32.gmra.mrb[0].mxu0 %v4167
    %v4429 = vpop.f32.mrb[0].mxu0
    %v4430 = vadd.f32 %v4304, %v4429
    %v4431 = vpop.f32.mrb[0].mxu0
    %v4432 = vadd.f32 %v4308, %v4431
    %4433 = vdwg.mxu0
    %4434 = vmatprep.subr.mxu0 %v4237
    %4435 = vmatpush1.msra.mxu0 %v4236
    %4436 = vmatprep.subr.mxu0 %v4241
    %4437 = vmatpush1.msra.mxu0 %v4240
    %4438 = vmatprep.subr.mxu0 %v4245
    %4439 = vmatpush1.msra.mxu0 %v4244
    %4440 = vmatprep.subr.mxu0 %v4249
    %4441 = vmatpush1.msra.mxu0 %v4248
    %4442 = vmatprep.subr.mxu0 %v4253
    %4443 = vmatpush1.msra.mxu0 %v4252
    %4444 = vmatprep.subr.mxu0 %v4257
    %4445 = vmatpush1.msra.mxu0 %v4256
    %4446 = vmatprep.subr.mxu0 %v4261
    %4447 = vmatpush1.msra.mxu0 %v4260
    %4448 = vmatprep.subr.mxu0 %v4265
    %4449 = vmatpush1.msra.mxu0 %v4264
    %4450 = vmatprep.subr.mxu0 %v4269
    %4451 = vmatpush1.msra.mxu0 %v4268
    %4452 = vmatprep.subr.mxu0 %v4273
    %4453 = vmatpush1.msra.mxu0 %v4272
    %4454 = vmatprep.subr.mxu0 %v4277
    %4455 = vmatpush1.msra.mxu0 %v4276
    %4456 = vmatprep.subr.mxu0 %v4281
    %4457 = vmatpush1.msra.mxu0 %v4280
    %4458 = vmatprep.subr.mxu0 %v4285
    %4459 = vmatpush1.msra.mxu0 %v4284
    %4460 = vmatprep.subr.mxu0 %v4289
    %4461 = vmatpush1.msra.mxu0 %v4288
    %4462 = vmatprep.subr.mxu0 %v4293
    %4463 = vmatpush1.msra.mxu0 %v4292
    %4464 = vmatprep.subr.mxu0 %v4297
    %4465 = vmatpush1.msra.mxu0 %v4296
    %4466 = vmatprep.subr.mxu0 0.0
    %4467 = vmatpush1.msra.mxu0 0.0
    %4468 = vmatprep.subr.mxu0 0.0
    %4469 = vmatpush1.msra.mxu0 0.0
    %4470 = vmatprep.subr.mxu0 0.0
    %4471 = vmatpush1.msra.mxu0 0.0
    %4472 = vmatprep.subr.mxu0 0.0
    %4473 = vmatpush1.msra.mxu0 0.0
    %4474 = vmatprep.subr.mxu0 0.0
    %4475 = vmatpush1.msra.mxu0 0.0
    %4476 = vmatprep.subr.mxu0 0.0
    %4477 = vmatpush1.msra.mxu0 0.0
    %4478 = vmatprep.subr.mxu0 0.0
    %4479 = vmatpush1.msra.mxu0 0.0
    %4480 = vmatprep.subr.mxu0 0.0
    %4481 = vmatpush1.msra.mxu0 0.0
    %4482 = vmatprep.subr.mxu0 0.0
    %4483 = vmatpush1.msra.mxu0 0.0
    %4484 = vmatprep.subr.mxu0 0.0
    %4485 = vmatpush1.msra.mxu0 0.0
    %4486 = vmatprep.subr.mxu0 0.0
    %4487 = vmatpush1.msra.mxu0 0.0
    %4488 = vmatprep.subr.mxu0 0.0
    %4489 = vmatpush1.msra.mxu0 0.0
    %4490 = vmatprep.subr.mxu0 0.0
    %4491 = vmatpush1.msra.mxu0 0.0
    %4492 = vmatprep.subr.mxu0 0.0
    %4493 = vmatpush1.msra.mxu0 0.0
    %4494 = vmatprep.subr.mxu0 0.0
    %4495 = vmatpush1.msra.mxu0 0.0
    %4496 = vmatprep.subr.mxu0 0.0
    %4497 = vmatpush1.msra.mxu0 0.0
    %4498 = vmatprep.mubr.f32.mxu0 0.0
    %4499 = vmatmul.mubr.f32.gmra.mrb[0].mxu0 %v2977
    %v4500 = vpop.f32.mrb[0].mxu0
    %v4501 = vadd.f32 %v4312, %v4500
    %v4502 = vpop.f32.mrb[0].mxu0
    %v4503 = vadd.f32 %v4316, %v4502
    %4504 = vmatprep.mubr.f32.mxu0 0.0
    %4505 = vmatmul.mubr.f32.gmra.mrb[0].mxu0 %v3147
    %v4506 = vpop.f32.mrb[0].mxu0
    %v4507 = vadd.f32 %v4312, %v4506
    %v4508 = vpop.f32.mrb[0].mxu0
    %v4509 = vadd.f32 %v4316, %v4508
    %4510 = vmatprep.mubr.f32.mxu0 0.0
    %4511 = vmatmul.mubr.f32.gmra.mrb[0].mxu0 %v3317
    %v4512 = vpop.f32.mrb[0].mxu0
    %v4513 = vadd.f32 %v4312, %v4512
    %v4514 = vpop.f32.mrb[0].mxu0
    %v4515 = vadd.f32 %v4316, %v4514
    %4516 = vmatprep.mubr.f32.mxu0 0.0
    %4517 = vmatmul.mubr.f32.gmra.mrb[0].mxu0 %v3487
    %v4518 = vpop.f32.mrb[0].mxu0
    %v4519 = vadd.f32 %v4312, %v4518
    %v4520 = vpop.f32.mrb[0].mxu0
    %v4521 = vadd.f32 %v4316, %v4520
    %4522 = vmatprep.mubr.f32.mxu0 0.0
    %4523 = vmatmul.mubr.f32.gmra.mrb[0].mxu0 %v3657
    %v4524 = vpop.f32.mrb[0].mxu0
    %v4525 = vadd.f32 %v4312, %v4524
    %v4526 = vpop.f32.mrb[0].mxu0
    %v4527 = vadd.f32 %v4316, %v4526
    %4528 = vmatprep.mubr.f32.mxu0 0.0
    %4529 = vmatmul.mubr.f32.gmra.mrb[0].mxu0 %v3827
    %v4530 = vpop.f32.mrb[0].mxu0
    %v4531 = vadd.f32 %v4312, %v4530
    %v4532 = vpop.f32.mrb[0].mxu0
    %v4533 = vadd.f32 %v4316, %v4532
    %4534 = vmatprep.mubr.f32.mxu0 0.0
    %4535 = vmatmul.mubr.f32.gmra.mrb[0].mxu0 %v3997
    %v4536 = vpop.f32.mrb[0].mxu0
    %v4537 = vadd.f32 %v4312, %v4536
    %v4538 = vpop.f32.mrb[0].mxu0
    %v4539 = vadd.f32 %v4316, %v4538
    %4540 = vmatprep.mubr.f32.mxu0 0.0
    %4541 = vmatmul.mubr.f32.gmra.mrb[0].mxu0 %v4167
    %v4542 = vpop.f32.mrb[0].mxu0
    %v4543 = vadd.f32 %v4312, %v4542
    %v4544 = vpop.f32.mrb[0].mxu0
    %v4545 = vadd.f32 %v4316, %v4544
    %4546 = vdwg.mxu0
    %4547 = vmatprep.subr.mxu0 %v4170
    %4548 = vmatpush1.msra.mxu0 %v4169
    %4549 = vmatprep.subr.mxu0 %v4174
    %4550 = vmatpush1.msra.mxu0 %v4173
    %4551 = vmatprep.subr.mxu0 %v4178
    %4552 = vmatpush1.msra.mxu0 %v4177
    %4553 = vmatprep.subr.mxu0 %v4182
    %4554 = vmatpush1.msra.mxu0 %v4181
    %4555 = vmatprep.subr.mxu0 %v4186
    %4556 = vmatpush1.msra.mxu0 %v4185
    %4557 = vmatprep.subr.mxu0 %v4190
    %4558 = vmatpush1.msra.mxu0 %v4189
    %4559 = vmatprep.subr.mxu0 %v4194
    %4560 = vmatpush1.msra.mxu0 %v4193
    %4561 = vmatprep.subr.mxu0 %v4198
    %4562 = vmatpush1.msra.mxu0 %v4197
    %4563 = vmatprep.subr.mxu0 %v4202
    %4564 = vmatpush1.msra.mxu0 %v4201
    %4565 = vmatprep.subr.mxu0 %v4206
    %4566 = vmatpush1.msra.mxu0 %v4205
    %4567 = vmatprep.subr.mxu0 %v4210
    %4568 = vmatpush1.msra.mxu0 %v4209
    %4569 = vmatprep.subr.mxu0 %v4214
    %4570 = vmatpush1.msra.mxu0 %v4213
    %4571 = vmatprep.subr.mxu0 %v4218
    %4572 = vmatpush1.msra.mxu0 %v4217
    %4573 = vmatprep.subr.mxu0 %v4222
    %4574 = vmatpush1.msra.mxu0 %v4221
    %4575 = vmatprep.subr.mxu0 %v4226
    %4576 = vmatpush1.msra.mxu0 %v4225
    %4577 = vmatprep.subr.mxu0 %v4230
    %4578 = vmatpush1.msra.mxu0 %v4229
    %4579 = vmatprep.subr.mxu0 0.0
    %4580 = vmatpush1.msra.mxu0 0.0
    %4581 = vmatprep.subr.mxu0 0.0
    %4582 = vmatpush1.msra.mxu0 0.0
    %4583 = vmatprep.subr.mxu0 0.0
    %4584 = vmatpush1.msra.mxu0 0.0
    %4585 = vmatprep.subr.mxu0 0.0
    %4586 = vmatpush1.msra.mxu0 0.0
    %4587 = vmatprep.subr.mxu0 0.0
    %4588 = vmatpush1.msra.mxu0 0.0
    %4589 = vmatprep.subr.mxu0 0.0
    %4590 = vmatpush1.msra.mxu0 0.0
    %4591 = vmatprep.subr.mxu0 0.0
    %4592 = vmatpush1.msra.mxu0 0.0
    %4593 = vmatprep.subr.mxu0 0.0
    %4594 = vmatpush1.msra.mxu0 0.0
    %4595 = vmatprep.subr.mxu0 0.0
    %4596 = vmatpush1.msra.mxu0 0.0
    %4597 = vmatprep.subr.mxu0 0.0
    %4598 = vmatpush1.msra.mxu0 0.0
    %4599 = vmatprep.subr.mxu0 0.0
    %4600 = vmatpush1.msra.mxu0 0.0
    %4601 = vmatprep.subr.mxu0 0.0
    %4602 = vmatpush1.msra.mxu0 0.0
    %4603 = vmatprep.subr.mxu0 0.0
    %4604 = vmatpush1.msra.mxu0 0.0
    %4605 = vmatprep.subr.mxu0 0.0
    %4606 = vmatpush1.msra.mxu0 0.0
    %4607 = vmatprep.subr.mxu0 0.0
    %4608 = vmatpush1.msra.mxu0 0.0
    %4609 = vmatprep.subr.mxu0 0.0
    %4610 = vmatpush1.msra.mxu0 0.0
    %4611 = vmatprep.mubr.f32.mxu0 0.0
    %4612 = vmatmul.mubr.f32.gmra.mrb[0].mxu0 0.0
    %v4613 = vpop.f32.mrb[0].mxu0
    %v4614 = vadd.f32 0.0, %v4613
    %v4615 = vpop.f32.mrb[0].mxu0
    %v4616 = vadd.f32 0.0, %v4615
    %4617 = vdwg.mxu0
    %4618 = vmatprep.subr.mxu0 %v4172
    %4619 = vmatpush1.msra.mxu0 %v4171
    %4620 = vmatprep.subr.mxu0 %v4176
    %4621 = vmatpush1.msra.mxu0 %v4175
    %4622 = vmatprep.subr.mxu0 %v4180
    %4623 = vmatpush1.msra.mxu0 %v4179
    %4624 = vmatprep.subr.mxu0 %v4184
    %4625 = vmatpush1.msra.mxu0 %v4183
    %4626 = vmatprep.subr.mxu0 %v4188
    %4627 = vmatpush1.msra.mxu0 %v4187
    %4628 = vmatprep.subr.mxu0 %v4192
    %4629 = vmatpush1.msra.mxu0 %v4191
    %4630 = vmatprep.subr.mxu0 %v4196
    %4631 = vmatpush1.msra.mxu0 %v4195
    %4632 = vmatprep.subr.mxu0 %v4200
    %4633 = vmatpush1.msra.mxu0 %v4199
    %4634 = vmatprep.subr.mxu0 %v4204
    %4635 = vmatpush1.msra.mxu0 %v4203
    %4636 = vmatprep.subr.mxu0 %v4208
    %4637 = vmatpush1.msra.mxu0 %v4207
    %4638 = vmatprep.subr.mxu0 %v4212
    %4639 = vmatpush1.msra.mxu0 %v4211
    %4640 = vmatprep.subr.mxu0 %v4216
    %4641 = vmatpush1.msra.mxu0 %v4215
    %4642 = vmatprep.subr.mxu0 %v4220
    %4643 = vmatpush1.msra.mxu0 %v4219
    %4644 = vmatprep.subr.mxu0 %v4224
    %4645 = vmatpush1.msra.mxu0 %v4223
    %4646 = vmatprep.subr.mxu0 %v4228
    %4647 = vmatpush1.msra.mxu0 %v4227
    %4648 = vmatprep.subr.mxu0 %v4232
    %4649 = vmatpush1.msra.mxu0 %v4231
    %4650 = vmatprep.subr.mxu0 0.0
    %4651 = vmatpush1.msra.mxu0 0.0
    %4652 = vmatprep.subr.mxu0 0.0
    %4653 = vmatpush1.msra.mxu0 0.0
    %4654 = vmatprep.subr.mxu0 0.0
    %4655 = vmatpush1.msra.mxu0 0.0
    %4656 = vmatprep.subr.mxu0 0.0
    %4657 = vmatpush1.msra.mxu0 0.0
    %4658 = vmatprep.subr.mxu0 0.0
    %4659 = vmatpush1.msra.mxu0 0.0
    %4660 = vmatprep.subr.mxu0 0.0
    %4661 = vmatpush1.msra.mxu0 0.0
    %4662 = vmatprep.subr.mxu0 0.0
    %4663 = vmatpush1.msra.mxu0 0.0
    %4664 = vmatprep.subr.mxu0 0.0
    %4665 = vmatpush1.msra.mxu0 0.0
    %4666 = vmatprep.subr.mxu0 0.0
    %4667 = vmatpush1.msra.mxu0 0.0
    %4668 = vmatprep.subr.mxu0 0.0
    %4669 = vmatpush1.msra.mxu0 0.0
    %4670 = vmatprep.subr.mxu0 0.0
    %4671 = vmatpush1.msra.mxu0 0.0
    %4672 = vmatprep.subr.mxu0 0.0
    %4673 = vmatpush1.msra.mxu0 0.0
    %4674 = vmatprep.subr.mxu0 0.0
    %4675 = vmatpush1.msra.mxu0 0.0
    %4676 = vmatprep.subr.mxu0 0.0
    %4677 = vmatpush1.msra.mxu0 0.0
    %4678 = vmatprep.subr.mxu0 0.0
    %4679 = vmatpush1.msra.mxu0 0.0
    %4680 = vmatprep.subr.mxu0 0.0
    %4681 = vmatpush1.msra.mxu0 0.0
    %4682 = vmatprep.mubr.f32.mxu0 0.0
    %4683 = vmatmul.mubr.f32.gmra.mrb[0].mxu0 0.0
    %v4684 = vpop.f32.mrb[0].mxu0
    %v4685 = vadd.f32 0.0, %v4684
    %v4686 = vpop.f32.mrb[0].mxu0
    %v4687 = vadd.f32 0.0, %v4686
    %4688 = vdwg.mxu0
    %v4689 = vadd.f32 %v4388, %v4614
    %v4690 = vadd.f32 %v4390, %v4616
    %v4691 = vadd.f32 %v4501, %v4685
    %v4692 = vadd.f32 %v4503, %v4687
    %v4693 = vxor.u32 %v4689, 2147483648
    %v4694 = vmul.f32 %v4693, 1.442695
    %v4695 = vpow.pop %v4694
    %v4696 = vadd.f32 %v4695, 1.0
    %v4697 = vrcp.pop %v4696
    %v4698 = vmul.f32 1.0, %v4697
    %v4699 = vxor.u32 %v4690, 2147483648
    %v4700 = vmul.f32 %v4699, 1.442695
    %v4701 = vpow.pop %v4700
    %v4702 = vadd.f32 %v4701, 1.0
    %v4703 = vrcp.pop %v4702
    %v4704 = vmul.f32 1.0, %v4703
    %v4705 = vtanh.pop %v4691
    %v4706 = vxor.u32 %v4692, 2147483648
    %v4707 = vmul.f32 %v4706, 1.442695
    %v4708 = vpow.pop %v4707
    %v4709 = vadd.f32 %v4708, 1.0
    %v4710 = vrcp.pop %v4709
    %v4711 = vmul.f32 1.0, %v4710
    %v4712 = vmul.f32 %v4704, 0.0
    %v4713 = vmul.f32 %v4698, %v4705
    %v4714 = vadd.f32 %v4712, %v4713
    %v4715 = vtanh.pop %v4714
    %v4716 = vmul.f32 %v4711, %v4715
    %4717 = vmatprep.subr.mxu0 %v4170
    %4718 = vmatpush1.msra.mxu0 %v4169
    %4719 = vmatprep.subr.mxu0 %v4174
    %4720 = vmatpush1.msra.mxu0 %v4173
    %4721 = vmatprep.subr.mxu0 %v4178
    %4722 = vmatpush1.msra.mxu0 %v4177
    %4723 = vmatprep.subr.mxu0 %v4182
    %4724 = vmatpush1.msra.mxu0 %v4181
    %4725 = vmatprep.subr.mxu0 %v4186
    %4726 = vmatpush1.msra.mxu0 %v4185
    %4727 = vmatprep.subr.mxu0 %v4190
    %4728 = vmatpush1.msra.mxu0 %v4189
    %4729 = vmatprep.subr.mxu0 %v4194
    %4730 = vmatpush1.msra.mxu0 %v4193
    %4731 = vmatprep.subr.mxu0 %v4198
    %4732 = vmatpush1.msra.mxu0 %v4197
    %4733 = vmatprep.subr.mxu0 %v4202
    %4734 = vmatpush1.msra.mxu0 %v4201
    %4735 = vmatprep.subr.mxu0 %v4206
    %4736 = vmatpush1.msra.mxu0 %v4205
    %4737 = vmatprep.subr.mxu0 %v4210
    %4738 = vmatpush1.msra.mxu0 %v4209
    %4739 = vmatprep.subr.mxu0 %v4214
    %4740 = vmatpush1.msra.mxu0 %v4213
    %4741 = vmatprep.subr.mxu0 %v4218
    %4742 = vmatpush1.msra.mxu0 %v4217
    %4743 = vmatprep.subr.mxu0 %v4222
    %4744 = vmatpush1.msra.mxu0 %v4221
    %4745 = vmatprep.subr.mxu0 %v4226
    %4746 = vmatpush1.msra.mxu0 %v4225
    %4747 = vmatprep.subr.mxu0 %v4230
    %4748 = vmatpush1.msra.mxu0 %v4229
    %4749 = vmatprep.subr.mxu0 0.0
    %4750 = vmatpush1.msra.mxu0 0.0
    %4751 = vmatprep.subr.mxu0 0.0
    %4752 = vmatpush1.msra.mxu0 0.0
    %4753 = vmatprep.subr.mxu0 0.0
    %4754 = vmatpush1.msra.mxu0 0.0
    %4755 = vmatprep.subr.mxu0 0.0
    %4756 = vmatpush1.msra.mxu0 0.0
    %4757 = vmatprep.subr.mxu0 0.0
    %4758 = vmatpush1.msra.mxu0 0.0
    %4759 = vmatprep.subr.mxu0 0.0
    %4760 = vmatpush1.msra.mxu0 0.0
    %4761 = vmatprep.subr.mxu0 0.0
    %4762 = vmatpush1.msra.mxu0 0.0
    %4763 = vmatprep.subr.mxu0 0.0
    %4764 = vmatpush1.msra.mxu0 0.0
    %4765 = vmatprep.subr.mxu0 0.0
    %4766 = vmatpush1.msra.mxu0 0.0
    %4767 = vmatprep.subr.mxu0 0.0
    %4768 = vmatpush1.msra.mxu0 0.0
    %4769 = vmatprep.subr.mxu0 0.0
    %4770 = vmatpush1.msra.mxu0 0.0
    %4771 = vmatprep.subr.mxu0 0.0
    %4772 = vmatpush1.msra.mxu0 0.0
    %4773 = vmatprep.subr.mxu0 0.0
    %4774 = vmatpush1.msra.mxu0 0.0
    %4775 = vmatprep.subr.mxu0 0.0
    %4776 = vmatpush1.msra.mxu0 0.0
    %4777 = vmatprep.subr.mxu0 0.0
    %4778 = vmatpush1.msra.mxu0 0.0
    %4779 = vmatprep.subr.mxu0 0.0
    %4780 = vmatpush1.msra.mxu0 0.0
    %4781 = vmatprep.mubr.f32.mxu0 0.0
    %4782 = vmatmul.mubr.f32.gmra.mrb[0].mxu0 %v4716
    %v4783 = vpop.f32.mrb[0].mxu0
    %v4784 = vadd.f32 0.0, %v4783
    %v4785 = vpop.f32.mrb[0].mxu0
    %v4786 = vadd.f32 0.0, %v4785
    %4787 = vdwg.mxu0
    %4788 = vmatprep.subr.mxu0 %v4172
    %4789 = vmatpush1.msra.mxu0 %v4171
    %4790 = vmatprep.subr.mxu0 %v4176
    %4791 = vmatpush1.msra.mxu0 %v4175
    %4792 = vmatprep.subr.mxu0 %v4180
    %4793 = vmatpush1.msra.mxu0 %v4179
    %4794 = vmatprep.subr.mxu0 %v4184
    %4795 = vmatpush1.msra.mxu0 %v4183
    %4796 = vmatprep.subr.mxu0 %v4188
    %4797 = vmatpush1.msra.mxu0 %v4187
    %4798 = vmatprep.subr.mxu0 %v4192
    %4799 = vmatpush1.msra.mxu0 %v4191
    %4800 = vmatprep.subr.mxu0 %v4196
    %4801 = vmatpush1.msra.mxu0 %v4195
    %4802 = vmatprep.subr.mxu0 %v4200
    %4803 = vmatpush1.msra.mxu0 %v4199
    %4804 = vmatprep.subr.mxu0 %v4204
    %4805 = vmatpush1.msra.mxu0 %v4203
    %4806 = vmatprep.subr.mxu0 %v4208
    %4807 = vmatpush1.msra.mxu0 %v4207
    %4808 = vmatprep.subr.mxu0 %v4212
    %4809 = vmatpush1.msra.mxu0 %v4211
    %4810 = vmatprep.subr.mxu0 %v4216
    %4811 = vmatpush1.msra.mxu0 %v4215
    %4812 = vmatprep.subr.mxu0 %v4220
    %4813 = vmatpush1.msra.mxu0 %v4219
    %4814 = vmatprep.subr.mxu0 %v4224
    %4815 = vmatpush1.msra.mxu0 %v4223
    %4816 = vmatprep.subr.mxu0 %v4228
    %4817 = vmatpush1.msra.mxu0 %v4227
    %4818 = vmatprep.subr.mxu0 %v4232
    %4819 = vmatpush1.msra.mxu0 %v4231
    %4820 = vmatprep.subr.mxu0 0.0
    %4821 = vmatpush1.msra.mxu0 0.0
    %4822 = vmatprep.subr.mxu0 0.0
    %4823 = vmatpush1.msra.mxu0 0.0
    %4824 = vmatprep.subr.mxu0 0.0
    %4825 = vmatpush1.msra.mxu0 0.0
    %4826 = vmatprep.subr.mxu0 0.0
    %4827 = vmatpush1.msra.mxu0 0.0
    %4828 = vmatprep.subr.mxu0 0.0
    %4829 = vmatpush1.msra.mxu0 0.0
    %4830 = vmatprep.subr.mxu0 0.0
    %4831 = vmatpush1.msra.mxu0 0.0
    %4832 = vmatprep.subr.mxu0 0.0
    %4833 = vmatpush1.msra.mxu0 0.0
    %4834 = vmatprep.subr.mxu0 0.0
    %4835 = vmatpush1.msra.mxu0 0.0
    %4836 = vmatprep.subr.mxu0 0.0
    %4837 = vmatpush1.msra.mxu0 0.0
    %4838 = vmatprep.subr.mxu0 0.0
    %4839 = vmatpush1.msra.mxu0 0.0
    %4840 = vmatprep.subr.mxu0 0.0
    %4841 = vmatpush1.msra.mxu0 0.0
    %4842 = vmatprep.subr.mxu0 0.0
    %4843 = vmatpush1.msra.mxu0 0.0
    %4844 = vmatprep.subr.mxu0 0.0
    %4845 = vmatpush1.msra.mxu0 0.0
    %4846 = vmatprep.subr.mxu0 0.0
    %4847 = vmatpush1.msra.mxu0 0.0
    %4848 = vmatprep.subr.mxu0 0.0
    %4849 = vmatpush1.msra.mxu0 0.0
    %4850 = vmatprep.subr.mxu0 0.0
    %4851 = vmatpush1.msra.mxu0 0.0
    %4852 = vmatprep.mubr.f32.mxu0 0.0
    %4853 = vmatmul.mubr.f32.gmra.mrb[0].mxu0 %v4716
    %v4854 = vpop.f32.mrb[0].mxu0
    %v4855 = vadd.f32 0.0, %v4854
    %v4856 = vpop.f32.mrb[0].mxu0
    %v4857 = vadd.f32 0.0, %v4856
    %4858 = vdwg.mxu0
    %v4859 = vadd.f32 %v4394, %v4784
    %v4860 = vadd.f32 %v4396, %v4786
    %v4861 = vadd.f32 %v4507, %v4855
    %v4862 = vadd.f32 %v4509, %v4857
    %v4863 = vxor.u32 %v4859, 2147483648
    %v4864 = vmul.f32 %v4863, 1.442695
    %v4865 = vpow.pop %v4864
    %v4866 = vadd.f32 %v4865, 1.0
    %v4867 = vrcp.pop %v4866
    %v4868 = vmul.f32 1.0, %v4867
    %v4869 = vxor.u32 %v4860, 2147483648
    %v4870 = vmul.f32 %v4869, 1.442695
    %v4871 = vpow.pop %v4870
    %v4872 = vadd.f32 %v4871, 1.0
    %v4873 = vrcp.pop %v4872
    %v4874 = vmul.f32 1.0, %v4873
    %v4875 = vtanh.pop %v4861
    %v4876 = vxor.u32 %v4862, 2147483648
    %v4877 = vmul.f32 %v4876, 1.442695
    %v4878 = vpow.pop %v4877
    %v4879 = vadd.f32 %v4878, 1.0
    %v4880 = vrcp.pop %v4879
    %v4881 = vmul.f32 1.0, %v4880
    %v4882 = vmul.f32 %v4874, %v4714
    %v4883 = vmul.f32 %v4868, %v4875
    %v4884 = vadd.f32 %v4882, %v4883
    %v4885 = vtanh.pop %v4884
    %v4886 = vmul.f32 %v4881, %v4885
    %4887 = vmatprep.subr.mxu0 %v4170
    %4888 = vmatpush1.msra.mxu0 %v4169
    %4889 = vmatprep.subr.mxu0 %v4174
    %4890 = vmatpush1.msra.mxu0 %v4173
    %4891 = vmatprep.subr.mxu0 %v4178
    %4892 = vmatpush1.msra.mxu0 %v4177
    %4893 = vmatprep.subr.mxu0 %v4182
    %4894 = vmatpush1.msra.mxu0 %v4181
    %4895 = vmatprep.subr.mxu0 %v4186
    %4896 = vmatpush1.msra.mxu0 %v4185
    %4897 = vmatprep.subr.mxu0 %v4190
    %4898 = vmatpush1.msra.mxu0 %v4189
    %4899 = vmatprep.subr.mxu0 %v4194
    %4900 = vmatpush1.msra.mxu0 %v4193
    %4901 = vmatprep.subr.mxu0 %v4198
    %4902 = vmatpush1.msra.mxu0 %v4197
    %4903 = vmatprep.subr.mxu0 %v4202
    %4904 = vmatpush1.msra.mxu0 %v4201
    %4905 = vmatprep.subr.mxu0 %v4206
    %4906 = vmatpush1.msra.mxu0 %v4205
    %4907 = vmatprep.subr.mxu0 %v4210
    %4908 = vmatpush1.msra.mxu0 %v4209
    %4909 = vmatprep.subr.mxu0 %v4214
    %4910 = vmatpush1.msra.mxu0 %v4213
    %4911 = vmatprep.subr.mxu0 %v4218
    %4912 = vmatpush1.msra.mxu0 %v4217
    %4913 = vmatprep.subr.mxu0 %v4222
    %4914 = vmatpush1.msra.mxu0 %v4221
    %4915 = vmatprep.subr.mxu0 %v4226
    %4916 = vmatpush1.msra.mxu0 %v4225
    %4917 = vmatprep.subr.mxu0 %v4230
    %4918 = vmatpush1.msra.mxu0 %v4229
    %4919 = vmatprep.subr.mxu0 0.0
    %4920 = vmatpush1.msra.mxu0 0.0
    %4921 = vmatprep.subr.mxu0 0.0
    %4922 = vmatpush1.msra.mxu0 0.0
    %4923 = vmatprep.subr.mxu0 0.0
    %4924 = vmatpush1.msra.mxu0 0.0
    %4925 = vmatprep.subr.mxu0 0.0
    %4926 = vmatpush1.msra.mxu0 0.0
    %4927 = vmatprep.subr.mxu0 0.0
    %4928 = vmatpush1.msra.mxu0 0.0
    %4929 = vmatprep.subr.mxu0 0.0
    %4930 = vmatpush1.msra.mxu0 0.0
    %4931 = vmatprep.subr.mxu0 0.0
    %4932 = vmatpush1.msra.mxu0 0.0
    %4933 = vmatprep.subr.mxu0 0.0
    %4934 = vmatpush1.msra.mxu0 0.0
    %4935 = vmatprep.subr.mxu0 0.0
    %4936 = vmatpush1.msra.mxu0 0.0
    %4937 = vmatprep.subr.mxu0 0.0
    %4938 = vmatpush1.msra.mxu0 0.0
    %4939 = vmatprep.subr.mxu0 0.0
    %4940 = vmatpush1.msra.mxu0 0.0
    %4941 = vmatprep.subr.mxu0 0.0
    %4942 = vmatpush1.msra.mxu0 0.0
    %4943 = vmatprep.subr.mxu0 0.0
    %4944 = vmatpush1.msra.mxu0 0.0
    %4945 = vmatprep.subr.mxu0 0.0
    %4946 = vmatpush1.msra.mxu0 0.0
    %4947 = vmatprep.subr.mxu0 0.0
    %4948 = vmatpush1.msra.mxu0 0.0
    %4949 = vmatprep.subr.mxu0 0.0
    %4950 = vmatpush1.msra.mxu0 0.0
    %4951 = vmatprep.mubr.f32.mxu0 0.0
    %4952 = vmatmul.mubr.f32.gmra.mrb[0].mxu0 %v4886
    %v4953 = vpop.f32.mrb[0].mxu0
    %v4954 = vadd.f32 0.0, %v4953
    %v4955 = vpop.f32.mrb[0].mxu0
    %v4956 = vadd.f32 0.0, %v4955
    %4957 = vdwg.mxu0
    %4958 = vmatprep.subr.mxu0 %v4172
    %4959 = vmatpush1.msra.mxu0 %v4171
    %4960 = vmatprep.subr.mxu0 %v4176
    %4961 = vmatpush1.msra.mxu0 %v4175
    %4962 = vmatprep.subr.mxu0 %v4180
    %4963 = vmatpush1.msra.mxu0 %v4179
    %4964 = vmatprep.subr.mxu0 %v4184
    %4965 = vmatpush1.msra.mxu0 %v4183
    %4966 = vmatprep.subr.mxu0 %v4188
    %4967 = vmatpush1.msra.mxu0 %v4187
    %4968 = vmatprep.subr.mxu0 %v4192
    %4969 = vmatpush1.msra.mxu0 %v4191
    %4970 = vmatprep.subr.mxu0 %v4196
    %4971 = vmatpush1.msra.mxu0 %v4195
    %4972 = vmatprep.subr.mxu0 %v4200
    %4973 = vmatpush1.msra.mxu0 %v4199
    %4974 = vmatprep.subr.mxu0 %v4204
    %4975 = vmatpush1.msra.mxu0 %v4203
    %4976 = vmatprep.subr.mxu0 %v4208
    %4977 = vmatpush1.msra.mxu0 %v4207
    %4978 = vmatprep.subr.mxu0 %v4212
    %4979 = vmatpush1.msra.mxu0 %v4211
    %4980 = vmatprep.subr.mxu0 %v4216
    %4981 = vmatpush1.msra.mxu0 %v4215
    %4982 = vmatprep.subr.mxu0 %v4220
    %4983 = vmatpush1.msra.mxu0 %v4219
    %4984 = vmatprep.subr.mxu0 %v4224
    %4985 = vmatpush1.msra.mxu0 %v4223
    %4986 = vmatprep.subr.mxu0 %v4228
    %4987 = vmatpush1.msra.mxu0 %v4227
    %4988 = vmatprep.subr.mxu0 %v4232
    %4989 = vmatpush1.msra.mxu0 %v4231
    %4990 = vmatprep.subr.mxu0 0.0
    %4991 = vmatpush1.msra.mxu0 0.0
    %4992 = vmatprep.subr.mxu0 0.0
    %4993 = vmatpush1.msra.mxu0 0.0
    %4994 = vmatprep.subr.mxu0 0.0
    %4995 = vmatpush1.msra.mxu0 0.0
    %4996 = vmatprep.subr.mxu0 0.0
    %4997 = vmatpush1.msra.mxu0 0.0
    %4998 = vmatprep.subr.mxu0 0.0
    %4999 = vmatpush1.msra.mxu0 0.0
    %5000 = vmatprep.subr.mxu0 0.0
    %5001 = vmatpush1.msra.mxu0 0.0
    %5002 = vmatprep.subr.mxu0 0.0
    %5003 = vmatpush1.msra.mxu0 0.0
    %5004 = vmatprep.subr.mxu0 0.0
    %5005 = vmatpush1.msra.mxu0 0.0
    %5006 = vmatprep.subr.mxu0 0.0
    %5007 = vmatpush1.msra.mxu0 0.0
    %5008 = vmatprep.subr.mxu0 0.0
    %5009 = vmatpush1.msra.mxu0 0.0
    %5010 = vmatprep.subr.mxu0 0.0
    %5011 = vmatpush1.msra.mxu0 0.0
    %5012 = vmatprep.subr.mxu0 0.0
    %5013 = vmatpush1.msra.mxu0 0.0
    %5014 = vmatprep.subr.mxu0 0.0
    %5015 = vmatpush1.msra.mxu0 0.0
    %5016 = vmatprep.subr.mxu0 0.0
    %5017 = vmatpush1.msra.mxu0 0.0
    %5018 = vmatprep.subr.mxu0 0.0
    %5019 = vmatpush1.msra.mxu0 0.0
    %5020 = vmatprep.subr.mxu0 0.0
    %5021 = vmatpush1.msra.mxu0 0.0
    %5022 = vmatprep.mubr.f32.mxu0 0.0
    %5023 = vmatmul.mubr.f32.gmra.mrb[0].mxu0 %v4886
    %v5024 = vpop.f32.mrb[0].mxu0
    %v5025 = vadd.f32 0.0, %v5024
    %v5026 = vpop.f32.mrb[0].mxu0
    %v5027 = vadd.f32 0.0, %v5026
    %5028 = vdwg.mxu0
    %v5029 = vadd.f32 %v4400, %v4954
    %v5030 = vadd.f32 %v4402, %v4956
    %v5031 = vadd.f32 %v4513, %v5025
    %v5032 = vadd.f32 %v4515, %v5027
    %v5033 = vxor.u32 %v5029, 2147483648
    %v5034 = vmul.f32 %v5033, 1.442695
    %v5035 = vpow.pop %v5034
    %v5036 = vadd.f32 %v5035, 1.0
    %v5037 = vrcp.pop %v5036
    %v5038 = vmul.f32 1.0, %v5037
    %v5039 = vxor.u32 %v5030, 2147483648
    %v5040 = vmul.f32 %v5039, 1.442695
    %v5041 = vpow.pop %v5040
    %v5042 = vadd.f32 %v5041, 1.0
    %v5043 = vrcp.pop %v5042
    %v5044 = vmul.f32 1.0, %v5043
    %v5045 = vtanh.pop %v5031
    %v5046 = vxor.u32 %v5032, 2147483648
    %v5047 = vmul.f32 %v5046, 1.442695
    %v5048 = vpow.pop %v5047
    %v5049 = vadd.f32 %v5048, 1.0
    %v5050 = vrcp.pop %v5049
    %v5051 = vmul.f32 1.0, %v5050
    %v5052 = vmul.f32 %v5044, %v4884
    %v5053 = vmul.f32 %v5038, %v5045
    %v5054 = vadd.f32 %v5052, %v5053
    %v5055 = vtanh.pop %v5054
    %v5056 = vmul.f32 %v5051, %v5055
    %5057 = vmatprep.subr.mxu0 %v4170
    %5058 = vmatpush1.msra.mxu0 %v4169
    %5059 = vmatprep.subr.mxu0 %v4174
    %5060 = vmatpush1.msra.mxu0 %v4173
    %5061 = vmatprep.subr.mxu0 %v4178
    %5062 = vmatpush1.msra.mxu0 %v4177
    %5063 = vmatprep.subr.mxu0 %v4182
    %5064 = vmatpush1.msra.mxu0 %v4181
    %5065 = vmatprep.subr.mxu0 %v4186
    %5066 = vmatpush1.msra.mxu0 %v4185
    %5067 = vmatprep.subr.mxu0 %v4190
    %5068 = vmatpush1.msra.mxu0 %v4189
    %5069 = vmatprep.subr.mxu0 %v4194
    %5070 = vmatpush1.msra.mxu0 %v4193
    %5071 = vmatprep.subr.mxu0 %v4198
    %5072 = vmatpush1.msra.mxu0 %v4197
    %5073 = vmatprep.subr.mxu0 %v4202
    %5074 = vmatpush1.msra.mxu0 %v4201
    %5075 = vmatprep.subr.mxu0 %v4206
    %5076 = vmatpush1.msra.mxu0 %v4205
    %5077 = vmatprep.subr.mxu0 %v4210
    %5078 = vmatpush1.msra.mxu0 %v4209
    %5079 = vmatprep.subr.mxu0 %v4214
    %5080 = vmatpush1.msra.mxu0 %v4213
    %5081 = vmatprep.subr.mxu0 %v4218
    %5082 = vmatpush1.msra.mxu0 %v4217
    %5083 = vmatprep.subr.mxu0 %v4222
    %5084 = vmatpush1.msra.mxu0 %v4221
    %5085 = vmatprep.subr.mxu0 %v4226
    %5086 = vmatpush1.msra.mxu0 %v4225
    %5087 = vmatprep.subr.mxu0 %v4230
    %5088 = vmatpush1.msra.mxu0 %v4229
    %5089 = vmatprep.subr.mxu0 0.0
    %5090 = vmatpush1.msra.mxu0 0.0
    %5091 = vmatprep.subr.mxu0 0.0
    %5092 = vmatpush1.msra.mxu0 0.0
    %5093 = vmatprep.subr.mxu0 0.0
    %5094 = vmatpush1.msra.mxu0 0.0
    %5095 = vmatprep.subr.mxu0 0.0
    %5096 = vmatpush1.msra.mxu0 0.0
    %5097 = vmatprep.subr.mxu0 0.0
    %5098 = vmatpush1.msra.mxu0 0.0
    %5099 = vmatprep.subr.mxu0 0.0
    %5100 = vmatpush1.msra.mxu0 0.0
    %5101 = vmatprep.subr.mxu0 0.0
    %5102 = vmatpush1.msra.mxu0 0.0
    %5103 = vmatprep.subr.mxu0 0.0
    %5104 = vmatpush1.msra.mxu0 0.0
    %5105 = vmatprep.subr.mxu0 0.0
    %5106 = vmatpush1.msra.mxu0 0.0
    %5107 = vmatprep.subr.mxu0 0.0
    %5108 = vmatpush1.msra.mxu0 0.0
    %5109 = vmatprep.subr.mxu0 0.0
    %5110 = vmatpush1.msra.mxu0 0.0
    %5111 = vmatprep.subr.mxu0 0.0
    %5112 = vmatpush1.msra.mxu0 0.0
    %5113 = vmatprep.subr.mxu0 0.0
    %5114 = vmatpush1.msra.mxu0 0.0
    %5115 = vmatprep.subr.mxu0 0.0
    %5116 = vmatpush1.msra.mxu0 0.0
    %5117 = vmatprep.subr.mxu0 0.0
    %5118 = vmatpush1.msra.mxu0 0.0
    %5119 = vmatprep.subr.mxu0 0.0
    %5120 = vmatpush1.msra.mxu0 0.0
    %5121 = vmatprep.mubr.f32.mxu0 0.0
    %5122 = vmatmul.mubr.f32.gmra.mrb[0].mxu0 %v5056
    %v5123 = vpop.f32.mrb[0].mxu0
    %v5124 = vadd.f32 0.0, %v5123
    %v5125 = vpop.f32.mrb[0].mxu0
    %v5126 = vadd.f32 0.0, %v5125
    %5127 = vdwg.mxu0
    %5128 = vmatprep.subr.mxu0 %v4172
    %5129 = vmatpush1.msra.mxu0 %v4171
    %5130 = vmatprep.subr.mxu0 %v4176
    %5131 = vmatpush1.msra.mxu0 %v4175
    %5132 = vmatprep.subr.mxu0 %v4180
    %5133 = vmatpush1.msra.mxu0 %v4179
    %5134 = vmatprep.subr.mxu0 %v4184
    %5135 = vmatpush1.msra.mxu0 %v4183
    %5136 = vmatprep.subr.mxu0 %v4188
    %5137 = vmatpush1.msra.mxu0 %v4187
    %5138 = vmatprep.subr.mxu0 %v4192
    %5139 = vmatpush1.msra.mxu0 %v4191
    %5140 = vmatprep.subr.mxu0 %v4196
    %5141 = vmatpush1.msra.mxu0 %v4195
    %5142 = vmatprep.subr.mxu0 %v4200
    %5143 = vmatpush1.msra.mxu0 %v4199
    %5144 = vmatprep.subr.mxu0 %v4204
    %5145 = vmatpush1.msra.mxu0 %v4203
    %5146 = vmatprep.subr.mxu0 %v4208
    %5147 = vmatpush1.msra.mxu0 %v4207
    %5148 = vmatprep.subr.mxu0 %v4212
    %5149 = vmatpush1.msra.mxu0 %v4211
    %5150 = vmatprep.subr.mxu0 %v4216
    %5151 = vmatpush1.msra.mxu0 %v4215
    %5152 = vmatprep.subr.mxu0 %v4220
    %5153 = vmatpush1.msra.mxu0 %v4219
    %5154 = vmatprep.subr.mxu0 %v4224
    %5155 = vmatpush1.msra.mxu0 %v4223
    %5156 = vmatprep.subr.mxu0 %v4228
    %5157 = vmatpush1.msra.mxu0 %v4227
    %5158 = vmatprep.subr.mxu0 %v4232
    %5159 = vmatpush1.msra.mxu0 %v4231
    %5160 = vmatprep.subr.mxu0 0.0
    %5161 = vmatpush1.msra.mxu0 0.0
    %5162 = vmatprep.subr.mxu0 0.0
    %5163 = vmatpush1.msra.mxu0 0.0
    %5164 = vmatprep.subr.mxu0 0.0
    %5165 = vmatpush1.msra.mxu0 0.0
    %5166 = vmatprep.subr.mxu0 0.0
    %5167 = vmatpush1.msra.mxu0 0.0
    %5168 = vmatprep.subr.mxu0 0.0
    %5169 = vmatpush1.msra.mxu0 0.0
    %5170 = vmatprep.subr.mxu0 0.0
    %5171 = vmatpush1.msra.mxu0 0.0
    %5172 = vmatprep.subr.mxu0 0.0
    %5173 = vmatpush1.msra.mxu0 0.0
    %5174 = vmatprep.subr.mxu0 0.0
    %5175 = vmatpush1.msra.mxu0 0.0
    %5176 = vmatprep.subr.mxu0 0.0
    %5177 = vmatpush1.msra.mxu0 0.0
    %5178 = vmatprep.subr.mxu0 0.0
    %5179 = vmatpush1.msra.mxu0 0.0
    %5180 = vmatprep.subr.mxu0 0.0
    %5181 = vmatpush1.msra.mxu0 0.0
    %5182 = vmatprep.subr.mxu0 0.0
    %5183 = vmatpush1.msra.mxu0 0.0
    %5184 = vmatprep.subr.mxu0 0.0
    %5185 = vmatpush1.msra.mxu0 0.0
    %5186 = vmatprep.subr.mxu0 0.0
    %5187 = vmatpush1.msra.mxu0 0.0
    %5188 = vmatprep.subr.mxu0 0.0
    %5189 = vmatpush1.msra.mxu0 0.0
    %5190 = vmatprep.subr.mxu0 0.0
    %5191 = vmatpush1.msra.mxu0 0.0
    %5192 = vmatprep.mubr.f32.mxu0 0.0
    %5193 = vmatmul.mubr.f32.gmra.mrb[0].mxu0 %v5056
    %v5194 = vpop.f32.mrb[0].mxu0
    %v5195 = vadd.f32 0.0, %v5194
    %v5196 = vpop.f32.mrb[0].mxu0
    %v5197 = vadd.f32 0.0, %v5196
    %5198 = vdwg.mxu0
    %v5199 = vadd.f32 %v4406, %v5124
    %v5200 = vadd.f32 %v4408, %v5126
    %v5201 = vadd.f32 %v4519, %v5195
    %v5202 = vadd.f32 %v4521, %v5197
    %v5203 = vxor.u32 %v5199, 2147483648
    %v5204 = vmul.f32 %v5203, 1.442695
    %v5205 = vpow.pop %v5204
    %v5206 = vadd.f32 %v5205, 1.0
    %v5207 = vrcp.pop %v5206
    %v5208 = vmul.f32 1.0, %v5207
    %v5209 = vxor.u32 %v5200, 2147483648
    %v5210 = vmul.f32 %v5209, 1.442695
    %v5211 = vpow.pop %v5210
    %v5212 = vadd.f32 %v5211, 1.0
    %v5213 = vrcp.pop %v5212
    %v5214 = vmul.f32 1.0, %v5213
    %v5215 = vtanh.pop %v5201
    %v5216 = vxor.u32 %v5202, 2147483648
    %v5217 = vmul.f32 %v5216, 1.442695
    %v5218 = vpow.pop %v5217
    %v5219 = vadd.f32 %v5218, 1.0
    %v5220 = vrcp.pop %v5219
    %v5221 = vmul.f32 1.0, %v5220
    %v5222 = vmul.f32 %v5214, %v5054
    %v5223 = vmul.f32 %v5208, %v5215
    %v5224 = vadd.f32 %v5222, %v5223
    %v5225 = vtanh.pop %v5224
    %v5226 = vmul.f32 %v5221, %v5225
    %5227 = vmatprep.subr.mxu0 %v4170
    %5228 = vmatpush1.msra.mxu0 %v4169
    %5229 = vmatprep.subr.mxu0 %v4174
    %5230 = vmatpush1.msra.mxu0 %v4173
    %5231 = vmatprep.subr.mxu0 %v4178
    %5232 = vmatpush1.msra.mxu0 %v4177
    %5233 = vmatprep.subr.mxu0 %v4182
    %5234 = vmatpush1.msra.mxu0 %v4181
    %5235 = vmatprep.subr.mxu0 %v4186
    %5236 = vmatpush1.msra.mxu0 %v4185
    %5237 = vmatprep.subr.mxu0 %v4190
    %5238 = vmatpush1.msra.mxu0 %v4189
    %5239 = vmatprep.subr.mxu0 %v4194
    %5240 = vmatpush1.msra.mxu0 %v4193
    %5241 = vmatprep.subr.mxu0 %v4198
    %5242 = vmatpush1.msra.mxu0 %v4197
    %5243 = vmatprep.subr.mxu0 %v4202
    %5244 = vmatpush1.msra.mxu0 %v4201
    %5245 = vmatprep.subr.mxu0 %v4206
    %5246 = vmatpush1.msra.mxu0 %v4205
    %5247 = vmatprep.subr.mxu0 %v4210
    %5248 = vmatpush1.msra.mxu0 %v4209
    %5249 = vmatprep.subr.mxu0 %v4214
    %5250 = vmatpush1.msra.mxu0 %v4213
    %5251 = vmatprep.subr.mxu0 %v4218
    %5252 = vmatpush1.msra.mxu0 %v4217
    %5253 = vmatprep.subr.mxu0 %v4222
    %5254 = vmatpush1.msra.mxu0 %v4221
    %5255 = vmatprep.subr.mxu0 %v4226
    %5256 = vmatpush1.msra.mxu0 %v4225
    %5257 = vmatprep.subr.mxu0 %v4230
    %5258 = vmatpush1.msra.mxu0 %v4229
    %5259 = vmatprep.subr.mxu0 0.0
    %5260 = vmatpush1.msra.mxu0 0.0
    %5261 = vmatprep.subr.mxu0 0.0
    %5262 = vmatpush1.msra.mxu0 0.0
    %5263 = vmatprep.subr.mxu0 0.0
    %5264 = vmatpush1.msra.mxu0 0.0
    %5265 = vmatprep.subr.mxu0 0.0
    %5266 = vmatpush1.msra.mxu0 0.0
    %5267 = vmatprep.subr.mxu0 0.0
    %5268 = vmatpush1.msra.mxu0 0.0
    %5269 = vmatprep.subr.mxu0 0.0
    %5270 = vmatpush1.msra.mxu0 0.0
    %5271 = vmatprep.subr.mxu0 0.0
    %5272 = vmatpush1.msra.mxu0 0.0
    %5273 = vmatprep.subr.mxu0 0.0
    %5274 = vmatpush1.msra.mxu0 0.0
    %5275 = vmatprep.subr.mxu0 0.0
    %5276 = vmatpush1.msra.mxu0 0.0
    %5277 = vmatprep.subr.mxu0 0.0
    %5278 = vmatpush1.msra.mxu0 0.0
    %5279 = vmatprep.subr.mxu0 0.0
    %5280 = vmatpush1.msra.mxu0 0.0
    %5281 = vmatprep.subr.mxu0 0.0
    %5282 = vmatpush1.msra.mxu0 0.0
    %5283 = vmatprep.subr.mxu0 0.0
    %5284 = vmatpush1.msra.mxu0 0.0
    %5285 = vmatprep.subr.mxu0 0.0
    %5286 = vmatpush1.msra.mxu0 0.0
    %5287 = vmatprep.subr.mxu0 0.0
    %5288 = vmatpush1.msra.mxu0 0.0
    %5289 = vmatprep.subr.mxu0 0.0
    %5290 = vmatpush1.msra.mxu0 0.0
    %5291 = vmatprep.mubr.f32.mxu0 0.0
    %5292 = vmatmul.mubr.f32.gmra.mrb[0].mxu0 %v5226
    %v5293 = vpop.f32.mrb[0].mxu0
    %v5294 = vadd.f32 0.0, %v5293
    %v5295 = vpop.f32.mrb[0].mxu0
    %v5296 = vadd.f32 0.0, %v5295
    %5297 = vdwg.mxu0
    %5298 = vmatprep.subr.mxu0 %v4172
    %5299 = vmatpush1.msra.mxu0 %v4171
    %5300 = vmatprep.subr.mxu0 %v4176
    %5301 = vmatpush1.msra.mxu0 %v4175
    %5302 = vmatprep.subr.mxu0 %v4180
    %5303 = vmatpush1.msra.mxu0 %v4179
    %5304 = vmatprep.subr.mxu0 %v4184
    %5305 = vmatpush1.msra.mxu0 %v4183
    %5306 = vmatprep.subr.mxu0 %v4188
    %5307 = vmatpush1.msra.mxu0 %v4187
    %5308 = vmatprep.subr.mxu0 %v4192
    %5309 = vmatpush1.msra.mxu0 %v4191
    %5310 = vmatprep.subr.mxu0 %v4196
    %5311 = vmatpush1.msra.mxu0 %v4195
    %5312 = vmatprep.subr.mxu0 %v4200
    %5313 = vmatpush1.msra.mxu0 %v4199
    %5314 = vmatprep.subr.mxu0 %v4204
    %5315 = vmatpush1.msra.mxu0 %v4203
    %5316 = vmatprep.subr.mxu0 %v4208
    %5317 = vmatpush1.msra.mxu0 %v4207
    %5318 = vmatprep.subr.mxu0 %v4212
    %5319 = vmatpush1.msra.mxu0 %v4211
    %5320 = vmatprep.subr.mxu0 %v4216
    %5321 = vmatpush1.msra.mxu0 %v4215
    %5322 = vmatprep.subr.mxu0 %v4220
    %5323 = vmatpush1.msra.mxu0 %v4219
    %5324 = vmatprep.subr.mxu0 %v4224
    %5325 = vmatpush1.msra.mxu0 %v4223
    %5326 = vmatprep.subr.mxu0 %v4228
    %5327 = vmatpush1.msra.mxu0 %v4227
    %5328 = vmatprep.subr.mxu0 %v4232
    %5329 = vmatpush1.msra.mxu0 %v4231
    %5330 = vmatprep.subr.mxu0 0.0
    %5331 = vmatpush1.msra.mxu0 0.0
    %5332 = vmatprep.subr.mxu0 0.0
    %5333 = vmatpush1.msra.mxu0 0.0
    %5334 = vmatprep.subr.mxu0 0.0
    %5335 = vmatpush1.msra.mxu0 0.0
    %5336 = vmatprep.subr.mxu0 0.0
    %5337 = vmatpush1.msra.mxu0 0.0
    %5338 = vmatprep.subr.mxu0 0.0
    %5339 = vmatpush1.msra.mxu0 0.0
    %5340 = vmatprep.subr.mxu0 0.0
    %5341 = vmatpush1.msra.mxu0 0.0
    %5342 = vmatprep.subr.mxu0 0.0
    %5343 = vmatpush1.msra.mxu0 0.0
    %5344 = vmatprep.subr.mxu0 0.0
    %5345 = vmatpush1.msra.mxu0 0.0
    %5346 = vmatprep.subr.mxu0 0.0
    %5347 = vmatpush1.msra.mxu0 0.0
    %5348 = vmatprep.subr.mxu0 0.0
    %5349 = vmatpush1.msra.mxu0 0.0
    %5350 = vmatprep.subr.mxu0 0.0
    %5351 = vmatpush1.msra.mxu0 0.0
    %5352 = vmatprep.subr.mxu0 0.0
    %5353 = vmatpush1.msra.mxu0 0.0
    %5354 = vmatprep.subr.mxu0 0.0
    %5355 = vmatpush1.msra.mxu0 0.0
    %5356 = vmatprep.subr.mxu0 0.0
    %5357 = vmatpush1.msra.mxu0 0.0
    %5358 = vmatprep.subr.mxu0 0.0
    %5359 = vmatpush1.msra.mxu0 0.0
    %5360 = vmatprep.subr.mxu0 0.0
    %5361 = vmatpush1.msra.mxu0 0.0
    %5362 = vmatprep.mubr.f32.mxu0 0.0
    %5363 = vmatmul.mubr.f32.gmra.mrb[0].mxu0 %v5226
    %v5364 = vpop.f32.mrb[0].mxu0
    %v5365 = vadd.f32 0.0, %v5364
    %v5366 = vpop.f32.mrb[0].mxu0
    %v5367 = vadd.f32 0.0, %v5366
    %5368 = vdwg.mxu0
    %v5369 = vadd.f32 %v4412, %v5294
    %v5370 = vadd.f32 %v4414, %v5296
    %v5371 = vadd.f32 %v4525, %v5365
    %v5372 = vadd.f32 %v4527, %v5367
    %v5373 = vxor.u32 %v5369, 2147483648
    %v5374 = vmul.f32 %v5373, 1.442695
    %v5375 = vpow.pop %v5374
    %v5376 = vadd.f32 %v5375, 1.0
    %v5377 = vrcp.pop %v5376
    %v5378 = vmul.f32 1.0, %v5377
    %v5379 = vxor.u32 %v5370, 2147483648
    %v5380 = vmul.f32 %v5379, 1.442695
    %v5381 = vpow.pop %v5380
    %v5382 = vadd.f32 %v5381, 1.0
    %v5383 = vrcp.pop %v5382
    %v5384 = vmul.f32 1.0, %v5383
    %v5385 = vtanh.pop %v5371
    %v5386 = vxor.u32 %v5372, 2147483648
    %v5387 = vmul.f32 %v5386, 1.442695
    %v5388 = vpow.pop %v5387
    %v5389 = vadd.f32 %v5388, 1.0
    %v5390 = vrcp.pop %v5389
    %v5391 = vmul.f32 1.0, %v5390
    %v5392 = vmul.f32 %v5384, %v5224
    %v5393 = vmul.f32 %v5378, %v5385
    %v5394 = vadd.f32 %v5392, %v5393
    %v5395 = vtanh.pop %v5394
    %v5396 = vmul.f32 %v5391, %v5395
    %5397 = vmatprep.subr.mxu0 %v4170
    %5398 = vmatpush1.msra.mxu0 %v4169
    %5399 = vmatprep.subr.mxu0 %v4174
    %5400 = vmatpush1.msra.mxu0 %v4173
    %5401 = vmatprep.subr.mxu0 %v4178
    %5402 = vmatpush1.msra.mxu0 %v4177
    %5403 = vmatprep.subr.mxu0 %v4182
    %5404 = vmatpush1.msra.mxu0 %v4181
    %5405 = vmatprep.subr.mxu0 %v4186
    %5406 = vmatpush1.msra.mxu0 %v4185
    %5407 = vmatprep.subr.mxu0 %v4190
    %5408 = vmatpush1.msra.mxu0 %v4189
    %5409 = vmatprep.subr.mxu0 %v4194
    %5410 = vmatpush1.msra.mxu0 %v4193
    %5411 = vmatprep.subr.mxu0 %v4198
    %5412 = vmatpush1.msra.mxu0 %v4197
    %5413 = vmatprep.subr.mxu0 %v4202
    %5414 = vmatpush1.msra.mxu0 %v4201
    %5415 = vmatprep.subr.mxu0 %v4206
    %5416 = vmatpush1.msra.mxu0 %v4205
    %5417 = vmatprep.subr.mxu0 %v4210
    %5418 = vmatpush1.msra.mxu0 %v4209
    %5419 = vmatprep.subr.mxu0 %v4214
    %5420 = vmatpush1.msra.mxu0 %v4213
    %5421 = vmatprep.subr.mxu0 %v4218
    %5422 = vmatpush1.msra.mxu0 %v4217
    %5423 = vmatprep.subr.mxu0 %v4222
    %5424 = vmatpush1.msra.mxu0 %v4221
    %5425 = vmatprep.subr.mxu0 %v4226
    %5426 = vmatpush1.msra.mxu0 %v4225
    %5427 = vmatprep.subr.mxu0 %v4230
    %5428 = vmatpush1.msra.mxu0 %v4229
    %5429 = vmatprep.subr.mxu0 0.0
    %5430 = vmatpush1.msra.mxu0 0.0
    %5431 = vmatprep.subr.mxu0 0.0
    %5432 = vmatpush1.msra.mxu0 0.0
    %5433 = vmatprep.subr.mxu0 0.0
    %5434 = vmatpush1.msra.mxu0 0.0
    %5435 = vmatprep.subr.mxu0 0.0
    %5436 = vmatpush1.msra.mxu0 0.0
    %5437 = vmatprep.subr.mxu0 0.0
    %5438 = vmatpush1.msra.mxu0 0.0
    %5439 = vmatprep.subr.mxu0 0.0
    %5440 = vmatpush1.msra.mxu0 0.0
    %5441 = vmatprep.subr.mxu0 0.0
    %5442 = vmatpush1.msra.mxu0 0.0
    %5443 = vmatprep.subr.mxu0 0.0
    %5444 = vmatpush1.msra.mxu0 0.0
    %5445 = vmatprep.subr.mxu0 0.0
    %5446 = vmatpush1.msra.mxu0 0.0
    %5447 = vmatprep.subr.mxu0 0.0
    %5448 = vmatpush1.msra.mxu0 0.0
    %5449 = vmatprep.subr.mxu0 0.0
    %5450 = vmatpush1.msra.mxu0 0.0
    %5451 = vmatprep.subr.mxu0 0.0
    %5452 = vmatpush1.msra.mxu0 0.0
    %5453 = vmatprep.subr.mxu0 0.0
    %5454 = vmatpush1.msra.mxu0 0.0
    %5455 = vmatprep.subr.mxu0 0.0
    %5456 = vmatpush1.msra.mxu0 0.0
    %5457 = vmatprep.subr.mxu0 0.0
    %5458 = vmatpush1.msra.mxu0 0.0
    %5459 = vmatprep.subr.mxu0 0.0
    %5460 = vmatpush1.msra.mxu0 0.0
    %5461 = vmatprep.mubr.f32.mxu0 0.0
    %5462 = vmatmul.mubr.f32.gmra.mrb[0].mxu0 %v5396
    %v5463 = vpop.f32.mrb[0].mxu0
    %v5464 = vadd.f32 0.0, %v5463
    %v5465 = vpop.f32.mrb[0].mxu0
    %v5466 = vadd.f32 0.0, %v5465
    %5467 = vdwg.mxu0
    %5468 = vmatprep.subr.mxu0 %v4172
    %5469 = vmatpush1.msra.mxu0 %v4171
    %5470 = vmatprep.subr.mxu0 %v4176
    %5471 = vmatpush1.msra.mxu0 %v4175
    %5472 = vmatprep.subr.mxu0 %v4180
    %5473 = vmatpush1.msra.mxu0 %v4179
    %5474 = vmatprep.subr.mxu0 %v4184
    %5475 = vmatpush1.msra.mxu0 %v4183
    %5476 = vmatprep.subr.mxu0 %v4188
    %5477 = vmatpush1.msra.mxu0 %v4187
    %5478 = vmatprep.subr.mxu0 %v4192
    %5479 = vmatpush1.msra.mxu0 %v4191
    %5480 = vmatprep.subr.mxu0 %v4196
    %5481 = vmatpush1.msra.mxu0 %v4195
    %5482 = vmatprep.subr.mxu0 %v4200
    %5483 = vmatpush1.msra.mxu0 %v4199
    %5484 = vmatprep.subr.mxu0 %v4204
    %5485 = vmatpush1.msra.mxu0 %v4203
    %5486 = vmatprep.subr.mxu0 %v4208
    %5487 = vmatpush1.msra.mxu0 %v4207
    %5488 = vmatprep.subr.mxu0 %v4212
    %5489 = vmatpush1.msra.mxu0 %v4211
    %5490 = vmatprep.subr.mxu0 %v4216
    %5491 = vmatpush1.msra.mxu0 %v4215
    %5492 = vmatprep.subr.mxu0 %v4220
    %5493 = vmatpush1.msra.mxu0 %v4219
    %5494 = vmatprep.subr.mxu0 %v4224
    %5495 = vmatpush1.msra.mxu0 %v4223
    %5496 = vmatprep.subr.mxu0 %v4228
    %5497 = vmatpush1.msra.mxu0 %v4227
    %5498 = vmatprep.subr.mxu0 %v4232
    %5499 = vmatpush1.msra.mxu0 %v4231
    %5500 = vmatprep.subr.mxu0 0.0
    %5501 = vmatpush1.msra.mxu0 0.0
    %5502 = vmatprep.subr.mxu0 0.0
    %5503 = vmatpush1.msra.mxu0 0.0
    %5504 = vmatprep.subr.mxu0 0.0
    %5505 = vmatpush1.msra.mxu0 0.0
    %5506 = vmatprep.subr.mxu0 0.0
    %5507 = vmatpush1.msra.mxu0 0.0
    %5508 = vmatprep.subr.mxu0 0.0
    %5509 = vmatpush1.msra.mxu0 0.0
    %5510 = vmatprep.subr.mxu0 0.0
    %5511 = vmatpush1.msra.mxu0 0.0
    %5512 = vmatprep.subr.mxu0 0.0
    %5513 = vmatpush1.msra.mxu0 0.0
    %5514 = vmatprep.subr.mxu0 0.0
    %5515 = vmatpush1.msra.mxu0 0.0
    %5516 = vmatprep.subr.mxu0 0.0
    %5517 = vmatpush1.msra.mxu0 0.0
    %5518 = vmatprep.subr.mxu0 0.0
    %5519 = vmatpush1.msra.mxu0 0.0
    %5520 = vmatprep.subr.mxu0 0.0
    %5521 = vmatpush1.msra.mxu0 0.0
    %5522 = vmatprep.subr.mxu0 0.0
    %5523 = vmatpush1.msra.mxu0 0.0
    %5524 = vmatprep.subr.mxu0 0.0
    %5525 = vmatpush1.msra.mxu0 0.0
    %5526 = vmatprep.subr.mxu0 0.0
    %5527 = vmatpush1.msra.mxu0 0.0
    %5528 = vmatprep.subr.mxu0 0.0
    %5529 = vmatpush1.msra.mxu0 0.0
    %5530 = vmatprep.subr.mxu0 0.0
    %5531 = vmatpush1.msra.mxu0 0.0
    %5532 = vmatprep.mubr.f32.mxu0 0.0
    %5533 = vmatmul.mubr.f32.gmra.mrb[0].mxu0 %v5396
    %v5534 = vpop.f32.mrb[0].mxu0
    %v5535 = vadd.f32 0.0, %v5534
    %v5536 = vpop.f32.mrb[0].mxu0
    %v5537 = vadd.f32 0.0, %v5536
    %5538 = vdwg.mxu0
    %v5539 = vadd.f32 %v4418, %v5464
    %v5540 = vadd.f32 %v4420, %v5466
    %v5541 = vadd.f32 %v4531, %v5535
    %v5542 = vadd.f32 %v4533, %v5537
    %v5543 = vxor.u32 %v5539, 2147483648
    %v5544 = vmul.f32 %v5543, 1.442695
    %v5545 = vpow.pop %v5544
    %v5546 = vadd.f32 %v5545, 1.0
    %v5547 = vrcp.pop %v5546
    %v5548 = vmul.f32 1.0, %v5547
    %v5549 = vxor.u32 %v5540, 2147483648
    %v5550 = vmul.f32 %v5549, 1.442695
    %v5551 = vpow.pop %v5550
    %v5552 = vadd.f32 %v5551, 1.0
    %v5553 = vrcp.pop %v5552
    %v5554 = vmul.f32 1.0, %v5553
    %v5555 = vtanh.pop %v5541
    %v5556 = vxor.u32 %v5542, 2147483648
    %v5557 = vmul.f32 %v5556, 1.442695
    %v5558 = vpow.pop %v5557
    %v5559 = vadd.f32 %v5558, 1.0
    %v5560 = vrcp.pop %v5559
    %v5561 = vmul.f32 1.0, %v5560
    %v5562 = vmul.f32 %v5554, %v5394
    %v5563 = vmul.f32 %v5548, %v5555
    %v5564 = vadd.f32 %v5562, %v5563
    %v5565 = vtanh.pop %v5564
    %v5566 = vmul.f32 %v5561, %v5565
    %5567 = vmatprep.subr.mxu0 %v4170
    %5568 = vmatpush1.msra.mxu0 %v4169
    %5569 = vmatprep.subr.mxu0 %v4174
    %5570 = vmatpush1.msra.mxu0 %v4173
    %5571 = vmatprep.subr.mxu0 %v4178
    %5572 = vmatpush1.msra.mxu0 %v4177
    %5573 = vmatprep.subr.mxu0 %v4182
    %5574 = vmatpush1.msra.mxu0 %v4181
    %5575 = vmatprep.subr.mxu0 %v4186
    %5576 = vmatpush1.msra.mxu0 %v4185
    %5577 = vmatprep.subr.mxu0 %v4190
    %5578 = vmatpush1.msra.mxu0 %v4189
    %5579 = vmatprep.subr.mxu0 %v4194
    %5580 = vmatpush1.msra.mxu0 %v4193
    %5581 = vmatprep.subr.mxu0 %v4198
    %5582 = vmatpush1.msra.mxu0 %v4197
    %5583 = vmatprep.subr.mxu0 %v4202
    %5584 = vmatpush1.msra.mxu0 %v4201
    %5585 = vmatprep.subr.mxu0 %v4206
    %5586 = vmatpush1.msra.mxu0 %v4205
    %5587 = vmatprep.subr.mxu0 %v4210
    %5588 = vmatpush1.msra.mxu0 %v4209
    %5589 = vmatprep.subr.mxu0 %v4214
    %5590 = vmatpush1.msra.mxu0 %v4213
    %5591 = vmatprep.subr.mxu0 %v4218
    %5592 = vmatpush1.msra.mxu0 %v4217
    %5593 = vmatprep.subr.mxu0 %v4222
    %5594 = vmatpush1.msra.mxu0 %v4221
    %5595 = vmatprep.subr.mxu0 %v4226
    %5596 = vmatpush1.msra.mxu0 %v4225
    %5597 = vmatprep.subr.mxu0 %v4230
    %5598 = vmatpush1.msra.mxu0 %v4229
    %5599 = vmatprep.subr.mxu0 0.0
    %5600 = vmatpush1.msra.mxu0 0.0
    %5601 = vmatprep.subr.mxu0 0.0
    %5602 = vmatpush1.msra.mxu0 0.0
    %5603 = vmatprep.subr.mxu0 0.0
    %5604 = vmatpush1.msra.mxu0 0.0
    %5605 = vmatprep.subr.mxu0 0.0
    %5606 = vmatpush1.msra.mxu0 0.0
    %5607 = vmatprep.subr.mxu0 0.0
    %5608 = vmatpush1.msra.mxu0 0.0
    %5609 = vmatprep.subr.mxu0 0.0
    %5610 = vmatpush1.msra.mxu0 0.0
    %5611 = vmatprep.subr.mxu0 0.0
    %5612 = vmatpush1.msra.mxu0 0.0
    %5613 = vmatprep.subr.mxu0 0.0
    %5614 = vmatpush1.msra.mxu0 0.0
    %5615 = vmatprep.subr.mxu0 0.0
    %5616 = vmatpush1.msra.mxu0 0.0
    %5617 = vmatprep.subr.mxu0 0.0
    %5618 = vmatpush1.msra.mxu0 0.0
    %5619 = vmatprep.subr.mxu0 0.0
    %5620 = vmatpush1.msra.mxu0 0.0
    %5621 = vmatprep.subr.mxu0 0.0
    %5622 = vmatpush1.msra.mxu0 0.0
    %5623 = vmatprep.subr.mxu0 0.0
    %5624 = vmatpush1.msra.mxu0 0.0
    %5625 = vmatprep.subr.mxu0 0.0
    %5626 = vmatpush1.msra.mxu0 0.0
    %5627 = vmatprep.subr.mxu0 0.0
    %5628 = vmatpush1.msra.mxu0 0.0
    %5629 = vmatprep.subr.mxu0 0.0
    %5630 = vmatpush1.msra.mxu0 0.0
    %5631 = vmatprep.mubr.f32.mxu0 0.0
    %5632 = vmatmul.mubr.f32.gmra.mrb[0].mxu0 %v5566
    %v5633 = vpop.f32.mrb[0].mxu0
    %v5634 = vadd.f32 0.0, %v5633
    %v5635 = vpop.f32.mrb[0].mxu0
    %v5636 = vadd.f32 0.0, %v5635
    %5637 = vdwg.mxu0
    %5638 = vmatprep.subr.mxu0 %v4172
    %5639 = vmatpush1.msra.mxu0 %v4171
    %5640 = vmatprep.subr.mxu0 %v4176
    %5641 = vmatpush1.msra.mxu0 %v4175
    %5642 = vmatprep.subr.mxu0 %v4180
    %5643 = vmatpush1.msra.mxu0 %v4179
    %5644 = vmatprep.subr.mxu0 %v4184
    %5645 = vmatpush1.msra.mxu0 %v4183
    %5646 = vmatprep.subr.mxu0 %v4188
    %5647 = vmatpush1.msra.mxu0 %v4187
    %5648 = vmatprep.subr.mxu0 %v4192
    %5649 = vmatpush1.msra.mxu0 %v4191
    %5650 = vmatprep.subr.mxu0 %v4196
    %5651 = vmatpush1.msra.mxu0 %v4195
    %5652 = vmatprep.subr.mxu0 %v4200
    %5653 = vmatpush1.msra.mxu0 %v4199
    %5654 = vmatprep.subr.mxu0 %v4204
    %5655 = vmatpush1.msra.mxu0 %v4203
    %5656 = vmatprep.subr.mxu0 %v4208
    %5657 = vmatpush1.msra.mxu0 %v4207
    %5658 = vmatprep.subr.mxu0 %v4212
    %5659 = vmatpush1.msra.mxu0 %v4211
    %5660 = vmatprep.subr.mxu0 %v4216
    %5661 = vmatpush1.msra.mxu0 %v4215
    %5662 = vmatprep.subr.mxu0 %v4220
    %5663 = vmatpush1.msra.mxu0 %v4219
    %5664 = vmatprep.subr.mxu0 %v4224
    %5665 = vmatpush1.msra.mxu0 %v4223
    %5666 = vmatprep.subr.mxu0 %v4228
    %5667 = vmatpush1.msra.mxu0 %v4227
    %5668 = vmatprep.subr.mxu0 %v4232
    %5669 = vmatpush1.msra.mxu0 %v4231
    %5670 = vmatprep.subr.mxu0 0.0
    %5671 = vmatpush1.msra.mxu0 0.0
    %5672 = vmatprep.subr.mxu0 0.0
    %5673 = vmatpush1.msra.mxu0 0.0
    %5674 = vmatprep.subr.mxu0 0.0
    %5675 = vmatpush1.msra.mxu0 0.0
    %5676 = vmatprep.subr.mxu0 0.0
    %5677 = vmatpush1.msra.mxu0 0.0
    %5678 = vmatprep.subr.mxu0 0.0
    %5679 = vmatpush1.msra.mxu0 0.0
    %5680 = vmatprep.subr.mxu0 0.0
    %5681 = vmatpush1.msra.mxu0 0.0
    %5682 = vmatprep.subr.mxu0 0.0
    %5683 = vmatpush1.msra.mxu0 0.0
    %5684 = vmatprep.subr.mxu0 0.0
    %5685 = vmatpush1.msra.mxu0 0.0
    %5686 = vmatprep.subr.mxu0 0.0
    %5687 = vmatpush1.msra.mxu0 0.0
    %5688 = vmatprep.subr.mxu0 0.0
    %5689 = vmatpush1.msra.mxu0 0.0
    %5690 = vmatprep.subr.mxu0 0.0
    %5691 = vmatpush1.msra.mxu0 0.0
    %5692 = vmatprep.subr.mxu0 0.0
    %5693 = vmatpush1.msra.mxu0 0.0
    %5694 = vmatprep.subr.mxu0 0.0
    %5695 = vmatpush1.msra.mxu0 0.0
    %5696 = vmatprep.subr.mxu0 0.0
    %5697 = vmatpush1.msra.mxu0 0.0
    %5698 = vmatprep.subr.mxu0 0.0
    %5699 = vmatpush1.msra.mxu0 0.0
    %5700 = vmatprep.subr.mxu0 0.0
    %5701 = vmatpush1.msra.mxu0 0.0
    %5702 = vmatprep.mubr.f32.mxu0 0.0
    %5703 = vmatmul.mubr.f32.gmra.mrb[0].mxu0 %v5566
    %v5704 = vpop.f32.mrb[0].mxu0
    %v5705 = vadd.f32 0.0, %v5704
    %v5706 = vpop.f32.mrb[0].mxu0
    %v5707 = vadd.f32 0.0, %v5706
    %5708 = vdwg.mxu0
    %v5709 = vadd.f32 %v4424, %v5634
    %v5710 = vadd.f32 %v4426, %v5636
    %v5711 = vadd.f32 %v4537, %v5705
    %v5712 = vadd.f32 %v4539, %v5707
    %v5713 = vxor.u32 %v5709, 2147483648
    %v5714 = vmul.f32 %v5713, 1.442695
    %v5715 = vpow.pop %v5714
    %v5716 = vadd.f32 %v5715, 1.0
    %v5717 = vrcp.pop %v5716
    %v5718 = vmul.f32 1.0, %v5717
    %v5719 = vxor.u32 %v5710, 2147483648
    %v5720 = vmul.f32 %v5719, 1.442695
    %v5721 = vpow.pop %v5720
    %v5722 = vadd.f32 %v5721, 1.0
    %v5723 = vrcp.pop %v5722
    %v5724 = vmul.f32 1.0, %v5723
    %v5725 = vtanh.pop %v5711
    %v5726 = vxor.u32 %v5712, 2147483648
    %v5727 = vmul.f32 %v5726, 1.442695
    %v5728 = vpow.pop %v5727
    %v5729 = vadd.f32 %v5728, 1.0
    %v5730 = vrcp.pop %v5729
    %v5731 = vmul.f32 1.0, %v5730
    %v5732 = vmul.f32 %v5724, %v5564
    %v5733 = vmul.f32 %v5718, %v5725
    %v5734 = vadd.f32 %v5732, %v5733
    %v5735 = vtanh.pop %v5734
    %v5736 = vmul.f32 %v5731, %v5735
    %5737 = vmatprep.subr.mxu0 %v4170
    %5738 = vmatpush1.msra.mxu0 %v4169
    %5739 = vmatprep.subr.mxu0 %v4174
    %5740 = vmatpush1.msra.mxu0 %v4173
    %5741 = vmatprep.subr.mxu0 %v4178
    %5742 = vmatpush1.msra.mxu0 %v4177
    %5743 = vmatprep.subr.mxu0 %v4182
    %5744 = vmatpush1.msra.mxu0 %v4181
    %5745 = vmatprep.subr.mxu0 %v4186
    %5746 = vmatpush1.msra.mxu0 %v4185
    %5747 = vmatprep.subr.mxu0 %v4190
    %5748 = vmatpush1.msra.mxu0 %v4189
    %5749 = vmatprep.subr.mxu0 %v4194
    %5750 = vmatpush1.msra.mxu0 %v4193
    %5751 = vmatprep.subr.mxu0 %v4198
    %5752 = vmatpush1.msra.mxu0 %v4197
    %5753 = vmatprep.subr.mxu0 %v4202
    %5754 = vmatpush1.msra.mxu0 %v4201
    %5755 = vmatprep.subr.mxu0 %v4206
    %5756 = vmatpush1.msra.mxu0 %v4205
    %5757 = vmatprep.subr.mxu0 %v4210
    %5758 = vmatpush1.msra.mxu0 %v4209
    %5759 = vmatprep.subr.mxu0 %v4214
    %5760 = vmatpush1.msra.mxu0 %v4213
    %5761 = vmatprep.subr.mxu0 %v4218
    %5762 = vmatpush1.msra.mxu0 %v4217
    %5763 = vmatprep.subr.mxu0 %v4222
    %5764 = vmatpush1.msra.mxu0 %v4221
    %5765 = vmatprep.subr.mxu0 %v4226
    %5766 = vmatpush1.msra.mxu0 %v4225
    %5767 = vmatprep.subr.mxu0 %v4230
    %5768 = vmatpush1.msra.mxu0 %v4229
    %5769 = vmatprep.subr.mxu0 0.0
    %5770 = vmatpush1.msra.mxu0 0.0
    %5771 = vmatprep.subr.mxu0 0.0
    %5772 = vmatpush1.msra.mxu0 0.0
    %5773 = vmatprep.subr.mxu0 0.0
    %5774 = vmatpush1.msra.mxu0 0.0
    %5775 = vmatprep.subr.mxu0 0.0
    %5776 = vmatpush1.msra.mxu0 0.0
    %5777 = vmatprep.subr.mxu0 0.0
    %5778 = vmatpush1.msra.mxu0 0.0
    %5779 = vmatprep.subr.mxu0 0.0
    %5780 = vmatpush1.msra.mxu0 0.0
    %5781 = vmatprep.subr.mxu0 0.0
    %5782 = vmatpush1.msra.mxu0 0.0
    %5783 = vmatprep.subr.mxu0 0.0
    %5784 = vmatpush1.msra.mxu0 0.0
    %5785 = vmatprep.subr.mxu0 0.0
    %5786 = vmatpush1.msra.mxu0 0.0
    %5787 = vmatprep.subr.mxu0 0.0
    %5788 = vmatpush1.msra.mxu0 0.0
    %5789 = vmatprep.subr.mxu0 0.0
    %5790 = vmatpush1.msra.mxu0 0.0
    %5791 = vmatprep.subr.mxu0 0.0
    %5792 = vmatpush1.msra.mxu0 0.0
    %5793 = vmatprep.subr.mxu0 0.0
    %5794 = vmatpush1.msra.mxu0 0.0
    %5795 = vmatprep.subr.mxu0 0.0
    %5796 = vmatpush1.msra.mxu0 0.0
    %5797 = vmatprep.subr.mxu0 0.0
    %5798 = vmatpush1.msra.mxu0 0.0
    %5799 = vmatprep.subr.mxu0 0.0
    %5800 = vmatpush1.msra.mxu0 0.0
    %5801 = vmatprep.mubr.f32.mxu0 0.0
    %5802 = vmatmul.mubr.f32.gmra.mrb[0].mxu0 %v5736
    %v5803 = vpop.f32.mrb[0].mxu0
    %v5804 = vadd.f32 0.0, %v5803
    %v5805 = vpop.f32.mrb[0].mxu0
    %v5806 = vadd.f32 0.0, %v5805
    %5807 = vdwg.mxu0
    %5808 = vmatprep.subr.mxu0 %v4172
    %5809 = vmatpush1.msra.mxu0 %v4171
    %5810 = vmatprep.subr.mxu0 %v4176
    %5811 = vmatpush1.msra.mxu0 %v4175
    %5812 = vmatprep.subr.mxu0 %v4180
    %5813 = vmatpush1.msra.mxu0 %v4179
    %5814 = vmatprep.subr.mxu0 %v4184
    %5815 = vmatpush1.msra.mxu0 %v4183
    %5816 = vmatprep.subr.mxu0 %v4188
    %5817 = vmatpush1.msra.mxu0 %v4187
    %5818 = vmatprep.subr.mxu0 %v4192
    %5819 = vmatpush1.msra.mxu0 %v4191
    %5820 = vmatprep.subr.mxu0 %v4196
    %5821 = vmatpush1.msra.mxu0 %v4195
    %5822 = vmatprep.subr.mxu0 %v4200
    %5823 = vmatpush1.msra.mxu0 %v4199
    %5824 = vmatprep.subr.mxu0 %v4204
    %5825 = vmatpush1.msra.mxu0 %v4203
    %5826 = vmatprep.subr.mxu0 %v4208
    %5827 = vmatpush1.msra.mxu0 %v4207
    %5828 = vmatprep.subr.mxu0 %v4212
    %5829 = vmatpush1.msra.mxu0 %v4211
    %5830 = vmatprep.subr.mxu0 %v4216
    %5831 = vmatpush1.msra.mxu0 %v4215
    %5832 = vmatprep.subr.mxu0 %v4220
    %5833 = vmatpush1.msra.mxu0 %v4219
    %5834 = vmatprep.subr.mxu0 %v4224
    %5835 = vmatpush1.msra.mxu0 %v4223
    %5836 = vmatprep.subr.mxu0 %v4228
    %5837 = vmatpush1.msra.mxu0 %v4227
    %5838 = vmatprep.subr.mxu0 %v4232
    %5839 = vmatpush1.msra.mxu0 %v4231
    %5840 = vmatprep.subr.mxu0 0.0
    %5841 = vmatpush1.msra.mxu0 0.0
    %5842 = vmatprep.subr.mxu0 0.0
    %5843 = vmatpush1.msra.mxu0 0.0
    %5844 = vmatprep.subr.mxu0 0.0
    %5845 = vmatpush1.msra.mxu0 0.0
    %5846 = vmatprep.subr.mxu0 0.0
    %5847 = vmatpush1.msra.mxu0 0.0
    %5848 = vmatprep.subr.mxu0 0.0
    %5849 = vmatpush1.msra.mxu0 0.0
    %5850 = vmatprep.subr.mxu0 0.0
    %5851 = vmatpush1.msra.mxu0 0.0
    %5852 = vmatprep.subr.mxu0 0.0
    %5853 = vmatpush1.msra.mxu0 0.0
    %5854 = vmatprep.subr.mxu0 0.0
    %5855 = vmatpush1.msra.mxu0 0.0
    %5856 = vmatprep.subr.mxu0 0.0
    %5857 = vmatpush1.msra.mxu0 0.0
    %5858 = vmatprep.subr.mxu0 0.0
    %5859 = vmatpush1.msra.mxu0 0.0
    %5860 = vmatprep.subr.mxu0 0.0
    %5861 = vmatpush1.msra.mxu0 0.0
    %5862 = vmatprep.subr.mxu0 0.0
    %5863 = vmatpush1.msra.mxu0 0.0
    %5864 = vmatprep.subr.mxu0 0.0
    %5865 = vmatpush1.msra.mxu0 0.0
    %5866 = vmatprep.subr.mxu0 0.0
    %5867 = vmatpush1.msra.mxu0 0.0
    %5868 = vmatprep.subr.mxu0 0.0
    %5869 = vmatpush1.msra.mxu0 0.0
    %5870 = vmatprep.subr.mxu0 0.0
    %5871 = vmatpush1.msra.mxu0 0.0
    %5872 = vmatprep.mubr.f32.mxu0 0.0
    %5873 = vmatmul.mubr.f32.gmra.mrb[0].mxu0 %v5736
    %v5874 = vpop.f32.mrb[0].mxu0
    %v5875 = vadd.f32 0.0, %v5874
    %v5876 = vpop.f32.mrb[0].mxu0
    %v5877 = vadd.f32 0.0, %v5876
    %5878 = vdwg.mxu0
    %v5879 = vadd.f32 %v4430, %v5804
    %v5880 = vadd.f32 %v4432, %v5806
    %v5881 = vadd.f32 %v4543, %v5875
    %v5882 = vadd.f32 %v4545, %v5877
    %v5883 = vxor.u32 %v5879, 2147483648
    %v5884 = vmul.f32 %v5883, 1.442695
    %v5885 = vpow.pop %v5884
    %v5886 = vadd.f32 %v5885, 1.0
    %v5887 = vrcp.pop %v5886
    %v5888 = vmul.f32 1.0, %v5887
    %v5889 = vxor.u32 %v5880, 2147483648
    %v5890 = vmul.f32 %v5889, 1.442695
    %v5891 = vpow.pop %v5890
    %v5892 = vadd.f32 %v5891, 1.0
    %v5893 = vrcp.pop %v5892
    %v5894 = vmul.f32 1.0, %v5893
    %v5895 = vtanh.pop %v5881
    %v5896 = vxor.u32 %v5882, 2147483648
    %v5897 = vmul.f32 %v5896, 1.442695
    %v5898 = vpow.pop %v5897
    %v5899 = vadd.f32 %v5898, 1.0
    %v5900 = vrcp.pop %v5899
    %v5901 = vmul.f32 1.0, %v5900
    %v5902 = vmul.f32 %v5894, %v5734
    %v5903 = vmul.f32 %v5888, %v5895
    %v5904 = vadd.f32 %v5902, %v5903
    %v5905 = vtanh.pop %v5904
    %v5906 = vmul.f32 %v5901, %v5905
    %s5907 = scalar_lea.vmem [#allocation7], 1536
    %v5908 = vld [vmem:[%s5907] sm:$0xff]
    %v5909 = vld [vmem:[%s5907 + $0x8] sm:$0xff]
    %v5910 = vld [vmem:[%s5907 + $0x10] sm:$0xff]
    %v5911 = vld [vmem:[%s5907 + $0x18] sm:$0xff]
    %v5912 = vld [vmem:[%s5907 + $0x20] sm:$0xff]
    %v5913 = vld [vmem:[%s5907 + $0x28] sm:$0xff]
    %v5914 = vld [vmem:[%s5907 + $0x30] sm:$0xff]
    %v5915 = vld [vmem:[%s5907 + $0x38] sm:$0xff]
    %v5916 = vld [vmem:[%s5907 + $0x40] sm:$0xff]
    %v5917 = vld [vmem:[%s5907 + $0x48] sm:$0xff]
    %v5918 = vld [vmem:[%s5907 + $0x50] sm:$0xff]
    %v5919 = vld [vmem:[%s5907 + $0x58] sm:$0xff]
    %v5920 = vld [vmem:[%s5907 + $0x60] sm:$0xff]
    %v5921 = vld [vmem:[%s5907 + $0x68] sm:$0xff]
    %v5922 = vld [vmem:[%s5907 + $0x70] sm:$0xff]
    %v5923 = vld [vmem:[%s5907 + $0x78] sm:$0xff]
    %v5924 = vld [vmem:[%s5907 + $0x80] sm:$0xff]
    %v5925 = vld [vmem:[%s5907 + $0x88] sm:$0xff]
    %v5926 = vld [vmem:[%s5907 + $0x90] sm:$0xff]
    %v5927 = vld [vmem:[%s5907 + $0x98] sm:$0xff]
    %v5928 = vld [vmem:[%s5907 + $0xa0] sm:$0xff]
    %v5929 = vld [vmem:[%s5907 + $0xa8] sm:$0xff]
    %v5930 = vld [vmem:[%s5907 + $0xb0] sm:$0xff]
    %v5931 = vld [vmem:[%s5907 + $0xb8] sm:$0xff]
    %v5932 = vld [vmem:[%s5907 + $0xc0] sm:$0xff]
    %v5933 = vld [vmem:[%s5907 + $0xc8] sm:$0xff]
    %v5934 = vld [vmem:[%s5907 + $0xd0] sm:$0xff]
    %v5935 = vld [vmem:[%s5907 + $0xd8] sm:$0xff]
    %v5936 = vld [vmem:[%s5907 + $0xe0] sm:$0xff]
    %v5937 = vld [vmem:[%s5907 + $0xe8] sm:$0xff]
    %v5938 = vld [vmem:[%s5907 + $0xf0] sm:$0xff]
    %v5939 = vld [vmem:[%s5907 + $0xf8] sm:$0xff]
    %v5940 = vld [vmem:[%s5907 + $0x100] sm:$0xff]
    %v5941 = vld [vmem:[%s5907 + $0x108] sm:$0xff]
    %v5942 = vld [vmem:[%s5907 + $0x110] sm:$0xff]
    %v5943 = vld [vmem:[%s5907 + $0x118] sm:$0xff]
    %v5944 = vld [vmem:[%s5907 + $0x120] sm:$0xff]
    %v5945 = vld [vmem:[%s5907 + $0x128] sm:$0xff]
    %v5946 = vld [vmem:[%s5907 + $0x130] sm:$0xff]
    %v5947 = vld [vmem:[%s5907 + $0x138] sm:$0xff]
    %v5948 = vld [vmem:[%s5907 + $0x140] sm:$0xff]
    %v5949 = vld [vmem:[%s5907 + $0x148] sm:$0xff]
    %v5950 = vld [vmem:[%s5907 + $0x150] sm:$0xff]
    %v5951 = vld [vmem:[%s5907 + $0x158] sm:$0xff]
    %v5952 = vld [vmem:[%s5907 + $0x160] sm:$0xff]
    %v5953 = vld [vmem:[%s5907 + $0x168] sm:$0xff]
    %v5954 = vld [vmem:[%s5907 + $0x170] sm:$0xff]
    %v5955 = vld [vmem:[%s5907 + $0x178] sm:$0xff]
    %v5956 = vld [vmem:[%s5907 + $0x180] sm:$0xff]
    %v5957 = vld [vmem:[%s5907 + $0x188] sm:$0xff]
    %v5958 = vld [vmem:[%s5907 + $0x190] sm:$0xff]
    %v5959 = vld [vmem:[%s5907 + $0x198] sm:$0xff]
    %v5960 = vld [vmem:[%s5907 + $0x1a0] sm:$0xff]
    %v5961 = vld [vmem:[%s5907 + $0x1a8] sm:$0xff]
    %v5962 = vld [vmem:[%s5907 + $0x1b0] sm:$0xff]
    %v5963 = vld [vmem:[%s5907 + $0x1b8] sm:$0xff]
    %v5964 = vld [vmem:[%s5907 + $0x1c0] sm:$0xff]
    %v5965 = vld [vmem:[%s5907 + $0x1c8] sm:$0xff]
    %v5966 = vld [vmem:[%s5907 + $0x1d0] sm:$0xff]
    %v5967 = vld [vmem:[%s5907 + $0x1d8] sm:$0xff]
    %v5968 = vld [vmem:[%s5907 + $0x1e0] sm:$0xff]
    %v5969 = vld [vmem:[%s5907 + $0x1e8] sm:$0xff]
    %v5970 = vld [vmem:[%s5907 + $0x1f0] sm:$0xff]
    %v5971 = vld [vmem:[%s5907 + $0x1f8] sm:$0xff]
    %s5972 = scalar_lea.vmem [#allocation7], 3072
    %v5973 = vld [vmem:[%s5972] sm:$0xff]
    %v5974 = vld [vmem:[%s5972 + $0x8] sm:$0xff]
    %v5975 = vld [vmem:[%s5972 + $0x10] sm:$0xff]
    %v5976 = vld [vmem:[%s5972 + $0x18] sm:$0xff]
    %v5977 = vld [vmem:[%s5972 + $0x20] sm:$0xff]
    %v5978 = vld [vmem:[%s5972 + $0x28] sm:$0xff]
    %v5979 = vld [vmem:[%s5972 + $0x30] sm:$0xff]
    %v5980 = vld [vmem:[%s5972 + $0x38] sm:$0xff]
    %v5981 = vld [vmem:[%s5972 + $0x40] sm:$0xff]
    %v5982 = vld [vmem:[%s5972 + $0x48] sm:$0xff]
    %v5983 = vld [vmem:[%s5972 + $0x50] sm:$0xff]
    %v5984 = vld [vmem:[%s5972 + $0x58] sm:$0xff]
    %v5985 = vld [vmem:[%s5972 + $0x60] sm:$0xff]
    %v5986 = vld [vmem:[%s5972 + $0x68] sm:$0xff]
    %v5987 = vld [vmem:[%s5972 + $0x70] sm:$0xff]
    %v5988 = vld [vmem:[%s5972 + $0x78] sm:$0xff]
    %v5989 = vld [vmem:[%s5972 + $0x80] sm:$0xff]
    %v5990 = vld [vmem:[%s5972 + $0x88] sm:$0xff]
    %v5991 = vld [vmem:[%s5972 + $0x90] sm:$0xff]
    %v5992 = vld [vmem:[%s5972 + $0x98] sm:$0xff]
    %v5993 = vld [vmem:[%s5972 + $0xa0] sm:$0xff]
    %v5994 = vld [vmem:[%s5972 + $0xa8] sm:$0xff]
    %v5995 = vld [vmem:[%s5972 + $0xb0] sm:$0xff]
    %v5996 = vld [vmem:[%s5972 + $0xb8] sm:$0xff]
    %v5997 = vld [vmem:[%s5972 + $0xc0] sm:$0xff]
    %v5998 = vld [vmem:[%s5972 + $0xc8] sm:$0xff]
    %v5999 = vld [vmem:[%s5972 + $0xd0] sm:$0xff]
    %v6000 = vld [vmem:[%s5972 + $0xd8] sm:$0xff]
    %v6001 = vld [vmem:[%s5972 + $0xe0] sm:$0xff]
    %v6002 = vld [vmem:[%s5972 + $0xe8] sm:$0xff]
    %v6003 = vld [vmem:[%s5972 + $0xf0] sm:$0xff]
    %v6004 = vld [vmem:[%s5972 + $0xf8] sm:$0xff]
    %v6005 = vld [vmem:[%s5972 + $0x100] sm:$0xff]
    %v6006 = vld [vmem:[%s5972 + $0x108] sm:$0xff]
    %v6007 = vld [vmem:[%s5972 + $0x110] sm:$0xff]
    %v6008 = vld [vmem:[%s5972 + $0x118] sm:$0xff]
    %v6009 = vld [vmem:[%s5972 + $0x120] sm:$0xff]
    %v6010 = vld [vmem:[%s5972 + $0x128] sm:$0xff]
    %v6011 = vld [vmem:[%s5972 + $0x130] sm:$0xff]
    %v6012 = vld [vmem:[%s5972 + $0x138] sm:$0xff]
    %v6013 = vld [vmem:[%s5972 + $0x140] sm:$0xff]
    %v6014 = vld [vmem:[%s5972 + $0x148] sm:$0xff]
    %v6015 = vld [vmem:[%s5972 + $0x150] sm:$0xff]
    %v6016 = vld [vmem:[%s5972 + $0x158] sm:$0xff]
    %v6017 = vld [vmem:[%s5972 + $0x160] sm:$0xff]
    %v6018 = vld [vmem:[%s5972 + $0x168] sm:$0xff]
    %v6019 = vld [vmem:[%s5972 + $0x170] sm:$0xff]
    %v6020 = vld [vmem:[%s5972 + $0x178] sm:$0xff]
    %v6021 = vld [vmem:[%s5972 + $0x180] sm:$0xff]
    %v6022 = vld [vmem:[%s5972 + $0x188] sm:$0xff]
    %v6023 = vld [vmem:[%s5972 + $0x190] sm:$0xff]
    %v6024 = vld [vmem:[%s5972 + $0x198] sm:$0xff]
    %v6025 = vld [vmem:[%s5972 + $0x1a0] sm:$0xff]
    %v6026 = vld [vmem:[%s5972 + $0x1a8] sm:$0xff]
    %v6027 = vld [vmem:[%s5972 + $0x1b0] sm:$0xff]
    %v6028 = vld [vmem:[%s5972 + $0x1b8] sm:$0xff]
    %v6029 = vld [vmem:[%s5972 + $0x1c0] sm:$0xff]
    %v6030 = vld [vmem:[%s5972 + $0x1c8] sm:$0xff]
    %v6031 = vld [vmem:[%s5972 + $0x1d0] sm:$0xff]
    %v6032 = vld [vmem:[%s5972 + $0x1d8] sm:$0xff]
    %v6033 = vld [vmem:[%s5972 + $0x1e0] sm:$0xff]
    %v6034 = vld [vmem:[%s5972 + $0x1e8] sm:$0xff]
    %v6035 = vld [vmem:[%s5972 + $0x1f0] sm:$0xff]
    %v6036 = vld [vmem:[%s5972 + $0x1f8] sm:$0xff]
    %s6037 = scalar_lea.vmem [#allocation9], 3
    %v6038 = vld [vmem:[%s6037] ss:$4 sm:$0xf]
    %v6040 = vlaneseq
    %v6041 = vshrl.u32 %v6040, 7
    %v6042 = vsub.s32 0, %v6041
    %v6043 = vrot.slane %v6038, %v6042
    %v6044 = vlaneseq
    %v6045 = vshrl.u32 %v6044, 7
    %v6046 = vsub.s32 1, %v6045
    %v6047 = vrot.slane %v6038, %v6046
    %v6048 = vlaneseq
    %v6049 = vshrl.u32 %v6048, 7
    %v6050 = vsub.s32 2, %v6049
    %v6051 = vrot.slane %v6038, %v6050
    %v6052 = vlaneseq
    %v6053 = vshrl.u32 %v6052, 7
    %v6054 = vsub.s32 3, %v6053
    %v6055 = vrot.slane %v6038, %v6054
    %6060 = vmatprep.subr.mxu0 %v5974
    %6061 = vmatpush1.msra.mxu0 %v5973
    %6062 = vmatprep.subr.mxu0 %v5978
    %6063 = vmatpush1.msra.mxu0 %v5977
    %6064 = vmatprep.subr.mxu0 %v5982
    %6065 = vmatpush1.msra.mxu0 %v5981
    %6066 = vmatprep.subr.mxu0 %v5986
    %6067 = vmatpush1.msra.mxu0 %v5985
    %6068 = vmatprep.subr.mxu0 %v5990
    %6069 = vmatpush1.msra.mxu0 %v5989
    %6070 = vmatprep.subr.mxu0 %v5994
    %6071 = vmatpush1.msra.mxu0 %v5993
    %6072 = vmatprep.subr.mxu0 %v5998
    %6073 = vmatpush1.msra.mxu0 %v5997
    %6074 = vmatprep.subr.mxu0 %v6002
    %6075 = vmatpush1.msra.mxu0 %v6001
    %6076 = vmatprep.subr.mxu0 %v6006
    %6077 = vmatpush1.msra.mxu0 %v6005
    %6078 = vmatprep.subr.mxu0 %v6010
    %6079 = vmatpush1.msra.mxu0 %v6009
    %6080 = vmatprep.subr.mxu0 %v6014
    %6081 = vmatpush1.msra.mxu0 %v6013
    %6082 = vmatprep.subr.mxu0 %v6018
    %6083 = vmatpush1.msra.mxu0 %v6017
    %6084 = vmatprep.subr.mxu0 %v6022
    %6085 = vmatpush1.msra.mxu0 %v6021
    %6086 = vmatprep.subr.mxu0 %v6026
    %6087 = vmatpush1.msra.mxu0 %v6025
    %6088 = vmatprep.subr.mxu0 %v6030
    %6089 = vmatpush1.msra.mxu0 %v6029
    %6090 = vmatprep.subr.mxu0 %v6034
    %6091 = vmatpush1.msra.mxu0 %v6033
    %6092 = vmatprep.subr.mxu0 0.0
    %6093 = vmatpush1.msra.mxu0 0.0
    %6094 = vmatprep.subr.mxu0 0.0
    %6095 = vmatpush1.msra.mxu0 0.0
    %6096 = vmatprep.subr.mxu0 0.0
    %6097 = vmatpush1.msra.mxu0 0.0
    %6098 = vmatprep.subr.mxu0 0.0
    %6099 = vmatpush1.msra.mxu0 0.0
    %6100 = vmatprep.subr.mxu0 0.0
    %6101 = vmatpush1.msra.mxu0 0.0
    %6102 = vmatprep.subr.mxu0 0.0
    %6103 = vmatpush1.msra.mxu0 0.0
    %6104 = vmatprep.subr.mxu0 0.0
    %6105 = vmatpush1.msra.mxu0 0.0
    %6106 = vmatprep.subr.mxu0 0.0
    %6107 = vmatpush1.msra.mxu0 0.0
    %6108 = vmatprep.subr.mxu0 0.0
    %6109 = vmatpush1.msra.mxu0 0.0
    %6110 = vmatprep.subr.mxu0 0.0
    %6111 = vmatpush1.msra.mxu0 0.0
    %6112 = vmatprep.subr.mxu0 0.0
    %6113 = vmatpush1.msra.mxu0 0.0
    %6114 = vmatprep.subr.mxu0 0.0
    %6115 = vmatpush1.msra.mxu0 0.0
    %6116 = vmatprep.subr.mxu0 0.0
    %6117 = vmatpush1.msra.mxu0 0.0
    %6118 = vmatprep.subr.mxu0 0.0
    %6119 = vmatpush1.msra.mxu0 0.0
    %6120 = vmatprep.subr.mxu0 0.0
    %6121 = vmatpush1.msra.mxu0 0.0
    %6122 = vmatprep.subr.mxu0 0.0
    %6123 = vmatpush1.msra.mxu0 0.0
    %6124 = vmatprep.mubr.f32.mxu0 0.0
    %6125 = vmatmul.mubr.f32.gmra.mrb[0].mxu0 %v4716
    %v6126 = vpop.f32.mrb[0].mxu0
    %v6127 = vadd.f32 %v6043, %v6126
    %v6128 = vpop.f32.mrb[0].mxu0
    %v6129 = vadd.f32 %v6047, %v6128
    %6130 = vmatprep.mubr.f32.mxu0 0.0
    %6131 = vmatmul.mubr.f32.gmra.mrb[0].mxu0 %v4886
    %v6132 = vpop.f32.mrb[0].mxu0
    %v6133 = vadd.f32 %v6043, %v6132
    %v6134 = vpop.f32.mrb[0].mxu0
    %v6135 = vadd.f32 %v6047, %v6134
    %6136 = vmatprep.mubr.f32.mxu0 0.0
    %6137 = vmatmul.mubr.f32.gmra.mrb[0].mxu0 %v5056
    %v6138 = vpop.f32.mrb[0].mxu0
    %v6139 = vadd.f32 %v6043, %v6138
    %v6140 = vpop.f32.mrb[0].mxu0
    %v6141 = vadd.f32 %v6047, %v6140
    %6142 = vmatprep.mubr.f32.mxu0 0.0
    %6143 = vmatmul.mubr.f32.gmra.mrb[0].mxu0 %v5226
    %v6144 = vpop.f32.mrb[0].mxu0
    %v6145 = vadd.f32 %v6043, %v6144
    %v6146 = vpop.f32.mrb[0].mxu0
    %v6147 = vadd.f32 %v6047, %v6146
    %6148 = vmatprep.mubr.f32.mxu0 0.0
    %6149 = vmatmul.mubr.f32.gmra.mrb[0].mxu0 %v5396
    %v6150 = vpop.f32.mrb[0].mxu0
    %v6151 = vadd.f32 %v6043, %v6150
    %v6152 = vpop.f32.mrb[0].mxu0
    %v6153 = vadd.f32 %v6047, %v6152
    %6154 = vmatprep.mubr.f32.mxu0 0.0
    %6155 = vmatmul.mubr.f32.gmra.mrb[0].mxu0 %v5566
    %v6156 = vpop.f32.mrb[0].mxu0
    %v6157 = vadd.f32 %v6043, %v6156
    %v6158 = vpop.f32.mrb[0].mxu0
    %v6159 = vadd.f32 %v6047, %v6158
    %6160 = vmatprep.mubr.f32.mxu0 0.0
    %6161 = vmatmul.mubr.f32.gmra.mrb[0].mxu0 %v5736
    %v6162 = vpop.f32.mrb[0].mxu0
    %v6163 = vadd.f32 %v6043, %v6162
    %v6164 = vpop.f32.mrb[0].mxu0
    %v6165 = vadd.f32 %v6047, %v6164
    %6166 = vmatprep.mubr.f32.mxu0 0.0
    %6167 = vmatmul.mubr.f32.gmra.mrb[0].mxu0 %v5906
    %v6168 = vpop.f32.mrb[0].mxu0
    %v6169 = vadd.f32 %v6043, %v6168
    %v6170 = vpop.f32.mrb[0].mxu0
    %v6171 = vadd.f32 %v6047, %v6170
    %6172 = vdwg.mxu0
    %6173 = vmatprep.subr.mxu0 %v5976
    %6174 = vmatpush1.msra.mxu0 %v5975
    %6175 = vmatprep.subr.mxu0 %v5980
    %6176 = vmatpush1.msra.mxu0 %v5979
    %6177 = vmatprep.subr.mxu0 %v5984
    %6178 = vmatpush1.msra.mxu0 %v5983
    %6179 = vmatprep.subr.mxu0 %v5988
    %6180 = vmatpush1.msra.mxu0 %v5987
    %6181 = vmatprep.subr.mxu0 %v5992
    %6182 = vmatpush1.msra.mxu0 %v5991
    %6183 = vmatprep.subr.mxu0 %v5996
    %6184 = vmatpush1.msra.mxu0 %v5995
    %6185 = vmatprep.subr.mxu0 %v6000
    %6186 = vmatpush1.msra.mxu0 %v5999
    %6187 = vmatprep.subr.mxu0 %v6004
    %6188 = vmatpush1.msra.mxu0 %v6003
    %6189 = vmatprep.subr.mxu0 %v6008
    %6190 = vmatpush1.msra.mxu0 %v6007
    %6191 = vmatprep.subr.mxu0 %v6012
    %6192 = vmatpush1.msra.mxu0 %v6011
    %6193 = vmatprep.subr.mxu0 %v6016
    %6194 = vmatpush1.msra.mxu0 %v6015
    %6195 = vmatprep.subr.mxu0 %v6020
    %6196 = vmatpush1.msra.mxu0 %v6019
    %6197 = vmatprep.subr.mxu0 %v6024
    %6198 = vmatpush1.msra.mxu0 %v6023
    %6199 = vmatprep.subr.mxu0 %v6028
    %6200 = vmatpush1.msra.mxu0 %v6027
    %6201 = vmatprep.subr.mxu0 %v6032
    %6202 = vmatpush1.msra.mxu0 %v6031
    %6203 = vmatprep.subr.mxu0 %v6036
    %6204 = vmatpush1.msra.mxu0 %v6035
    %6205 = vmatprep.subr.mxu0 0.0
    %6206 = vmatpush1.msra.mxu0 0.0
    %6207 = vmatprep.subr.mxu0 0.0
    %6208 = vmatpush1.msra.mxu0 0.0
    %6209 = vmatprep.subr.mxu0 0.0
    %6210 = vmatpush1.msra.mxu0 0.0
    %6211 = vmatprep.subr.mxu0 0.0
    %6212 = vmatpush1.msra.mxu0 0.0
    %6213 = vmatprep.subr.mxu0 0.0
    %6214 = vmatpush1.msra.mxu0 0.0
    %6215 = vmatprep.subr.mxu0 0.0
    %6216 = vmatpush1.msra.mxu0 0.0
    %6217 = vmatprep.subr.mxu0 0.0
    %6218 = vmatpush1.msra.mxu0 0.0
    %6219 = vmatprep.subr.mxu0 0.0
    %6220 = vmatpush1.msra.mxu0 0.0
    %6221 = vmatprep.subr.mxu0 0.0
    %6222 = vmatpush1.msra.mxu0 0.0
    %6223 = vmatprep.subr.mxu0 0.0
    %6224 = vmatpush1.msra.mxu0 0.0
    %6225 = vmatprep.subr.mxu0 0.0
    %6226 = vmatpush1.msra.mxu0 0.0
    %6227 = vmatprep.subr.mxu0 0.0
    %6228 = vmatpush1.msra.mxu0 0.0
    %6229 = vmatprep.subr.mxu0 0.0
    %6230 = vmatpush1.msra.mxu0 0.0
    %6231 = vmatprep.subr.mxu0 0.0
    %6232 = vmatpush1.msra.mxu0 0.0
    %6233 = vmatprep.subr.mxu0 0.0
    %6234 = vmatpush1.msra.mxu0 0.0
    %6235 = vmatprep.subr.mxu0 0.0
    %6236 = vmatpush1.msra.mxu0 0.0
    %6237 = vmatprep.mubr.f32.mxu0 0.0
    %6238 = vmatmul.mubr.f32.gmra.mrb[0].mxu0 %v4716
    %v6239 = vpop.f32.mrb[0].mxu0
    %v6240 = vadd.f32 %v6051, %v6239
    %v6241 = vpop.f32.mrb[0].mxu0
    %v6242 = vadd.f32 %v6055, %v6241
    %6243 = vmatprep.mubr.f32.mxu0 0.0
    %6244 = vmatmul.mubr.f32.gmra.mrb[0].mxu0 %v4886
    %v6245 = vpop.f32.mrb[0].mxu0
    %v6246 = vadd.f32 %v6051, %v6245
    %v6247 = vpop.f32.mrb[0].mxu0
    %v6248 = vadd.f32 %v6055, %v6247
    %6249 = vmatprep.mubr.f32.mxu0 0.0
    %6250 = vmatmul.mubr.f32.gmra.mrb[0].mxu0 %v5056
    %v6251 = vpop.f32.mrb[0].mxu0
    %v6252 = vadd.f32 %v6051, %v6251
    %v6253 = vpop.f32.mrb[0].mxu0
    %v6254 = vadd.f32 %v6055, %v6253
    %6255 = vmatprep.mubr.f32.mxu0 0.0
    %6256 = vmatmul.mubr.f32.gmra.mrb[0].mxu0 %v5226
    %v6257 = vpop.f32.mrb[0].mxu0
    %v6258 = vadd.f32 %v6051, %v6257
    %v6259 = vpop.f32.mrb[0].mxu0
    %v6260 = vadd.f32 %v6055, %v6259
    %6261 = vmatprep.mubr.f32.mxu0 0.0
    %6262 = vmatmul.mubr.f32.gmra.mrb[0].mxu0 %v5396
    %v6263 = vpop.f32.mrb[0].mxu0
    %v6264 = vadd.f32 %v6051, %v6263
    %v6265 = vpop.f32.mrb[0].mxu0
    %v6266 = vadd.f32 %v6055, %v6265
    %6267 = vmatprep.mubr.f32.mxu0 0.0
    %6268 = vmatmul.mubr.f32.gmra.mrb[0].mxu0 %v5566
    %v6269 = vpop.f32.mrb[0].mxu0
    %v6270 = vadd.f32 %v6051, %v6269
    %v6271 = vpop.f32.mrb[0].mxu0
    %v6272 = vadd.f32 %v6055, %v6271
    %6273 = vmatprep.mubr.f32.mxu0 0.0
    %6274 = vmatmul.mubr.f32.gmra.mrb[0].mxu0 %v5736
    %v6275 = vpop.f32.mrb[0].mxu0
    %v6276 = vadd.f32 %v6051, %v6275
    %v6277 = vpop.f32.mrb[0].mxu0
    %v6278 = vadd.f32 %v6055, %v6277
    %6279 = vmatprep.mubr.f32.mxu0 0.0
    %6280 = vmatmul.mubr.f32.gmra.mrb[0].mxu0 %v5906
    %v6281 = vpop.f32.mrb[0].mxu0
    %v6282 = vadd.f32 %v6051, %v6281
    %v6283 = vpop.f32.mrb[0].mxu0
    %v6284 = vadd.f32 %v6055, %v6283
    %6285 = vdwg.mxu0
    %6286 = vmatprep.subr.mxu0 %v5909
    %6287 = vmatpush1.msra.mxu0 %v5908
    %6288 = vmatprep.subr.mxu0 %v5913
    %6289 = vmatpush1.msra.mxu0 %v5912
    %6290 = vmatprep.subr.mxu0 %v5917
    %6291 = vmatpush1.msra.mxu0 %v5916
    %6292 = vmatprep.subr.mxu0 %v5921
    %6293 = vmatpush1.msra.mxu0 %v5920
    %6294 = vmatprep.subr.mxu0 %v5925
    %6295 = vmatpush1.msra.mxu0 %v5924
    %6296 = vmatprep.subr.mxu0 %v5929
    %6297 = vmatpush1.msra.mxu0 %v5928
    %6298 = vmatprep.subr.mxu0 %v5933
    %6299 = vmatpush1.msra.mxu0 %v5932
    %6300 = vmatprep.subr.mxu0 %v5937
    %6301 = vmatpush1.msra.mxu0 %v5936
    %6302 = vmatprep.subr.mxu0 %v5941
    %6303 = vmatpush1.msra.mxu0 %v5940
    %6304 = vmatprep.subr.mxu0 %v5945
    %6305 = vmatpush1.msra.mxu0 %v5944
    %6306 = vmatprep.subr.mxu0 %v5949
    %6307 = vmatpush1.msra.mxu0 %v5948
    %6308 = vmatprep.subr.mxu0 %v5953
    %6309 = vmatpush1.msra.mxu0 %v5952
    %6310 = vmatprep.subr.mxu0 %v5957
    %6311 = vmatpush1.msra.mxu0 %v5956
    %6312 = vmatprep.subr.mxu0 %v5961
    %6313 = vmatpush1.msra.mxu0 %v5960
    %6314 = vmatprep.subr.mxu0 %v5965
    %6315 = vmatpush1.msra.mxu0 %v5964
    %6316 = vmatprep.subr.mxu0 %v5969
    %6317 = vmatpush1.msra.mxu0 %v5968
    %6318 = vmatprep.subr.mxu0 0.0
    %6319 = vmatpush1.msra.mxu0 0.0
    %6320 = vmatprep.subr.mxu0 0.0
    %6321 = vmatpush1.msra.mxu0 0.0
    %6322 = vmatprep.subr.mxu0 0.0
    %6323 = vmatpush1.msra.mxu0 0.0
    %6324 = vmatprep.subr.mxu0 0.0
    %6325 = vmatpush1.msra.mxu0 0.0
    %6326 = vmatprep.subr.mxu0 0.0
    %6327 = vmatpush1.msra.mxu0 0.0
    %6328 = vmatprep.subr.mxu0 0.0
    %6329 = vmatpush1.msra.mxu0 0.0
    %6330 = vmatprep.subr.mxu0 0.0
    %6331 = vmatpush1.msra.mxu0 0.0
    %6332 = vmatprep.subr.mxu0 0.0
    %6333 = vmatpush1.msra.mxu0 0.0
    %6334 = vmatprep.subr.mxu0 0.0
    %6335 = vmatpush1.msra.mxu0 0.0
    %6336 = vmatprep.subr.mxu0 0.0
    %6337 = vmatpush1.msra.mxu0 0.0
    %6338 = vmatprep.subr.mxu0 0.0
    %6339 = vmatpush1.msra.mxu0 0.0
    %6340 = vmatprep.subr.mxu0 0.0
    %6341 = vmatpush1.msra.mxu0 0.0
    %6342 = vmatprep.subr.mxu0 0.0
    %6343 = vmatpush1.msra.mxu0 0.0
    %6344 = vmatprep.subr.mxu0 0.0
    %6345 = vmatpush1.msra.mxu0 0.0
    %6346 = vmatprep.subr.mxu0 0.0
    %6347 = vmatpush1.msra.mxu0 0.0
    %6348 = vmatprep.subr.mxu0 0.0
    %6349 = vmatpush1.msra.mxu0 0.0
    %6350 = vmatprep.mubr.f32.mxu0 0.0
    %6351 = vmatmul.mubr.f32.gmra.mrb[0].mxu0 0.0
    %v6352 = vpop.f32.mrb[0].mxu0
    %v6353 = vadd.f32 0.0, %v6352
    %v6354 = vpop.f32.mrb[0].mxu0
    %v6355 = vadd.f32 0.0, %v6354
    %6356 = vdwg.mxu0
    %6357 = vmatprep.subr.mxu0 %v5911
    %6358 = vmatpush1.msra.mxu0 %v5910
    %6359 = vmatprep.subr.mxu0 %v5915
    %6360 = vmatpush1.msra.mxu0 %v5914
    %6361 = vmatprep.subr.mxu0 %v5919
    %6362 = vmatpush1.msra.mxu0 %v5918
    %6363 = vmatprep.subr.mxu0 %v5923
    %6364 = vmatpush1.msra.mxu0 %v5922
    %6365 = vmatprep.subr.mxu0 %v5927
    %6366 = vmatpush1.msra.mxu0 %v5926
    %6367 = vmatprep.subr.mxu0 %v5931
    %6368 = vmatpush1.msra.mxu0 %v5930
    %6369 = vmatprep.subr.mxu0 %v5935
    %6370 = vmatpush1.msra.mxu0 %v5934
    %6371 = vmatprep.subr.mxu0 %v5939
    %6372 = vmatpush1.msra.mxu0 %v5938
    %6373 = vmatprep.subr.mxu0 %v5943
    %6374 = vmatpush1.msra.mxu0 %v5942
    %6375 = vmatprep.subr.mxu0 %v5947
    %6376 = vmatpush1.msra.mxu0 %v5946
    %6377 = vmatprep.subr.mxu0 %v5951
    %6378 = vmatpush1.msra.mxu0 %v5950
    %6379 = vmatprep.subr.mxu0 %v5955
    %6380 = vmatpush1.msra.mxu0 %v5954
    %6381 = vmatprep.subr.mxu0 %v5959
    %6382 = vmatpush1.msra.mxu0 %v5958
    %6383 = vmatprep.subr.mxu0 %v5963
    %6384 = vmatpush1.msra.mxu0 %v5962
    %6385 = vmatprep.subr.mxu0 %v5967
    %6386 = vmatpush1.msra.mxu0 %v5966
    %6387 = vmatprep.subr.mxu0 %v5971
    %6388 = vmatpush1.msra.mxu0 %v5970
    %6389 = vmatprep.subr.mxu0 0.0
    %6390 = vmatpush1.msra.mxu0 0.0
    %6391 = vmatprep.subr.mxu0 0.0
    %6392 = vmatpush1.msra.mxu0 0.0
    %6393 = vmatprep.subr.mxu0 0.0
    %6394 = vmatpush1.msra.mxu0 0.0
    %6395 = vmatprep.subr.mxu0 0.0
    %6396 = vmatpush1.msra.mxu0 0.0
    %6397 = vmatprep.subr.mxu0 0.0
    %6398 = vmatpush1.msra.mxu0 0.0
    %6399 = vmatprep.subr.mxu0 0.0
    %6400 = vmatpush1.msra.mxu0 0.0
    %6401 = vmatprep.subr.mxu0 0.0
    %6402 = vmatpush1.msra.mxu0 0.0
    %6403 = vmatprep.subr.mxu0 0.0
    %6404 = vmatpush1.msra.mxu0 0.0
    %6405 = vmatprep.subr.mxu0 0.0
    %6406 = vmatpush1.msra.mxu0 0.0
    %6407 = vmatprep.subr.mxu0 0.0
    %6408 = vmatpush1.msra.mxu0 0.0
    %6409 = vmatprep.subr.mxu0 0.0
    %6410 = vmatpush1.msra.mxu0 0.0
    %6411 = vmatprep.subr.mxu0 0.0
    %6412 = vmatpush1.msra.mxu0 0.0
    %6413 = vmatprep.subr.mxu0 0.0
    %6414 = vmatpush1.msra.mxu0 0.0
    %6415 = vmatprep.subr.mxu0 0.0
    %6416 = vmatpush1.msra.mxu0 0.0
    %6417 = vmatprep.subr.mxu0 0.0
    %6418 = vmatpush1.msra.mxu0 0.0
    %6419 = vmatprep.subr.mxu0 0.0
    %6420 = vmatpush1.msra.mxu0 0.0
    %6421 = vmatprep.mubr.f32.mxu0 0.0
    %6422 = vmatmul.mubr.f32.gmra.mrb[0].mxu0 0.0
    %v6423 = vpop.f32.mrb[0].mxu0
    %v6424 = vadd.f32 0.0, %v6423
    %v6425 = vpop.f32.mrb[0].mxu0
    %v6426 = vadd.f32 0.0, %v6425
    %6427 = vdwg.mxu0
    %v6428 = vadd.f32 %v6127, %v6353
    %v6429 = vadd.f32 %v6129, %v6355
    %v6430 = vadd.f32 %v6240, %v6424
    %v6431 = vadd.f32 %v6242, %v6426
    %v6432 = vxor.u32 %v6428, 2147483648
    %v6433 = vmul.f32 %v6432, 1.442695
    %v6434 = vpow.pop %v6433
    %v6435 = vadd.f32 %v6434, 1.0
    %v6436 = vrcp.pop %v6435
    %v6437 = vmul.f32 1.0, %v6436
    %v6438 = vxor.u32 %v6429, 2147483648
    %v6439 = vmul.f32 %v6438, 1.442695
    %v6440 = vpow.pop %v6439
    %v6441 = vadd.f32 %v6440, 1.0
    %v6442 = vrcp.pop %v6441
    %v6443 = vmul.f32 1.0, %v6442
    %v6444 = vtanh.pop %v6430
    %v6445 = vxor.u32 %v6431, 2147483648
    %v6446 = vmul.f32 %v6445, 1.442695
    %v6447 = vpow.pop %v6446
    %v6448 = vadd.f32 %v6447, 1.0
    %v6449 = vrcp.pop %v6448
    %v6450 = vmul.f32 1.0, %v6449
    %v6451 = vmul.f32 %v6443, 0.0
    %v6452 = vmul.f32 %v6437, %v6444
    %v6453 = vadd.f32 %v6451, %v6452
    %v6454 = vtanh.pop %v6453
    %v6455 = vmul.f32 %v6450, %v6454
    %6456 = vmatprep.subr.mxu0 %v5909
    %6457 = vmatpush1.msra.mxu0 %v5908
    %6458 = vmatprep.subr.mxu0 %v5913
    %6459 = vmatpush1.msra.mxu0 %v5912
    %6460 = vmatprep.subr.mxu0 %v5917
    %6461 = vmatpush1.msra.mxu0 %v5916
    %6462 = vmatprep.subr.mxu0 %v5921
    %6463 = vmatpush1.msra.mxu0 %v5920
    %6464 = vmatprep.subr.mxu0 %v5925
    %6465 = vmatpush1.msra.mxu0 %v5924
    %6466 = vmatprep.subr.mxu0 %v5929
    %6467 = vmatpush1.msra.mxu0 %v5928
    %6468 = vmatprep.subr.mxu0 %v5933
    %6469 = vmatpush1.msra.mxu0 %v5932
    %6470 = vmatprep.subr.mxu0 %v5937
    %6471 = vmatpush1.msra.mxu0 %v5936
    %6472 = vmatprep.subr.mxu0 %v5941
    %6473 = vmatpush1.msra.mxu0 %v5940
    %6474 = vmatprep.subr.mxu0 %v5945
    %6475 = vmatpush1.msra.mxu0 %v5944
    %6476 = vmatprep.subr.mxu0 %v5949
    %6477 = vmatpush1.msra.mxu0 %v5948
    %6478 = vmatprep.subr.mxu0 %v5953
    %6479 = vmatpush1.msra.mxu0 %v5952
    %6480 = vmatprep.subr.mxu0 %v5957
    %6481 = vmatpush1.msra.mxu0 %v5956
    %6482 = vmatprep.subr.mxu0 %v5961
    %6483 = vmatpush1.msra.mxu0 %v5960
    %6484 = vmatprep.subr.mxu0 %v5965
    %6485 = vmatpush1.msra.mxu0 %v5964
    %6486 = vmatprep.subr.mxu0 %v5969
    %6487 = vmatpush1.msra.mxu0 %v5968
    %6488 = vmatprep.subr.mxu0 0.0
    %6489 = vmatpush1.msra.mxu0 0.0
    %6490 = vmatprep.subr.mxu0 0.0
    %6491 = vmatpush1.msra.mxu0 0.0
    %6492 = vmatprep.subr.mxu0 0.0
    %6493 = vmatpush1.msra.mxu0 0.0
    %6494 = vmatprep.subr.mxu0 0.0
    %6495 = vmatpush1.msra.mxu0 0.0
    %6496 = vmatprep.subr.mxu0 0.0
    %6497 = vmatpush1.msra.mxu0 0.0
    %6498 = vmatprep.subr.mxu0 0.0
    %6499 = vmatpush1.msra.mxu0 0.0
    %6500 = vmatprep.subr.mxu0 0.0
    %6501 = vmatpush1.msra.mxu0 0.0
    %6502 = vmatprep.subr.mxu0 0.0
    %6503 = vmatpush1.msra.mxu0 0.0
    %6504 = vmatprep.subr.mxu0 0.0
    %6505 = vmatpush1.msra.mxu0 0.0
    %6506 = vmatprep.subr.mxu0 0.0
    %6507 = vmatpush1.msra.mxu0 0.0
    %6508 = vmatprep.subr.mxu0 0.0
    %6509 = vmatpush1.msra.mxu0 0.0
    %6510 = vmatprep.subr.mxu0 0.0
    %6511 = vmatpush1.msra.mxu0 0.0
    %6512 = vmatprep.subr.mxu0 0.0
    %6513 = vmatpush1.msra.mxu0 0.0
    %6514 = vmatprep.subr.mxu0 0.0
    %6515 = vmatpush1.msra.mxu0 0.0
    %6516 = vmatprep.subr.mxu0 0.0
    %6517 = vmatpush1.msra.mxu0 0.0
    %6518 = vmatprep.subr.mxu0 0.0
    %6519 = vmatpush1.msra.mxu0 0.0
    %6520 = vmatprep.mubr.f32.mxu0 0.0
    %6521 = vmatmul.mubr.f32.gmra.mrb[0].mxu0 %v6455
    %v6522 = vpop.f32.mrb[0].mxu0
    %v6523 = vadd.f32 0.0, %v6522
    %v6524 = vpop.f32.mrb[0].mxu0
    %v6525 = vadd.f32 0.0, %v6524
    %6526 = vdwg.mxu0
    %6527 = vmatprep.subr.mxu0 %v5911
    %6528 = vmatpush1.msra.mxu0 %v5910
    %6529 = vmatprep.subr.mxu0 %v5915
    %6530 = vmatpush1.msra.mxu0 %v5914
    %6531 = vmatprep.subr.mxu0 %v5919
    %6532 = vmatpush1.msra.mxu0 %v5918
    %6533 = vmatprep.subr.mxu0 %v5923
    %6534 = vmatpush1.msra.mxu0 %v5922
    %6535 = vmatprep.subr.mxu0 %v5927
    %6536 = vmatpush1.msra.mxu0 %v5926
    %6537 = vmatprep.subr.mxu0 %v5931
    %6538 = vmatpush1.msra.mxu0 %v5930
    %6539 = vmatprep.subr.mxu0 %v5935
    %6540 = vmatpush1.msra.mxu0 %v5934
    %6541 = vmatprep.subr.mxu0 %v5939
    %6542 = vmatpush1.msra.mxu0 %v5938
    %6543 = vmatprep.subr.mxu0 %v5943
    %6544 = vmatpush1.msra.mxu0 %v5942
    %6545 = vmatprep.subr.mxu0 %v5947
    %6546 = vmatpush1.msra.mxu0 %v5946
    %6547 = vmatprep.subr.mxu0 %v5951
    %6548 = vmatpush1.msra.mxu0 %v5950
    %6549 = vmatprep.subr.mxu0 %v5955
    %6550 = vmatpush1.msra.mxu0 %v5954
    %6551 = vmatprep.subr.mxu0 %v5959
    %6552 = vmatpush1.msra.mxu0 %v5958
    %6553 = vmatprep.subr.mxu0 %v5963
    %6554 = vmatpush1.msra.mxu0 %v5962
    %6555 = vmatprep.subr.mxu0 %v5967
    %6556 = vmatpush1.msra.mxu0 %v5966
    %6557 = vmatprep.subr.mxu0 %v5971
    %6558 = vmatpush1.msra.mxu0 %v5970
    %6559 = vmatprep.subr.mxu0 0.0
    %6560 = vmatpush1.msra.mxu0 0.0
    %6561 = vmatprep.subr.mxu0 0.0
    %6562 = vmatpush1.msra.mxu0 0.0
    %6563 = vmatprep.subr.mxu0 0.0
    %6564 = vmatpush1.msra.mxu0 0.0
    %6565 = vmatprep.subr.mxu0 0.0
    %6566 = vmatpush1.msra.mxu0 0.0
    %6567 = vmatprep.subr.mxu0 0.0
    %6568 = vmatpush1.msra.mxu0 0.0
    %6569 = vmatprep.subr.mxu0 0.0
    %6570 = vmatpush1.msra.mxu0 0.0
    %6571 = vmatprep.subr.mxu0 0.0
    %6572 = vmatpush1.msra.mxu0 0.0
    %6573 = vmatprep.subr.mxu0 0.0
    %6574 = vmatpush1.msra.mxu0 0.0
    %6575 = vmatprep.subr.mxu0 0.0
    %6576 = vmatpush1.msra.mxu0 0.0
    %6577 = vmatprep.subr.mxu0 0.0
    %6578 = vmatpush1.msra.mxu0 0.0
    %6579 = vmatprep.subr.mxu0 0.0
    %6580 = vmatpush1.msra.mxu0 0.0
    %6581 = vmatprep.subr.mxu0 0.0
    %6582 = vmatpush1.msra.mxu0 0.0
    %6583 = vmatprep.subr.mxu0 0.0
    %6584 = vmatpush1.msra.mxu0 0.0
    %6585 = vmatprep.subr.mxu0 0.0
    %6586 = vmatpush1.msra.mxu0 0.0
    %6587 = vmatprep.subr.mxu0 0.0
    %6588 = vmatpush1.msra.mxu0 0.0
    %6589 = vmatprep.subr.mxu0 0.0
    %6590 = vmatpush1.msra.mxu0 0.0
    %6591 = vmatprep.mubr.f32.mxu0 0.0
    %6592 = vmatmul.mubr.f32.gmra.mrb[0].mxu0 %v6455
    %v6593 = vpop.f32.mrb[0].mxu0
    %v6594 = vadd.f32 0.0, %v6593
    %v6595 = vpop.f32.mrb[0].mxu0
    %v6596 = vadd.f32 0.0, %v6595
    %6597 = vdwg.mxu0
    %v6598 = vadd.f32 %v6133, %v6523
    %v6599 = vadd.f32 %v6135, %v6525
    %v6600 = vadd.f32 %v6246, %v6594
    %v6601 = vadd.f32 %v6248, %v6596
    %v6602 = vxor.u32 %v6598, 2147483648
    %v6603 = vmul.f32 %v6602, 1.442695
    %v6604 = vpow.pop %v6603
    %v6605 = vadd.f32 %v6604, 1.0
    %v6606 = vrcp.pop %v6605
    %v6607 = vmul.f32 1.0, %v6606
    %v6608 = vxor.u32 %v6599, 2147483648
    %v6609 = vmul.f32 %v6608, 1.442695
    %v6610 = vpow.pop %v6609
    %v6611 = vadd.f32 %v6610, 1.0
    %v6612 = vrcp.pop %v6611
    %v6613 = vmul.f32 1.0, %v6612
    %v6614 = vtanh.pop %v6600
    %v6615 = vxor.u32 %v6601, 2147483648
    %v6616 = vmul.f32 %v6615, 1.442695
    %v6617 = vpow.pop %v6616
    %v6618 = vadd.f32 %v6617, 1.0
    %v6619 = vrcp.pop %v6618
    %v6620 = vmul.f32 1.0, %v6619
    %v6621 = vmul.f32 %v6613, %v6453
    %v6622 = vmul.f32 %v6607, %v6614
    %v6623 = vadd.f32 %v6621, %v6622
    %v6624 = vtanh.pop %v6623
    %v6625 = vmul.f32 %v6620, %v6624
    %6626 = vmatprep.subr.mxu0 %v5909
    %6627 = vmatpush1.msra.mxu0 %v5908
    %6628 = vmatprep.subr.mxu0 %v5913
    %6629 = vmatpush1.msra.mxu0 %v5912
    %6630 = vmatprep.subr.mxu0 %v5917
    %6631 = vmatpush1.msra.mxu0 %v5916
    %6632 = vmatprep.subr.mxu0 %v5921
    %6633 = vmatpush1.msra.mxu0 %v5920
    %6634 = vmatprep.subr.mxu0 %v5925
    %6635 = vmatpush1.msra.mxu0 %v5924
    %6636 = vmatprep.subr.mxu0 %v5929
    %6637 = vmatpush1.msra.mxu0 %v5928
    %6638 = vmatprep.subr.mxu0 %v5933
    %6639 = vmatpush1.msra.mxu0 %v5932
    %6640 = vmatprep.subr.mxu0 %v5937
    %6641 = vmatpush1.msra.mxu0 %v5936
    %6642 = vmatprep.subr.mxu0 %v5941
    %6643 = vmatpush1.msra.mxu0 %v5940
    %6644 = vmatprep.subr.mxu0 %v5945
    %6645 = vmatpush1.msra.mxu0 %v5944
    %6646 = vmatprep.subr.mxu0 %v5949
    %6647 = vmatpush1.msra.mxu0 %v5948
    %6648 = vmatprep.subr.mxu0 %v5953
    %6649 = vmatpush1.msra.mxu0 %v5952
    %6650 = vmatprep.subr.mxu0 %v5957
    %6651 = vmatpush1.msra.mxu0 %v5956
    %6652 = vmatprep.subr.mxu0 %v5961
    %6653 = vmatpush1.msra.mxu0 %v5960
    %6654 = vmatprep.subr.mxu0 %v5965
    %6655 = vmatpush1.msra.mxu0 %v5964
    %6656 = vmatprep.subr.mxu0 %v5969
    %6657 = vmatpush1.msra.mxu0 %v5968
    %6658 = vmatprep.subr.mxu0 0.0
    %6659 = vmatpush1.msra.mxu0 0.0
    %6660 = vmatprep.subr.mxu0 0.0
    %6661 = vmatpush1.msra.mxu0 0.0
    %6662 = vmatprep.subr.mxu0 0.0
    %6663 = vmatpush1.msra.mxu0 0.0
    %6664 = vmatprep.subr.mxu0 0.0
    %6665 = vmatpush1.msra.mxu0 0.0
    %6666 = vmatprep.subr.mxu0 0.0
    %6667 = vmatpush1.msra.mxu0 0.0
    %6668 = vmatprep.subr.mxu0 0.0
    %6669 = vmatpush1.msra.mxu0 0.0
    %6670 = vmatprep.subr.mxu0 0.0
    %6671 = vmatpush1.msra.mxu0 0.0
    %6672 = vmatprep.subr.mxu0 0.0
    %6673 = vmatpush1.msra.mxu0 0.0
    %6674 = vmatprep.subr.mxu0 0.0
    %6675 = vmatpush1.msra.mxu0 0.0
    %6676 = vmatprep.subr.mxu0 0.0
    %6677 = vmatpush1.msra.mxu0 0.0
    %6678 = vmatprep.subr.mxu0 0.0
    %6679 = vmatpush1.msra.mxu0 0.0
    %6680 = vmatprep.subr.mxu0 0.0
    %6681 = vmatpush1.msra.mxu0 0.0
    %6682 = vmatprep.subr.mxu0 0.0
    %6683 = vmatpush1.msra.mxu0 0.0
    %6684 = vmatprep.subr.mxu0 0.0
    %6685 = vmatpush1.msra.mxu0 0.0
    %6686 = vmatprep.subr.mxu0 0.0
    %6687 = vmatpush1.msra.mxu0 0.0
    %6688 = vmatprep.subr.mxu0 0.0
    %6689 = vmatpush1.msra.mxu0 0.0
    %6690 = vmatprep.mubr.f32.mxu0 0.0
    %6691 = vmatmul.mubr.f32.gmra.mrb[0].mxu0 %v6625
    %v6692 = vpop.f32.mrb[0].mxu0
    %v6693 = vadd.f32 0.0, %v6692
    %v6694 = vpop.f32.mrb[0].mxu0
    %v6695 = vadd.f32 0.0, %v6694
    %6696 = vdwg.mxu0
    %6697 = vmatprep.subr.mxu0 %v5911
    %6698 = vmatpush1.msra.mxu0 %v5910
    %6699 = vmatprep.subr.mxu0 %v5915
    %6700 = vmatpush1.msra.mxu0 %v5914
    %6701 = vmatprep.subr.mxu0 %v5919
    %6702 = vmatpush1.msra.mxu0 %v5918
    %6703 = vmatprep.subr.mxu0 %v5923
    %6704 = vmatpush1.msra.mxu0 %v5922
    %6705 = vmatprep.subr.mxu0 %v5927
    %6706 = vmatpush1.msra.mxu0 %v5926
    %6707 = vmatprep.subr.mxu0 %v5931
    %6708 = vmatpush1.msra.mxu0 %v5930
    %6709 = vmatprep.subr.mxu0 %v5935
    %6710 = vmatpush1.msra.mxu0 %v5934
    %6711 = vmatprep.subr.mxu0 %v5939
    %6712 = vmatpush1.msra.mxu0 %v5938
    %6713 = vmatprep.subr.mxu0 %v5943
    %6714 = vmatpush1.msra.mxu0 %v5942
    %6715 = vmatprep.subr.mxu0 %v5947
    %6716 = vmatpush1.msra.mxu0 %v5946
    %6717 = vmatprep.subr.mxu0 %v5951
    %6718 = vmatpush1.msra.mxu0 %v5950
    %6719 = vmatprep.subr.mxu0 %v5955
    %6720 = vmatpush1.msra.mxu0 %v5954
    %6721 = vmatprep.subr.mxu0 %v5959
    %6722 = vmatpush1.msra.mxu0 %v5958
    %6723 = vmatprep.subr.mxu0 %v5963
    %6724 = vmatpush1.msra.mxu0 %v5962
    %6725 = vmatprep.subr.mxu0 %v5967
    %6726 = vmatpush1.msra.mxu0 %v5966
    %6727 = vmatprep.subr.mxu0 %v5971
    %6728 = vmatpush1.msra.mxu0 %v5970
    %6729 = vmatprep.subr.mxu0 0.0
    %6730 = vmatpush1.msra.mxu0 0.0
    %6731 = vmatprep.subr.mxu0 0.0
    %6732 = vmatpush1.msra.mxu0 0.0
    %6733 = vmatprep.subr.mxu0 0.0
    %6734 = vmatpush1.msra.mxu0 0.0
    %6735 = vmatprep.subr.mxu0 0.0
    %6736 = vmatpush1.msra.mxu0 0.0
    %6737 = vmatprep.subr.mxu0 0.0
    %6738 = vmatpush1.msra.mxu0 0.0
    %6739 = vmatprep.subr.mxu0 0.0
    %6740 = vmatpush1.msra.mxu0 0.0
    %6741 = vmatprep.subr.mxu0 0.0
    %6742 = vmatpush1.msra.mxu0 0.0
    %6743 = vmatprep.subr.mxu0 0.0
    %6744 = vmatpush1.msra.mxu0 0.0
    %6745 = vmatprep.subr.mxu0 0.0
    %6746 = vmatpush1.msra.mxu0 0.0
    %6747 = vmatprep.subr.mxu0 0.0
    %6748 = vmatpush1.msra.mxu0 0.0
    %6749 = vmatprep.subr.mxu0 0.0
    %6750 = vmatpush1.msra.mxu0 0.0
    %6751 = vmatprep.subr.mxu0 0.0
    %6752 = vmatpush1.msra.mxu0 0.0
    %6753 = vmatprep.subr.mxu0 0.0
    %6754 = vmatpush1.msra.mxu0 0.0
    %6755 = vmatprep.subr.mxu0 0.0
    %6756 = vmatpush1.msra.mxu0 0.0
    %6757 = vmatprep.subr.mxu0 0.0
    %6758 = vmatpush1.msra.mxu0 0.0
    %6759 = vmatprep.subr.mxu0 0.0
    %6760 = vmatpush1.msra.mxu0 0.0
    %6761 = vmatprep.mubr.f32.mxu0 0.0
    %6762 = vmatmul.mubr.f32.gmra.mrb[0].mxu0 %v6625
    %v6763 = vpop.f32.mrb[0].mxu0
    %v6764 = vadd.f32 0.0, %v6763
    %v6765 = vpop.f32.mrb[0].mxu0
    %v6766 = vadd.f32 0.0, %v6765
    %6767 = vdwg.mxu0
    %v6768 = vadd.f32 %v6139, %v6693
    %v6769 = vadd.f32 %v6141, %v6695
    %v6770 = vadd.f32 %v6252, %v6764
    %v6771 = vadd.f32 %v6254, %v6766
    %v6772 = vxor.u32 %v6768, 2147483648
    %v6773 = vmul.f32 %v6772, 1.442695
    %v6774 = vpow.pop %v6773
    %v6775 = vadd.f32 %v6774, 1.0
    %v6776 = vrcp.pop %v6775
    %v6777 = vmul.f32 1.0, %v6776
    %v6778 = vxor.u32 %v6769, 2147483648
    %v6779 = vmul.f32 %v6778, 1.442695
    %v6780 = vpow.pop %v6779
    %v6781 = vadd.f32 %v6780, 1.0
    %v6782 = vrcp.pop %v6781
    %v6783 = vmul.f32 1.0, %v6782
    %v6784 = vtanh.pop %v6770
    %v6785 = vxor.u32 %v6771, 2147483648
    %v6786 = vmul.f32 %v6785, 1.442695
    %v6787 = vpow.pop %v6786
    %v6788 = vadd.f32 %v6787, 1.0
    %v6789 = vrcp.pop %v6788
    %v6790 = vmul.f32 1.0, %v6789
    %v6791 = vmul.f32 %v6783, %v6623
    %v6792 = vmul.f32 %v6777, %v6784
    %v6793 = vadd.f32 %v6791, %v6792
    %v6794 = vtanh.pop %v6793
    %v6795 = vmul.f32 %v6790, %v6794
    %6796 = vmatprep.subr.mxu0 %v5909
    %6797 = vmatpush1.msra.mxu0 %v5908
    %6798 = vmatprep.subr.mxu0 %v5913
    %6799 = vmatpush1.msra.mxu0 %v5912
    %6800 = vmatprep.subr.mxu0 %v5917
    %6801 = vmatpush1.msra.mxu0 %v5916
    %6802 = vmatprep.subr.mxu0 %v5921
    %6803 = vmatpush1.msra.mxu0 %v5920
    %6804 = vmatprep.subr.mxu0 %v5925
    %6805 = vmatpush1.msra.mxu0 %v5924
    %6806 = vmatprep.subr.mxu0 %v5929
    %6807 = vmatpush1.msra.mxu0 %v5928
    %6808 = vmatprep.subr.mxu0 %v5933
    %6809 = vmatpush1.msra.mxu0 %v5932
    %6810 = vmatprep.subr.mxu0 %v5937
    %6811 = vmatpush1.msra.mxu0 %v5936
    %6812 = vmatprep.subr.mxu0 %v5941
    %6813 = vmatpush1.msra.mxu0 %v5940
    %6814 = vmatprep.subr.mxu0 %v5945
    %6815 = vmatpush1.msra.mxu0 %v5944
    %6816 = vmatprep.subr.mxu0 %v5949
    %6817 = vmatpush1.msra.mxu0 %v5948
    %6818 = vmatprep.subr.mxu0 %v5953
    %6819 = vmatpush1.msra.mxu0 %v5952
    %6820 = vmatprep.subr.mxu0 %v5957
    %6821 = vmatpush1.msra.mxu0 %v5956
    %6822 = vmatprep.subr.mxu0 %v5961
    %6823 = vmatpush1.msra.mxu0 %v5960
    %6824 = vmatprep.subr.mxu0 %v5965
    %6825 = vmatpush1.msra.mxu0 %v5964
    %6826 = vmatprep.subr.mxu0 %v5969
    %6827 = vmatpush1.msra.mxu0 %v5968
    %6828 = vmatprep.subr.mxu0 0.0
    %6829 = vmatpush1.msra.mxu0 0.0
    %6830 = vmatprep.subr.mxu0 0.0
    %6831 = vmatpush1.msra.mxu0 0.0
    %6832 = vmatprep.subr.mxu0 0.0
    %6833 = vmatpush1.msra.mxu0 0.0
    %6834 = vmatprep.subr.mxu0 0.0
    %6835 = vmatpush1.msra.mxu0 0.0
    %6836 = vmatprep.subr.mxu0 0.0
    %6837 = vmatpush1.msra.mxu0 0.0
    %6838 = vmatprep.subr.mxu0 0.0
    %6839 = vmatpush1.msra.mxu0 0.0
    %6840 = vmatprep.subr.mxu0 0.0
    %6841 = vmatpush1.msra.mxu0 0.0
    %6842 = vmatprep.subr.mxu0 0.0
    %6843 = vmatpush1.msra.mxu0 0.0
    %6844 = vmatprep.subr.mxu0 0.0
    %6845 = vmatpush1.msra.mxu0 0.0
    %6846 = vmatprep.subr.mxu0 0.0
    %6847 = vmatpush1.msra.mxu0 0.0
    %6848 = vmatprep.subr.mxu0 0.0
    %6849 = vmatpush1.msra.mxu0 0.0
    %6850 = vmatprep.subr.mxu0 0.0
    %6851 = vmatpush1.msra.mxu0 0.0
    %6852 = vmatprep.subr.mxu0 0.0
    %6853 = vmatpush1.msra.mxu0 0.0
    %6854 = vmatprep.subr.mxu0 0.0
    %6855 = vmatpush1.msra.mxu0 0.0
    %6856 = vmatprep.subr.mxu0 0.0
    %6857 = vmatpush1.msra.mxu0 0.0
    %6858 = vmatprep.subr.mxu0 0.0
    %6859 = vmatpush1.msra.mxu0 0.0
    %6860 = vmatprep.mubr.f32.mxu0 0.0
    %6861 = vmatmul.mubr.f32.gmra.mrb[0].mxu0 %v6795
    %v6862 = vpop.f32.mrb[0].mxu0
    %v6863 = vadd.f32 0.0, %v6862
    %v6864 = vpop.f32.mrb[0].mxu0
    %v6865 = vadd.f32 0.0, %v6864
    %6866 = vdwg.mxu0
    %6867 = vmatprep.subr.mxu0 %v5911
    %6868 = vmatpush1.msra.mxu0 %v5910
    %6869 = vmatprep.subr.mxu0 %v5915
    %6870 = vmatpush1.msra.mxu0 %v5914
    %6871 = vmatprep.subr.mxu0 %v5919
    %6872 = vmatpush1.msra.mxu0 %v5918
    %6873 = vmatprep.subr.mxu0 %v5923
    %6874 = vmatpush1.msra.mxu0 %v5922
    %6875 = vmatprep.subr.mxu0 %v5927
    %6876 = vmatpush1.msra.mxu0 %v5926
    %6877 = vmatprep.subr.mxu0 %v5931
    %6878 = vmatpush1.msra.mxu0 %v5930
    %6879 = vmatprep.subr.mxu0 %v5935
    %6880 = vmatpush1.msra.mxu0 %v5934
    %6881 = vmatprep.subr.mxu0 %v5939
    %6882 = vmatpush1.msra.mxu0 %v5938
    %6883 = vmatprep.subr.mxu0 %v5943
    %6884 = vmatpush1.msra.mxu0 %v5942
    %6885 = vmatprep.subr.mxu0 %v5947
    %6886 = vmatpush1.msra.mxu0 %v5946
    %6887 = vmatprep.subr.mxu0 %v5951
    %6888 = vmatpush1.msra.mxu0 %v5950
    %6889 = vmatprep.subr.mxu0 %v5955
    %6890 = vmatpush1.msra.mxu0 %v5954
    %6891 = vmatprep.subr.mxu0 %v5959
    %6892 = vmatpush1.msra.mxu0 %v5958
    %6893 = vmatprep.subr.mxu0 %v5963
    %6894 = vmatpush1.msra.mxu0 %v5962
    %6895 = vmatprep.subr.mxu0 %v5967
    %6896 = vmatpush1.msra.mxu0 %v5966
    %6897 = vmatprep.subr.mxu0 %v5971
    %6898 = vmatpush1.msra.mxu0 %v5970
    %6899 = vmatprep.subr.mxu0 0.0
    %6900 = vmatpush1.msra.mxu0 0.0
    %6901 = vmatprep.subr.mxu0 0.0
    %6902 = vmatpush1.msra.mxu0 0.0
    %6903 = vmatprep.subr.mxu0 0.0
    %6904 = vmatpush1.msra.mxu0 0.0
    %6905 = vmatprep.subr.mxu0 0.0
    %6906 = vmatpush1.msra.mxu0 0.0
    %6907 = vmatprep.subr.mxu0 0.0
    %6908 = vmatpush1.msra.mxu0 0.0
    %6909 = vmatprep.subr.mxu0 0.0
    %6910 = vmatpush1.msra.mxu0 0.0
    %6911 = vmatprep.subr.mxu0 0.0
    %6912 = vmatpush1.msra.mxu0 0.0
    %6913 = vmatprep.subr.mxu0 0.0
    %6914 = vmatpush1.msra.mxu0 0.0
    %6915 = vmatprep.subr.mxu0 0.0
    %6916 = vmatpush1.msra.mxu0 0.0
    %6917 = vmatprep.subr.mxu0 0.0
    %6918 = vmatpush1.msra.mxu0 0.0
    %6919 = vmatprep.subr.mxu0 0.0
    %6920 = vmatpush1.msra.mxu0 0.0
    %6921 = vmatprep.subr.mxu0 0.0
    %6922 = vmatpush1.msra.mxu0 0.0
    %6923 = vmatprep.subr.mxu0 0.0
    %6924 = vmatpush1.msra.mxu0 0.0
    %6925 = vmatprep.subr.mxu0 0.0
    %6926 = vmatpush1.msra.mxu0 0.0
    %6927 = vmatprep.subr.mxu0 0.0
    %6928 = vmatpush1.msra.mxu0 0.0
    %6929 = vmatprep.subr.mxu0 0.0
    %6930 = vmatpush1.msra.mxu0 0.0
    %6931 = vmatprep.mubr.f32.mxu0 0.0
    %6932 = vmatmul.mubr.f32.gmra.mrb[0].mxu0 %v6795
    %v6933 = vpop.f32.mrb[0].mxu0
    %v6934 = vadd.f32 0.0, %v6933
    %v6935 = vpop.f32.mrb[0].mxu0
    %v6936 = vadd.f32 0.0, %v6935
    %6937 = vdwg.mxu0
    %v6938 = vadd.f32 %v6145, %v6863
    %v6939 = vadd.f32 %v6147, %v6865
    %v6940 = vadd.f32 %v6258, %v6934
    %v6941 = vadd.f32 %v6260, %v6936
    %v6942 = vxor.u32 %v6938, 2147483648
    %v6943 = vmul.f32 %v6942, 1.442695
    %v6944 = vpow.pop %v6943
    %v6945 = vadd.f32 %v6944, 1.0
    %v6946 = vrcp.pop %v6945
    %v6947 = vmul.f32 1.0, %v6946
    %v6948 = vxor.u32 %v6939, 2147483648
    %v6949 = vmul.f32 %v6948, 1.442695
    %v6950 = vpow.pop %v6949
    %v6951 = vadd.f32 %v6950, 1.0
    %v6952 = vrcp.pop %v6951
    %v6953 = vmul.f32 1.0, %v6952
    %v6954 = vtanh.pop %v6940
    %v6955 = vxor.u32 %v6941, 2147483648
    %v6956 = vmul.f32 %v6955, 1.442695
    %v6957 = vpow.pop %v6956
    %v6958 = vadd.f32 %v6957, 1.0
    %v6959 = vrcp.pop %v6958
    %v6960 = vmul.f32 1.0, %v6959
    %v6961 = vmul.f32 %v6953, %v6793
    %v6962 = vmul.f32 %v6947, %v6954
    %v6963 = vadd.f32 %v6961, %v6962
    %v6964 = vtanh.pop %v6963
    %v6965 = vmul.f32 %v6960, %v6964
    %6966 = vmatprep.subr.mxu0 %v5909
    %6967 = vmatpush1.msra.mxu0 %v5908
    %6968 = vmatprep.subr.mxu0 %v5913
    %6969 = vmatpush1.msra.mxu0 %v5912
    %6970 = vmatprep.subr.mxu0 %v5917
    %6971 = vmatpush1.msra.mxu0 %v5916
    %6972 = vmatprep.subr.mxu0 %v5921
    %6973 = vmatpush1.msra.mxu0 %v5920
    %6974 = vmatprep.subr.mxu0 %v5925
    %6975 = vmatpush1.msra.mxu0 %v5924
    %6976 = vmatprep.subr.mxu0 %v5929
    %6977 = vmatpush1.msra.mxu0 %v5928
    %6978 = vmatprep.subr.mxu0 %v5933
    %6979 = vmatpush1.msra.mxu0 %v5932
    %6980 = vmatprep.subr.mxu0 %v5937
    %6981 = vmatpush1.msra.mxu0 %v5936
    %6982 = vmatprep.subr.mxu0 %v5941
    %6983 = vmatpush1.msra.mxu0 %v5940
    %6984 = vmatprep.subr.mxu0 %v5945
    %6985 = vmatpush1.msra.mxu0 %v5944
    %6986 = vmatprep.subr.mxu0 %v5949
    %6987 = vmatpush1.msra.mxu0 %v5948
    %6988 = vmatprep.subr.mxu0 %v5953
    %6989 = vmatpush1.msra.mxu0 %v5952
    %6990 = vmatprep.subr.mxu0 %v5957
    %6991 = vmatpush1.msra.mxu0 %v5956
    %6992 = vmatprep.subr.mxu0 %v5961
    %6993 = vmatpush1.msra.mxu0 %v5960
    %6994 = vmatprep.subr.mxu0 %v5965
    %6995 = vmatpush1.msra.mxu0 %v5964
    %6996 = vmatprep.subr.mxu0 %v5969
    %6997 = vmatpush1.msra.mxu0 %v5968
    %6998 = vmatprep.subr.mxu0 0.0
    %6999 = vmatpush1.msra.mxu0 0.0
    %7000 = vmatprep.subr.mxu0 0.0
    %7001 = vmatpush1.msra.mxu0 0.0
    %7002 = vmatprep.subr.mxu0 0.0
    %7003 = vmatpush1.msra.mxu0 0.0
    %7004 = vmatprep.subr.mxu0 0.0
    %7005 = vmatpush1.msra.mxu0 0.0
    %7006 = vmatprep.subr.mxu0 0.0
    %7007 = vmatpush1.msra.mxu0 0.0
    %7008 = vmatprep.subr.mxu0 0.0
    %7009 = vmatpush1.msra.mxu0 0.0
    %7010 = vmatprep.subr.mxu0 0.0
    %7011 = vmatpush1.msra.mxu0 0.0
    %7012 = vmatprep.subr.mxu0 0.0
    %7013 = vmatpush1.msra.mxu0 0.0
    %7014 = vmatprep.subr.mxu0 0.0
    %7015 = vmatpush1.msra.mxu0 0.0
    %7016 = vmatprep.subr.mxu0 0.0
    %7017 = vmatpush1.msra.mxu0 0.0
    %7018 = vmatprep.subr.mxu0 0.0
    %7019 = vmatpush1.msra.mxu0 0.0
    %7020 = vmatprep.subr.mxu0 0.0
    %7021 = vmatpush1.msra.mxu0 0.0
    %7022 = vmatprep.subr.mxu0 0.0
    %7023 = vmatpush1.msra.mxu0 0.0
    %7024 = vmatprep.subr.mxu0 0.0
    %7025 = vmatpush1.msra.mxu0 0.0
    %7026 = vmatprep.subr.mxu0 0.0
    %7027 = vmatpush1.msra.mxu0 0.0
    %7028 = vmatprep.subr.mxu0 0.0
    %7029 = vmatpush1.msra.mxu0 0.0
    %7030 = vmatprep.mubr.f32.mxu0 0.0
    %7031 = vmatmul.mubr.f32.gmra.mrb[0].mxu0 %v6965
    %v7032 = vpop.f32.mrb[0].mxu0
    %v7033 = vadd.f32 0.0, %v7032
    %v7034 = vpop.f32.mrb[0].mxu0
    %v7035 = vadd.f32 0.0, %v7034
    %7036 = vdwg.mxu0
    %7037 = vmatprep.subr.mxu0 %v5911
    %7038 = vmatpush1.msra.mxu0 %v5910
    %7039 = vmatprep.subr.mxu0 %v5915
    %7040 = vmatpush1.msra.mxu0 %v5914
    %7041 = vmatprep.subr.mxu0 %v5919
    %7042 = vmatpush1.msra.mxu0 %v5918
    %7043 = vmatprep.subr.mxu0 %v5923
    %7044 = vmatpush1.msra.mxu0 %v5922
    %7045 = vmatprep.subr.mxu0 %v5927
    %7046 = vmatpush1.msra.mxu0 %v5926
    %7047 = vmatprep.subr.mxu0 %v5931
    %7048 = vmatpush1.msra.mxu0 %v5930
    %7049 = vmatprep.subr.mxu0 %v5935
    %7050 = vmatpush1.msra.mxu0 %v5934
    %7051 = vmatprep.subr.mxu0 %v5939
    %7052 = vmatpush1.msra.mxu0 %v5938
    %7053 = vmatprep.subr.mxu0 %v5943
    %7054 = vmatpush1.msra.mxu0 %v5942
    %7055 = vmatprep.subr.mxu0 %v5947
    %7056 = vmatpush1.msra.mxu0 %v5946
    %7057 = vmatprep.subr.mxu0 %v5951
    %7058 = vmatpush1.msra.mxu0 %v5950
    %7059 = vmatprep.subr.mxu0 %v5955
    %7060 = vmatpush1.msra.mxu0 %v5954
    %7061 = vmatprep.subr.mxu0 %v5959
    %7062 = vmatpush1.msra.mxu0 %v5958
    %7063 = vmatprep.subr.mxu0 %v5963
    %7064 = vmatpush1.msra.mxu0 %v5962
    %7065 = vmatprep.subr.mxu0 %v5967
    %7066 = vmatpush1.msra.mxu0 %v5966
    %7067 = vmatprep.subr.mxu0 %v5971
    %7068 = vmatpush1.msra.mxu0 %v5970
    %7069 = vmatprep.subr.mxu0 0.0
    %7070 = vmatpush1.msra.mxu0 0.0
    %7071 = vmatprep.subr.mxu0 0.0
    %7072 = vmatpush1.msra.mxu0 0.0
    %7073 = vmatprep.subr.mxu0 0.0
    %7074 = vmatpush1.msra.mxu0 0.0
    %7075 = vmatprep.subr.mxu0 0.0
    %7076 = vmatpush1.msra.mxu0 0.0
    %7077 = vmatprep.subr.mxu0 0.0
    %7078 = vmatpush1.msra.mxu0 0.0
    %7079 = vmatprep.subr.mxu0 0.0
    %7080 = vmatpush1.msra.mxu0 0.0
    %7081 = vmatprep.subr.mxu0 0.0
    %7082 = vmatpush1.msra.mxu0 0.0
    %7083 = vmatprep.subr.mxu0 0.0
    %7084 = vmatpush1.msra.mxu0 0.0
    %7085 = vmatprep.subr.mxu0 0.0
    %7086 = vmatpush1.msra.mxu0 0.0
    %7087 = vmatprep.subr.mxu0 0.0
    %7088 = vmatpush1.msra.mxu0 0.0
    %7089 = vmatprep.subr.mxu0 0.0
    %7090 = vmatpush1.msra.mxu0 0.0
    %7091 = vmatprep.subr.mxu0 0.0
    %7092 = vmatpush1.msra.mxu0 0.0
    %7093 = vmatprep.subr.mxu0 0.0
    %7094 = vmatpush1.msra.mxu0 0.0
    %7095 = vmatprep.subr.mxu0 0.0
    %7096 = vmatpush1.msra.mxu0 0.0
    %7097 = vmatprep.subr.mxu0 0.0
    %7098 = vmatpush1.msra.mxu0 0.0
    %7099 = vmatprep.subr.mxu0 0.0
    %7100 = vmatpush1.msra.mxu0 0.0
    %7101 = vmatprep.mubr.f32.mxu0 0.0
    %7102 = vmatmul.mubr.f32.gmra.mrb[0].mxu0 %v6965
    %v7103 = vpop.f32.mrb[0].mxu0
    %v7104 = vadd.f32 0.0, %v7103
    %v7105 = vpop.f32.mrb[0].mxu0
    %v7106 = vadd.f32 0.0, %v7105
    %7107 = vdwg.mxu0
    %v7108 = vadd.f32 %v6151, %v7033
    %v7109 = vadd.f32 %v6153, %v7035
    %v7110 = vadd.f32 %v6264, %v7104
    %v7111 = vadd.f32 %v6266, %v7106
    %v7112 = vxor.u32 %v7108, 2147483648
    %v7113 = vmul.f32 %v7112, 1.442695
    %v7114 = vpow.pop %v7113
    %v7115 = vadd.f32 %v7114, 1.0
    %v7116 = vrcp.pop %v7115
    %v7117 = vmul.f32 1.0, %v7116
    %v7118 = vxor.u32 %v7109, 2147483648
    %v7119 = vmul.f32 %v7118, 1.442695
    %v7120 = vpow.pop %v7119
    %v7121 = vadd.f32 %v7120, 1.0
    %v7122 = vrcp.pop %v7121
    %v7123 = vmul.f32 1.0, %v7122
    %v7124 = vtanh.pop %v7110
    %v7125 = vxor.u32 %v7111, 2147483648
    %v7126 = vmul.f32 %v7125, 1.442695
    %v7127 = vpow.pop %v7126
    %v7128 = vadd.f32 %v7127, 1.0
    %v7129 = vrcp.pop %v7128
    %v7130 = vmul.f32 1.0, %v7129
    %v7131 = vmul.f32 %v7123, %v6963
    %v7132 = vmul.f32 %v7117, %v7124
    %v7133 = vadd.f32 %v7131, %v7132
    %v7134 = vtanh.pop %v7133
    %v7135 = vmul.f32 %v7130, %v7134
    %7136 = vmatprep.subr.mxu0 %v5909
    %7137 = vmatpush1.msra.mxu0 %v5908
    %7138 = vmatprep.subr.mxu0 %v5913
    %7139 = vmatpush1.msra.mxu0 %v5912
    %7140 = vmatprep.subr.mxu0 %v5917
    %7141 = vmatpush1.msra.mxu0 %v5916
    %7142 = vmatprep.subr.mxu0 %v5921
    %7143 = vmatpush1.msra.mxu0 %v5920
    %7144 = vmatprep.subr.mxu0 %v5925
    %7145 = vmatpush1.msra.mxu0 %v5924
    %7146 = vmatprep.subr.mxu0 %v5929
    %7147 = vmatpush1.msra.mxu0 %v5928
    %7148 = vmatprep.subr.mxu0 %v5933
    %7149 = vmatpush1.msra.mxu0 %v5932
    %7150 = vmatprep.subr.mxu0 %v5937
    %7151 = vmatpush1.msra.mxu0 %v5936
    %7152 = vmatprep.subr.mxu0 %v5941
    %7153 = vmatpush1.msra.mxu0 %v5940
    %7154 = vmatprep.subr.mxu0 %v5945
    %7155 = vmatpush1.msra.mxu0 %v5944
    %7156 = vmatprep.subr.mxu0 %v5949
    %7157 = vmatpush1.msra.mxu0 %v5948
    %7158 = vmatprep.subr.mxu0 %v5953
    %7159 = vmatpush1.msra.mxu0 %v5952
    %7160 = vmatprep.subr.mxu0 %v5957
    %7161 = vmatpush1.msra.mxu0 %v5956
    %7162 = vmatprep.subr.mxu0 %v5961
    %7163 = vmatpush1.msra.mxu0 %v5960
    %7164 = vmatprep.subr.mxu0 %v5965
    %7165 = vmatpush1.msra.mxu0 %v5964
    %7166 = vmatprep.subr.mxu0 %v5969
    %7167 = vmatpush1.msra.mxu0 %v5968
    %7168 = vmatprep.subr.mxu0 0.0
    %7169 = vmatpush1.msra.mxu0 0.0
    %7170 = vmatprep.subr.mxu0 0.0
    %7171 = vmatpush1.msra.mxu0 0.0
    %7172 = vmatprep.subr.mxu0 0.0
    %7173 = vmatpush1.msra.mxu0 0.0
    %7174 = vmatprep.subr.mxu0 0.0
    %7175 = vmatpush1.msra.mxu0 0.0
    %7176 = vmatprep.subr.mxu0 0.0
    %7177 = vmatpush1.msra.mxu0 0.0
    %7178 = vmatprep.subr.mxu0 0.0
    %7179 = vmatpush1.msra.mxu0 0.0
    %7180 = vmatprep.subr.mxu0 0.0
    %7181 = vmatpush1.msra.mxu0 0.0
    %7182 = vmatprep.subr.mxu0 0.0
    %7183 = vmatpush1.msra.mxu0 0.0
    %7184 = vmatprep.subr.mxu0 0.0
    %7185 = vmatpush1.msra.mxu0 0.0
    %7186 = vmatprep.subr.mxu0 0.0
    %7187 = vmatpush1.msra.mxu0 0.0
    %7188 = vmatprep.subr.mxu0 0.0
    %7189 = vmatpush1.msra.mxu0 0.0
    %7190 = vmatprep.subr.mxu0 0.0
    %7191 = vmatpush1.msra.mxu0 0.0
    %7192 = vmatprep.subr.mxu0 0.0
    %7193 = vmatpush1.msra.mxu0 0.0
    %7194 = vmatprep.subr.mxu0 0.0
    %7195 = vmatpush1.msra.mxu0 0.0
    %7196 = vmatprep.subr.mxu0 0.0
    %7197 = vmatpush1.msra.mxu0 0.0
    %7198 = vmatprep.subr.mxu0 0.0
    %7199 = vmatpush1.msra.mxu0 0.0
    %7200 = vmatprep.mubr.f32.mxu0 0.0
    %7201 = vmatmul.mubr.f32.gmra.mrb[0].mxu0 %v7135
    %v7202 = vpop.f32.mrb[0].mxu0
    %v7203 = vadd.f32 0.0, %v7202
    %v7204 = vpop.f32.mrb[0].mxu0
    %v7205 = vadd.f32 0.0, %v7204
    %7206 = vdwg.mxu0
    %7207 = vmatprep.subr.mxu0 %v5911
    %7208 = vmatpush1.msra.mxu0 %v5910
    %7209 = vmatprep.subr.mxu0 %v5915
    %7210 = vmatpush1.msra.mxu0 %v5914
    %7211 = vmatprep.subr.mxu0 %v5919
    %7212 = vmatpush1.msra.mxu0 %v5918
    %7213 = vmatprep.subr.mxu0 %v5923
    %7214 = vmatpush1.msra.mxu0 %v5922
    %7215 = vmatprep.subr.mxu0 %v5927
    %7216 = vmatpush1.msra.mxu0 %v5926
    %7217 = vmatprep.subr.mxu0 %v5931
    %7218 = vmatpush1.msra.mxu0 %v5930
    %7219 = vmatprep.subr.mxu0 %v5935
    %7220 = vmatpush1.msra.mxu0 %v5934
    %7221 = vmatprep.subr.mxu0 %v5939
    %7222 = vmatpush1.msra.mxu0 %v5938
    %7223 = vmatprep.subr.mxu0 %v5943
    %7224 = vmatpush1.msra.mxu0 %v5942
    %7225 = vmatprep.subr.mxu0 %v5947
    %7226 = vmatpush1.msra.mxu0 %v5946
    %7227 = vmatprep.subr.mxu0 %v5951
    %7228 = vmatpush1.msra.mxu0 %v5950
    %7229 = vmatprep.subr.mxu0 %v5955
    %7230 = vmatpush1.msra.mxu0 %v5954
    %7231 = vmatprep.subr.mxu0 %v5959
    %7232 = vmatpush1.msra.mxu0 %v5958
    %7233 = vmatprep.subr.mxu0 %v5963
    %7234 = vmatpush1.msra.mxu0 %v5962
    %7235 = vmatprep.subr.mxu0 %v5967
    %7236 = vmatpush1.msra.mxu0 %v5966
    %7237 = vmatprep.subr.mxu0 %v5971
    %7238 = vmatpush1.msra.mxu0 %v5970
    %7239 = vmatprep.subr.mxu0 0.0
    %7240 = vmatpush1.msra.mxu0 0.0
    %7241 = vmatprep.subr.mxu0 0.0
    %7242 = vmatpush1.msra.mxu0 0.0
    %7243 = vmatprep.subr.mxu0 0.0
    %7244 = vmatpush1.msra.mxu0 0.0
    %7245 = vmatprep.subr.mxu0 0.0
    %7246 = vmatpush1.msra.mxu0 0.0
    %7247 = vmatprep.subr.mxu0 0.0
    %7248 = vmatpush1.msra.mxu0 0.0
    %7249 = vmatprep.subr.mxu0 0.0
    %7250 = vmatpush1.msra.mxu0 0.0
    %7251 = vmatprep.subr.mxu0 0.0
    %7252 = vmatpush1.msra.mxu0 0.0
    %7253 = vmatprep.subr.mxu0 0.0
    %7254 = vmatpush1.msra.mxu0 0.0
    %7255 = vmatprep.subr.mxu0 0.0
    %7256 = vmatpush1.msra.mxu0 0.0
    %7257 = vmatprep.subr.mxu0 0.0
    %7258 = vmatpush1.msra.mxu0 0.0
    %7259 = vmatprep.subr.mxu0 0.0
    %7260 = vmatpush1.msra.mxu0 0.0
    %7261 = vmatprep.subr.mxu0 0.0
    %7262 = vmatpush1.msra.mxu0 0.0
    %7263 = vmatprep.subr.mxu0 0.0
    %7264 = vmatpush1.msra.mxu0 0.0
    %7265 = vmatprep.subr.mxu0 0.0
    %7266 = vmatpush1.msra.mxu0 0.0
    %7267 = vmatprep.subr.mxu0 0.0
    %7268 = vmatpush1.msra.mxu0 0.0
    %7269 = vmatprep.subr.mxu0 0.0
    %7270 = vmatpush1.msra.mxu0 0.0
    %7271 = vmatprep.mubr.f32.mxu0 0.0
    %7272 = vmatmul.mubr.f32.gmra.mrb[0].mxu0 %v7135
    %v7273 = vpop.f32.mrb[0].mxu0
    %v7274 = vadd.f32 0.0, %v7273
    %v7275 = vpop.f32.mrb[0].mxu0
    %v7276 = vadd.f32 0.0, %v7275
    %7277 = vdwg.mxu0
    %v7278 = vadd.f32 %v6157, %v7203
    %v7279 = vadd.f32 %v6159, %v7205
    %v7280 = vadd.f32 %v6270, %v7274
    %v7281 = vadd.f32 %v6272, %v7276
    %v7282 = vxor.u32 %v7278, 2147483648
    %v7283 = vmul.f32 %v7282, 1.442695
    %v7284 = vpow.pop %v7283
    %v7285 = vadd.f32 %v7284, 1.0
    %v7286 = vrcp.pop %v7285
    %v7287 = vmul.f32 1.0, %v7286
    %v7288 = vxor.u32 %v7279, 2147483648
    %v7289 = vmul.f32 %v7288, 1.442695
    %v7290 = vpow.pop %v7289
    %v7291 = vadd.f32 %v7290, 1.0
    %v7292 = vrcp.pop %v7291
    %v7293 = vmul.f32 1.0, %v7292
    %v7294 = vtanh.pop %v7280
    %v7295 = vxor.u32 %v7281, 2147483648
    %v7296 = vmul.f32 %v7295, 1.442695
    %v7297 = vpow.pop %v7296
    %v7298 = vadd.f32 %v7297, 1.0
    %v7299 = vrcp.pop %v7298
    %v7300 = vmul.f32 1.0, %v7299
    %v7301 = vmul.f32 %v7293, %v7133
    %v7302 = vmul.f32 %v7287, %v7294
    %v7303 = vadd.f32 %v7301, %v7302
    %v7304 = vtanh.pop %v7303
    %v7305 = vmul.f32 %v7300, %v7304
    %7306 = vmatprep.subr.mxu0 %v5909
    %7307 = vmatpush1.msra.mxu0 %v5908
    %7308 = vmatprep.subr.mxu0 %v5913
    %7309 = vmatpush1.msra.mxu0 %v5912
    %7310 = vmatprep.subr.mxu0 %v5917
    %7311 = vmatpush1.msra.mxu0 %v5916
    %7312 = vmatprep.subr.mxu0 %v5921
    %7313 = vmatpush1.msra.mxu0 %v5920
    %7314 = vmatprep.subr.mxu0 %v5925
    %7315 = vmatpush1.msra.mxu0 %v5924
    %7316 = vmatprep.subr.mxu0 %v5929
    %7317 = vmatpush1.msra.mxu0 %v5928
    %7318 = vmatprep.subr.mxu0 %v5933
    %7319 = vmatpush1.msra.mxu0 %v5932
    %7320 = vmatprep.subr.mxu0 %v5937
    %7321 = vmatpush1.msra.mxu0 %v5936
    %7322 = vmatprep.subr.mxu0 %v5941
    %7323 = vmatpush1.msra.mxu0 %v5940
    %7324 = vmatprep.subr.mxu0 %v5945
    %7325 = vmatpush1.msra.mxu0 %v5944
    %7326 = vmatprep.subr.mxu0 %v5949
    %7327 = vmatpush1.msra.mxu0 %v5948
    %7328 = vmatprep.subr.mxu0 %v5953
    %7329 = vmatpush1.msra.mxu0 %v5952
    %7330 = vmatprep.subr.mxu0 %v5957
    %7331 = vmatpush1.msra.mxu0 %v5956
    %7332 = vmatprep.subr.mxu0 %v5961
    %7333 = vmatpush1.msra.mxu0 %v5960
    %7334 = vmatprep.subr.mxu0 %v5965
    %7335 = vmatpush1.msra.mxu0 %v5964
    %7336 = vmatprep.subr.mxu0 %v5969
    %7337 = vmatpush1.msra.mxu0 %v5968
    %7338 = vmatprep.subr.mxu0 0.0
    %7339 = vmatpush1.msra.mxu0 0.0
    %7340 = vmatprep.subr.mxu0 0.0
    %7341 = vmatpush1.msra.mxu0 0.0
    %7342 = vmatprep.subr.mxu0 0.0
    %7343 = vmatpush1.msra.mxu0 0.0
    %7344 = vmatprep.subr.mxu0 0.0
    %7345 = vmatpush1.msra.mxu0 0.0
    %7346 = vmatprep.subr.mxu0 0.0
    %7347 = vmatpush1.msra.mxu0 0.0
    %7348 = vmatprep.subr.mxu0 0.0
    %7349 = vmatpush1.msra.mxu0 0.0
    %7350 = vmatprep.subr.mxu0 0.0
    %7351 = vmatpush1.msra.mxu0 0.0
    %7352 = vmatprep.subr.mxu0 0.0
    %7353 = vmatpush1.msra.mxu0 0.0
    %7354 = vmatprep.subr.mxu0 0.0
    %7355 = vmatpush1.msra.mxu0 0.0
    %7356 = vmatprep.subr.mxu0 0.0
    %7357 = vmatpush1.msra.mxu0 0.0
    %7358 = vmatprep.subr.mxu0 0.0
    %7359 = vmatpush1.msra.mxu0 0.0
    %7360 = vmatprep.subr.mxu0 0.0
    %7361 = vmatpush1.msra.mxu0 0.0
    %7362 = vmatprep.subr.mxu0 0.0
    %7363 = vmatpush1.msra.mxu0 0.0
    %7364 = vmatprep.subr.mxu0 0.0
    %7365 = vmatpush1.msra.mxu0 0.0
    %7366 = vmatprep.subr.mxu0 0.0
    %7367 = vmatpush1.msra.mxu0 0.0
    %7368 = vmatprep.subr.mxu0 0.0
    %7369 = vmatpush1.msra.mxu0 0.0
    %7370 = vmatprep.mubr.f32.mxu0 0.0
    %7371 = vmatmul.mubr.f32.gmra.mrb[0].mxu0 %v7305
    %v7372 = vpop.f32.mrb[0].mxu0
    %v7373 = vadd.f32 0.0, %v7372
    %v7374 = vpop.f32.mrb[0].mxu0
    %v7375 = vadd.f32 0.0, %v7374
    %7376 = vdwg.mxu0
    %7377 = vmatprep.subr.mxu0 %v5911
    %7378 = vmatpush1.msra.mxu0 %v5910
    %7379 = vmatprep.subr.mxu0 %v5915
    %7380 = vmatpush1.msra.mxu0 %v5914
    %7381 = vmatprep.subr.mxu0 %v5919
    %7382 = vmatpush1.msra.mxu0 %v5918
    %7383 = vmatprep.subr.mxu0 %v5923
    %7384 = vmatpush1.msra.mxu0 %v5922
    %7385 = vmatprep.subr.mxu0 %v5927
    %7386 = vmatpush1.msra.mxu0 %v5926
    %7387 = vmatprep.subr.mxu0 %v5931
    %7388 = vmatpush1.msra.mxu0 %v5930
    %7389 = vmatprep.subr.mxu0 %v5935
    %7390 = vmatpush1.msra.mxu0 %v5934
    %7391 = vmatprep.subr.mxu0 %v5939
    %7392 = vmatpush1.msra.mxu0 %v5938
    %7393 = vmatprep.subr.mxu0 %v5943
    %7394 = vmatpush1.msra.mxu0 %v5942
    %7395 = vmatprep.subr.mxu0 %v5947
    %7396 = vmatpush1.msra.mxu0 %v5946
    %7397 = vmatprep.subr.mxu0 %v5951
    %7398 = vmatpush1.msra.mxu0 %v5950
    %7399 = vmatprep.subr.mxu0 %v5955
    %7400 = vmatpush1.msra.mxu0 %v5954
    %7401 = vmatprep.subr.mxu0 %v5959
    %7402 = vmatpush1.msra.mxu0 %v5958
    %7403 = vmatprep.subr.mxu0 %v5963
    %7404 = vmatpush1.msra.mxu0 %v5962
    %7405 = vmatprep.subr.mxu0 %v5967
    %7406 = vmatpush1.msra.mxu0 %v5966
    %7407 = vmatprep.subr.mxu0 %v5971
    %7408 = vmatpush1.msra.mxu0 %v5970
    %7409 = vmatprep.subr.mxu0 0.0
    %7410 = vmatpush1.msra.mxu0 0.0
    %7411 = vmatprep.subr.mxu0 0.0
    %7412 = vmatpush1.msra.mxu0 0.0
    %7413 = vmatprep.subr.mxu0 0.0
    %7414 = vmatpush1.msra.mxu0 0.0
    %7415 = vmatprep.subr.mxu0 0.0
    %7416 = vmatpush1.msra.mxu0 0.0
    %7417 = vmatprep.subr.mxu0 0.0
    %7418 = vmatpush1.msra.mxu0 0.0
    %7419 = vmatprep.subr.mxu0 0.0
    %7420 = vmatpush1.msra.mxu0 0.0
    %7421 = vmatprep.subr.mxu0 0.0
    %7422 = vmatpush1.msra.mxu0 0.0
    %7423 = vmatprep.subr.mxu0 0.0
    %7424 = vmatpush1.msra.mxu0 0.0
    %7425 = vmatprep.subr.mxu0 0.0
    %7426 = vmatpush1.msra.mxu0 0.0
    %7427 = vmatprep.subr.mxu0 0.0
    %7428 = vmatpush1.msra.mxu0 0.0
    %7429 = vmatprep.subr.mxu0 0.0
    %7430 = vmatpush1.msra.mxu0 0.0
    %7431 = vmatprep.subr.mxu0 0.0
    %7432 = vmatpush1.msra.mxu0 0.0
    %7433 = vmatprep.subr.mxu0 0.0
    %7434 = vmatpush1.msra.mxu0 0.0
    %7435 = vmatprep.subr.mxu0 0.0
    %7436 = vmatpush1.msra.mxu0 0.0
    %7437 = vmatprep.subr.mxu0 0.0
    %7438 = vmatpush1.msra.mxu0 0.0
    %7439 = vmatprep.subr.mxu0 0.0
    %7440 = vmatpush1.msra.mxu0 0.0
    %7441 = vmatprep.mubr.f32.mxu0 0.0
    %7442 = vmatmul.mubr.f32.gmra.mrb[0].mxu0 %v7305
    %v7443 = vpop.f32.mrb[0].mxu0
    %v7444 = vadd.f32 0.0, %v7443
    %v7445 = vpop.f32.mrb[0].mxu0
    %v7446 = vadd.f32 0.0, %v7445
    %7447 = vdwg.mxu0
    %v7448 = vadd.f32 %v6163, %v7373
    %v7449 = vadd.f32 %v6165, %v7375
    %v7450 = vadd.f32 %v6276, %v7444
    %v7451 = vadd.f32 %v6278, %v7446
    %v7452 = vxor.u32 %v7448, 2147483648
    %v7453 = vmul.f32 %v7452, 1.442695
    %v7454 = vpow.pop %v7453
    %v7455 = vadd.f32 %v7454, 1.0
    %v7456 = vrcp.pop %v7455
    %v7457 = vmul.f32 1.0, %v7456
    %v7458 = vxor.u32 %v7449, 2147483648
    %v7459 = vmul.f32 %v7458, 1.442695
    %v7460 = vpow.pop %v7459
    %v7461 = vadd.f32 %v7460, 1.0
    %v7462 = vrcp.pop %v7461
    %v7463 = vmul.f32 1.0, %v7462
    %v7464 = vtanh.pop %v7450
    %v7465 = vxor.u32 %v7451, 2147483648
    %v7466 = vmul.f32 %v7465, 1.442695
    %v7467 = vpow.pop %v7466
    %v7468 = vadd.f32 %v7467, 1.0
    %v7469 = vrcp.pop %v7468
    %v7470 = vmul.f32 1.0, %v7469
    %v7471 = vmul.f32 %v7463, %v7303
    %v7472 = vmul.f32 %v7457, %v7464
    %v7473 = vadd.f32 %v7471, %v7472
    %v7474 = vtanh.pop %v7473
    %v7475 = vmul.f32 %v7470, %v7474
    %7476 = vmatprep.subr.mxu0 %v5909
    %7477 = vmatpush1.msra.mxu0 %v5908
    %7478 = vmatprep.subr.mxu0 %v5913
    %7479 = vmatpush1.msra.mxu0 %v5912
    %7480 = vmatprep.subr.mxu0 %v5917
    %7481 = vmatpush1.msra.mxu0 %v5916
    %7482 = vmatprep.subr.mxu0 %v5921
    %7483 = vmatpush1.msra.mxu0 %v5920
    %7484 = vmatprep.subr.mxu0 %v5925
    %7485 = vmatpush1.msra.mxu0 %v5924
    %7486 = vmatprep.subr.mxu0 %v5929
    %7487 = vmatpush1.msra.mxu0 %v5928
    %7488 = vmatprep.subr.mxu0 %v5933
    %7489 = vmatpush1.msra.mxu0 %v5932
    %7490 = vmatprep.subr.mxu0 %v5937
    %7491 = vmatpush1.msra.mxu0 %v5936
    %7492 = vmatprep.subr.mxu0 %v5941
    %7493 = vmatpush1.msra.mxu0 %v5940
    %7494 = vmatprep.subr.mxu0 %v5945
    %7495 = vmatpush1.msra.mxu0 %v5944
    %7496 = vmatprep.subr.mxu0 %v5949
    %7497 = vmatpush1.msra.mxu0 %v5948
    %7498 = vmatprep.subr.mxu0 %v5953
    %7499 = vmatpush1.msra.mxu0 %v5952
    %7500 = vmatprep.subr.mxu0 %v5957
    %7501 = vmatpush1.msra.mxu0 %v5956
    %7502 = vmatprep.subr.mxu0 %v5961
    %7503 = vmatpush1.msra.mxu0 %v5960
    %7504 = vmatprep.subr.mxu0 %v5965
    %7505 = vmatpush1.msra.mxu0 %v5964
    %7506 = vmatprep.subr.mxu0 %v5969
    %7507 = vmatpush1.msra.mxu0 %v5968
    %7508 = vmatprep.subr.mxu0 0.0
    %7509 = vmatpush1.msra.mxu0 0.0
    %7510 = vmatprep.subr.mxu0 0.0
    %7511 = vmatpush1.msra.mxu0 0.0
    %7512 = vmatprep.subr.mxu0 0.0
    %7513 = vmatpush1.msra.mxu0 0.0
    %7514 = vmatprep.subr.mxu0 0.0
    %7515 = vmatpush1.msra.mxu0 0.0
    %7516 = vmatprep.subr.mxu0 0.0
    %7517 = vmatpush1.msra.mxu0 0.0
    %7518 = vmatprep.subr.mxu0 0.0
    %7519 = vmatpush1.msra.mxu0 0.0
    %7520 = vmatprep.subr.mxu0 0.0
    %7521 = vmatpush1.msra.mxu0 0.0
    %7522 = vmatprep.subr.mxu0 0.0
    %7523 = vmatpush1.msra.mxu0 0.0
    %7524 = vmatprep.subr.mxu0 0.0
    %7525 = vmatpush1.msra.mxu0 0.0
    %7526 = vmatprep.subr.mxu0 0.0
    %7527 = vmatpush1.msra.mxu0 0.0
    %7528 = vmatprep.subr.mxu0 0.0
    %7529 = vmatpush1.msra.mxu0 0.0
    %7530 = vmatprep.subr.mxu0 0.0
    %7531 = vmatpush1.msra.mxu0 0.0
    %7532 = vmatprep.subr.mxu0 0.0
    %7533 = vmatpush1.msra.mxu0 0.0
    %7534 = vmatprep.subr.mxu0 0.0
    %7535 = vmatpush1.msra.mxu0 0.0
    %7536 = vmatprep.subr.mxu0 0.0
    %7537 = vmatpush1.msra.mxu0 0.0
    %7538 = vmatprep.subr.mxu0 0.0
    %7539 = vmatpush1.msra.mxu0 0.0
    %7540 = vmatprep.mubr.f32.mxu0 0.0
    %7541 = vmatmul.mubr.f32.gmra.mrb[0].mxu0 %v7475
    %v7542 = vpop.f32.mrb[0].mxu0
    %v7543 = vadd.f32 0.0, %v7542
    %v7544 = vpop.f32.mrb[0].mxu0
    %v7545 = vadd.f32 0.0, %v7544
    %7546 = vdwg.mxu0
    %7547 = vmatprep.subr.mxu0 %v5911
    %7548 = vmatpush1.msra.mxu0 %v5910
    %7549 = vmatprep.subr.mxu0 %v5915
    %7550 = vmatpush1.msra.mxu0 %v5914
    %7551 = vmatprep.subr.mxu0 %v5919
    %7552 = vmatpush1.msra.mxu0 %v5918
    %7553 = vmatprep.subr.mxu0 %v5923
    %7554 = vmatpush1.msra.mxu0 %v5922
    %7555 = vmatprep.subr.mxu0 %v5927
    %7556 = vmatpush1.msra.mxu0 %v5926
    %7557 = vmatprep.subr.mxu0 %v5931
    %7558 = vmatpush1.msra.mxu0 %v5930
    %7559 = vmatprep.subr.mxu0 %v5935
    %7560 = vmatpush1.msra.mxu0 %v5934
    %7561 = vmatprep.subr.mxu0 %v5939
    %7562 = vmatpush1.msra.mxu0 %v5938
    %7563 = vmatprep.subr.mxu0 %v5943
    %7564 = vmatpush1.msra.mxu0 %v5942
    %7565 = vmatprep.subr.mxu0 %v5947
    %7566 = vmatpush1.msra.mxu0 %v5946
    %7567 = vmatprep.subr.mxu0 %v5951
    %7568 = vmatpush1.msra.mxu0 %v5950
    %7569 = vmatprep.subr.mxu0 %v5955
    %7570 = vmatpush1.msra.mxu0 %v5954
    %7571 = vmatprep.subr.mxu0 %v5959
    %7572 = vmatpush1.msra.mxu0 %v5958
    %7573 = vmatprep.subr.mxu0 %v5963
    %7574 = vmatpush1.msra.mxu0 %v5962
    %7575 = vmatprep.subr.mxu0 %v5967
    %7576 = vmatpush1.msra.mxu0 %v5966
    %7577 = vmatprep.subr.mxu0 %v5971
    %7578 = vmatpush1.msra.mxu0 %v5970
    %7579 = vmatprep.subr.mxu0 0.0
    %7580 = vmatpush1.msra.mxu0 0.0
    %7581 = vmatprep.subr.mxu0 0.0
    %7582 = vmatpush1.msra.mxu0 0.0
    %7583 = vmatprep.subr.mxu0 0.0
    %7584 = vmatpush1.msra.mxu0 0.0
    %7585 = vmatprep.subr.mxu0 0.0
    %7586 = vmatpush1.msra.mxu0 0.0
    %7587 = vmatprep.subr.mxu0 0.0
    %7588 = vmatpush1.msra.mxu0 0.0
    %7589 = vmatprep.subr.mxu0 0.0
    %7590 = vmatpush1.msra.mxu0 0.0
    %7591 = vmatprep.subr.mxu0 0.0
    %7592 = vmatpush1.msra.mxu0 0.0
    %7593 = vmatprep.subr.mxu0 0.0
    %7594 = vmatpush1.msra.mxu0 0.0
    %7595 = vmatprep.subr.mxu0 0.0
    %7596 = vmatpush1.msra.mxu0 0.0
    %7597 = vmatprep.subr.mxu0 0.0
    %7598 = vmatpush1.msra.mxu0 0.0
    %7599 = vmatprep.subr.mxu0 0.0
    %7600 = vmatpush1.msra.mxu0 0.0
    %7601 = vmatprep.subr.mxu0 0.0
    %7602 = vmatpush1.msra.mxu0 0.0
    %7603 = vmatprep.subr.mxu0 0.0
    %7604 = vmatpush1.msra.mxu0 0.0
    %7605 = vmatprep.subr.mxu0 0.0
    %7606 = vmatpush1.msra.mxu0 0.0
    %7607 = vmatprep.subr.mxu0 0.0
    %7608 = vmatpush1.msra.mxu0 0.0
    %7609 = vmatprep.subr.mxu0 0.0
    %7610 = vmatpush1.msra.mxu0 0.0
    %7611 = vmatprep.mubr.f32.mxu0 0.0
    %7612 = vmatmul.mubr.f32.gmra.mrb[0].mxu0 %v7475
    %v7613 = vpop.f32.mrb[0].mxu0
    %v7614 = vadd.f32 0.0, %v7613
    %v7615 = vpop.f32.mrb[0].mxu0
    %v7616 = vadd.f32 0.0, %v7615
    %7617 = vdwg.mxu0
    %v7618 = vadd.f32 %v6169, %v7543
    %v7619 = vadd.f32 %v6171, %v7545
    %v7620 = vadd.f32 %v6282, %v7614
    %v7621 = vadd.f32 %v6284, %v7616
    %v7622 = vxor.u32 %v7618, 2147483648
    %v7623 = vmul.f32 %v7622, 1.442695
    %v7624 = vpow.pop %v7623
    %v7625 = vadd.f32 %v7624, 1.0
    %v7626 = vrcp.pop %v7625
    %v7627 = vmul.f32 1.0, %v7626
    %v7628 = vxor.u32 %v7619, 2147483648
    %v7629 = vmul.f32 %v7628, 1.442695
    %v7630 = vpow.pop %v7629
    %v7631 = vadd.f32 %v7630, 1.0
    %v7632 = vrcp.pop %v7631
    %v7633 = vmul.f32 1.0, %v7632
    %v7634 = vtanh.pop %v7620
    %v7635 = vxor.u32 %v7621, 2147483648
    %v7636 = vmul.f32 %v7635, 1.442695
    %v7637 = vpow.pop %v7636
    %v7638 = vadd.f32 %v7637, 1.0
    %v7639 = vrcp.pop %v7638
    %v7640 = vmul.f32 1.0, %v7639
    %v7641 = vmul.f32 %v7633, %v7473
    %v7642 = vmul.f32 %v7627, %v7634
    %v7643 = vadd.f32 %v7641, %v7642
    %v7644 = vtanh.pop %v7643
    %v7645 = vmul.f32 %v7640, %v7644
    %v7646 = vld [vmem:[%s6] sm:$0xff]
    %v7647 = vld [vmem:[%s6 + $0x8] sm:$0xff]
    %v7648 = vld [vmem:[%s6 + $0x10] sm:$0xff]
    %v7649 = vld [vmem:[%s6 + $0x18] sm:$0xff]
    %v7650 = vld [vmem:[%s6 + $0x20] sm:$0xff]
    %v7651 = vld [vmem:[%s6 + $0x28] sm:$0xff]
    %v7652 = vld [vmem:[%s6 + $0x30] sm:$0xff]
    %v7653 = vld [vmem:[%s6 + $0x38] sm:$0xff]
    %v7654 = vld [vmem:[%s6 + $0x40] sm:$0xff]
    %v7655 = vld [vmem:[%s6 + $0x48] sm:$0xff]
    %v7656 = vld [vmem:[%s6 + $0x50] sm:$0xff]
    %v7657 = vld [vmem:[%s6 + $0x58] sm:$0xff]
    %v7658 = vld [vmem:[%s6 + $0x60] sm:$0xff]
    %v7659 = vld [vmem:[%s6 + $0x68] sm:$0xff]
    %v7660 = vld [vmem:[%s6 + $0x70] sm:$0xff]
    %v7661 = vld [vmem:[%s6 + $0x78] sm:$0xff]
    %v7662 = vld [vmem:[#allocation4 + $0x4] sm:$0x1]
    %v7663 = vlaneseq
    %v7664 = vshrl.u32 %v7663, 7
    %v7665 = vsub.s32 0, %v7664
    %v7666 = vrot.slane %v7662, %v7665
    %7667 = vmatprep.subr.mxu0 0.0
    %7668 = vmatpush1.msra.mxu0 %v7646
    %7669 = vmatprep.subr.mxu0 0.0
    %7670 = vmatpush1.msra.mxu0 %v7647
    %7671 = vmatprep.subr.mxu0 0.0
    %7672 = vmatpush1.msra.mxu0 %v7648
    %7673 = vmatprep.subr.mxu0 0.0
    %7674 = vmatpush1.msra.mxu0 %v7649
    %7675 = vmatprep.subr.mxu0 0.0
    %7676 = vmatpush1.msra.mxu0 %v7650
    %7677 = vmatprep.subr.mxu0 0.0
    %7678 = vmatpush1.msra.mxu0 %v7651
    %7679 = vmatprep.subr.mxu0 0.0
    %7680 = vmatpush1.msra.mxu0 %v7652
    %7681 = vmatprep.subr.mxu0 0.0
    %7682 = vmatpush1.msra.mxu0 %v7653
    %7683 = vmatprep.subr.mxu0 0.0
    %7684 = vmatpush1.msra.mxu0 %v7654
    %7685 = vmatprep.subr.mxu0 0.0
    %7686 = vmatpush1.msra.mxu0 %v7655
    %7687 = vmatprep.subr.mxu0 0.0
    %7688 = vmatpush1.msra.mxu0 %v7656
    %7689 = vmatprep.subr.mxu0 0.0
    %7690 = vmatpush1.msra.mxu0 %v7657
    %7691 = vmatprep.subr.mxu0 0.0
    %7692 = vmatpush1.msra.mxu0 %v7658
    %7693 = vmatprep.subr.mxu0 0.0
    %7694 = vmatpush1.msra.mxu0 %v7659
    %7695 = vmatprep.subr.mxu0 0.0
    %7696 = vmatpush1.msra.mxu0 %v7660
    %7697 = vmatprep.subr.mxu0 0.0
    %7698 = vmatpush1.msra.mxu0 %v7661
    %7699 = vmatprep.subr.mxu0 0.0
    %7700 = vmatpush1.msra.mxu0 0.0
    %7701 = vmatprep.subr.mxu0 0.0
    %7702 = vmatpush1.msra.mxu0 0.0
    %7703 = vmatprep.subr.mxu0 0.0
    %7704 = vmatpush1.msra.mxu0 0.0
    %7705 = vmatprep.subr.mxu0 0.0
    %7706 = vmatpush1.msra.mxu0 0.0
    %7707 = vmatprep.subr.mxu0 0.0
    %7708 = vmatpush1.msra.mxu0 0.0
    %7709 = vmatprep.subr.mxu0 0.0
    %7710 = vmatpush1.msra.mxu0 0.0
    %7711 = vmatprep.subr.mxu0 0.0
    %7712 = vmatpush1.msra.mxu0 0.0
    %7713 = vmatprep.subr.mxu0 0.0
    %7714 = vmatpush1.msra.mxu0 0.0
    %7715 = vmatprep.subr.mxu0 0.0
    %7716 = vmatpush1.msra.mxu0 0.0
    %7717 = vmatprep.subr.mxu0 0.0
    %7718 = vmatpush1.msra.mxu0 0.0
    %7719 = vmatprep.subr.mxu0 0.0
    %7720 = vmatpush1.msra.mxu0 0.0
    %7721 = vmatprep.subr.mxu0 0.0
    %7722 = vmatpush1.msra.mxu0 0.0
    %7723 = vmatprep.subr.mxu0 0.0
    %7724 = vmatpush1.msra.mxu0 0.0
    %7725 = vmatprep.subr.mxu0 0.0
    %7726 = vmatpush1.msra.mxu0 0.0
    %7727 = vmatprep.subr.mxu0 0.0
    %7728 = vmatpush1.msra.mxu0 0.0
    %7729 = vmatprep.subr.mxu0 0.0
    %7730 = vmatpush1.msra.mxu0 0.0
    %7731 = vmatprep.mubr.f32.mxu0 0.0
    %7732 = vmatmul.mubr.f32.gmra.mrb[0].mxu0 %v7645
    %v7733 = vpop.f32.mrb[0].mxu0
    %v7734 = vadd.f32 %v7666, %v7733
    %v7735 = vpop.f32.mrb[0].mxu0
    %7736 = vdwg.mxu0
    %v7737 = vmax.f32 %v7734, 0.0
    %s7738 = scalar_lea.vmem [#allocation2], 128
    %v7739 = vld [vmem:[%s7738] sm:$0xff]
    %v7740 = vld [vmem:[%s7738 + $0x8] sm:$0xff]
    %v7741 = vld [vmem:[%s7738 + $0x10] sm:$0xff]
    %v7742 = vld [vmem:[%s7738 + $0x18] sm:$0xff]
    %v7743 = vld [vmem:[#allocation4 + $0x5] sm:$0x1]
    %v7744 = vlaneseq
    %v7745 = vshrl.u32 %v7744, 7
    %v7746 = vsub.s32 0, %v7745
    %v7747 = vrot.slane %v7743, %v7746
    %v7749 = vsel %vm138, %v7737, 0
    %7751 = vmatprep.subr.mxu0 0.0
    %7752 = vmatpush1.msra.mxu0 %v7739
    %7753 = vmatprep.subr.mxu0 0.0
    %7754 = vmatpush1.msra.mxu0 %v7740
    %7755 = vmatprep.subr.mxu0 0.0
    %7756 = vmatpush1.msra.mxu0 %v7741
    %7757 = vmatprep.subr.mxu0 0.0
    %7758 = vmatpush1.msra.mxu0 %v7742
    %7759 = vmatprep.subr.mxu0 0.0
    %7760 = vmatpush1.msra.mxu0 0.0
    %7761 = vmatprep.subr.mxu0 0.0
    %7762 = vmatpush1.msra.mxu0 0.0
    %7763 = vmatprep.subr.mxu0 0.0
    %7764 = vmatpush1.msra.mxu0 0.0
    %7765 = vmatprep.subr.mxu0 0.0
    %7766 = vmatpush1.msra.mxu0 0.0
    %7767 = vmatprep.subr.mxu0 0.0
    %7768 = vmatpush1.msra.mxu0 0.0
    %7769 = vmatprep.subr.mxu0 0.0
    %7770 = vmatpush1.msra.mxu0 0.0
    %7771 = vmatprep.subr.mxu0 0.0
    %7772 = vmatpush1.msra.mxu0 0.0
    %7773 = vmatprep.subr.mxu0 0.0
    %7774 = vmatpush1.msra.mxu0 0.0
    %7775 = vmatprep.subr.mxu0 0.0
    %7776 = vmatpush1.msra.mxu0 0.0
    %7777 = vmatprep.subr.mxu0 0.0
    %7778 = vmatpush1.msra.mxu0 0.0
    %7779 = vmatprep.subr.mxu0 0.0
    %7780 = vmatpush1.msra.mxu0 0.0
    %7781 = vmatprep.subr.mxu0 0.0
    %7782 = vmatpush1.msra.mxu0 0.0
    %7783 = vmatprep.subr.mxu0 0.0
    %7784 = vmatpush1.msra.mxu0 0.0
    %7785 = vmatprep.subr.mxu0 0.0
    %7786 = vmatpush1.msra.mxu0 0.0
    %7787 = vmatprep.subr.mxu0 0.0
    %7788 = vmatpush1.msra.mxu0 0.0
    %7789 = vmatprep.subr.mxu0 0.0
    %7790 = vmatpush1.msra.mxu0 0.0
    %7791 = vmatprep.subr.mxu0 0.0
    %7792 = vmatpush1.msra.mxu0 0.0
    %7793 = vmatprep.subr.mxu0 0.0
    %7794 = vmatpush1.msra.mxu0 0.0
    %7795 = vmatprep.subr.mxu0 0.0
    %7796 = vmatpush1.msra.mxu0 0.0
    %7797 = vmatprep.subr.mxu0 0.0
    %7798 = vmatpush1.msra.mxu0 0.0
    %7799 = vmatprep.subr.mxu0 0.0
    %7800 = vmatpush1.msra.mxu0 0.0
    %7801 = vmatprep.subr.mxu0 0.0
    %7802 = vmatpush1.msra.mxu0 0.0
    %7803 = vmatprep.subr.mxu0 0.0
    %7804 = vmatpush1.msra.mxu0 0.0
    %7805 = vmatprep.subr.mxu0 0.0
    %7806 = vmatpush1.msra.mxu0 0.0
    %7807 = vmatprep.subr.mxu0 0.0
    %7808 = vmatpush1.msra.mxu0 0.0
    %7809 = vmatprep.subr.mxu0 0.0
    %7810 = vmatpush1.msra.mxu0 0.0
    %7811 = vmatprep.subr.mxu0 0.0
    %7812 = vmatpush1.msra.mxu0 0.0
    %7813 = vmatprep.subr.mxu0 0.0
    %7814 = vmatpush1.msra.mxu0 0.0
    %7815 = vmatprep.mubr.f32.mxu0 0.0
    %7816 = vmatmul.mubr.f32.gmra.mrb[0].mxu0 %v7749
    %v7817 = vpop.f32.mrb[0].mxu0
    %v7818 = vadd.f32 %v7747, %v7817
    %v7819 = vpop.f32.mrb[0].mxu0
    %7820 = vdwg.mxu0
    %v7821 = vmax.f32 %v7818, 0.0
    %s7822 = scalar_lea.vmem [#allocation2], 160
    %v7823 = vld [vmem:[%s7822] sm:$0xff]
    %v7824 = vld [vmem:[%s7822 + $0x8] sm:$0xff]
    %v7825 = vld [vmem:[%s7822 + $0x10] sm:$0xff]
    %v7826 = vld [vmem:[%s7822 + $0x18] sm:$0xff]
    %v7827 = vld [vmem:[#allocation4 + $0x6] sm:$0x1]
    %v7828 = vlaneseq
    %v7829 = vshrl.u32 %v7828, 7
    %v7830 = vsub.s32 0, %v7829
    %v7831 = vrot.slane %v7827, %v7830
    %v7833 = vsel %vm138, %v7821, 0
    %7835 = vmatprep.subr.mxu0 0.0
    %7836 = vmatpush1.msra.mxu0 %v7823
    %7837 = vmatprep.subr.mxu0 0.0
    %7838 = vmatpush1.msra.mxu0 %v7824
    %7839 = vmatprep.subr.mxu0 0.0
    %7840 = vmatpush1.msra.mxu0 %v7825
    %7841 = vmatprep.subr.mxu0 0.0
    %7842 = vmatpush1.msra.mxu0 %v7826
    %7843 = vmatprep.subr.mxu0 0.0
    %7844 = vmatpush1.msra.mxu0 0.0
    %7845 = vmatprep.subr.mxu0 0.0
    %7846 = vmatpush1.msra.mxu0 0.0
    %7847 = vmatprep.subr.mxu0 0.0
    %7848 = vmatpush1.msra.mxu0 0.0
    %7849 = vmatprep.subr.mxu0 0.0
    %7850 = vmatpush1.msra.mxu0 0.0
    %7851 = vmatprep.subr.mxu0 0.0
    %7852 = vmatpush1.msra.mxu0 0.0
    %7853 = vmatprep.subr.mxu0 0.0
    %7854 = vmatpush1.msra.mxu0 0.0
    %7855 = vmatprep.subr.mxu0 0.0
    %7856 = vmatpush1.msra.mxu0 0.0
    %7857 = vmatprep.subr.mxu0 0.0
    %7858 = vmatpush1.msra.mxu0 0.0
    %7859 = vmatprep.subr.mxu0 0.0
    %7860 = vmatpush1.msra.mxu0 0.0
    %7861 = vmatprep.subr.mxu0 0.0
    %7862 = vmatpush1.msra.mxu0 0.0
    %7863 = vmatprep.subr.mxu0 0.0
    %7864 = vmatpush1.msra.mxu0 0.0
    %7865 = vmatprep.subr.mxu0 0.0
    %7866 = vmatpush1.msra.mxu0 0.0
    %7867 = vmatprep.subr.mxu0 0.0
    %7868 = vmatpush1.msra.mxu0 0.0
    %7869 = vmatprep.subr.mxu0 0.0
    %7870 = vmatpush1.msra.mxu0 0.0
    %7871 = vmatprep.subr.mxu0 0.0
    %7872 = vmatpush1.msra.mxu0 0.0
    %7873 = vmatprep.subr.mxu0 0.0
    %7874 = vmatpush1.msra.mxu0 0.0
    %7875 = vmatprep.subr.mxu0 0.0
    %7876 = vmatpush1.msra.mxu0 0.0
    %7877 = vmatprep.subr.mxu0 0.0
    %7878 = vmatpush1.msra.mxu0 0.0
    %7879 = vmatprep.subr.mxu0 0.0
    %7880 = vmatpush1.msra.mxu0 0.0
    %7881 = vmatprep.subr.mxu0 0.0
    %7882 = vmatpush1.msra.mxu0 0.0
    %7883 = vmatprep.subr.mxu0 0.0
    %7884 = vmatpush1.msra.mxu0 0.0
    %7885 = vmatprep.subr.mxu0 0.0
    %7886 = vmatpush1.msra.mxu0 0.0
    %7887 = vmatprep.subr.mxu0 0.0
    %7888 = vmatpush1.msra.mxu0 0.0
    %7889 = vmatprep.subr.mxu0 0.0
    %7890 = vmatpush1.msra.mxu0 0.0
    %7891 = vmatprep.subr.mxu0 0.0
    %7892 = vmatpush1.msra.mxu0 0.0
    %7893 = vmatprep.subr.mxu0 0.0
    %7894 = vmatpush1.msra.mxu0 0.0
    %7895 = vmatprep.subr.mxu0 0.0
    %7896 = vmatpush1.msra.mxu0 0.0
    %7897 = vmatprep.subr.mxu0 0.0
    %7898 = vmatpush1.msra.mxu0 0.0
    %7899 = vmatprep.mubr.f32.mxu0 0.0
    %7900 = vmatmul.mubr.f32.gmra.mrb[0].mxu0 %v7833
    %v7901 = vpop.f32.mrb[0].mxu0
    %v7902 = vadd.f32 %v7831, %v7901
    %v7903 = vpop.f32.mrb[0].mxu0
    %7904 = vdwg.mxu0
    %v7905 = vmax.f32 %v7902, 0.0
    %v7906 = vld [vmem:[#allocation10] sm:$0xff]
    %v7907 = vld [vmem:[#allocation10 + $0x8] sm:$0xff]
    %v7908 = vld [vmem:[#allocation10 + $0x10] sm:$0xff]
    %v7909 = vld [vmem:[#allocation10 + $0x18] sm:$0xff]
    %v7910 = vld [vmem:[#allocation12] sm:$0x1]
    %v7912 = vlaneseq
    %v7913 = vshrl.u32 %v7912, 7
    %v7914 = vsub.s32 0, %v7913
    %v7915 = vrot.slane %v7910, %v7914
    %v7918 = vsel %vm138, %v7905, 0
    %7920 = vmatprep.subr.mxu0 0.0
    %7921 = vmatpush1.msra.mxu0 %v7906
    %7922 = vmatprep.subr.mxu0 0.0
    %7923 = vmatpush1.msra.mxu0 %v7907
    %7924 = vmatprep.subr.mxu0 0.0
    %7925 = vmatpush1.msra.mxu0 %v7908
    %7926 = vmatprep.subr.mxu0 0.0
    %7927 = vmatpush1.msra.mxu0 %v7909
    %7928 = vmatprep.subr.mxu0 0.0
    %7929 = vmatpush1.msra.mxu0 0.0
    %7930 = vmatprep.subr.mxu0 0.0
    %7931 = vmatpush1.msra.mxu0 0.0
    %7932 = vmatprep.subr.mxu0 0.0
    %7933 = vmatpush1.msra.mxu0 0.0
    %7934 = vmatprep.subr.mxu0 0.0
    %7935 = vmatpush1.msra.mxu0 0.0
    %7936 = vmatprep.subr.mxu0 0.0
    %7937 = vmatpush1.msra.mxu0 0.0
    %7938 = vmatprep.subr.mxu0 0.0
    %7939 = vmatpush1.msra.mxu0 0.0
    %7940 = vmatprep.subr.mxu0 0.0
    %7941 = vmatpush1.msra.mxu0 0.0
    %7942 = vmatprep.subr.mxu0 0.0
    %7943 = vmatpush1.msra.mxu0 0.0
    %7944 = vmatprep.subr.mxu0 0.0
    %7945 = vmatpush1.msra.mxu0 0.0
    %7946 = vmatprep.subr.mxu0 0.0
    %7947 = vmatpush1.msra.mxu0 0.0
    %7948 = vmatprep.subr.mxu0 0.0
    %7949 = vmatpush1.msra.mxu0 0.0
    %7950 = vmatprep.subr.mxu0 0.0
    %7951 = vmatpush1.msra.mxu0 0.0
    %7952 = vmatprep.subr.mxu0 0.0
    %7953 = vmatpush1.msra.mxu0 0.0
    %7954 = vmatprep.subr.mxu0 0.0
    %7955 = vmatpush1.msra.mxu0 0.0
    %7956 = vmatprep.subr.mxu0 0.0
    %7957 = vmatpush1.msra.mxu0 0.0
    %7958 = vmatprep.subr.mxu0 0.0
    %7959 = vmatpush1.msra.mxu0 0.0
    %7960 = vmatprep.subr.mxu0 0.0
    %7961 = vmatpush1.msra.mxu0 0.0
    %7962 = vmatprep.subr.mxu0 0.0
    %7963 = vmatpush1.msra.mxu0 0.0
    %7964 = vmatprep.subr.mxu0 0.0
    %7965 = vmatpush1.msra.mxu0 0.0
    %7966 = vmatprep.subr.mxu0 0.0
    %7967 = vmatpush1.msra.mxu0 0.0
    %7968 = vmatprep.subr.mxu0 0.0
    %7969 = vmatpush1.msra.mxu0 0.0
    %7970 = vmatprep.subr.mxu0 0.0
    %7971 = vmatpush1.msra.mxu0 0.0
    %7972 = vmatprep.subr.mxu0 0.0
    %7973 = vmatpush1.msra.mxu0 0.0
    %7974 = vmatprep.subr.mxu0 0.0
    %7975 = vmatpush1.msra.mxu0 0.0
    %7976 = vmatprep.subr.mxu0 0.0
    %7977 = vmatpush1.msra.mxu0 0.0
    %7978 = vmatprep.subr.mxu0 0.0
    %7979 = vmatpush1.msra.mxu0 0.0
    %7980 = vmatprep.subr.mxu0 0.0
    %7981 = vmatpush1.msra.mxu0 0.0
    %7982 = vmatprep.subr.mxu0 0.0
    %7983 = vmatpush1.msra.mxu0 0.0
    %7984 = vmatprep.mubr.f32.mxu0 0.0
    %7985 = vmatmul.mubr.f32.gmra.mrb[0].mxu0 %v7918
    %v7986 = vpop.f32.mrb[0].mxu0
    %v7987 = vadd.f32 %v7915, %v7986
    %v7988 = vpop.f32.mrb[0].mxu0
    %7989 = vdwg.mxu0
    %7990 = vst [vmem:[%s9] sm:$0xff] %v7987
    // Predicated region
    $region66: #{jihyeon_lstm_classifier.1} parent=1 // pred_check
      _
    $region67: #{jihyeon_lstm_classifier.1} parent=1 // pred_check_branch
      %7992 = sbr.rel (0) target = $region69
    $region68: #{jihyeon_lstm_classifier.1} parent=1 // pred_region
      _
    $region69: #{jihyeon_lstm_classifier.1} parent=1 // pred_fallthru
      _
    // Predicated region
    $region70: #{jihyeon_lstm_classifier.1} parent=1 // pred_check
      _
    $region71: #{jihyeon_lstm_classifier.1} parent=1 // pred_check_branch
      %7994 = sbr.rel (0) target = $region73
    $region72: #{jihyeon_lstm_classifier.1} parent=1 // pred_region
      _
    $region73: #{jihyeon_lstm_classifier.1} parent=1 // pred_fallthru
      _
    %7995 = vsyncpa [#allocation3], 1
    %7996 = vsyncpa [#allocation5], 1
    %7997 = vsyncpa [#allocation8], 1
    %7998 = vsyncpa [#allocation11], 1

</llo_original>
